<compile_context>
chip_gen: v6e
topology: v6e:2x2x1
jax: 0.10.0
libtpu: 0.0.40
codegen_flags: <defaults>
</compile_context>

<pallas_src>
import math

import jax
import jax.numpy as jnp
from jax import lax
from jax.experimental import pallas as pl
from jax.experimental.pallas import tpu as pltpu


_SUBLANE_BF16 = 16   # bf16 sublane packing granule (f32 is 8; 16 covers both)
_LANE = 128          # lane width


def _round_up(x, m):
    return ((x + m - 1) // m) * m


def _pick_vmem_limit(need_bytes):
    """Size- and generation-aware VMEM limit (never below what we need)."""
    try:
        cap = int(getattr(pltpu.get_tpu_info(), "vmem_capacity_bytes", 64 << 20))
    except Exception:
        cap = 64 << 20                      # conservative (v7x per-TC)
    limit = max(2 * need_bytes + (4 << 20), 16 << 20)
    limit = min(limit, (cap * 3) // 4)      # leave headroom for compiler temps
    limit = max(limit, need_bytes + (2 << 20))
    return int(limit)


# ---------------------------------------------------------------------------
# Fused Pallas kernel (all layers + both heads, invoked once, no grid)
# ---------------------------------------------------------------------------

def _make_fused_kernel(n_layers, T, Bp, Pp):
    def kernel(*refs):
        # ---- unpack refs: inputs..., outputs..., scratch... ----
        x_ref, h0_ref, c0_ref = refs[0:3]
        lstm_refs = refs[3:3 + 3 * n_layers]
        (w1_ref, b1_ref, w2p_ref, b2p_ref,
         w2a_ref, b2a_ref) = refs[3 + 3 * n_layers: 9 + 3 * n_layers]
        pred_ref, ana_ref, lat_ref = refs[9 + 3 * n_layers: 12 + 3 * n_layers]
        seq_scr, gx_scr = refs[12 + 3 * n_layers:]

        Hp = c0_ref.shape[-1]            # padded hidden width (multiple of 128)
        bf16 = jnp.bfloat16

        h = None
        for l in range(n_layers):        # layers unrolled at trace time
            wx_ref, wh_ref, b_ref = lstm_refs[3 * l: 3 * l + 3]

            # Layer input sequence: original x (bf16) for layer 0, previous
            # layer's hidden sequence (bf16 VMEM scratch, never HBM) otherwise.
            xin = x_ref[...] if l == 0 else seq_scr[...]      # (T*Bp, In) bf16

            # Hoisted input projection: one big bf16 MXU matmul for all T
            # steps, f32 accumulation, bias added in f32.
            gx_scr[...] = (jnp.dot(xin, wx_ref[...],
                                   preferred_element_type=jnp.float32)
                           + b_ref[...])                       # (T*Bp, 4Hp) f32

            h = h0_ref[l]                                      # (Bp, Hp) f32
            c = c0_ref[l]                                      # (Bp, Hp) f32
            last_layer = (l == n_layers - 1)

            def step(t, carry, wh_ref=wh_ref, last_layer=last_layer):
                h, c = carry
                off = pl.multiple_of(t * Bp, Bp)               # sublane-aligned
                # TODO(synk): pin W_hh in MXU weight/staging registers across
                # the T loop (matmul_push_rhs once, matmul_acc_lhs per step).
                g = (gx_scr[pl.ds(off, Bp), :]
                     + jnp.dot(h.astype(bf16), wh_ref[...],
                               preferred_element_type=jnp.float32))
                # Gate blocks are 128-lane aligned -> free views.  Gate math
                # stays in f32 (VPU/EUP).
                i_g = jax.nn.sigmoid(g[:, 0 * Hp:1 * Hp])
                f_g = jax.nn.sigmoid(g[:, 1 * Hp:2 * Hp])
                g_g = jnp.tanh(g[:, 2 * Hp:3 * Hp])
                o_g = jax.nn.sigmoid(g[:, 3 * Hp:4 * Hp])
                c_new = f_g * c + i_g * g_g
                h_new = o_g * jnp.tanh(c_new)
                if not last_layer:
                    # Only intermediate layers need the full sequence (bf16).
                    seq_scr[pl.ds(off, Bp), :] = h_new.astype(seq_scr.dtype)
                return (h_new, c_new)

            # Serial recurrence: fori_loop bounds vreg live ranges; unroll only
            # when T is small and static.
            h, c = lax.fori_loop(0, T, step, (h, c), unroll=(T <= 8))

        # ---- heads on the last hidden state (stays in vregs) ----
        # Dropout = identity (eval mode).  Both first layers fused into one
        # (Hp, Pp+Ap) matmul; lane-slice the result per head.
        hb = h.astype(bf16)
        z = (jnp.dot(hb, w1_ref[...], preferred_element_type=jnp.float32)
             + b1_ref[...])                                    # (Bp, Pp+Ap) f32
        ph = jnp.tanh(z[:, :Pp])
        lat = jnp.tanh(z[:, Pp:])

        lat_ref[...] = lat.astype(lat_ref.dtype)
        pred_ref[...] = (jnp.dot(ph.astype(bf16), w2p_ref[...],
                                 preferred_element_type=jnp.float32)
                         + b2p_ref[...]).astype(pred_ref.dtype)
        ana_ref[...] = (jnp.dot(lat.astype(bf16), w2a_ref[...],
                                preferred_element_type=jnp.float32)
                        + b2a_ref[...]).astype(ana_ref.dtype)

    return kernel


def _fused_forward(x2d, h0p, c0p, flat_weights, *,
                   n_layers, T, Bp, Dp, Hp, Pp, Ap):
    kernel = _make_fused_kernel(n_layers, T, Bp, Pp)
    out_shape = (jax.ShapeDtypeStruct((Bp, Dp), jnp.float32),   # prediction
                 jax.ShapeDtypeStruct((Bp, Dp), jnp.float32),   # analysis out
                 jax.ShapeDtypeStruct((Bp, Ap), jnp.float32))   # latent (tanh)
    scratch_shapes = [
        pltpu.VMEM((T * Bp, Hp), jnp.bfloat16),       # inter-layer sequence
        pltpu.VMEM((T * Bp, 4 * Hp), jnp.float32),    # hoisted x-projection
    ]

    operands = (x2d, h0p, c0p) + tuple(flat_weights)
    need = sum(math.prod(a.shape) * a.dtype.itemsize for a in operands)
    need += sum(math.prod(s.shape) * 4 for s in out_shape)
    need += T * Bp * Hp * 2 + T * Bp * 4 * Hp * 4
    vmem_limit = _pick_vmem_limit(int(need))

    return pl.pallas_call(
        kernel,
        out_shape=out_shape,
        in_specs=[pl.BlockSpec(memory_space=pltpu.MemorySpace.VMEM)]
                 * len(operands),
        out_specs=(pl.BlockSpec(memory_space=pltpu.MemorySpace.VMEM),) * 3,
        scratch_shapes=scratch_shapes,
        compiler_params=pltpu.CompilerParams(vmem_limit_bytes=vmem_limit),
    )(*operands)


# ---------------------------------------------------------------------------
# Public wrapper: pad/pack to the lane-dense kernel layout (MXU operands in
# bf16, biases/accumulators in f32), call the kernel, slice back.
# ---------------------------------------------------------------------------

@jax.jit
def lstm_multitask_forward(input_data, h0, c0, params):
    """input_data: (B, T, D); h0, c0: (n_layers, B, H); params: PyTorch layout.
    Returns (prediction (B, D), analysis_out (B, D), latent (B, A))."""
    f32 = jnp.float32
    bf16 = jnp.bfloat16
    B, T, D = input_data.shape
    L, _, H = h0.shape
    P = params["pred"][0].shape[0]
    A = params["analysis"][0].shape[0]

    # Batch padded to 16 so bf16 sublane tiles stay aligned for the dynamic
    # per-timestep scratch stores.  TODO(synk): at production batch sizes pad
    # toward >=64-128 rows so the recurrence matmul fills the MXU.
    Bp = _round_up(max(B, 1), _SUBLANE_BF16)
    Dp = _round_up(max(D, 1), _LANE)
    Hp = _round_up(max(H, 1), _LANE)
    Pp = _round_up(max(P, 1), _LANE)
    Ap = _round_up(max(A, 1), _LANE)

    # ---- pad activations (zeros in padded lanes keep math exact) ----
    x = jnp.transpose(input_data.astype(f32), (1, 0, 2))          # (T, B, D)
    x = jnp.pad(x, ((0, 0), (0, Bp - B), (0, Dp - D)))
    x2d = x.reshape(T * Bp, Dp).astype(bf16)
    h0p = jnp.pad(h0.astype(f32), ((0, 0), (0, Bp - B), (0, Hp - H)))
    c0p = jnp.pad(c0.astype(f32), ((0, 0), (0, Bp - B), (0, Hp - H)))

    # ---- pack weights: transposed, gate blocks at 128-lane boundaries,
    #      MXU operands cast to bf16, biases kept f32 ----
    flat = []
    for l in range(L):
        w_ih, w_hh, b_ih, b_hh = params["lstm"][l]   # PyTorch shapes
        in_dim = w_ih.shape[1]
        in_p = Dp if l == 0 else Hp
        wx = jnp.zeros((in_p, 4 * Hp), f32)
        wh = jnp.zeros((Hp, 4 * Hp), f32)
        b = jnp.zeros((1, 4 * Hp), f32)
        for k in range(4):                           # gate order i, f, g, o
            wx = wx.at[:in_dim, k * Hp:k * Hp + H].set(
                w_ih[k * H:(k + 1) * H, :].T.astype(f32))
            wh = wh.at[:H, k * Hp:k * Hp + H].set(
                w_hh[k * H:(k + 1) * H, :].T.astype(f32))
            b = b.at[0, k * Hp:k * Hp + H].set(
                (b_ih[k * H:(k + 1) * H] + b_hh[k * H:(k + 1) * H]).astype(f32))
        flat += [wx.astype(bf16), wh.astype(bf16), b]

    def pack_linear(w, bias, in_dim, in_p, out_dim, out_p):
        wp = jnp.zeros((in_p, out_p), f32).at[:in_dim, :out_dim].set(
            w.T.astype(f32))
        bp = jnp.zeros((1, out_p), f32).at[0, :out_dim].set(bias.astype(f32))
        return wp, bp

    w1, b1, w2, b2 = params["pred"]
    w1p, b1p = pack_linear(w1, b1, H, Hp, P, Pp)
    w2p, b2p = pack_linear(w2, b2, P, Pp, D, Dp)
    w1a_, b1a_, w2a_, b2a_ = params["analysis"]
    w1a, b1a = pack_linear(w1a_, b1a_, H, Hp, A, Ap)
    w2a, b2a = pack_linear(w2a_, b2a_, A, Ap, D, Dp)

    # Fuse the two head first layers into one (Hp, Pp+Ap) matmul.
    w1f = jnp.concatenate([w1p, w1a], axis=1).astype(bf16)
    b1f = jnp.concatenate([b1p, b1a], axis=1)

    flat += [w1f, b1f, w2p.astype(bf16), b2p, w2a.astype(bf16), b2a]

    pred_p, ana_p, lat_p = _fused_forward(
        x2d, h0p, c0p, flat,
        n_layers=L, T=T, Bp=Bp, Dp=Dp, Hp=Hp, Pp=Pp, Ap=Ap)

    return pred_p[:B, :D], ana_p[:B, :D], lat_p[:B, :A]


# ---------------------------------------------------------------------------
# Deterministic parameter init (PyTorch-layout shapes, like the nn.Module)
# ---------------------------------------------------------------------------

def init_params(key, input_dim, n_hidden_lstm, n_layers,
                n_hidden_fc_prediction, n_hidden_fc_ls_analysis):
    H = n_hidden_lstm

    def uniform(k, shape, bound):
        return jax.random.uniform(k, shape, jnp.float32,
                                  minval=-bound, maxval=bound)

    params = {"lstm": [], "pred": None, "analysis": None}
    k_lstm = 1.0 / float(H) ** 0.5
    for l in range(n_layers):
        d_in = input_dim if l == 0 else H
        key, k1, k2, k3, k4 = jax.random.split(key, 5)
        params["lstm"].append((
            uniform(k1, (4 * H, d_in), k_lstm),   # weight_ih_l{l}
            uniform(k2, (4 * H, H), k_lstm),      # weight_hh_l{l}
            uniform(k3, (4 * H,), k_lstm),        # bias_ih_l{l}
            uniform(k4, (4 * H,), k_lstm),        # bias_hh_l{l}
        ))

    def linear(key, fan_in, fan_out):
        key, k1, k2 = jax.random.split(key, 3)
        bound = 1.0 / float(fan_in) ** 0.5
        return key, uniform(k1, (fan_out, fan_in), bound), uniform(k2, (fan_out,), bound)

    key, w1p, b1p = linear(key, H, n_hidden_fc_prediction)
    key, w2p, b2p = linear(key, n_hidden_fc_prediction, input_dim)
    params["pred"] = (w1p, b1p, w2p, b2p)

    key, w1a, b1a = linear(key, H, n_hidden_fc_ls_analysis)
    key, w2a, b2a = linear(key, n_hidden_fc_ls_analysis, input_dim)
    params["analysis"] = (w1a, b1a, w2a, b2a)
    return params


# ---------------------------------------------------------------------------
# Pure-JAX f32 reference (correctness check)
# ---------------------------------------------------------------------------

def reference_forward(input_data, h0, c0, params):
    x = jnp.transpose(input_data, (1, 0, 2)).astype(jnp.float32)   # (T, B, D)
    L, _, H = h0.shape
    for l in range(L):
        w_ih, w_hh, b_ih, b_hh = params["lstm"][l]
        wih_t, whh_t, bias = w_ih.T, w_hh.T, (b_ih + b_hh)[None, :]

        def step(carry, x_t, wih_t=wih_t, whh_t=whh_t, bias=bias):
            h, c = carry
            g = x_t @ wih_t + h @ whh_t + bias
            i_g = jax.nn.sigmoid(g[:, 0 * H:1 * H])
            f_g = jax.nn.sigmoid(g[:, 1 * H:2 * H])
            g_g = jnp.tanh(g[:, 2 * H:3 * H])
            o_g = jax.nn.sigmoid(g[:, 3 * H:4 * H])
            c_new = f_g * c + i_g * g_g
            h_new = o_g * jnp.tanh(c_new)
            return (h_new, c_new), h_new

        (_, _), x = lax.scan(step, (h0[l], c0[l]), x)

    last = x[-1]
    w1, b1, w2, b2 = params["pred"]
    pred = jnp.tanh(last @ w1.T + b1) @ w2.T + b2
    w1a, b1a, w2a, b2a = params["analysis"]
    latent = jnp.tanh(last @ w1a.T + b1a)
    ana = latent @ w2a.T + b2a
    return pred, ana, latent


# ---------------------------------------------------------------------------

if __name__ == "__main__":
    batch_size = 2
    input_dim = 4
    n_hidden_lstm = 32
    n_layers = 2
    seq_len = 8
    n_hidden_fc_prediction = 16
    n_hidden_fc_ls_analysis = 16

    key = jax.random.PRNGKey(0)
    key, k_x = jax.random.split(key)

    params = init_params(key, input_dim, n_hidden_lstm, n_layers,
                         n_hidden_fc_prediction, n_hidden_fc_ls_analysis)

    input_data = jax.random.normal(k_x, (batch_size, seq_len, input_dim),
                                   dtype=jnp.float32)
    # init_hidden(): zeros of (n_layers, B, H)
    h0 = jnp.zeros((n_layers, batch_size, n_hidden_lstm), jnp.float32)
    c0 = jnp.zeros((n_layers, batch_size, n_hidden_lstm), jnp.float32)

    prediction, analysis_out, latent = lstm_multitask_forward(
        input_data, h0, c0, params)
    jax.block_until_ready((prediction, analysis_out, latent))

    # Correctness check against a pure-JAX f32 reference.  Tolerances are
    # loosened because MXU operands are bf16 (f32 accumulation).
    ref_pred, ref_ana, ref_lat = reference_forward(input_data, h0, c0, params)
    assert jnp.allclose(prediction, ref_pred, atol=5e-2, rtol=5e-2)
    assert jnp.allclose(analysis_out, ref_ana, atol=5e-2, rtol=5e-2)
    assert jnp.allclose(latent, ref_lat, atol=5e-2, rtol=5e-2)
    assert prediction.shape == (batch_size, input_dim)
    assert analysis_out.shape == (batch_size, input_dim)
    assert latent.shape == (batch_size, n_hidden_fc_ls_analysis)

    print("KERNEL_OK")
</pallas_src>

<mosaic_0001>
module attributes {stable_mosaic.version = 11 : i64} {
  func.func @kernel(%arg0: memref<128x128xbf16, #tpu.memory_space<vmem>>, %arg1: memref<2x16x128xf32, #tpu.memory_space<vmem>>, %arg2: memref<2x16x128xf32, #tpu.memory_space<vmem>>, %arg3: memref<128x512xbf16, #tpu.memory_space<vmem>>, %arg4: memref<128x512xbf16, #tpu.memory_space<vmem>>, %arg5: memref<1x512xf32, #tpu.memory_space<vmem>>, %arg6: memref<128x512xbf16, #tpu.memory_space<vmem>>, %arg7: memref<128x512xbf16, #tpu.memory_space<vmem>>, %arg8: memref<1x512xf32, #tpu.memory_space<vmem>>, %arg9: memref<128x256xbf16, #tpu.memory_space<vmem>>, %arg10: memref<1x256xf32, #tpu.memory_space<vmem>>, %arg11: memref<128x128xbf16, #tpu.memory_space<vmem>>, %arg12: memref<1x128xf32, #tpu.memory_space<vmem>>, %arg13: memref<128x128xbf16, #tpu.memory_space<vmem>>, %arg14: memref<1x128xf32, #tpu.memory_space<vmem>>, %arg15: memref<16x128xf32, #tpu.memory_space<vmem>>, %arg16: memref<16x128xf32, #tpu.memory_space<vmem>>, %arg17: memref<16x128xf32, #tpu.memory_space<vmem>>, %arg18: memref<128x128xbf16, #tpu.memory_space<vmem>>, %arg19: memref<128x512xf32, #tpu.memory_space<vmem>>) attributes {dimension_semantics = [], scalar_prefetch = 0 : i64, scratch_operands = 2 : i64, tpu.core_type = #tpu.core_type<tc>} {
    %c0 = arith.constant 0 : index
    %c0_0 = arith.constant 0 : index
    %0 = vector.load %arg0[%c0, %c0_0] : memref<128x128xbf16, #tpu.memory_space<vmem>>, vector<128x128xbf16>
    %c0_1 = arith.constant 0 : index
    %c0_2 = arith.constant 0 : index
    %1 = vector.load %arg3[%c0_1, %c0_2] : memref<128x512xbf16, #tpu.memory_space<vmem>>, vector<128x512xbf16>
    %cst = arith.constant dense<0.000000e+00> : vector<128x512xf32>
    %2 = tpu.matmul %0, %1, %cst {dimension_numbers = #tpu.dot_dimension_numbers<[1], [0], [0], [1], [0, 0, 1, 1], [], []>} : vector<128x128xbf16>, vector<128x512xbf16>, vector<128x512xf32> -> vector<128x512xf32>
    %c0_3 = arith.constant 0 : index
    %c0_4 = arith.constant 0 : index
    %3 = vector.load %arg5[%c0_3, %c0_4] : memref<1x512xf32, #tpu.memory_space<vmem>>, vector<1x512xf32>
    %4 = vector.broadcast %3 : vector<1x512xf32> to vector<128x512xf32>
    %5 = arith.addf %2, %4 : vector<128x512xf32>
    %c0_5 = arith.constant 0 : index
    %c0_6 = arith.constant 0 : index
    %6 = vector.load %arg19[%c0_5, %c0_6] : memref<128x512xf32, #tpu.memory_space<vmem>>, vector<128x512xf32>
    tpu.vector_store %arg19[%c0_5, %c0_6], %5 {strides = array<i32>} : memref<128x512xf32, #tpu.memory_space<vmem>>, vector<128x512xf32>,
    %c0_7 = arith.constant 0 : index
    %c0_8 = arith.constant 0 : index
    %c0_9 = arith.constant 0 : index
    %7 = vector.load %arg1[%c0_7, %c0_8, %c0_9] : memref<2x16x128xf32, #tpu.memory_space<vmem>>, vector<1x16x128xf32>
    %8 = vector.shape_cast %7 : vector<1x16x128xf32> to vector<16x128xf32>
    %c0_10 = arith.constant 0 : index
    %c0_11 = arith.constant 0 : index
    %c0_12 = arith.constant 0 : index
    %9 = vector.load %arg2[%c0_10, %c0_11, %c0_12] : memref<2x16x128xf32, #tpu.memory_space<vmem>>, vector<1x16x128xf32>
    %10 = vector.shape_cast %9 : vector<1x16x128xf32> to vector<16x128xf32>
    %c0_i32 = arith.constant 0 : i32
    %c16_i32 = arith.constant 16 : i32
    %11 = arith.muli %c0_i32, %c16_i32 : i32
    %12 = tpu.assume_multiple %11, 16 : i32
    %13 = arith.index_cast %12 : i32 to index
    %c0_13 = arith.constant 0 : index
    %14 = vector.load %arg19[%13, %c0_13] : memref<128x512xf32, #tpu.memory_space<vmem>>, vector<16x512xf32>
    %15 = arith.truncf %8 : vector<16x128xf32> to vector<16x128xbf16>
    %c0_14 = arith.constant 0 : index
    %c0_15 = arith.constant 0 : index
    %16 = vector.load %arg4[%c0_14, %c0_15] : memref<128x512xbf16, #tpu.memory_space<vmem>>, vector<128x512xbf16>
    %cst_16 = arith.constant dense<0.000000e+00> : vector<16x512xf32>
    %17 = tpu.matmul %15, %16, %cst_16 {dimension_numbers = #tpu.dot_dimension_numbers<[1], [0], [0], [1], [0, 0, 1, 1], [], []>} : vector<16x128xbf16>, vector<128x512xbf16>, vector<16x512xf32> -> vector<16x512xf32>
    %18 = arith.addf %14, %17 : vector<16x512xf32>
    %19 = vector.extract_strided_slice %18 {offsets = [0, 0], sizes = [16, 128], strides = [1, 1]} : vector<16x512xf32> to vector<16x128xf32>
    %20 = arith.negf %19 : vector<16x128xf32>
    %21 = math.exp %20 : vector<16x128xf32>
    %cst_17 = arith.constant 1.000000e+00 : f32
    %22 = vector.broadcast %cst_17 : f32 to vector<16x128xf32>
    %23 = arith.addf %22, %21 : vector<16x128xf32>
    %24 = arith.divf %22, %23 : vector<16x128xf32>
    %25 = vector.extract_strided_slice %18 {offsets = [0, 128], sizes = [16, 128], strides = [1, 1]} : vector<16x512xf32> to vector<16x128xf32>
    %26 = arith.negf %25 : vector<16x128xf32>
    %27 = math.exp %26 : vector<16x128xf32>
    %cst_18 = arith.constant 1.000000e+00 : f32
    %28 = vector.broadcast %cst_18 : f32 to vector<16x128xf32>
    %29 = arith.addf %28, %27 : vector<16x128xf32>
    %30 = arith.divf %28, %29 : vector<16x128xf32>
    %31 = vector.extract_strided_slice %18 {offsets = [0, 256], sizes = [16, 128], strides = [1, 1]} : vector<16x512xf32> to vector<16x128xf32>
    %32 = math.tanh %31 : vector<16x128xf32>
    %33 = vector.extract_strided_slice %18 {offsets = [0, 384], sizes = [16, 128], strides = [1, 1]} : vector<16x512xf32> to vector<16x128xf32>
    %34 = arith.negf %33 : vector<16x128xf32>
    %35 = math.exp %34 : vector<16x128xf32>
    %cst_19 = arith.constant 1.000000e+00 : f32
    %36 = vector.broadcast %cst_19 : f32 to vector<16x128xf32>
    %37 = arith.addf %36, %35 : vector<16x128xf32>
    %38 = arith.divf %36, %37 : vector<16x128xf32>
    %39 = arith.mulf %30, %10 : vector<16x128xf32>
    %40 = arith.mulf %24, %32 : vector<16x128xf32>
    %41 = arith.addf %39, %40 : vector<16x128xf32>
    %42 = math.tanh %41 : vector<16x128xf32>
    %43 = arith.mulf %38, %42 : vector<16x128xf32>
    %44 = arith.truncf %43 : vector<16x128xf32> to vector<16x128xbf16>
    %45 = arith.index_cast %12 : i32 to index
    %c0_20 = arith.constant 0 : index
    %46 = vector.load %arg18[%45, %c0_20] : memref<128x128xbf16, #tpu.memory_space<vmem>>, vector<16x128xbf16>
    tpu.vector_store %arg18[%45, %c0_20], %44 {strides = array<i32>} : memref<128x128xbf16, #tpu.memory_space<vmem>>, vector<16x128xbf16>,
    %c1_i32 = arith.constant 1 : i32
    %c16_i32_21 = arith.constant 16 : i32
    %47 = arith.muli %c1_i32, %c16_i32_21 : i32
    %48 = tpu.assume_multiple %47, 16 : i32
    %49 = arith.index_cast %48 : i32 to index
    %c0_22 = arith.constant 0 : index
    %50 = vector.load %arg19[%49, %c0_22] : memref<128x512xf32, #tpu.memory_space<vmem>>, vector<16x512xf32>
    %51 = arith.truncf %43 : vector<16x128xf32> to vector<16x128xbf16>
    %c0_23 = arith.constant 0 : index
    %c0_24 = arith.constant 0 : index
    %52 = vector.load %arg4[%c0_23, %c0_24] : memref<128x512xbf16, #tpu.memory_space<vmem>>, vector<128x512xbf16>
    %cst_25 = arith.constant dense<0.000000e+00> : vector<16x512xf32>
    %53 = tpu.matmul %51, %52, %cst_25 {dimension_numbers = #tpu.dot_dimension_numbers<[1], [0], [0], [1], [0, 0, 1, 1], [], []>} : vector<16x128xbf16>, vector<128x512xbf16>, vector<16x512xf32> -> vector<16x512xf32>
    %54 = arith.addf %50, %53 : vector<16x512xf32>
    %55 = vector.extract_strided_slice %54 {offsets = [0, 0], sizes = [16, 128], strides = [1, 1]} : vector<16x512xf32> to vector<16x128xf32>
    %56 = arith.negf %55 : vector<16x128xf32>
    %57 = math.exp %56 : vector<16x128xf32>
    %cst_26 = arith.constant 1.000000e+00 : f32
    %58 = vector.broadcast %cst_26 : f32 to vector<16x128xf32>
    %59 = arith.addf %58, %57 : vector<16x128xf32>
    %60 = arith.divf %58, %59 : vector<16x128xf32>
    %61 = vector.extract_strided_slice %54 {offsets = [0, 128], sizes = [16, 128], strides = [1, 1]} : vector<16x512xf32> to vector<16x128xf32>
    %62 = arith.negf %61 : vector<16x128xf32>
    %63 = math.exp %62 : vector<16x128xf32>
    %cst_27 = arith.constant 1.000000e+00 : f32
    %64 = vector.broadcast %cst_27 : f32 to vector<16x128xf32>
    %65 = arith.addf %64, %63 : vector<16x128xf32>
    %66 = arith.divf %64, %65 : vector<16x128xf32>
    %67 = vector.extract_strided_slice %54 {offsets = [0, 256], sizes = [16, 128], strides = [1, 1]} : vector<16x512xf32> to vector<16x128xf32>
    %68 = math.tanh %67 : vector<16x128xf32>
    %69 = vector.extract_strided_slice %54 {offsets = [0, 384], sizes = [16, 128], strides = [1, 1]} : vector<16x512xf32> to vector<16x128xf32>
    %70 = arith.negf %69 : vector<16x128xf32>
    %71 = math.exp %70 : vector<16x128xf32>
    %cst_28 = arith.constant 1.000000e+00 : f32
    %72 = vector.broadcast %cst_28 : f32 to vector<16x128xf32>
    %73 = arith.addf %72, %71 : vector<16x128xf32>
    %74 = arith.divf %72, %73 : vector<16x128xf32>
    %75 = arith.mulf %66, %41 : vector<16x128xf32>
    %76 = arith.mulf %60, %68 : vector<16x128xf32>
    %77 = arith.addf %75, %76 : vector<16x128xf32>
    %78 = math.tanh %77 : vector<16x128xf32>
    %79 = arith.mulf %74, %78 : vector<16x128xf32>
    %80 = arith.truncf %79 : vector<16x128xf32> to vector<16x128xbf16>
    %81 = arith.index_cast %48 : i32 to index
    %c0_29 = arith.constant 0 : index
    %82 = vector.load %arg18[%81, %c0_29] : memref<128x128xbf16, #tpu.memory_space<vmem>>, vector<16x128xbf16>
    tpu.vector_store %arg18[%81, %c0_29], %80 {strides = array<i32>} : memref<128x128xbf16, #tpu.memory_space<vmem>>, vector<16x128xbf16>,
    %c2_i32 = arith.constant 2 : i32
    %c16_i32_30 = arith.constant 16 : i32
    %83 = arith.muli %c2_i32, %c16_i32_30 : i32
    %84 = tpu.assume_multiple %83, 16 : i32
    %85 = arith.index_cast %84 : i32 to index
    %c0_31 = arith.constant 0 : index
    %86 = vector.load %arg19[%85, %c0_31] : memref<128x512xf32, #tpu.memory_space<vmem>>, vector<16x512xf32>
    %87 = arith.truncf %79 : vector<16x128xf32> to vector<16x128xbf16>
    %c0_32 = arith.constant 0 : index
    %c0_33 = arith.constant 0 : index
    %88 = vector.load %arg4[%c0_32, %c0_33] : memref<128x512xbf16, #tpu.memory_space<vmem>>, vector<128x512xbf16>
    %cst_34 = arith.constant dense<0.000000e+00> : vector<16x512xf32>
    %89 = tpu.matmul %87, %88, %cst_34 {dimension_numbers = #tpu.dot_dimension_numbers<[1], [0], [0], [1], [0, 0, 1, 1], [], []>} : vector<16x128xbf16>, vector<128x512xbf16>, vector<16x512xf32> -> vector<16x512xf32>
    %90 = arith.addf %86, %89 : vector<16x512xf32>
    %91 = vector.extract_strided_slice %90 {offsets = [0, 0], sizes = [16, 128], strides = [1, 1]} : vector<16x512xf32> to vector<16x128xf32>
    %92 = arith.negf %91 : vector<16x128xf32>
    %93 = math.exp %92 : vector<16x128xf32>
    %cst_35 = arith.constant 1.000000e+00 : f32
    %94 = vector.broadcast %cst_35 : f32 to vector<16x128xf32>
    %95 = arith.addf %94, %93 : vector<16x128xf32>
    %96 = arith.divf %94, %95 : vector<16x128xf32>
    %97 = vector.extract_strided_slice %90 {offsets = [0, 128], sizes = [16, 128], strides = [1, 1]} : vector<16x512xf32> to vector<16x128xf32>
    %98 = arith.negf %97 : vector<16x128xf32>
    %99 = math.exp %98 : vector<16x128xf32>
    %cst_36 = arith.constant 1.000000e+00 : f32
    %100 = vector.broadcast %cst_36 : f32 to vector<16x128xf32>
    %101 = arith.addf %100, %99 : vector<16x128xf32>
    %102 = arith.divf %100, %101 : vector<16x128xf32>
    %103 = vector.extract_strided_slice %90 {offsets = [0, 256], sizes = [16, 128], strides = [1, 1]} : vector<16x512xf32> to vector<16x128xf32>
    %104 = math.tanh %103 : vector<16x128xf32>
    %105 = vector.extract_strided_slice %90 {offsets = [0, 384], sizes = [16, 128], strides = [1, 1]} : vector<16x512xf32> to vector<16x128xf32>
    %106 = arith.negf %105 : vector<16x128xf32>
    %107 = math.exp %106 : vector<16x128xf32>
    %cst_37 = arith.constant 1.000000e+00 : f32
    %108 = vector.broadcast %cst_37 : f32 to vector<16x128xf32>
    %109 = arith.addf %108, %107 : vector<16x128xf32>
    %110 = arith.divf %108, %109 : vector<16x128xf32>
    %111 = arith.mulf %102, %77 : vector<16x128xf32>
    %112 = arith.mulf %96, %104 : vector<16x128xf32>
    %113 = arith.addf %111, %112 : vector<16x128xf32>
    %114 = math.tanh %113 : vector<16x128xf32>
    %115 = arith.mulf %110, %114 : vector<16x128xf32>
    %116 = arith.truncf %115 : vector<16x128xf32> to vector<16x128xbf16>
    %117 = arith.index_cast %84 : i32 to index
    %c0_38 = arith.constant 0 : index
    %118 = vector.load %arg18[%117, %c0_38] : memref<128x128xbf16, #tpu.memory_space<vmem>>, vector<16x128xbf16>
    tpu.vector_store %arg18[%117, %c0_38], %116 {strides = array<i32>} : memref<128x128xbf16, #tpu.memory_space<vmem>>, vector<16x128xbf16>,
    %c3_i32 = arith.constant 3 : i32
    %c16_i32_39 = arith.constant 16 : i32
    %119 = arith.muli %c3_i32, %c16_i32_39 : i32
    %120 = tpu.assume_multiple %119, 16 : i32
    %121 = arith.index_cast %120 : i32 to index
    %c0_40 = arith.constant 0 : index
    %122 = vector.load %arg19[%121, %c0_40] : memref<128x512xf32, #tpu.memory_space<vmem>>, vector<16x512xf32>
    %123 = arith.truncf %115 : vector<16x128xf32> to vector<16x128xbf16>
    %c0_41 = arith.constant 0 : index
    %c0_42 = arith.constant 0 : index
    %124 = vector.load %arg4[%c0_41, %c0_42] : memref<128x512xbf16, #tpu.memory_space<vmem>>, vector<128x512xbf16>
    %cst_43 = arith.constant dense<0.000000e+00> : vector<16x512xf32>
    %125 = tpu.matmul %123, %124, %cst_43 {dimension_numbers = #tpu.dot_dimension_numbers<[1], [0], [0], [1], [0, 0, 1, 1], [], []>} : vector<16x128xbf16>, vector<128x512xbf16>, vector<16x512xf32> -> vector<16x512xf32>
    %126 = arith.addf %122, %125 : vector<16x512xf32>
    %127 = vector.extract_strided_slice %126 {offsets = [0, 0], sizes = [16, 128], strides = [1, 1]} : vector<16x512xf32> to vector<16x128xf32>
    %128 = arith.negf %127 : vector<16x128xf32>
    %129 = math.exp %128 : vector<16x128xf32>
    %cst_44 = arith.constant 1.000000e+00 : f32
    %130 = vector.broadcast %cst_44 : f32 to vector<16x128xf32>
    %131 = arith.addf %130, %129 : vector<16x128xf32>
    %132 = arith.divf %130, %131 : vector<16x128xf32>
    %133 = vector.extract_strided_slice %126 {offsets = [0, 128], sizes = [16, 128], strides = [1, 1]} : vector<16x512xf32> to vector<16x128xf32>
    %134 = arith.negf %133 : vector<16x128xf32>
    %135 = math.exp %134 : vector<16x128xf32>
    %cst_45 = arith.constant 1.000000e+00 : f32
    %136 = vector.broadcast %cst_45 : f32 to vector<16x128xf32>
    %137 = arith.addf %136, %135 : vector<16x128xf32>
    %138 = arith.divf %136, %137 : vector<16x128xf32>
    %139 = vector.extract_strided_slice %126 {offsets = [0, 256], sizes = [16, 128], strides = [1, 1]} : vector<16x512xf32> to vector<16x128xf32>
    %140 = math.tanh %139 : vector<16x128xf32>
    %141 = vector.extract_strided_slice %126 {offsets = [0, 384], sizes = [16, 128], strides = [1, 1]} : vector<16x512xf32> to vector<16x128xf32>
    %142 = arith.negf %141 : vector<16x128xf32>
    %143 = math.exp %142 : vector<16x128xf32>
    %cst_46 = arith.constant 1.000000e+00 : f32
    %144 = vector.broadcast %cst_46 : f32 to vector<16x128xf32>
    %145 = arith.addf %144, %143 : vector<16x128xf32>
    %146 = arith.divf %144, %145 : vector<16x128xf32>
    %147 = arith.mulf %138, %113 : vector<16x128xf32>
    %148 = arith.mulf %132, %140 : vector<16x128xf32>
    %149 = arith.addf %147, %148 : vector<16x128xf32>
    %150 = math.tanh %149 : vector<16x128xf32>
    %151 = arith.mulf %146, %150 : vector<16x128xf32>
    %152 = arith.truncf %151 : vector<16x128xf32> to vector<16x128xbf16>
    %153 = arith.index_cast %120 : i32 to index
    %c0_47 = arith.constant 0 : index
    %154 = vector.load %arg18[%153, %c0_47] : memref<128x128xbf16, #tpu.memory_space<vmem>>, vector<16x128xbf16>
    tpu.vector_store %arg18[%153, %c0_47], %152 {strides = array<i32>} : memref<128x128xbf16, #tpu.memory_space<vmem>>, vector<16x128xbf16>,
    %c4_i32 = arith.constant 4 : i32
    %c16_i32_48 = arith.constant 16 : i32
    %155 = arith.muli %c4_i32, %c16_i32_48 : i32
    %156 = tpu.assume_multiple %155, 16 : i32
    %157 = arith.index_cast %156 : i32 to index
    %c0_49 = arith.constant 0 : index
    %158 = vector.load %arg19[%157, %c0_49] : memref<128x512xf32, #tpu.memory_space<vmem>>, vector<16x512xf32>
    %159 = arith.truncf %151 : vector<16x128xf32> to vector<16x128xbf16>
    %c0_50 = arith.constant 0 : index
    %c0_51 = arith.constant 0 : index
    %160 = vector.load %arg4[%c0_50, %c0_51] : memref<128x512xbf16, #tpu.memory_space<vmem>>, vector<128x512xbf16>
    %cst_52 = arith.constant dense<0.000000e+00> : vector<16x512xf32>
    %161 = tpu.matmul %159, %160, %cst_52 {dimension_numbers = #tpu.dot_dimension_numbers<[1], [0], [0], [1], [0, 0, 1, 1], [], []>} : vector<16x128xbf16>, vector<128x512xbf16>, vector<16x512xf32> -> vector<16x512xf32>
    %162 = arith.addf %158, %161 : vector<16x512xf32>
    %163 = vector.extract_strided_slice %162 {offsets = [0, 0], sizes = [16, 128], strides = [1, 1]} : vector<16x512xf32> to vector<16x128xf32>
    %164 = arith.negf %163 : vector<16x128xf32>
    %165 = math.exp %164 : vector<16x128xf32>
    %cst_53 = arith.constant 1.000000e+00 : f32
    %166 = vector.broadcast %cst_53 : f32 to vector<16x128xf32>
    %167 = arith.addf %166, %165 : vector<16x128xf32>
    %168 = arith.divf %166, %167 : vector<16x128xf32>
    %169 = vector.extract_strided_slice %162 {offsets = [0, 128], sizes = [16, 128], strides = [1, 1]} : vector<16x512xf32> to vector<16x128xf32>
    %170 = arith.negf %169 : vector<16x128xf32>
    %171 = math.exp %170 : vector<16x128xf32>
    %cst_54 = arith.constant 1.000000e+00 : f32
    %172 = vector.broadcast %cst_54 : f32 to vector<16x128xf32>
    %173 = arith.addf %172, %171 : vector<16x128xf32>
    %174 = arith.divf %172, %173 : vector<16x128xf32>
    %175 = vector.extract_strided_slice %162 {offsets = [0, 256], sizes = [16, 128], strides = [1, 1]} : vector<16x512xf32> to vector<16x128xf32>
    %176 = math.tanh %175 : vector<16x128xf32>
    %177 = vector.extract_strided_slice %162 {offsets = [0, 384], sizes = [16, 128], strides = [1, 1]} : vector<16x512xf32> to vector<16x128xf32>
    %178 = arith.negf %177 : vector<16x128xf32>
    %179 = math.exp %178 : vector<16x128xf32>
    %cst_55 = arith.constant 1.000000e+00 : f32
    %180 = vector.broadcast %cst_55 : f32 to vector<16x128xf32>
    %181 = arith.addf %180, %179 : vector<16x128xf32>
    %182 = arith.divf %180, %181 : vector<16x128xf32>
    %183 = arith.mulf %174, %149 : vector<16x128xf32>
    %184 = arith.mulf %168, %176 : vector<16x128xf32>
    %185 = arith.addf %183, %184 : vector<16x128xf32>
    %186 = math.tanh %185 : vector<16x128xf32>
    %187 = arith.mulf %182, %186 : vector<16x128xf32>
    %188 = arith.truncf %187 : vector<16x128xf32> to vector<16x128xbf16>
    %189 = arith.index_cast %156 : i32 to index
    %c0_56 = arith.constant 0 : index
    %190 = vector.load %arg18[%189, %c0_56] : memref<128x128xbf16, #tpu.memory_space<vmem>>, vector<16x128xbf16>
    tpu.vector_store %arg18[%189, %c0_56], %188 {strides = array<i32>} : memref<128x128xbf16, #tpu.memory_space<vmem>>, vector<16x128xbf16>,
    %c5_i32 = arith.constant 5 : i32
    %c16_i32_57 = arith.constant 16 : i32
    %191 = arith.muli %c5_i32, %c16_i32_57 : i32
    %192 = tpu.assume_multiple %191, 16 : i32
    %193 = arith.index_cast %192 : i32 to index
    %c0_58 = arith.constant 0 : index
    %194 = vector.load %arg19[%193, %c0_58] : memref<128x512xf32, #tpu.memory_space<vmem>>, vector<16x512xf32>
    %195 = arith.truncf %187 : vector<16x128xf32> to vector<16x128xbf16>
    %c0_59 = arith.constant 0 : index
    %c0_60 = arith.constant 0 : index
    %196 = vector.load %arg4[%c0_59, %c0_60] : memref<128x512xbf16, #tpu.memory_space<vmem>>, vector<128x512xbf16>
    %cst_61 = arith.constant dense<0.000000e+00> : vector<16x512xf32>
    %197 = tpu.matmul %195, %196, %cst_61 {dimension_numbers = #tpu.dot_dimension_numbers<[1], [0], [0], [1], [0, 0, 1, 1], [], []>} : vector<16x128xbf16>, vector<128x512xbf16>, vector<16x512xf32> -> vector<16x512xf32>
    %198 = arith.addf %194, %197 : vector<16x512xf32>
    %199 = vector.extract_strided_slice %198 {offsets = [0, 0], sizes = [16, 128], strides = [1, 1]} : vector<16x512xf32> to vector<16x128xf32>
    %200 = arith.negf %199 : vector<16x128xf32>
    %201 = math.exp %200 : vector<16x128xf32>
    %cst_62 = arith.constant 1.000000e+00 : f32
    %202 = vector.broadcast %cst_62 : f32 to vector<16x128xf32>
    %203 = arith.addf %202, %201 : vector<16x128xf32>
    %204 = arith.divf %202, %203 : vector<16x128xf32>
    %205 = vector.extract_strided_slice %198 {offsets = [0, 128], sizes = [16, 128], strides = [1, 1]} : vector<16x512xf32> to vector<16x128xf32>
    %206 = arith.negf %205 : vector<16x128xf32>
    %207 = math.exp %206 : vector<16x128xf32>
    %cst_63 = arith.constant 1.000000e+00 : f32
    %208 = vector.broadcast %cst_63 : f32 to vector<16x128xf32>
    %209 = arith.addf %208, %207 : vector<16x128xf32>
    %210 = arith.divf %208, %209 : vector<16x128xf32>
    %211 = vector.extract_strided_slice %198 {offsets = [0, 256], sizes = [16, 128], strides = [1, 1]} : vector<16x512xf32> to vector<16x128xf32>
    %212 = math.tanh %211 : vector<16x128xf32>
    %213 = vector.extract_strided_slice %198 {offsets = [0, 384], sizes = [16, 128], strides = [1, 1]} : vector<16x512xf32> to vector<16x128xf32>
    %214 = arith.negf %213 : vector<16x128xf32>
    %215 = math.exp %214 : vector<16x128xf32>
    %cst_64 = arith.constant 1.000000e+00 : f32
    %216 = vector.broadcast %cst_64 : f32 to vector<16x128xf32>
    %217 = arith.addf %216, %215 : vector<16x128xf32>
    %218 = arith.divf %216, %217 : vector<16x128xf32>
    %219 = arith.mulf %210, %185 : vector<16x128xf32>
    %220 = arith.mulf %204, %212 : vector<16x128xf32>
    %221 = arith.addf %219, %220 : vector<16x128xf32>
    %222 = math.tanh %221 : vector<16x128xf32>
    %223 = arith.mulf %218, %222 : vector<16x128xf32>
    %224 = arith.truncf %223 : vector<16x128xf32> to vector<16x128xbf16>
    %225 = arith.index_cast %192 : i32 to index
    %c0_65 = arith.constant 0 : index
    %226 = vector.load %arg18[%225, %c0_65] : memref<128x128xbf16, #tpu.memory_space<vmem>>, vector<16x128xbf16>
    tpu.vector_store %arg18[%225, %c0_65], %224 {strides = array<i32>} : memref<128x128xbf16, #tpu.memory_space<vmem>>, vector<16x128xbf16>,
    %c6_i32 = arith.constant 6 : i32
    %c16_i32_66 = arith.constant 16 : i32
    %227 = arith.muli %c6_i32, %c16_i32_66 : i32
    %228 = tpu.assume_multiple %227, 16 : i32
    %229 = arith.index_cast %228 : i32 to index
    %c0_67 = arith.constant 0 : index
    %230 = vector.load %arg19[%229, %c0_67] : memref<128x512xf32, #tpu.memory_space<vmem>>, vector<16x512xf32>
    %231 = arith.truncf %223 : vector<16x128xf32> to vector<16x128xbf16>
    %c0_68 = arith.constant 0 : index
    %c0_69 = arith.constant 0 : index
    %232 = vector.load %arg4[%c0_68, %c0_69] : memref<128x512xbf16, #tpu.memory_space<vmem>>, vector<128x512xbf16>
    %cst_70 = arith.constant dense<0.000000e+00> : vector<16x512xf32>
    %233 = tpu.matmul %231, %232, %cst_70 {dimension_numbers = #tpu.dot_dimension_numbers<[1], [0], [0], [1], [0, 0, 1, 1], [], []>} : vector<16x128xbf16>, vector<128x512xbf16>, vector<16x512xf32> -> vector<16x512xf32>
    %234 = arith.addf %230, %233 : vector<16x512xf32>
    %235 = vector.extract_strided_slice %234 {offsets = [0, 0], sizes = [16, 128], strides = [1, 1]} : vector<16x512xf32> to vector<16x128xf32>
    %236 = arith.negf %235 : vector<16x128xf32>
    %237 = math.exp %236 : vector<16x128xf32>
    %cst_71 = arith.constant 1.000000e+00 : f32
    %238 = vector.broadcast %cst_71 : f32 to vector<16x128xf32>
    %239 = arith.addf %238, %237 : vector<16x128xf32>
    %240 = arith.divf %238, %239 : vector<16x128xf32>
    %241 = vector.extract_strided_slice %234 {offsets = [0, 128], sizes = [16, 128], strides = [1, 1]} : vector<16x512xf32> to vector<16x128xf32>
    %242 = arith.negf %241 : vector<16x128xf32>
    %243 = math.exp %242 : vector<16x128xf32>
    %cst_72 = arith.constant 1.000000e+00 : f32
    %244 = vector.broadcast %cst_72 : f32 to vector<16x128xf32>
    %245 = arith.addf %244, %243 : vector<16x128xf32>
    %246 = arith.divf %244, %245 : vector<16x128xf32>
    %247 = vector.extract_strided_slice %234 {offsets = [0, 256], sizes = [16, 128], strides = [1, 1]} : vector<16x512xf32> to vector<16x128xf32>
    %248 = math.tanh %247 : vector<16x128xf32>
    %249 = vector.extract_strided_slice %234 {offsets = [0, 384], sizes = [16, 128], strides = [1, 1]} : vector<16x512xf32> to vector<16x128xf32>
    %250 = arith.negf %249 : vector<16x128xf32>
    %251 = math.exp %250 : vector<16x128xf32>
    %cst_73 = arith.constant 1.000000e+00 : f32
    %252 = vector.broadcast %cst_73 : f32 to vector<16x128xf32>
    %253 = arith.addf %252, %251 : vector<16x128xf32>
    %254 = arith.divf %252, %253 : vector<16x128xf32>
    %255 = arith.mulf %246, %221 : vector<16x128xf32>
    %256 = arith.mulf %240, %248 : vector<16x128xf32>
    %257 = arith.addf %255, %256 : vector<16x128xf32>
    %258 = math.tanh %257 : vector<16x128xf32>
    %259 = arith.mulf %254, %258 : vector<16x128xf32>
    %260 = arith.truncf %259 : vector<16x128xf32> to vector<16x128xbf16>
    %261 = arith.index_cast %228 : i32 to index
    %c0_74 = arith.constant 0 : index
    %262 = vector.load %arg18[%261, %c0_74] : memref<128x128xbf16, #tpu.memory_space<vmem>>, vector<16x128xbf16>
    tpu.vector_store %arg18[%261, %c0_74], %260 {strides = array<i32>} : memref<128x128xbf16, #tpu.memory_space<vmem>>, vector<16x128xbf16>,
    %c7_i32 = arith.constant 7 : i32
    %c16_i32_75 = arith.constant 16 : i32
    %263 = arith.muli %c7_i32, %c16_i32_75 : i32
    %264 = tpu.assume_multiple %263, 16 : i32
    %265 = arith.index_cast %264 : i32 to index
    %c0_76 = arith.constant 0 : index
    %266 = vector.load %arg19[%265, %c0_76] : memref<128x512xf32, #tpu.memory_space<vmem>>, vector<16x512xf32>
    %267 = arith.truncf %259 : vector<16x128xf32> to vector<16x128xbf16>
    %c0_77 = arith.constant 0 : index
    %c0_78 = arith.constant 0 : index
    %268 = vector.load %arg4[%c0_77, %c0_78] : memref<128x512xbf16, #tpu.memory_space<vmem>>, vector<128x512xbf16>
    %cst_79 = arith.constant dense<0.000000e+00> : vector<16x512xf32>
    %269 = tpu.matmul %267, %268, %cst_79 {dimension_numbers = #tpu.dot_dimension_numbers<[1], [0], [0], [1], [0, 0, 1, 1], [], []>} : vector<16x128xbf16>, vector<128x512xbf16>, vector<16x512xf32> -> vector<16x512xf32>
    %270 = arith.addf %266, %269 : vector<16x512xf32>
    %271 = vector.extract_strided_slice %270 {offsets = [0, 0], sizes = [16, 128], strides = [1, 1]} : vector<16x512xf32> to vector<16x128xf32>
    %272 = arith.negf %271 : vector<16x128xf32>
    %273 = math.exp %272 : vector<16x128xf32>
    %cst_80 = arith.constant 1.000000e+00 : f32
    %274 = vector.broadcast %cst_80 : f32 to vector<16x128xf32>
    %275 = arith.addf %274, %273 : vector<16x128xf32>
    %276 = arith.divf %274, %275 : vector<16x128xf32>
    %277 = vector.extract_strided_slice %270 {offsets = [0, 128], sizes = [16, 128], strides = [1, 1]} : vector<16x512xf32> to vector<16x128xf32>
    %278 = arith.negf %277 : vector<16x128xf32>
    %279 = math.exp %278 : vector<16x128xf32>
    %cst_81 = arith.constant 1.000000e+00 : f32
    %280 = vector.broadcast %cst_81 : f32 to vector<16x128xf32>
    %281 = arith.addf %280, %279 : vector<16x128xf32>
    %282 = arith.divf %280, %281 : vector<16x128xf32>
    %283 = vector.extract_strided_slice %270 {offsets = [0, 256], sizes = [16, 128], strides = [1, 1]} : vector<16x512xf32> to vector<16x128xf32>
    %284 = math.tanh %283 : vector<16x128xf32>
    %285 = vector.extract_strided_slice %270 {offsets = [0, 384], sizes = [16, 128], strides = [1, 1]} : vector<16x512xf32> to vector<16x128xf32>
    %286 = arith.negf %285 : vector<16x128xf32>
    %287 = math.exp %286 : vector<16x128xf32>
    %cst_82 = arith.constant 1.000000e+00 : f32
    %288 = vector.broadcast %cst_82 : f32 to vector<16x128xf32>
    %289 = arith.addf %288, %287 : vector<16x128xf32>
    %290 = arith.divf %288, %289 : vector<16x128xf32>
    %291 = arith.mulf %282, %257 : vector<16x128xf32>
    %292 = arith.mulf %276, %284 : vector<16x128xf32>
    %293 = arith.addf %291, %292 : vector<16x128xf32>
    %294 = math.tanh %293 : vector<16x128xf32>
    %295 = arith.mulf %290, %294 : vector<16x128xf32>
    %296 = arith.truncf %295 : vector<16x128xf32> to vector<16x128xbf16>
    %297 = arith.index_cast %264 : i32 to index
    %c0_83 = arith.constant 0 : index
    %298 = vector.load %arg18[%297, %c0_83] : memref<128x128xbf16, #tpu.memory_space<vmem>>, vector<16x128xbf16>
    tpu.vector_store %arg18[%297, %c0_83], %296 {strides = array<i32>} : memref<128x128xbf16, #tpu.memory_space<vmem>>, vector<16x128xbf16>,
    %c8_i32 = arith.constant 8 : i32
    %c0_84 = arith.constant 0 : index
    %c0_85 = arith.constant 0 : index
    %299 = vector.load %arg18[%c0_84, %c0_85] : memref<128x128xbf16, #tpu.memory_space<vmem>>, vector<128x128xbf16>
    %c0_86 = arith.constant 0 : index
    %c0_87 = arith.constant 0 : index
    %300 = vector.load %arg6[%c0_86, %c0_87] : memref<128x512xbf16, #tpu.memory_space<vmem>>, vector<128x512xbf16>
    %cst_88 = arith.constant dense<0.000000e+00> : vector<128x512xf32>
    %301 = tpu.matmul %299, %300, %cst_88 {dimension_numbers = #tpu.dot_dimension_numbers<[1], [0], [0], [1], [0, 0, 1, 1], [], []>} : vector<128x128xbf16>, vector<128x512xbf16>, vector<128x512xf32> -> vector<128x512xf32>
    %c0_89 = arith.constant 0 : index
    %c0_90 = arith.constant 0 : index
    %302 = vector.load %arg8[%c0_89, %c0_90] : memref<1x512xf32, #tpu.memory_space<vmem>>, vector<1x512xf32>
    %303 = vector.broadcast %302 : vector<1x512xf32> to vector<128x512xf32>
    %304 = arith.addf %301, %303 : vector<128x512xf32>
    %c0_91 = arith.constant 0 : index
    %c0_92 = arith.constant 0 : index
    %305 = vector.load %arg19[%c0_91, %c0_92] : memref<128x512xf32, #tpu.memory_space<vmem>>, vector<128x512xf32>
    tpu.vector_store %arg19[%c0_91, %c0_92], %304 {strides = array<i32>} : memref<128x512xf32, #tpu.memory_space<vmem>>, vector<128x512xf32>,
    %c1 = arith.constant 1 : index
    %c0_93 = arith.constant 0 : index
    %c0_94 = arith.constant 0 : index
    %306 = vector.load %arg1[%c1, %c0_93, %c0_94] : memref<2x16x128xf32, #tpu.memory_space<vmem>>, vector<1x16x128xf32>
    %307 = vector.shape_cast %306 : vector<1x16x128xf32> to vector<16x128xf32>
    %c1_95 = arith.constant 1 : index
    %c0_96 = arith.constant 0 : index
    %c0_97 = arith.constant 0 : index
    %308 = vector.load %arg2[%c1_95, %c0_96, %c0_97] : memref<2x16x128xf32, #tpu.memory_space<vmem>>, vector<1x16x128xf32>
    %309 = vector.shape_cast %308 : vector<1x16x128xf32> to vector<16x128xf32>
    %c0_i32_98 = arith.constant 0 : i32
    %c16_i32_99 = arith.constant 16 : i32
    %310 = arith.muli %c0_i32_98, %c16_i32_99 : i32
    %311 = tpu.assume_multiple %310, 16 : i32
    %312 = arith.index_cast %311 : i32 to index
    %c0_100 = arith.constant 0 : index
    %313 = vector.load %arg19[%312, %c0_100] : memref<128x512xf32, #tpu.memory_space<vmem>>, vector<16x512xf32>
    %314 = arith.truncf %307 : vector<16x128xf32> to vector<16x128xbf16>
    %c0_101 = arith.constant 0 : index
    %c0_102 = arith.constant 0 : index
    %315 = vector.load %arg7[%c0_101, %c0_102] : memref<128x512xbf16, #tpu.memory_space<vmem>>, vector<128x512xbf16>
    %cst_103 = arith.constant dense<0.000000e+00> : vector<16x512xf32>
    %316 = tpu.matmul %314, %315, %cst_103 {dimension_numbers = #tpu.dot_dimension_numbers<[1], [0], [0], [1], [0, 0, 1, 1], [], []>} : vector<16x128xbf16>, vector<128x512xbf16>, vector<16x512xf32> -> vector<16x512xf32>
    %317 = arith.addf %313, %316 : vector<16x512xf32>
    %318 = vector.extract_strided_slice %317 {offsets = [0, 0], sizes = [16, 128], strides = [1, 1]} : vector<16x512xf32> to vector<16x128xf32>
    %319 = arith.negf %318 : vector<16x128xf32>
    %320 = math.exp %319 : vector<16x128xf32>
    %cst_104 = arith.constant 1.000000e+00 : f32
    %321 = vector.broadcast %cst_104 : f32 to vector<16x128xf32>
    %322 = arith.addf %321, %320 : vector<16x128xf32>
    %323 = arith.divf %321, %322 : vector<16x128xf32>
    %324 = vector.extract_strided_slice %317 {offsets = [0, 128], sizes = [16, 128], strides = [1, 1]} : vector<16x512xf32> to vector<16x128xf32>
    %325 = arith.negf %324 : vector<16x128xf32>
    %326 = math.exp %325 : vector<16x128xf32>
    %cst_105 = arith.constant 1.000000e+00 : f32
    %327 = vector.broadcast %cst_105 : f32 to vector<16x128xf32>
    %328 = arith.addf %327, %326 : vector<16x128xf32>
    %329 = arith.divf %327, %328 : vector<16x128xf32>
    %330 = vector.extract_strided_slice %317 {offsets = [0, 256], sizes = [16, 128], strides = [1, 1]} : vector<16x512xf32> to vector<16x128xf32>
    %331 = math.tanh %330 : vector<16x128xf32>
    %332 = vector.extract_strided_slice %317 {offsets = [0, 384], sizes = [16, 128], strides = [1, 1]} : vector<16x512xf32> to vector<16x128xf32>
    %333 = arith.negf %332 : vector<16x128xf32>
    %334 = math.exp %333 : vector<16x128xf32>
    %cst_106 = arith.constant 1.000000e+00 : f32
    %335 = vector.broadcast %cst_106 : f32 to vector<16x128xf32>
    %336 = arith.addf %335, %334 : vector<16x128xf32>
    %337 = arith.divf %335, %336 : vector<16x128xf32>
    %338 = arith.mulf %329, %309 : vector<16x128xf32>
    %339 = arith.mulf %323, %331 : vector<16x128xf32>
    %340 = arith.addf %338, %339 : vector<16x128xf32>
    %341 = math.tanh %340 : vector<16x128xf32>
    %342 = arith.mulf %337, %341 : vector<16x128xf32>
    %c1_i32_107 = arith.constant 1 : i32
    %c16_i32_108 = arith.constant 16 : i32
    %343 = arith.muli %c1_i32_107, %c16_i32_108 : i32
    %344 = tpu.assume_multiple %343, 16 : i32
    %345 = arith.index_cast %344 : i32 to index
    %c0_109 = arith.constant 0 : index
    %346 = vector.load %arg19[%345, %c0_109] : memref<128x512xf32, #tpu.memory_space<vmem>>, vector<16x512xf32>
    %347 = arith.truncf %342 : vector<16x128xf32> to vector<16x128xbf16>
    %c0_110 = arith.constant 0 : index
    %c0_111 = arith.constant 0 : index
    %348 = vector.load %arg7[%c0_110, %c0_111] : memref<128x512xbf16, #tpu.memory_space<vmem>>, vector<128x512xbf16>
    %cst_112 = arith.constant dense<0.000000e+00> : vector<16x512xf32>
    %349 = tpu.matmul %347, %348, %cst_112 {dimension_numbers = #tpu.dot_dimension_numbers<[1], [0], [0], [1], [0, 0, 1, 1], [], []>} : vector<16x128xbf16>, vector<128x512xbf16>, vector<16x512xf32> -> vector<16x512xf32>
    %350 = arith.addf %346, %349 : vector<16x512xf32>
    %351 = vector.extract_strided_slice %350 {offsets = [0, 0], sizes = [16, 128], strides = [1, 1]} : vector<16x512xf32> to vector<16x128xf32>
    %352 = arith.negf %351 : vector<16x128xf32>
    %353 = math.exp %352 : vector<16x128xf32>
    %cst_113 = arith.constant 1.000000e+00 : f32
    %354 = vector.broadcast %cst_113 : f32 to vector<16x128xf32>
    %355 = arith.addf %354, %353 : vector<16x128xf32>
    %356 = arith.divf %354, %355 : vector<16x128xf32>
    %357 = vector.extract_strided_slice %350 {offsets = [0, 128], sizes = [16, 128], strides = [1, 1]} : vector<16x512xf32> to vector<16x128xf32>
    %358 = arith.negf %357 : vector<16x128xf32>
    %359 = math.exp %358 : vector<16x128xf32>
    %cst_114 = arith.constant 1.000000e+00 : f32
    %360 = vector.broadcast %cst_114 : f32 to vector<16x128xf32>
    %361 = arith.addf %360, %359 : vector<16x128xf32>
    %362 = arith.divf %360, %361 : vector<16x128xf32>
    %363 = vector.extract_strided_slice %350 {offsets = [0, 256], sizes = [16, 128], strides = [1, 1]} : vector<16x512xf32> to vector<16x128xf32>
    %364 = math.tanh %363 : vector<16x128xf32>
    %365 = vector.extract_strided_slice %350 {offsets = [0, 384], sizes = [16, 128], strides = [1, 1]} : vector<16x512xf32> to vector<16x128xf32>
    %366 = arith.negf %365 : vector<16x128xf32>
    %367 = math.exp %366 : vector<16x128xf32>
    %cst_115 = arith.constant 1.000000e+00 : f32
    %368 = vector.broadcast %cst_115 : f32 to vector<16x128xf32>
    %369 = arith.addf %368, %367 : vector<16x128xf32>
    %370 = arith.divf %368, %369 : vector<16x128xf32>
    %371 = arith.mulf %362, %340 : vector<16x128xf32>
    %372 = arith.mulf %356, %364 : vector<16x128xf32>
    %373 = arith.addf %371, %372 : vector<16x128xf32>
    %374 = math.tanh %373 : vector<16x128xf32>
    %375 = arith.mulf %370, %374 : vector<16x128xf32>
    %c2_i32_116 = arith.constant 2 : i32
    %c16_i32_117 = arith.constant 16 : i32
    %376 = arith.muli %c2_i32_116, %c16_i32_117 : i32
    %377 = tpu.assume_multiple %376, 16 : i32
    %378 = arith.index_cast %377 : i32 to index
    %c0_118 = arith.constant 0 : index
    %379 = vector.load %arg19[%378, %c0_118] : memref<128x512xf32, #tpu.memory_space<vmem>>, vector<16x512xf32>
    %380 = arith.truncf %375 : vector<16x128xf32> to vector<16x128xbf16>
    %c0_119 = arith.constant 0 : index
    %c0_120 = arith.constant 0 : index
    %381 = vector.load %arg7[%c0_119, %c0_120] : memref<128x512xbf16, #tpu.memory_space<vmem>>, vector<128x512xbf16>
    %cst_121 = arith.constant dense<0.000000e+00> : vector<16x512xf32>
    %382 = tpu.matmul %380, %381, %cst_121 {dimension_numbers = #tpu.dot_dimension_numbers<[1], [0], [0], [1], [0, 0, 1, 1], [], []>} : vector<16x128xbf16>, vector<128x512xbf16>, vector<16x512xf32> -> vector<16x512xf32>
    %383 = arith.addf %379, %382 : vector<16x512xf32>
    %384 = vector.extract_strided_slice %383 {offsets = [0, 0], sizes = [16, 128], strides = [1, 1]} : vector<16x512xf32> to vector<16x128xf32>
    %385 = arith.negf %384 : vector<16x128xf32>
    %386 = math.exp %385 : vector<16x128xf32>
    %cst_122 = arith.constant 1.000000e+00 : f32
    %387 = vector.broadcast %cst_122 : f32 to vector<16x128xf32>
    %388 = arith.addf %387, %386 : vector<16x128xf32>
    %389 = arith.divf %387, %388 : vector<16x128xf32>
    %390 = vector.extract_strided_slice %383 {offsets = [0, 128], sizes = [16, 128], strides = [1, 1]} : vector<16x512xf32> to vector<16x128xf32>
    %391 = arith.negf %390 : vector<16x128xf32>
    %392 = math.exp %391 : vector<16x128xf32>
    %cst_123 = arith.constant 1.000000e+00 : f32
    %393 = vector.broadcast %cst_123 : f32 to vector<16x128xf32>
    %394 = arith.addf %393, %392 : vector<16x128xf32>
    %395 = arith.divf %393, %394 : vector<16x128xf32>
    %396 = vector.extract_strided_slice %383 {offsets = [0, 256], sizes = [16, 128], strides = [1, 1]} : vector<16x512xf32> to vector<16x128xf32>
    %397 = math.tanh %396 : vector<16x128xf32>
    %398 = vector.extract_strided_slice %383 {offsets = [0, 384], sizes = [16, 128], strides = [1, 1]} : vector<16x512xf32> to vector<16x128xf32>
    %399 = arith.negf %398 : vector<16x128xf32>
    %400 = math.exp %399 : vector<16x128xf32>
    %cst_124 = arith.constant 1.000000e+00 : f32
    %401 = vector.broadcast %cst_124 : f32 to vector<16x128xf32>
    %402 = arith.addf %401, %400 : vector<16x128xf32>
    %403 = arith.divf %401, %402 : vector<16x128xf32>
    %404 = arith.mulf %395, %373 : vector<16x128xf32>
    %405 = arith.mulf %389, %397 : vector<16x128xf32>
    %406 = arith.addf %404, %405 : vector<16x128xf32>
    %407 = math.tanh %406 : vector<16x128xf32>
    %408 = arith.mulf %403, %407 : vector<16x128xf32>
    %c3_i32_125 = arith.constant 3 : i32
    %c16_i32_126 = arith.constant 16 : i32
    %409 = arith.muli %c3_i32_125, %c16_i32_126 : i32
    %410 = tpu.assume_multiple %409, 16 : i32
    %411 = arith.index_cast %410 : i32 to index
    %c0_127 = arith.constant 0 : index
    %412 = vector.load %arg19[%411, %c0_127] : memref<128x512xf32, #tpu.memory_space<vmem>>, vector<16x512xf32>
    %413 = arith.truncf %408 : vector<16x128xf32> to vector<16x128xbf16>
    %c0_128 = arith.constant 0 : index
    %c0_129 = arith.constant 0 : index
    %414 = vector.load %arg7[%c0_128, %c0_129] : memref<128x512xbf16, #tpu.memory_space<vmem>>, vector<128x512xbf16>
    %cst_130 = arith.constant dense<0.000000e+00> : vector<16x512xf32>
    %415 = tpu.matmul %413, %414, %cst_130 {dimension_numbers = #tpu.dot_dimension_numbers<[1], [0], [0], [1], [0, 0, 1, 1], [], []>} : vector<16x128xbf16>, vector<128x512xbf16>, vector<16x512xf32> -> vector<16x512xf32>
    %416 = arith.addf %412, %415 : vector<16x512xf32>
    %417 = vector.extract_strided_slice %416 {offsets = [0, 0], sizes = [16, 128], strides = [1, 1]} : vector<16x512xf32> to vector<16x128xf32>
    %418 = arith.negf %417 : vector<16x128xf32>
    %419 = math.exp %418 : vector<16x128xf32>
    %cst_131 = arith.constant 1.000000e+00 : f32
    %420 = vector.broadcast %cst_131 : f32 to vector<16x128xf32>
    %421 = arith.addf %420, %419 : vector<16x128xf32>
    %422 = arith.divf %420, %421 : vector<16x128xf32>
    %423 = vector.extract_strided_slice %416 {offsets = [0, 128], sizes = [16, 128], strides = [1, 1]} : vector<16x512xf32> to vector<16x128xf32>
    %424 = arith.negf %423 : vector<16x128xf32>
    %425 = math.exp %424 : vector<16x128xf32>
    %cst_132 = arith.constant 1.000000e+00 : f32
    %426 = vector.broadcast %cst_132 : f32 to vector<16x128xf32>
    %427 = arith.addf %426, %425 : vector<16x128xf32>
    %428 = arith.divf %426, %427 : vector<16x128xf32>
    %429 = vector.extract_strided_slice %416 {offsets = [0, 256], sizes = [16, 128], strides = [1, 1]} : vector<16x512xf32> to vector<16x128xf32>
    %430 = math.tanh %429 : vector<16x128xf32>
    %431 = vector.extract_strided_slice %416 {offsets = [0, 384], sizes = [16, 128], strides = [1, 1]} : vector<16x512xf32> to vector<16x128xf32>
    %432 = arith.negf %431 : vector<16x128xf32>
    %433 = math.exp %432 : vector<16x128xf32>
    %cst_133 = arith.constant 1.000000e+00 : f32
    %434 = vector.broadcast %cst_133 : f32 to vector<16x128xf32>
    %435 = arith.addf %434, %433 : vector<16x128xf32>
    %436 = arith.divf %434, %435 : vector<16x128xf32>
    %437 = arith.mulf %428, %406 : vector<16x128xf32>
    %438 = arith.mulf %422, %430 : vector<16x128xf32>
    %439 = arith.addf %437, %438 : vector<16x128xf32>
    %440 = math.tanh %439 : vector<16x128xf32>
    %441 = arith.mulf %436, %440 : vector<16x128xf32>
    %c4_i32_134 = arith.constant 4 : i32
    %c16_i32_135 = arith.constant 16 : i32
    %442 = arith.muli %c4_i32_134, %c16_i32_135 : i32
    %443 = tpu.assume_multiple %442, 16 : i32
    %444 = arith.index_cast %443 : i32 to index
    %c0_136 = arith.constant 0 : index
    %445 = vector.load %arg19[%444, %c0_136] : memref<128x512xf32, #tpu.memory_space<vmem>>, vector<16x512xf32>
    %446 = arith.truncf %441 : vector<16x128xf32> to vector<16x128xbf16>
    %c0_137 = arith.constant 0 : index
    %c0_138 = arith.constant 0 : index
    %447 = vector.load %arg7[%c0_137, %c0_138] : memref<128x512xbf16, #tpu.memory_space<vmem>>, vector<128x512xbf16>
    %cst_139 = arith.constant dense<0.000000e+00> : vector<16x512xf32>
    %448 = tpu.matmul %446, %447, %cst_139 {dimension_numbers = #tpu.dot_dimension_numbers<[1], [0], [0], [1], [0, 0, 1, 1], [], []>} : vector<16x128xbf16>, vector<128x512xbf16>, vector<16x512xf32> -> vector<16x512xf32>
    %449 = arith.addf %445, %448 : vector<16x512xf32>
    %450 = vector.extract_strided_slice %449 {offsets = [0, 0], sizes = [16, 128], strides = [1, 1]} : vector<16x512xf32> to vector<16x128xf32>
    %451 = arith.negf %450 : vector<16x128xf32>
    %452 = math.exp %451 : vector<16x128xf32>
    %cst_140 = arith.constant 1.000000e+00 : f32
    %453 = vector.broadcast %cst_140 : f32 to vector<16x128xf32>
    %454 = arith.addf %453, %452 : vector<16x128xf32>
    %455 = arith.divf %453, %454 : vector<16x128xf32>
    %456 = vector.extract_strided_slice %449 {offsets = [0, 128], sizes = [16, 128], strides = [1, 1]} : vector<16x512xf32> to vector<16x128xf32>
    %457 = arith.negf %456 : vector<16x128xf32>
    %458 = math.exp %457 : vector<16x128xf32>
    %cst_141 = arith.constant 1.000000e+00 : f32
    %459 = vector.broadcast %cst_141 : f32 to vector<16x128xf32>
    %460 = arith.addf %459, %458 : vector<16x128xf32>
    %461 = arith.divf %459, %460 : vector<16x128xf32>
    %462 = vector.extract_strided_slice %449 {offsets = [0, 256], sizes = [16, 128], strides = [1, 1]} : vector<16x512xf32> to vector<16x128xf32>
    %463 = math.tanh %462 : vector<16x128xf32>
    %464 = vector.extract_strided_slice %449 {offsets = [0, 384], sizes = [16, 128], strides = [1, 1]} : vector<16x512xf32> to vector<16x128xf32>
    %465 = arith.negf %464 : vector<16x128xf32>
    %466 = math.exp %465 : vector<16x128xf32>
    %cst_142 = arith.constant 1.000000e+00 : f32
    %467 = vector.broadcast %cst_142 : f32 to vector<16x128xf32>
    %468 = arith.addf %467, %466 : vector<16x128xf32>
    %469 = arith.divf %467, %468 : vector<16x128xf32>
    %470 = arith.mulf %461, %439 : vector<16x128xf32>
    %471 = arith.mulf %455, %463 : vector<16x128xf32>
    %472 = arith.addf %470, %471 : vector<16x128xf32>
    %473 = math.tanh %472 : vector<16x128xf32>
    %474 = arith.mulf %469, %473 : vector<16x128xf32>
    %c5_i32_143 = arith.constant 5 : i32
    %c16_i32_144 = arith.constant 16 : i32
    %475 = arith.muli %c5_i32_143, %c16_i32_144 : i32
    %476 = tpu.assume_multiple %475, 16 : i32
    %477 = arith.index_cast %476 : i32 to index
    %c0_145 = arith.constant 0 : index
    %478 = vector.load %arg19[%477, %c0_145] : memref<128x512xf32, #tpu.memory_space<vmem>>, vector<16x512xf32>
    %479 = arith.truncf %474 : vector<16x128xf32> to vector<16x128xbf16>
    %c0_146 = arith.constant 0 : index
    %c0_147 = arith.constant 0 : index
    %480 = vector.load %arg7[%c0_146, %c0_147] : memref<128x512xbf16, #tpu.memory_space<vmem>>, vector<128x512xbf16>
    %cst_148 = arith.constant dense<0.000000e+00> : vector<16x512xf32>
    %481 = tpu.matmul %479, %480, %cst_148 {dimension_numbers = #tpu.dot_dimension_numbers<[1], [0], [0], [1], [0, 0, 1, 1], [], []>} : vector<16x128xbf16>, vector<128x512xbf16>, vector<16x512xf32> -> vector<16x512xf32>
    %482 = arith.addf %478, %481 : vector<16x512xf32>
    %483 = vector.extract_strided_slice %482 {offsets = [0, 0], sizes = [16, 128], strides = [1, 1]} : vector<16x512xf32> to vector<16x128xf32>
    %484 = arith.negf %483 : vector<16x128xf32>
    %485 = math.exp %484 : vector<16x128xf32>
    %cst_149 = arith.constant 1.000000e+00 : f32
    %486 = vector.broadcast %cst_149 : f32 to vector<16x128xf32>
    %487 = arith.addf %486, %485 : vector<16x128xf32>
    %488 = arith.divf %486, %487 : vector<16x128xf32>
    %489 = vector.extract_strided_slice %482 {offsets = [0, 128], sizes = [16, 128], strides = [1, 1]} : vector<16x512xf32> to vector<16x128xf32>
    %490 = arith.negf %489 : vector<16x128xf32>
    %491 = math.exp %490 : vector<16x128xf32>
    %cst_150 = arith.constant 1.000000e+00 : f32
    %492 = vector.broadcast %cst_150 : f32 to vector<16x128xf32>
    %493 = arith.addf %492, %491 : vector<16x128xf32>
    %494 = arith.divf %492, %493 : vector<16x128xf32>
    %495 = vector.extract_strided_slice %482 {offsets = [0, 256], sizes = [16, 128], strides = [1, 1]} : vector<16x512xf32> to vector<16x128xf32>
    %496 = math.tanh %495 : vector<16x128xf32>
    %497 = vector.extract_strided_slice %482 {offsets = [0, 384], sizes = [16, 128], strides = [1, 1]} : vector<16x512xf32> to vector<16x128xf32>
    %498 = arith.negf %497 : vector<16x128xf32>
    %499 = math.exp %498 : vector<16x128xf32>
    %cst_151 = arith.constant 1.000000e+00 : f32
    %500 = vector.broadcast %cst_151 : f32 to vector<16x128xf32>
    %501 = arith.addf %500, %499 : vector<16x128xf32>
    %502 = arith.divf %500, %501 : vector<16x128xf32>
    %503 = arith.mulf %494, %472 : vector<16x128xf32>
    %504 = arith.mulf %488, %496 : vector<16x128xf32>
    %505 = arith.addf %503, %504 : vector<16x128xf32>
    %506 = math.tanh %505 : vector<16x128xf32>
    %507 = arith.mulf %502, %506 : vector<16x128xf32>
    %c6_i32_152 = arith.constant 6 : i32
    %c16_i32_153 = arith.constant 16 : i32
    %508 = arith.muli %c6_i32_152, %c16_i32_153 : i32
    %509 = tpu.assume_multiple %508, 16 : i32
    %510 = arith.index_cast %509 : i32 to index
    %c0_154 = arith.constant 0 : index
    %511 = vector.load %arg19[%510, %c0_154] : memref<128x512xf32, #tpu.memory_space<vmem>>, vector<16x512xf32>
    %512 = arith.truncf %507 : vector<16x128xf32> to vector<16x128xbf16>
    %c0_155 = arith.constant 0 : index
    %c0_156 = arith.constant 0 : index
    %513 = vector.load %arg7[%c0_155, %c0_156] : memref<128x512xbf16, #tpu.memory_space<vmem>>, vector<128x512xbf16>
    %cst_157 = arith.constant dense<0.000000e+00> : vector<16x512xf32>
    %514 = tpu.matmul %512, %513, %cst_157 {dimension_numbers = #tpu.dot_dimension_numbers<[1], [0], [0], [1], [0, 0, 1, 1], [], []>} : vector<16x128xbf16>, vector<128x512xbf16>, vector<16x512xf32> -> vector<16x512xf32>
    %515 = arith.addf %511, %514 : vector<16x512xf32>
    %516 = vector.extract_strided_slice %515 {offsets = [0, 0], sizes = [16, 128], strides = [1, 1]} : vector<16x512xf32> to vector<16x128xf32>
    %517 = arith.negf %516 : vector<16x128xf32>
    %518 = math.exp %517 : vector<16x128xf32>
    %cst_158 = arith.constant 1.000000e+00 : f32
    %519 = vector.broadcast %cst_158 : f32 to vector<16x128xf32>
    %520 = arith.addf %519, %518 : vector<16x128xf32>
    %521 = arith.divf %519, %520 : vector<16x128xf32>
    %522 = vector.extract_strided_slice %515 {offsets = [0, 128], sizes = [16, 128], strides = [1, 1]} : vector<16x512xf32> to vector<16x128xf32>
    %523 = arith.negf %522 : vector<16x128xf32>
    %524 = math.exp %523 : vector<16x128xf32>
    %cst_159 = arith.constant 1.000000e+00 : f32
    %525 = vector.broadcast %cst_159 : f32 to vector<16x128xf32>
    %526 = arith.addf %525, %524 : vector<16x128xf32>
    %527 = arith.divf %525, %526 : vector<16x128xf32>
    %528 = vector.extract_strided_slice %515 {offsets = [0, 256], sizes = [16, 128], strides = [1, 1]} : vector<16x512xf32> to vector<16x128xf32>
    %529 = math.tanh %528 : vector<16x128xf32>
    %530 = vector.extract_strided_slice %515 {offsets = [0, 384], sizes = [16, 128], strides = [1, 1]} : vector<16x512xf32> to vector<16x128xf32>
    %531 = arith.negf %530 : vector<16x128xf32>
    %532 = math.exp %531 : vector<16x128xf32>
    %cst_160 = arith.constant 1.000000e+00 : f32
    %533 = vector.broadcast %cst_160 : f32 to vector<16x128xf32>
    %534 = arith.addf %533, %532 : vector<16x128xf32>
    %535 = arith.divf %533, %534 : vector<16x128xf32>
    %536 = arith.mulf %527, %505 : vector<16x128xf32>
    %537 = arith.mulf %521, %529 : vector<16x128xf32>
    %538 = arith.addf %536, %537 : vector<16x128xf32>
    %539 = math.tanh %538 : vector<16x128xf32>
    %540 = arith.mulf %535, %539 : vector<16x128xf32>
    %c7_i32_161 = arith.constant 7 : i32
    %c16_i32_162 = arith.constant 16 : i32
    %541 = arith.muli %c7_i32_161, %c16_i32_162 : i32
    %542 = tpu.assume_multiple %541, 16 : i32
    %543 = arith.index_cast %542 : i32 to index
    %c0_163 = arith.constant 0 : index
    %544 = vector.load %arg19[%543, %c0_163] : memref<128x512xf32, #tpu.memory_space<vmem>>, vector<16x512xf32>
    %545 = arith.truncf %540 : vector<16x128xf32> to vector<16x128xbf16>
    %c0_164 = arith.constant 0 : index
    %c0_165 = arith.constant 0 : index
    %546 = vector.load %arg7[%c0_164, %c0_165] : memref<128x512xbf16, #tpu.memory_space<vmem>>, vector<128x512xbf16>
    %cst_166 = arith.constant dense<0.000000e+00> : vector<16x512xf32>
    %547 = tpu.matmul %545, %546, %cst_166 {dimension_numbers = #tpu.dot_dimension_numbers<[1], [0], [0], [1], [0, 0, 1, 1], [], []>} : vector<16x128xbf16>, vector<128x512xbf16>, vector<16x512xf32> -> vector<16x512xf32>
    %548 = arith.addf %544, %547 : vector<16x512xf32>
    %549 = vector.extract_strided_slice %548 {offsets = [0, 0], sizes = [16, 128], strides = [1, 1]} : vector<16x512xf32> to vector<16x128xf32>
    %550 = arith.negf %549 : vector<16x128xf32>
    %551 = math.exp %550 : vector<16x128xf32>
    %cst_167 = arith.constant 1.000000e+00 : f32
    %552 = vector.broadcast %cst_167 : f32 to vector<16x128xf32>
    %553 = arith.addf %552, %551 : vector<16x128xf32>
    %554 = arith.divf %552, %553 : vector<16x128xf32>
    %555 = vector.extract_strided_slice %548 {offsets = [0, 128], sizes = [16, 128], strides = [1, 1]} : vector<16x512xf32> to vector<16x128xf32>
    %556 = arith.negf %555 : vector<16x128xf32>
    %557 = math.exp %556 : vector<16x128xf32>
    %cst_168 = arith.constant 1.000000e+00 : f32
    %558 = vector.broadcast %cst_168 : f32 to vector<16x128xf32>
    %559 = arith.addf %558, %557 : vector<16x128xf32>
    %560 = arith.divf %558, %559 : vector<16x128xf32>
    %561 = vector.extract_strided_slice %548 {offsets = [0, 256], sizes = [16, 128], strides = [1, 1]} : vector<16x512xf32> to vector<16x128xf32>
    %562 = math.tanh %561 : vector<16x128xf32>
    %563 = vector.extract_strided_slice %548 {offsets = [0, 384], sizes = [16, 128], strides = [1, 1]} : vector<16x512xf32> to vector<16x128xf32>
    %564 = arith.negf %563 : vector<16x128xf32>
    %565 = math.exp %564 : vector<16x128xf32>
    %cst_169 = arith.constant 1.000000e+00 : f32
    %566 = vector.broadcast %cst_169 : f32 to vector<16x128xf32>
    %567 = arith.addf %566, %565 : vector<16x128xf32>
    %568 = arith.divf %566, %567 : vector<16x128xf32>
    %569 = arith.mulf %560, %538 : vector<16x128xf32>
    %570 = arith.mulf %554, %562 : vector<16x128xf32>
    %571 = arith.addf %569, %570 : vector<16x128xf32>
    %572 = math.tanh %571 : vector<16x128xf32>
    %573 = arith.mulf %568, %572 : vector<16x128xf32>
    %c8_i32_170 = arith.constant 8 : i32
    %574 = arith.truncf %573 : vector<16x128xf32> to vector<16x128xbf16>
    %c0_171 = arith.constant 0 : index
    %c0_172 = arith.constant 0 : index
    %575 = vector.load %arg9[%c0_171, %c0_172] : memref<128x256xbf16, #tpu.memory_space<vmem>>, vector<128x256xbf16>
    %cst_173 = arith.constant dense<0.000000e+00> : vector<16x256xf32>
    %576 = tpu.matmul %574, %575, %cst_173 {dimension_numbers = #tpu.dot_dimension_numbers<[1], [0], [0], [1], [0, 0, 1, 1], [], []>} : vector<16x128xbf16>, vector<128x256xbf16>, vector<16x256xf32> -> vector<16x256xf32>
    %c0_174 = arith.constant 0 : index
    %c0_175 = arith.constant 0 : index
    %577 = vector.load %arg10[%c0_174, %c0_175] : memref<1x256xf32, #tpu.memory_space<vmem>>, vector<1x256xf32>
    %578 = vector.broadcast %577 : vector<1x256xf32> to vector<16x256xf32>
    %579 = arith.addf %576, %578 : vector<16x256xf32>
    %580 = vector.extract_strided_slice %579 {offsets = [0, 0], sizes = [16, 128], strides = [1, 1]} : vector<16x256xf32> to vector<16x128xf32>
    %581 = math.tanh %580 : vector<16x128xf32>
    %582 = vector.extract_strided_slice %579 {offsets = [0, 128], sizes = [16, 128], strides = [1, 1]} : vector<16x256xf32> to vector<16x128xf32>
    %583 = math.tanh %582 : vector<16x128xf32>
    %c0_176 = arith.constant 0 : index
    %c0_177 = arith.constant 0 : index
    %584 = vector.load %arg17[%c0_176, %c0_177] : memref<16x128xf32, #tpu.memory_space<vmem>>, vector<16x128xf32>
    tpu.vector_store %arg17[%c0_176, %c0_177], %583 {strides = array<i32>} : memref<16x128xf32, #tpu.memory_space<vmem>>, vector<16x128xf32>,
    %585 = arith.truncf %581 : vector<16x128xf32> to vector<16x128xbf16>
    %c0_178 = arith.constant 0 : index
    %c0_179 = arith.constant 0 : index
    %586 = vector.load %arg11[%c0_178, %c0_179] : memref<128x128xbf16, #tpu.memory_space<vmem>>, vector<128x128xbf16>
    %cst_180 = arith.constant dense<0.000000e+00> : vector<16x128xf32>
    %587 = tpu.matmul %585, %586, %cst_180 {dimension_numbers = #tpu.dot_dimension_numbers<[1], [0], [0], [1], [0, 0, 1, 1], [], []>} : vector<16x128xbf16>, vector<128x128xbf16>, vector<16x128xf32> -> vector<16x128xf32>
    %c0_181 = arith.constant 0 : index
    %c0_182 = arith.constant 0 : index
    %588 = vector.load %arg12[%c0_181, %c0_182] : memref<1x128xf32, #tpu.memory_space<vmem>>, vector<1x128xf32>
    %589 = vector.broadcast %588 : vector<1x128xf32> to vector<16x128xf32>
    %590 = arith.addf %587, %589 : vector<16x128xf32>
    %c0_183 = arith.constant 0 : index
    %c0_184 = arith.constant 0 : index
    %591 = vector.load %arg15[%c0_183, %c0_184] : memref<16x128xf32, #tpu.memory_space<vmem>>, vector<16x128xf32>
    tpu.vector_store %arg15[%c0_183, %c0_184], %590 {strides = array<i32>} : memref<16x128xf32, #tpu.memory_space<vmem>>, vector<16x128xf32>,
    %592 = arith.truncf %583 : vector<16x128xf32> to vector<16x128xbf16>
    %c0_185 = arith.constant 0 : index
    %c0_186 = arith.constant 0 : index
    %593 = vector.load %arg13[%c0_185, %c0_186] : memref<128x128xbf16, #tpu.memory_space<vmem>>, vector<128x128xbf16>
    %cst_187 = arith.constant dense<0.000000e+00> : vector<16x128xf32>
    %594 = tpu.matmul %592, %593, %cst_187 {dimension_numbers = #tpu.dot_dimension_numbers<[1], [0], [0], [1], [0, 0, 1, 1], [], []>} : vector<16x128xbf16>, vector<128x128xbf16>, vector<16x128xf32> -> vector<16x128xf32>
    %c0_188 = arith.constant 0 : index
    %c0_189 = arith.constant 0 : index
    %595 = vector.load %arg14[%c0_188, %c0_189] : memref<1x128xf32, #tpu.memory_space<vmem>>, vector<1x128xf32>
    %596 = vector.broadcast %595 : vector<1x128xf32> to vector<16x128xf32>
    %597 = arith.addf %594, %596 : vector<16x128xf32>
    %c0_190 = arith.constant 0 : index
    %c0_191 = arith.constant 0 : index
    %598 = vector.load %arg16[%c0_190, %c0_191] : memref<16x128xf32, #tpu.memory_space<vmem>>, vector<16x128xf32>
    tpu.vector_store %arg16[%c0_190, %c0_191], %597 {strides = array<i32>} : memref<16x128xf32, #tpu.memory_space<vmem>>, vector<16x128xf32>,
    return
  }
}

</mosaic_0001>

<llo_original>
// kernel: lstm_multitask_forward.1
$region0: #{lstm_multitask_forward.1}
  #allocation0 [shape = 'u32[]', space=smem, size = 0x4, offset = 0x4, fixed_abs, tag = 'smem constant byte address 0x4 - core index']
  #allocation1 [shape = 'u32[144,128]{1,0:T(1,128)}', space=vmem, size = 0x12000, scoped, tag = 'internal scratch']
  #allocation2 [shape = 'bf16[128,128]{1,0:T(8,128)(2,1)}', space=vmem, size = 0x8000, scoped, tag = 'scratch operand']
  #allocation3 [shape = 'f32[128,512]{1,0:T(8,128)}', space=vmem, size = 0x40000, scoped, tag = 'scratch operand']
  %s0 = inlined_call_operand.vmem [shape: bf16[128,128], index: 0, kind: input, shape index: {}]
  %s1 = inlined_call_operand.vmem [shape: f32[2,16,128], index: 1, kind: input, shape index: {}]
  %s2 = inlined_call_operand.vmem [shape: f32[2,16,128], index: 2, kind: input, shape index: {}]
  %s3 = inlined_call_operand.vmem [shape: bf16[128,512], index: 3, kind: input, shape index: {}]
  %s4 = inlined_call_operand.vmem [shape: bf16[128,512], index: 4, kind: input, shape index: {}]
  %s5 = inlined_call_operand.vmem [shape: f32[1,512], index: 5, kind: input, shape index: {}]
  %s6 = inlined_call_operand.vmem [shape: bf16[128,512], index: 6, kind: input, shape index: {}]
  %s7 = inlined_call_operand.vmem [shape: bf16[128,512], index: 7, kind: input, shape index: {}]
  %s8 = inlined_call_operand.vmem [shape: f32[1,512], index: 8, kind: input, shape index: {}]
  %s9 = inlined_call_operand.vmem [shape: bf16[128,256], index: 9, kind: input, shape index: {}]
  %s10 = inlined_call_operand.vmem [shape: f32[1,256], index: 10, kind: input, shape index: {}]
  %s11 = inlined_call_operand.vmem [shape: bf16[128,128], index: 11, kind: input, shape index: {}]
  %s12 = inlined_call_operand.vmem [shape: f32[1,128], index: 12, kind: input, shape index: {}]
  %s13 = inlined_call_operand.vmem [shape: bf16[128,128], index: 13, kind: input, shape index: {}]
  %s14 = inlined_call_operand.vmem [shape: f32[1,128], index: 14, kind: input, shape index: {}]
  %s15 = inlined_call_operand.vmem [shape: f32[16,128], index: 15, kind: output, shape index: {0}]
  %s16 = inlined_call_operand.vmem [shape: f32[16,128], index: 16, kind: output, shape index: {1}]
  %s17 = inlined_call_operand.vmem [shape: f32[16,128], index: 17, kind: output, shape index: {2}]
  %18 = xla_tuple %s15, %s16, %s17
  %s19 = sld [smem:[#allocation0]]
  $region86: #{lstm_multitask_forward.1} parent=0
    _
  %s21 = ssub.s32 1, %s19
  %s22 = scalar_select 0, %s21, %s19
  // Predicated region
  $region2: #{lstm_multitask_forward.1} parent=0 // pred_check
    _
  $region3: #{lstm_multitask_forward.1} parent=0 // pred_check_branch
    %24 = sbr.rel (0) target = $region5
  $region4: #{lstm_multitask_forward.1} parent=0 // pred_region
    _
  $region5: #{lstm_multitask_forward.1} parent=0 // pred_fallthru
    _
  // Predicated region
  $region6: #{lstm_multitask_forward.1} parent=0 // pred_check
    _
  $region7: #{lstm_multitask_forward.1} parent=0 // pred_check_branch
    %26 = sbr.rel (0) target = $region9
  $region8: #{lstm_multitask_forward.1} parent=0 // pred_region
    _
  $region9: #{lstm_multitask_forward.1} parent=0 // pred_fallthru
    _
  // Predicated region
  $region10: #{lstm_multitask_forward.1} parent=0 // pred_check
    _
  $region11: #{lstm_multitask_forward.1} parent=0 // pred_check_branch
    %28 = sbr.rel (0) target = $region13
  $region12: #{lstm_multitask_forward.1} parent=0 // pred_region
    _
  $region13: #{lstm_multitask_forward.1} parent=0 // pred_fallthru
    _
  // Predicated region
  $region14: #{lstm_multitask_forward.1} parent=0 // pred_check
    _
  $region15: #{lstm_multitask_forward.1} parent=0 // pred_check_branch
    %30 = sbr.rel (0) target = $region17
  $region16: #{lstm_multitask_forward.1} parent=0 // pred_region
    _
  $region17: #{lstm_multitask_forward.1} parent=0 // pred_fallthru
    _
  // Predicated region
  $region18: #{lstm_multitask_forward.1} parent=0 // pred_check
    _
  $region19: #{lstm_multitask_forward.1} parent=0 // pred_check_branch
    %32 = sbr.rel (0) target = $region21
  $region20: #{lstm_multitask_forward.1} parent=0 // pred_region
    _
  $region21: #{lstm_multitask_forward.1} parent=0 // pred_fallthru
    _
  // Predicated region
  $region22: #{lstm_multitask_forward.1} parent=0 // pred_check
    _
  $region23: #{lstm_multitask_forward.1} parent=0 // pred_check_branch
    %34 = sbr.rel (0) target = $region25
  $region24: #{lstm_multitask_forward.1} parent=0 // pred_region
    _
  $region25: #{lstm_multitask_forward.1} parent=0 // pred_fallthru
    _
  // Predicated region
  $region26: #{lstm_multitask_forward.1} parent=0 // pred_check
    _
  $region27: #{lstm_multitask_forward.1} parent=0 // pred_check_branch
    %36 = sbr.rel (0) target = $region29
  $region28: #{lstm_multitask_forward.1} parent=0 // pred_region
    _
  $region29: #{lstm_multitask_forward.1} parent=0 // pred_fallthru
    _
  // Predicated region
  $region30: #{lstm_multitask_forward.1} parent=0 // pred_check
    _
  $region31: #{lstm_multitask_forward.1} parent=0 // pred_check_branch
    %38 = sbr.rel (0) target = $region33
  $region32: #{lstm_multitask_forward.1} parent=0 // pred_region
    _
  $region33: #{lstm_multitask_forward.1} parent=0 // pred_fallthru
    _
  // Predicated region
  $region34: #{lstm_multitask_forward.1} parent=0 // pred_check
    _
  $region35: #{lstm_multitask_forward.1} parent=0 // pred_check_branch
    %40 = sbr.rel (0) target = $region37
  $region36: #{lstm_multitask_forward.1} parent=0 // pred_region
    _
  $region37: #{lstm_multitask_forward.1} parent=0 // pred_fallthru
    _
  // Predicated region
  $region38: #{lstm_multitask_forward.1} parent=0 // pred_check
    _
  $region39: #{lstm_multitask_forward.1} parent=0 // pred_check_branch
    %42 = sbr.rel (0) target = $region41
  $region40: #{lstm_multitask_forward.1} parent=0 // pred_region
    _
  $region41: #{lstm_multitask_forward.1} parent=0 // pred_fallthru
    _
  // Predicated region
  $region42: #{lstm_multitask_forward.1} parent=0 // pred_check
    _
  $region43: #{lstm_multitask_forward.1} parent=0 // pred_check_branch
    %44 = sbr.rel (0) target = $region45
  $region44: #{lstm_multitask_forward.1} parent=0 // pred_region
    _
  $region45: #{lstm_multitask_forward.1} parent=0 // pred_fallthru
    _
  // Predicated region
  $region46: #{lstm_multitask_forward.1} parent=0 // pred_check
    _
  $region47: #{lstm_multitask_forward.1} parent=0 // pred_check_branch
    %46 = sbr.rel (0) target = $region49
  $region48: #{lstm_multitask_forward.1} parent=0 // pred_region
    _
  $region49: #{lstm_multitask_forward.1} parent=0 // pred_fallthru
    _
  // Predicated region
  $region50: #{lstm_multitask_forward.1} parent=0 // pred_check
    _
  $region51: #{lstm_multitask_forward.1} parent=0 // pred_check_branch
    %48 = sbr.rel (0) target = $region53
  $region52: #{lstm_multitask_forward.1} parent=0 // pred_region
    _
  $region53: #{lstm_multitask_forward.1} parent=0 // pred_fallthru
    _
  // Predicated region
  $region54: #{lstm_multitask_forward.1} parent=0 // pred_check
    _
  $region55: #{lstm_multitask_forward.1} parent=0 // pred_check_branch
    %50 = sbr.rel (0) target = $region57
  $region56: #{lstm_multitask_forward.1} parent=0 // pred_region
    _
  $region57: #{lstm_multitask_forward.1} parent=0 // pred_fallthru
    _
  // Predicated region
  $region58: #{lstm_multitask_forward.1} parent=0 // pred_check
    _
  $region59: #{lstm_multitask_forward.1} parent=0 // pred_check_branch
    %52 = sbr.rel (0) target = $region61
  $region60: #{lstm_multitask_forward.1} parent=0 // pred_region
    _
  $region61: #{lstm_multitask_forward.1} parent=0 // pred_fallthru
    _
  %v54 = vld [vmem:[%s0] sm:$0xf]
  %v55 = vld [vmem:[%s0 + $0x4] sm:$0xf]
  %v56 = vld [vmem:[%s0 + $0x8] sm:$0xf]
  %v57 = vld [vmem:[%s0 + $0xc] sm:$0xf]
  %v58 = vld [vmem:[%s0 + $0x10] sm:$0xf]
  %v59 = vld [vmem:[%s0 + $0x14] sm:$0xf]
  %v60 = vld [vmem:[%s0 + $0x18] sm:$0xf]
  %v61 = vld [vmem:[%s0 + $0x1c] sm:$0xf]
  %v62 = vld [vmem:[%s0 + $0x20] sm:$0xf]
  %v63 = vld [vmem:[%s0 + $0x24] sm:$0xf]
  %v64 = vld [vmem:[%s0 + $0x28] sm:$0xf]
  %v65 = vld [vmem:[%s0 + $0x2c] sm:$0xf]
  %v66 = vld [vmem:[%s0 + $0x30] sm:$0xf]
  %v67 = vld [vmem:[%s0 + $0x34] sm:$0xf]
  %v68 = vld [vmem:[%s0 + $0x38] sm:$0xf]
  %v69 = vld [vmem:[%s0 + $0x3c] sm:$0xf]
  %v70 = vld [vmem:[%s3] sm:$0xff]
  %v71 = vld [vmem:[%s3 + $0x8] sm:$0xff]
  %v72 = vld [vmem:[%s3 + $0x10] sm:$0xff]
  %v73 = vld [vmem:[%s3 + $0x18] sm:$0xff]
  %v74 = vld [vmem:[%s3 + $0x20] sm:$0xff]
  %v75 = vld [vmem:[%s3 + $0x28] sm:$0xff]
  %v76 = vld [vmem:[%s3 + $0x30] sm:$0xff]
  %v77 = vld [vmem:[%s3 + $0x38] sm:$0xff]
  %v78 = vld [vmem:[%s3 + $0x40] sm:$0xff]
  %v79 = vld [vmem:[%s3 + $0x48] sm:$0xff]
  %v80 = vld [vmem:[%s3 + $0x50] sm:$0xff]
  %v81 = vld [vmem:[%s3 + $0x58] sm:$0xff]
  %v82 = vld [vmem:[%s3 + $0x60] sm:$0xff]
  %v83 = vld [vmem:[%s3 + $0x68] sm:$0xff]
  %v84 = vld [vmem:[%s3 + $0x70] sm:$0xff]
  %v85 = vld [vmem:[%s3 + $0x78] sm:$0xff]
  %v86 = vld [vmem:[%s3 + $0x80] sm:$0xff]
  %v87 = vld [vmem:[%s3 + $0x88] sm:$0xff]
  %v88 = vld [vmem:[%s3 + $0x90] sm:$0xff]
  %v89 = vld [vmem:[%s3 + $0x98] sm:$0xff]
  %v90 = vld [vmem:[%s3 + $0xa0] sm:$0xff]
  %v91 = vld [vmem:[%s3 + $0xa8] sm:$0xff]
  %v92 = vld [vmem:[%s3 + $0xb0] sm:$0xff]
  %v93 = vld [vmem:[%s3 + $0xb8] sm:$0xff]
  %v94 = vld [vmem:[%s3 + $0xc0] sm:$0xff]
  %v95 = vld [vmem:[%s3 + $0xc8] sm:$0xff]
  %v96 = vld [vmem:[%s3 + $0xd0] sm:$0xff]
  %v97 = vld [vmem:[%s3 + $0xd8] sm:$0xff]
  %v98 = vld [vmem:[%s3 + $0xe0] sm:$0xff]
  %v99 = vld [vmem:[%s3 + $0xe8] sm:$0xff]
  %v100 = vld [vmem:[%s3 + $0xf0] sm:$0xff]
  %v101 = vld [vmem:[%s3 + $0xf8] sm:$0xff]
  %v102 = vld [vmem:[%s5] sm:$0xf]
  %v104 = vlaneseq
  %v105 = vshrl.u32 %v104, 7
  %v106 = vsub.s32 0, %v105
  %v107 = vrot.slane %v102, %v106
  %v108 = vlaneseq
  %v109 = vshrl.u32 %v108, 7
  %v110 = vsub.s32 1, %v109
  %v111 = vrot.slane %v102, %v110
  %v112 = vlaneseq
  %v113 = vshrl.u32 %v112, 7
  %v114 = vsub.s32 2, %v113
  %v115 = vrot.slane %v102, %v114
  %v116 = vlaneseq
  %v117 = vshrl.u32 %v116, 7
  %v118 = vsub.s32 3, %v117
  %v119 = vrot.slane %v102, %v118
  %v140 = vunpack.c.l.b16 %v54
  %v141 = vunpack.c.l.b16 %v55
  %v142 = vunpack.c.l.b16 %v56
  %v143 = vunpack.c.l.b16 %v57
  %v144 = vunpack.c.l.b16 %v58
  %v145 = vunpack.c.l.b16 %v59
  %v146 = vunpack.c.l.b16 %v60
  %v147 = vunpack.c.l.b16 %v61
  %v148 = vunpack.c.l.b16 %v62
  %v149 = vunpack.c.l.b16 %v63
  %v150 = vunpack.c.l.b16 %v64
  %v151 = vunpack.c.l.b16 %v65
  %v152 = vunpack.c.l.b16 %v66
  %v153 = vunpack.c.l.b16 %v67
  %v154 = vunpack.c.l.b16 %v68
  %v155 = vunpack.c.l.b16 %v69
  %v156 = vpack.c.b16 %v141, %v140
  %v157 = vpack.c.b16 %v143, %v142
  %v158 = vpack.c.b16 %v145, %v144
  %v159 = vpack.c.b16 %v147, %v146
  %v160 = vpack.c.b16 %v149, %v148
  %v161 = vpack.c.b16 %v151, %v150
  %v162 = vpack.c.b16 %v153, %v152
  %v163 = vpack.c.b16 %v155, %v154
  %v204 = vunpack.c.l.b16 %v70
  %v205 = vunpack.c.h.b16 %v70
  %v206 = vunpack.c.l.b16 %v71
  %v207 = vunpack.c.h.b16 %v71
  %v208 = vunpack.c.l.b16 %v72
  %v209 = vunpack.c.h.b16 %v72
  %v210 = vunpack.c.l.b16 %v73
  %v211 = vunpack.c.h.b16 %v73
  %v212 = vunpack.c.l.b16 %v74
  %v213 = vunpack.c.h.b16 %v74
  %v214 = vunpack.c.l.b16 %v75
  %v215 = vunpack.c.h.b16 %v75
  %v216 = vunpack.c.l.b16 %v76
  %v217 = vunpack.c.h.b16 %v76
  %v218 = vunpack.c.l.b16 %v77
  %v219 = vunpack.c.h.b16 %v77
  %v220 = vunpack.c.l.b16 %v78
  %v221 = vunpack.c.h.b16 %v78
  %v222 = vunpack.c.l.b16 %v79
  %v223 = vunpack.c.h.b16 %v79
  %v224 = vunpack.c.l.b16 %v80
  %v225 = vunpack.c.h.b16 %v80
  %v226 = vunpack.c.l.b16 %v81
  %v227 = vunpack.c.h.b16 %v81
  %v228 = vunpack.c.l.b16 %v82
  %v229 = vunpack.c.h.b16 %v82
  %v230 = vunpack.c.l.b16 %v83
  %v231 = vunpack.c.h.b16 %v83
  %v232 = vunpack.c.l.b16 %v84
  %v233 = vunpack.c.h.b16 %v84
  %v234 = vunpack.c.l.b16 %v85
  %v235 = vunpack.c.h.b16 %v85
  %v236 = vunpack.c.l.b16 %v86
  %v237 = vunpack.c.h.b16 %v86
  %v238 = vunpack.c.l.b16 %v87
  %v239 = vunpack.c.h.b16 %v87
  %v240 = vunpack.c.l.b16 %v88
  %v241 = vunpack.c.h.b16 %v88
  %v242 = vunpack.c.l.b16 %v89
  %v243 = vunpack.c.h.b16 %v89
  %v244 = vunpack.c.l.b16 %v90
  %v245 = vunpack.c.h.b16 %v90
  %v246 = vunpack.c.l.b16 %v91
  %v247 = vunpack.c.h.b16 %v91
  %v248 = vunpack.c.l.b16 %v92
  %v249 = vunpack.c.h.b16 %v92
  %v250 = vunpack.c.l.b16 %v93
  %v251 = vunpack.c.h.b16 %v93
  %v252 = vunpack.c.l.b16 %v94
  %v253 = vunpack.c.h.b16 %v94
  %v254 = vunpack.c.l.b16 %v95
  %v255 = vunpack.c.h.b16 %v95
  %v256 = vunpack.c.l.b16 %v96
  %v257 = vunpack.c.h.b16 %v96
  %v258 = vunpack.c.l.b16 %v97
  %v259 = vunpack.c.h.b16 %v97
  %v260 = vunpack.c.l.b16 %v98
  %v261 = vunpack.c.h.b16 %v98
  %v262 = vunpack.c.l.b16 %v99
  %v263 = vunpack.c.h.b16 %v99
  %v264 = vunpack.c.l.b16 %v100
  %v265 = vunpack.c.h.b16 %v100
  %v266 = vunpack.c.l.b16 %v101
  %v267 = vunpack.c.h.b16 %v101
  %v268 = vpack.c.b16 %v208, %v204
  %v269 = vpack.c.b16 %v209, %v205
  %v270 = vpack.c.b16 %v210, %v206
  %v271 = vpack.c.b16 %v211, %v207
  %v272 = vpack.c.b16 %v216, %v212
  %v273 = vpack.c.b16 %v217, %v213
  %v274 = vpack.c.b16 %v218, %v214
  %v275 = vpack.c.b16 %v219, %v215
  %v276 = vpack.c.b16 %v224, %v220
  %v277 = vpack.c.b16 %v225, %v221
  %v278 = vpack.c.b16 %v226, %v222
  %v279 = vpack.c.b16 %v227, %v223
  %v280 = vpack.c.b16 %v232, %v228
  %v281 = vpack.c.b16 %v233, %v229
  %v282 = vpack.c.b16 %v234, %v230
  %v283 = vpack.c.b16 %v235, %v231
  %v284 = vpack.c.b16 %v240, %v236
  %v285 = vpack.c.b16 %v241, %v237
  %v286 = vpack.c.b16 %v242, %v238
  %v287 = vpack.c.b16 %v243, %v239
  %v288 = vpack.c.b16 %v248, %v244
  %v289 = vpack.c.b16 %v249, %v245
  %v290 = vpack.c.b16 %v250, %v246
  %v291 = vpack.c.b16 %v251, %v247
  %v292 = vpack.c.b16 %v256, %v252
  %v293 = vpack.c.b16 %v257, %v253
  %v294 = vpack.c.b16 %v258, %v254
  %v295 = vpack.c.b16 %v259, %v255
  %v296 = vpack.c.b16 %v264, %v260
  %v297 = vpack.c.b16 %v265, %v261
  %v298 = vpack.c.b16 %v266, %v262
  %v299 = vpack.c.b16 %v267, %v263
  %332 = vmatprep.subr.bf16.mxu0 %v297
  %333 = vmatpush1.bf16.msra.mxu0 %v296
  %334 = vmatprep.subr.bf16.mxu0 %v293
  %335 = vmatpush1.bf16.msra.mxu0 %v292
  %336 = vmatprep.subr.bf16.mxu0 %v289
  %337 = vmatpush1.bf16.msra.mxu0 %v288
  %338 = vmatprep.subr.bf16.mxu0 %v285
  %339 = vmatpush1.bf16.msra.mxu0 %v284
  %340 = vmatprep.subr.bf16.mxu0 %v281
  %341 = vmatpush1.bf16.msra.mxu0 %v280
  %342 = vmatprep.subr.bf16.mxu0 %v277
  %343 = vmatpush1.bf16.msra.mxu0 %v276
  %344 = vmatprep.subr.bf16.mxu0 %v273
  %345 = vmatpush1.bf16.msra.mxu0 %v272
  %346 = vmatprep.subr.bf16.mxu0 %v269
  %347 = vmatpush1.bf16.msra.mxu0 %v268
  %348 = vmatprep.subr.bf16.mxu0 0
  %349 = vmatpush2.bf16.msra.mxu0 0
  %350 = vmatprep.subr.bf16.mxu0 0
  %351 = vmatpush2.bf16.msra.mxu0 0
  %352 = vmatprep.subr.bf16.mxu0 0
  %353 = vmatpush2.bf16.msra.mxu0 0
  %354 = vmatprep.subr.bf16.mxu0 0
  %355 = vmatpush2.bf16.msra.mxu0 0
  %356 = vmatprep.subr.bf16.mxu0 0
  %357 = vmatpush2.bf16.msra.mxu0 0
  %358 = vmatprep.subr.bf16.mxu0 0
  %359 = vmatpush2.bf16.msra.mxu0 0
  %360 = vmatprep.subr.bf16.mxu0 0
  %361 = vmatpush2.bf16.msra.mxu0 0
  %362 = vmatprep.subr.bf16.mxu0 0
  %363 = vmatpush2.bf16.msra.mxu0 0
  %364 = vmatprep.mubr.bf16.mxu0 0
  %365 = vmatmul.mubr.bf16.gmra.mxu0 %v156
  %v366 = vpop.f32.mrf.mxu0
  %v367 = vadd.f32 %v107, %v366
  %v368 = vpop.f32.mrf.mxu0
  %v369 = vadd.f32 %v111, %v368
  %v370 = vpop.f32.mrf.mxu0
  %v371 = vadd.f32 %v107, %v370
  %v372 = vpop.f32.mrf.mxu0
  %v373 = vadd.f32 %v111, %v372
  %374 = vmatprep.mubr.bf16.mxu0 0
  %375 = vmatmul.mubr.bf16.gmra.mxu0 %v157
  %v376 = vpop.f32.mrf.mxu0
  %v377 = vadd.f32 %v107, %v376
  %v378 = vpop.f32.mrf.mxu0
  %v379 = vadd.f32 %v111, %v378
  %v380 = vpop.f32.mrf.mxu0
  %v381 = vadd.f32 %v107, %v380
  %v382 = vpop.f32.mrf.mxu0
  %v383 = vadd.f32 %v111, %v382
  %384 = vmatprep.mubr.bf16.mxu0 0
  %385 = vmatmul.mubr.bf16.gmra.mxu0 %v158
  %v386 = vpop.f32.mrf.mxu0
  %v387 = vadd.f32 %v107, %v386
  %v388 = vpop.f32.mrf.mxu0
  %v389 = vadd.f32 %v111, %v388
  %v390 = vpop.f32.mrf.mxu0
  %v391 = vadd.f32 %v107, %v390
  %v392 = vpop.f32.mrf.mxu0
  %v393 = vadd.f32 %v111, %v392
  %394 = vmatprep.mubr.bf16.mxu0 0
  %395 = vmatmul.mubr.bf16.gmra.mxu0 %v159
  %v396 = vpop.f32.mrf.mxu0
  %v397 = vadd.f32 %v107, %v396
  %v398 = vpop.f32.mrf.mxu0
  %v399 = vadd.f32 %v111, %v398
  %v400 = vpop.f32.mrf.mxu0
  %v401 = vadd.f32 %v107, %v400
  %v402 = vpop.f32.mrf.mxu0
  %v403 = vadd.f32 %v111, %v402
  %404 = vmatprep.mubr.bf16.mxu0 0
  %405 = vmatmul.mubr.bf16.gmra.mxu0 %v160
  %v406 = vpop.f32.mrf.mxu0
  %v407 = vadd.f32 %v107, %v406
  %v408 = vpop.f32.mrf.mxu0
  %v409 = vadd.f32 %v111, %v408
  %v410 = vpop.f32.mrf.mxu0
  %v411 = vadd.f32 %v107, %v410
  %v412 = vpop.f32.mrf.mxu0
  %v413 = vadd.f32 %v111, %v412
  %414 = vmatprep.mubr.bf16.mxu0 0
  %415 = vmatmul.mubr.bf16.gmra.mxu0 %v161
  %v416 = vpop.f32.mrf.mxu0
  %v417 = vadd.f32 %v107, %v416
  %v418 = vpop.f32.mrf.mxu0
  %v419 = vadd.f32 %v111, %v418
  %v420 = vpop.f32.mrf.mxu0
  %v421 = vadd.f32 %v107, %v420
  %v422 = vpop.f32.mrf.mxu0
  %v423 = vadd.f32 %v111, %v422
  %424 = vmatprep.mubr.bf16.mxu0 0
  %425 = vmatmul.mubr.bf16.gmra.mxu0 %v162
  %v426 = vpop.f32.mrf.mxu0
  %v427 = vadd.f32 %v107, %v426
  %v428 = vpop.f32.mrf.mxu0
  %v429 = vadd.f32 %v111, %v428
  %v430 = vpop.f32.mrf.mxu0
  %v431 = vadd.f32 %v107, %v430
  %v432 = vpop.f32.mrf.mxu0
  %v433 = vadd.f32 %v111, %v432
  %434 = vmatprep.mubr.bf16.mxu0 0
  %435 = vmatmul.mubr.bf16.gmra.mxu0 %v163
  %v436 = vpop.f32.mrf.mxu0
  %v437 = vadd.f32 %v107, %v436
  %v438 = vpop.f32.mrf.mxu0
  %v439 = vadd.f32 %v111, %v438
  %v440 = vpop.f32.mrf.mxu0
  %v441 = vadd.f32 %v107, %v440
  %v442 = vpop.f32.mrf.mxu0
  %v443 = vadd.f32 %v111, %v442
  %444 = vdwg.mxu0
  %445 = vmatprep.subr.bf16.mxu0 %v299
  %446 = vmatpush1.bf16.msra.mxu0 %v298
  %447 = vmatprep.subr.bf16.mxu0 %v295
  %448 = vmatpush1.bf16.msra.mxu0 %v294
  %449 = vmatprep.subr.bf16.mxu0 %v291
  %450 = vmatpush1.bf16.msra.mxu0 %v290
  %451 = vmatprep.subr.bf16.mxu0 %v287
  %452 = vmatpush1.bf16.msra.mxu0 %v286
  %453 = vmatprep.subr.bf16.mxu0 %v283
  %454 = vmatpush1.bf16.msra.mxu0 %v282
  %455 = vmatprep.subr.bf16.mxu0 %v279
  %456 = vmatpush1.bf16.msra.mxu0 %v278
  %457 = vmatprep.subr.bf16.mxu0 %v275
  %458 = vmatpush1.bf16.msra.mxu0 %v274
  %459 = vmatprep.subr.bf16.mxu0 %v271
  %460 = vmatpush1.bf16.msra.mxu0 %v270
  %461 = vmatprep.subr.bf16.mxu0 0
  %462 = vmatpush2.bf16.msra.mxu0 0
  %463 = vmatprep.subr.bf16.mxu0 0
  %464 = vmatpush2.bf16.msra.mxu0 0
  %465 = vmatprep.subr.bf16.mxu0 0
  %466 = vmatpush2.bf16.msra.mxu0 0
  %467 = vmatprep.subr.bf16.mxu0 0
  %468 = vmatpush2.bf16.msra.mxu0 0
  %469 = vmatprep.subr.bf16.mxu0 0
  %470 = vmatpush2.bf16.msra.mxu0 0
  %471 = vmatprep.subr.bf16.mxu0 0
  %472 = vmatpush2.bf16.msra.mxu0 0
  %473 = vmatprep.subr.bf16.mxu0 0
  %474 = vmatpush2.bf16.msra.mxu0 0
  %475 = vmatprep.subr.bf16.mxu0 0
  %476 = vmatpush2.bf16.msra.mxu0 0
  %477 = vmatprep.mubr.bf16.mxu0 0
  %478 = vmatmul.mubr.bf16.gmra.mxu0 %v156
  %v479 = vpop.f32.mrf.mxu0
  %v480 = vadd.f32 %v115, %v479
  %v481 = vpop.f32.mrf.mxu0
  %v482 = vadd.f32 %v119, %v481
  %v483 = vpop.f32.mrf.mxu0
  %v484 = vadd.f32 %v115, %v483
  %v485 = vpop.f32.mrf.mxu0
  %v486 = vadd.f32 %v119, %v485
  %487 = vmatprep.mubr.bf16.mxu0 0
  %488 = vmatmul.mubr.bf16.gmra.mxu0 %v157
  %v489 = vpop.f32.mrf.mxu0
  %v490 = vadd.f32 %v115, %v489
  %v491 = vpop.f32.mrf.mxu0
  %v492 = vadd.f32 %v119, %v491
  %v493 = vpop.f32.mrf.mxu0
  %v494 = vadd.f32 %v115, %v493
  %v495 = vpop.f32.mrf.mxu0
  %v496 = vadd.f32 %v119, %v495
  %497 = vmatprep.mubr.bf16.mxu0 0
  %498 = vmatmul.mubr.bf16.gmra.mxu0 %v158
  %v499 = vpop.f32.mrf.mxu0
  %v500 = vadd.f32 %v115, %v499
  %v501 = vpop.f32.mrf.mxu0
  %v502 = vadd.f32 %v119, %v501
  %v503 = vpop.f32.mrf.mxu0
  %v504 = vadd.f32 %v115, %v503
  %v505 = vpop.f32.mrf.mxu0
  %v506 = vadd.f32 %v119, %v505
  %507 = vmatprep.mubr.bf16.mxu0 0
  %508 = vmatmul.mubr.bf16.gmra.mxu0 %v159
  %v509 = vpop.f32.mrf.mxu0
  %v510 = vadd.f32 %v115, %v509
  %v511 = vpop.f32.mrf.mxu0
  %v512 = vadd.f32 %v119, %v511
  %v513 = vpop.f32.mrf.mxu0
  %v514 = vadd.f32 %v115, %v513
  %v515 = vpop.f32.mrf.mxu0
  %v516 = vadd.f32 %v119, %v515
  %517 = vmatprep.mubr.bf16.mxu0 0
  %518 = vmatmul.mubr.bf16.gmra.mxu0 %v160
  %v519 = vpop.f32.mrf.mxu0
  %v520 = vadd.f32 %v115, %v519
  %v521 = vpop.f32.mrf.mxu0
  %v522 = vadd.f32 %v119, %v521
  %v523 = vpop.f32.mrf.mxu0
  %v524 = vadd.f32 %v115, %v523
  %v525 = vpop.f32.mrf.mxu0
  %v526 = vadd.f32 %v119, %v525
  %527 = vmatprep.mubr.bf16.mxu0 0
  %528 = vmatmul.mubr.bf16.gmra.mxu0 %v161
  %v529 = vpop.f32.mrf.mxu0
  %v530 = vadd.f32 %v115, %v529
  %v531 = vpop.f32.mrf.mxu0
  %v532 = vadd.f32 %v119, %v531
  %v533 = vpop.f32.mrf.mxu0
  %v534 = vadd.f32 %v115, %v533
  %v535 = vpop.f32.mrf.mxu0
  %v536 = vadd.f32 %v119, %v535
  %537 = vmatprep.mubr.bf16.mxu0 0
  %538 = vmatmul.mubr.bf16.gmra.mxu0 %v162
  %v539 = vpop.f32.mrf.mxu0
  %v540 = vadd.f32 %v115, %v539
  %v541 = vpop.f32.mrf.mxu0
  %v542 = vadd.f32 %v119, %v541
  %v543 = vpop.f32.mrf.mxu0
  %v544 = vadd.f32 %v115, %v543
  %v545 = vpop.f32.mrf.mxu0
  %v546 = vadd.f32 %v119, %v545
  %547 = vmatprep.mubr.bf16.mxu0 0
  %548 = vmatmul.mubr.bf16.gmra.mxu0 %v163
  %v549 = vpop.f32.mrf.mxu0
  %v550 = vadd.f32 %v115, %v549
  %v551 = vpop.f32.mrf.mxu0
  %v552 = vadd.f32 %v119, %v551
  %v553 = vpop.f32.mrf.mxu0
  %v554 = vadd.f32 %v115, %v553
  %v555 = vpop.f32.mrf.mxu0
  %v556 = vadd.f32 %v119, %v555
  %557 = vdwg.mxu0
  %558 = vst [vmem:[#allocation3] sm:$0xff] %v367
  %559 = vst [vmem:[#allocation3 + $0x8] sm:$0xff] %v369
  %560 = vst [vmem:[#allocation3 + $0x10] sm:$0xff] %v480
  %561 = vst [vmem:[#allocation3 + $0x18] sm:$0xff] %v482
  %562 = vst [vmem:[#allocation3 + $0x20] sm:$0xff] %v371
  %563 = vst [vmem:[#allocation3 + $0x28] sm:$0xff] %v373
  %564 = vst [vmem:[#allocation3 + $0x30] sm:$0xff] %v484
  %565 = vst [vmem:[#allocation3 + $0x38] sm:$0xff] %v486
  %566 = vst [vmem:[#allocation3 + $0x40] sm:$0xff] %v377
  %567 = vst [vmem:[#allocation3 + $0x48] sm:$0xff] %v379
  %568 = vst [vmem:[#allocation3 + $0x50] sm:$0xff] %v490
  %569 = vst [vmem:[#allocation3 + $0x58] sm:$0xff] %v492
  %570 = vst [vmem:[#allocation3 + $0x60] sm:$0xff] %v381
  %571 = vst [vmem:[#allocation3 + $0x68] sm:$0xff] %v383
  %572 = vst [vmem:[#allocation3 + $0x70] sm:$0xff] %v494
  %573 = vst [vmem:[#allocation3 + $0x78] sm:$0xff] %v496
  %574 = vst [vmem:[#allocation3 + $0x80] sm:$0xff] %v387
  %575 = vst [vmem:[#allocation3 + $0x88] sm:$0xff] %v389
  %576 = vst [vmem:[#allocation3 + $0x90] sm:$0xff] %v500
  %577 = vst [vmem:[#allocation3 + $0x98] sm:$0xff] %v502
  %578 = vst [vmem:[#allocation3 + $0xa0] sm:$0xff] %v391
  %579 = vst [vmem:[#allocation3 + $0xa8] sm:$0xff] %v393
  %580 = vst [vmem:[#allocation3 + $0xb0] sm:$0xff] %v504
  %581 = vst [vmem:[#allocation3 + $0xb8] sm:$0xff] %v506
  %582 = vst [vmem:[#allocation3 + $0xc0] sm:$0xff] %v397
  %583 = vst [vmem:[#allocation3 + $0xc8] sm:$0xff] %v399
  %584 = vst [vmem:[#allocation3 + $0xd0] sm:$0xff] %v510
  %585 = vst [vmem:[#allocation3 + $0xd8] sm:$0xff] %v512
  %586 = vst [vmem:[#allocation3 + $0xe0] sm:$0xff] %v401
  %587 = vst [vmem:[#allocation3 + $0xe8] sm:$0xff] %v403
  %588 = vst [vmem:[#allocation3 + $0xf0] sm:$0xff] %v514
  %589 = vst [vmem:[#allocation3 + $0xf8] sm:$0xff] %v516
  %590 = vst [vmem:[#allocation3 + $0x100] sm:$0xff] %v407
  %591 = vst [vmem:[#allocation3 + $0x108] sm:$0xff] %v409
  %592 = vst [vmem:[#allocation3 + $0x110] sm:$0xff] %v520
  %593 = vst [vmem:[#allocation3 + $0x118] sm:$0xff] %v522
  %594 = vst [vmem:[#allocation3 + $0x120] sm:$0xff] %v411
  %595 = vst [vmem:[#allocation3 + $0x128] sm:$0xff] %v413
  %596 = vst [vmem:[#allocation3 + $0x130] sm:$0xff] %v524
  %597 = vst [vmem:[#allocation3 + $0x138] sm:$0xff] %v526
  %598 = vst [vmem:[#allocation3 + $0x140] sm:$0xff] %v417
  %599 = vst [vmem:[#allocation3 + $0x148] sm:$0xff] %v419
  %600 = vst [vmem:[#allocation3 + $0x150] sm:$0xff] %v530
  %601 = vst [vmem:[#allocation3 + $0x158] sm:$0xff] %v532
  %602 = vst [vmem:[#allocation3 + $0x160] sm:$0xff] %v421
  %603 = vst [vmem:[#allocation3 + $0x168] sm:$0xff] %v423
  %604 = vst [vmem:[#allocation3 + $0x170] sm:$0xff] %v534
  %605 = vst [vmem:[#allocation3 + $0x178] sm:$0xff] %v536
  %606 = vst [vmem:[#allocation3 + $0x180] sm:$0xff] %v427
  %607 = vst [vmem:[#allocation3 + $0x188] sm:$0xff] %v429
  %608 = vst [vmem:[#allocation3 + $0x190] sm:$0xff] %v540
  %609 = vst [vmem:[#allocation3 + $0x198] sm:$0xff] %v542
  %610 = vst [vmem:[#allocation3 + $0x1a0] sm:$0xff] %v431
  %611 = vst [vmem:[#allocation3 + $0x1a8] sm:$0xff] %v433
  %612 = vst [vmem:[#allocation3 + $0x1b0] sm:$0xff] %v544
  %613 = vst [vmem:[#allocation3 + $0x1b8] sm:$0xff] %v546
  %614 = vst [vmem:[#allocation3 + $0x1c0] sm:$0xff] %v437
  %615 = vst [vmem:[#allocation3 + $0x1c8] sm:$0xff] %v439
  %616 = vst [vmem:[#allocation3 + $0x1d0] sm:$0xff] %v550
  %617 = vst [vmem:[#allocation3 + $0x1d8] sm:$0xff] %v552
  %618 = vst [vmem:[#allocation3 + $0x1e0] sm:$0xff] %v441
  %619 = vst [vmem:[#allocation3 + $0x1e8] sm:$0xff] %v443
  %620 = vst [vmem:[#allocation3 + $0x1f0] sm:$0xff] %v554
  %621 = vst [vmem:[#allocation3 + $0x1f8] sm:$0xff] %v556
  %v622 = vld [vmem:[%s1] sm:$0xff]
  %v623 = vld [vmem:[%s1 + $0x8] sm:$0xff]
  %v624 = vld [vmem:[%s2] sm:$0xff]
  %v625 = vld [vmem:[%s2 + $0x8] sm:$0xff]
  %s626 = smul.u32 0, 4
  %s627 = smul.addr %s626, 8
  %s628 = scalar_lea.vmem [#allocation3], %s627
  %v629 = vld [vmem:[%s628] sm:$0xff]
  %v630 = vld [vmem:[%s628 + $0x8] sm:$0xff]
  %v631 = vld [vmem:[%s628 + $0x10] sm:$0xff]
  %v632 = vld [vmem:[%s628 + $0x18] sm:$0xff]
  %v633 = vld [vmem:[%s628 + $0x20] sm:$0xff]
  %v634 = vld [vmem:[%s628 + $0x28] sm:$0xff]
  %v635 = vld [vmem:[%s628 + $0x30] sm:$0xff]
  %v636 = vld [vmem:[%s628 + $0x38] sm:$0xff]
  %v637 = vpack.c.bf16 %v623, %v622
  %v638 = vld [vmem:[%s4] sm:$0xff]
  %v639 = vld [vmem:[%s4 + $0x8] sm:$0xff]
  %v640 = vld [vmem:[%s4 + $0x10] sm:$0xff]
  %v641 = vld [vmem:[%s4 + $0x18] sm:$0xff]
  %v642 = vld [vmem:[%s4 + $0x20] sm:$0xff]
  %v643 = vld [vmem:[%s4 + $0x28] sm:$0xff]
  %v644 = vld [vmem:[%s4 + $0x30] sm:$0xff]
  %v645 = vld [vmem:[%s4 + $0x38] sm:$0xff]
  %v646 = vld [vmem:[%s4 + $0x40] sm:$0xff]
  %v647 = vld [vmem:[%s4 + $0x48] sm:$0xff]
  %v648 = vld [vmem:[%s4 + $0x50] sm:$0xff]
  %v649 = vld [vmem:[%s4 + $0x58] sm:$0xff]
  %v650 = vld [vmem:[%s4 + $0x60] sm:$0xff]
  %v651 = vld [vmem:[%s4 + $0x68] sm:$0xff]
  %v652 = vld [vmem:[%s4 + $0x70] sm:$0xff]
  %v653 = vld [vmem:[%s4 + $0x78] sm:$0xff]
  %v654 = vld [vmem:[%s4 + $0x80] sm:$0xff]
  %v655 = vld [vmem:[%s4 + $0x88] sm:$0xff]
  %v656 = vld [vmem:[%s4 + $0x90] sm:$0xff]
  %v657 = vld [vmem:[%s4 + $0x98] sm:$0xff]
  %v658 = vld [vmem:[%s4 + $0xa0] sm:$0xff]
  %v659 = vld [vmem:[%s4 + $0xa8] sm:$0xff]
  %v660 = vld [vmem:[%s4 + $0xb0] sm:$0xff]
  %v661 = vld [vmem:[%s4 + $0xb8] sm:$0xff]
  %v662 = vld [vmem:[%s4 + $0xc0] sm:$0xff]
  %v663 = vld [vmem:[%s4 + $0xc8] sm:$0xff]
  %v664 = vld [vmem:[%s4 + $0xd0] sm:$0xff]
  %v665 = vld [vmem:[%s4 + $0xd8] sm:$0xff]
  %v666 = vld [vmem:[%s4 + $0xe0] sm:$0xff]
  %v667 = vld [vmem:[%s4 + $0xe8] sm:$0xff]
  %v668 = vld [vmem:[%s4 + $0xf0] sm:$0xff]
  %v669 = vld [vmem:[%s4 + $0xf8] sm:$0xff]
  %v702 = vunpack.c.l.b16 %v638
  %v703 = vunpack.c.h.b16 %v638
  %v704 = vunpack.c.l.b16 %v639
  %v705 = vunpack.c.h.b16 %v639
  %v706 = vunpack.c.l.b16 %v640
  %v707 = vunpack.c.h.b16 %v640
  %v708 = vunpack.c.l.b16 %v641
  %v709 = vunpack.c.h.b16 %v641
  %v710 = vunpack.c.l.b16 %v642
  %v711 = vunpack.c.h.b16 %v642
  %v712 = vunpack.c.l.b16 %v643
  %v713 = vunpack.c.h.b16 %v643
  %v714 = vunpack.c.l.b16 %v644
  %v715 = vunpack.c.h.b16 %v644
  %v716 = vunpack.c.l.b16 %v645
  %v717 = vunpack.c.h.b16 %v645
  %v718 = vunpack.c.l.b16 %v646
  %v719 = vunpack.c.h.b16 %v646
  %v720 = vunpack.c.l.b16 %v647
  %v721 = vunpack.c.h.b16 %v647
  %v722 = vunpack.c.l.b16 %v648
  %v723 = vunpack.c.h.b16 %v648
  %v724 = vunpack.c.l.b16 %v649
  %v725 = vunpack.c.h.b16 %v649
  %v726 = vunpack.c.l.b16 %v650
  %v727 = vunpack.c.h.b16 %v650
  %v728 = vunpack.c.l.b16 %v651
  %v729 = vunpack.c.h.b16 %v651
  %v730 = vunpack.c.l.b16 %v652
  %v731 = vunpack.c.h.b16 %v652
  %v732 = vunpack.c.l.b16 %v653
  %v733 = vunpack.c.h.b16 %v653
  %v734 = vunpack.c.l.b16 %v654
  %v735 = vunpack.c.h.b16 %v654
  %v736 = vunpack.c.l.b16 %v655
  %v737 = vunpack.c.h.b16 %v655
  %v738 = vunpack.c.l.b16 %v656
  %v739 = vunpack.c.h.b16 %v656
  %v740 = vunpack.c.l.b16 %v657
  %v741 = vunpack.c.h.b16 %v657
  %v742 = vunpack.c.l.b16 %v658
  %v743 = vunpack.c.h.b16 %v658
  %v744 = vunpack.c.l.b16 %v659
  %v745 = vunpack.c.h.b16 %v659
  %v746 = vunpack.c.l.b16 %v660
  %v747 = vunpack.c.h.b16 %v660
  %v748 = vunpack.c.l.b16 %v661
  %v749 = vunpack.c.h.b16 %v661
  %v750 = vunpack.c.l.b16 %v662
  %v751 = vunpack.c.h.b16 %v662
  %v752 = vunpack.c.l.b16 %v663
  %v753 = vunpack.c.h.b16 %v663
  %v754 = vunpack.c.l.b16 %v664
  %v755 = vunpack.c.h.b16 %v664
  %v756 = vunpack.c.l.b16 %v665
  %v757 = vunpack.c.h.b16 %v665
  %v758 = vunpack.c.l.b16 %v666
  %v759 = vunpack.c.h.b16 %v666
  %v760 = vunpack.c.l.b16 %v667
  %v761 = vunpack.c.h.b16 %v667
  %v762 = vunpack.c.l.b16 %v668
  %v763 = vunpack.c.h.b16 %v668
  %v764 = vunpack.c.l.b16 %v669
  %v765 = vunpack.c.h.b16 %v669
  %v766 = vpack.c.b16 %v706, %v702
  %v767 = vpack.c.b16 %v707, %v703
  %v768 = vpack.c.b16 %v708, %v704
  %v769 = vpack.c.b16 %v709, %v705
  %v770 = vpack.c.b16 %v714, %v710
  %v771 = vpack.c.b16 %v715, %v711
  %v772 = vpack.c.b16 %v716, %v712
  %v773 = vpack.c.b16 %v717, %v713
  %v774 = vpack.c.b16 %v722, %v718
  %v775 = vpack.c.b16 %v723, %v719
  %v776 = vpack.c.b16 %v724, %v720
  %v777 = vpack.c.b16 %v725, %v721
  %v778 = vpack.c.b16 %v730, %v726
  %v779 = vpack.c.b16 %v731, %v727
  %v780 = vpack.c.b16 %v732, %v728
  %v781 = vpack.c.b16 %v733, %v729
  %v782 = vpack.c.b16 %v738, %v734
  %v783 = vpack.c.b16 %v739, %v735
  %v784 = vpack.c.b16 %v740, %v736
  %v785 = vpack.c.b16 %v741, %v737
  %v786 = vpack.c.b16 %v746, %v742
  %v787 = vpack.c.b16 %v747, %v743
  %v788 = vpack.c.b16 %v748, %v744
  %v789 = vpack.c.b16 %v749, %v745
  %v790 = vpack.c.b16 %v754, %v750
  %v791 = vpack.c.b16 %v755, %v751
  %v792 = vpack.c.b16 %v756, %v752
  %v793 = vpack.c.b16 %v757, %v753
  %v794 = vpack.c.b16 %v762, %v758
  %v795 = vpack.c.b16 %v763, %v759
  %v796 = vpack.c.b16 %v764, %v760
  %v797 = vpack.c.b16 %v765, %v761
  %830 = vmatprep.subr.bf16.mxu0 %v795
  %831 = vmatpush1.bf16.msra.mxu0 %v794
  %832 = vmatprep.subr.bf16.mxu0 %v791
  %833 = vmatpush1.bf16.msra.mxu0 %v790
  %834 = vmatprep.subr.bf16.mxu0 %v787
  %835 = vmatpush1.bf16.msra.mxu0 %v786
  %836 = vmatprep.subr.bf16.mxu0 %v783
  %837 = vmatpush1.bf16.msra.mxu0 %v782
  %838 = vmatprep.subr.bf16.mxu0 %v779
  %839 = vmatpush1.bf16.msra.mxu0 %v778
  %840 = vmatprep.subr.bf16.mxu0 %v775
  %841 = vmatpush1.bf16.msra.mxu0 %v774
  %842 = vmatprep.subr.bf16.mxu0 %v771
  %843 = vmatpush1.bf16.msra.mxu0 %v770
  %844 = vmatprep.subr.bf16.mxu0 %v767
  %845 = vmatpush1.bf16.msra.mxu0 %v766
  %846 = vmatprep.subr.bf16.mxu0 0
  %847 = vmatpush2.bf16.msra.mxu0 0
  %848 = vmatprep.subr.bf16.mxu0 0
  %849 = vmatpush2.bf16.msra.mxu0 0
  %850 = vmatprep.subr.bf16.mxu0 0
  %851 = vmatpush2.bf16.msra.mxu0 0
  %852 = vmatprep.subr.bf16.mxu0 0
  %853 = vmatpush2.bf16.msra.mxu0 0
  %854 = vmatprep.subr.bf16.mxu0 0
  %855 = vmatpush2.bf16.msra.mxu0 0
  %856 = vmatprep.subr.bf16.mxu0 0
  %857 = vmatpush2.bf16.msra.mxu0 0
  %858 = vmatprep.subr.bf16.mxu0 0
  %859 = vmatpush2.bf16.msra.mxu0 0
  %860 = vmatprep.subr.bf16.mxu0 0
  %861 = vmatpush2.bf16.msra.mxu0 0
  %862 = vmatprep.mubr.bf16.mxu0 0
  %863 = vmatmul.mubr.bf16.gmra.mxu0 %v637
  %v864 = vpop.f32.mrf.mxu0
  %v865 = vadd.f32 0.0, %v864
  %v866 = vpop.f32.mrf.mxu0
  %v867 = vadd.f32 0.0, %v866
  %v868 = vpop.f32.mrf.mxu0
  %v869 = vadd.f32 0.0, %v868
  %v870 = vpop.f32.mrf.mxu0
  %v871 = vadd.f32 0.0, %v870
  %872 = vdwg.mxu0
  %873 = vmatprep.subr.bf16.mxu0 %v797
  %874 = vmatpush1.bf16.msra.mxu0 %v796
  %875 = vmatprep.subr.bf16.mxu0 %v793
  %876 = vmatpush1.bf16.msra.mxu0 %v792
  %877 = vmatprep.subr.bf16.mxu0 %v789
  %878 = vmatpush1.bf16.msra.mxu0 %v788
  %879 = vmatprep.subr.bf16.mxu0 %v785
  %880 = vmatpush1.bf16.msra.mxu0 %v784
  %881 = vmatprep.subr.bf16.mxu0 %v781
  %882 = vmatpush1.bf16.msra.mxu0 %v780
  %883 = vmatprep.subr.bf16.mxu0 %v777
  %884 = vmatpush1.bf16.msra.mxu0 %v776
  %885 = vmatprep.subr.bf16.mxu0 %v773
  %886 = vmatpush1.bf16.msra.mxu0 %v772
  %887 = vmatprep.subr.bf16.mxu0 %v769
  %888 = vmatpush1.bf16.msra.mxu0 %v768
  %889 = vmatprep.subr.bf16.mxu0 0
  %890 = vmatpush2.bf16.msra.mxu0 0
  %891 = vmatprep.subr.bf16.mxu0 0
  %892 = vmatpush2.bf16.msra.mxu0 0
  %893 = vmatprep.subr.bf16.mxu0 0
  %894 = vmatpush2.bf16.msra.mxu0 0
  %895 = vmatprep.subr.bf16.mxu0 0
  %896 = vmatpush2.bf16.msra.mxu0 0
  %897 = vmatprep.subr.bf16.mxu0 0
  %898 = vmatpush2.bf16.msra.mxu0 0
  %899 = vmatprep.subr.bf16.mxu0 0
  %900 = vmatpush2.bf16.msra.mxu0 0
  %901 = vmatprep.subr.bf16.mxu0 0
  %902 = vmatpush2.bf16.msra.mxu0 0
  %903 = vmatprep.subr.bf16.mxu0 0
  %904 = vmatpush2.bf16.msra.mxu0 0
  %905 = vmatprep.mubr.bf16.mxu0 0
  %906 = vmatmul.mubr.bf16.gmra.mxu0 %v637
  %v907 = vpop.f32.mrf.mxu0
  %v908 = vadd.f32 0.0, %v907
  %v909 = vpop.f32.mrf.mxu0
  %v910 = vadd.f32 0.0, %v909
  %v911 = vpop.f32.mrf.mxu0
  %v912 = vadd.f32 0.0, %v911
  %v913 = vpop.f32.mrf.mxu0
  %v914 = vadd.f32 0.0, %v913
  %915 = vdwg.mxu0
  %v916 = vadd.f32 %v629, %v865
  %v917 = vadd.f32 %v630, %v867
  %v918 = vadd.f32 %v631, %v908
  %v919 = vadd.f32 %v632, %v910
  %v920 = vadd.f32 %v633, %v869
  %v921 = vadd.f32 %v634, %v871
  %v922 = vadd.f32 %v635, %v912
  %v923 = vadd.f32 %v636, %v914
  %v924 = vxor.u32 %v916, 2147483648
  %v925 = vxor.u32 %v920, 2147483648
  %v926 = vmul.f32 %v924, 1.442695
  %v927 = vpow.pop %v926
  %v928 = vmul.f32 %v925, 1.442695
  %v929 = vpow.pop %v928
  %v930 = vadd.f32 %v927, 1.0
  %v931 = vadd.f32 %v929, 1.0
  %v932 = vrcp.pop %v930
  %v933 = vmul.f32 1.0, %v932
  %v934 = vrcp.pop %v931
  %v935 = vmul.f32 1.0, %v934
  %v936 = vxor.u32 %v917, 2147483648
  %v937 = vxor.u32 %v921, 2147483648
  %v938 = vmul.f32 %v936, 1.442695
  %v939 = vpow.pop %v938
  %v940 = vmul.f32 %v937, 1.442695
  %v941 = vpow.pop %v940
  %v942 = vadd.f32 %v939, 1.0
  %v943 = vadd.f32 %v941, 1.0
  %v944 = vrcp.pop %v942
  %v945 = vmul.f32 1.0, %v944
  %v946 = vrcp.pop %v943
  %v947 = vmul.f32 1.0, %v946
  %v948 = vtanh.pop %v918
  %v949 = vtanh.pop %v922
  %v950 = vxor.u32 %v919, 2147483648
  %v951 = vxor.u32 %v923, 2147483648
  %v952 = vmul.f32 %v950, 1.442695
  %v953 = vpow.pop %v952
  %v954 = vmul.f32 %v951, 1.442695
  %v955 = vpow.pop %v954
  %v956 = vadd.f32 %v953, 1.0
  %v957 = vadd.f32 %v955, 1.0
  %v958 = vrcp.pop %v956
  %v959 = vmul.f32 1.0, %v958
  %v960 = vrcp.pop %v957
  %v961 = vmul.f32 1.0, %v960
  %v962 = vmul.f32 %v945, %v624
  %v963 = vmul.f32 %v947, %v625
  %v964 = vmul.f32 %v933, %v948
  %v965 = vmul.f32 %v935, %v949
  %v966 = vadd.f32 %v962, %v964
  %v967 = vadd.f32 %v963, %v965
  %v968 = vtanh.pop %v966
  %v969 = vtanh.pop %v967
  %v970 = vmul.f32 %v959, %v968
  %v971 = vmul.f32 %v961, %v969
  %v972 = vpack.c.bf16 %v971, %v970
  %v974 = vunpack.c.l.b16 %v972
  %v975 = vunpack.c.h.b16 %v972
  %v976 = vpack.c.b16 %v974, %v974
  %v977 = vpack.c.b16 %v975, %v975
  %980 = vst [vmem:[#allocation2] sm:$0xf] %v976
  %981 = vst [vmem:[#allocation2 + $0x4] sm:$0xf] %v977
  %s982 = smul.u32 2, 4
  %s983 = smul.addr %s982, 8
  %s984 = scalar_lea.vmem [#allocation3], %s983
  %v985 = vld [vmem:[%s984] sm:$0xff]
  %v986 = vld [vmem:[%s984 + $0x8] sm:$0xff]
  %v987 = vld [vmem:[%s984 + $0x10] sm:$0xff]
  %v988 = vld [vmem:[%s984 + $0x18] sm:$0xff]
  %v989 = vld [vmem:[%s984 + $0x20] sm:$0xff]
  %v990 = vld [vmem:[%s984 + $0x28] sm:$0xff]
  %v991 = vld [vmem:[%s984 + $0x30] sm:$0xff]
  %v992 = vld [vmem:[%s984 + $0x38] sm:$0xff]
  %v993 = vld [vmem:[%s4] sm:$0xff]
  %v994 = vld [vmem:[%s4 + $0x8] sm:$0xff]
  %v995 = vld [vmem:[%s4 + $0x10] sm:$0xff]
  %v996 = vld [vmem:[%s4 + $0x18] sm:$0xff]
  %v997 = vld [vmem:[%s4 + $0x20] sm:$0xff]
  %v998 = vld [vmem:[%s4 + $0x28] sm:$0xff]
  %v999 = vld [vmem:[%s4 + $0x30] sm:$0xff]
  %v1000 = vld [vmem:[%s4 + $0x38] sm:$0xff]
  %v1001 = vld [vmem:[%s4 + $0x40] sm:$0xff]
  %v1002 = vld [vmem:[%s4 + $0x48] sm:$0xff]
  %v1003 = vld [vmem:[%s4 + $0x50] sm:$0xff]
  %v1004 = vld [vmem:[%s4 + $0x58] sm:$0xff]
  %v1005 = vld [vmem:[%s4 + $0x60] sm:$0xff]
  %v1006 = vld [vmem:[%s4 + $0x68] sm:$0xff]
  %v1007 = vld [vmem:[%s4 + $0x70] sm:$0xff]
  %v1008 = vld [vmem:[%s4 + $0x78] sm:$0xff]
  %v1009 = vld [vmem:[%s4 + $0x80] sm:$0xff]
  %v1010 = vld [vmem:[%s4 + $0x88] sm:$0xff]
  %v1011 = vld [vmem:[%s4 + $0x90] sm:$0xff]
  %v1012 = vld [vmem:[%s4 + $0x98] sm:$0xff]
  %v1013 = vld [vmem:[%s4 + $0xa0] sm:$0xff]
  %v1014 = vld [vmem:[%s4 + $0xa8] sm:$0xff]
  %v1015 = vld [vmem:[%s4 + $0xb0] sm:$0xff]
  %v1016 = vld [vmem:[%s4 + $0xb8] sm:$0xff]
  %v1017 = vld [vmem:[%s4 + $0xc0] sm:$0xff]
  %v1018 = vld [vmem:[%s4 + $0xc8] sm:$0xff]
  %v1019 = vld [vmem:[%s4 + $0xd0] sm:$0xff]
  %v1020 = vld [vmem:[%s4 + $0xd8] sm:$0xff]
  %v1021 = vld [vmem:[%s4 + $0xe0] sm:$0xff]
  %v1022 = vld [vmem:[%s4 + $0xe8] sm:$0xff]
  %v1023 = vld [vmem:[%s4 + $0xf0] sm:$0xff]
  %v1024 = vld [vmem:[%s4 + $0xf8] sm:$0xff]
  %v1057 = vunpack.c.l.b16 %v993
  %v1058 = vunpack.c.h.b16 %v993
  %v1059 = vunpack.c.l.b16 %v994
  %v1060 = vunpack.c.h.b16 %v994
  %v1061 = vunpack.c.l.b16 %v995
  %v1062 = vunpack.c.h.b16 %v995
  %v1063 = vunpack.c.l.b16 %v996
  %v1064 = vunpack.c.h.b16 %v996
  %v1065 = vunpack.c.l.b16 %v997
  %v1066 = vunpack.c.h.b16 %v997
  %v1067 = vunpack.c.l.b16 %v998
  %v1068 = vunpack.c.h.b16 %v998
  %v1069 = vunpack.c.l.b16 %v999
  %v1070 = vunpack.c.h.b16 %v999
  %v1071 = vunpack.c.l.b16 %v1000
  %v1072 = vunpack.c.h.b16 %v1000
  %v1073 = vunpack.c.l.b16 %v1001
  %v1074 = vunpack.c.h.b16 %v1001
  %v1075 = vunpack.c.l.b16 %v1002
  %v1076 = vunpack.c.h.b16 %v1002
  %v1077 = vunpack.c.l.b16 %v1003
  %v1078 = vunpack.c.h.b16 %v1003
  %v1079 = vunpack.c.l.b16 %v1004
  %v1080 = vunpack.c.h.b16 %v1004
  %v1081 = vunpack.c.l.b16 %v1005
  %v1082 = vunpack.c.h.b16 %v1005
  %v1083 = vunpack.c.l.b16 %v1006
  %v1084 = vunpack.c.h.b16 %v1006
  %v1085 = vunpack.c.l.b16 %v1007
  %v1086 = vunpack.c.h.b16 %v1007
  %v1087 = vunpack.c.l.b16 %v1008
  %v1088 = vunpack.c.h.b16 %v1008
  %v1089 = vunpack.c.l.b16 %v1009
  %v1090 = vunpack.c.h.b16 %v1009
  %v1091 = vunpack.c.l.b16 %v1010
  %v1092 = vunpack.c.h.b16 %v1010
  %v1093 = vunpack.c.l.b16 %v1011
  %v1094 = vunpack.c.h.b16 %v1011
  %v1095 = vunpack.c.l.b16 %v1012
  %v1096 = vunpack.c.h.b16 %v1012
  %v1097 = vunpack.c.l.b16 %v1013
  %v1098 = vunpack.c.h.b16 %v1013
  %v1099 = vunpack.c.l.b16 %v1014
  %v1100 = vunpack.c.h.b16 %v1014
  %v1101 = vunpack.c.l.b16 %v1015
  %v1102 = vunpack.c.h.b16 %v1015
  %v1103 = vunpack.c.l.b16 %v1016
  %v1104 = vunpack.c.h.b16 %v1016
  %v1105 = vunpack.c.l.b16 %v1017
  %v1106 = vunpack.c.h.b16 %v1017
  %v1107 = vunpack.c.l.b16 %v1018
  %v1108 = vunpack.c.h.b16 %v1018
  %v1109 = vunpack.c.l.b16 %v1019
  %v1110 = vunpack.c.h.b16 %v1019
  %v1111 = vunpack.c.l.b16 %v1020
  %v1112 = vunpack.c.h.b16 %v1020
  %v1113 = vunpack.c.l.b16 %v1021
  %v1114 = vunpack.c.h.b16 %v1021
  %v1115 = vunpack.c.l.b16 %v1022
  %v1116 = vunpack.c.h.b16 %v1022
  %v1117 = vunpack.c.l.b16 %v1023
  %v1118 = vunpack.c.h.b16 %v1023
  %v1119 = vunpack.c.l.b16 %v1024
  %v1120 = vunpack.c.h.b16 %v1024
  %v1121 = vpack.c.b16 %v1061, %v1057
  %v1122 = vpack.c.b16 %v1062, %v1058
  %v1123 = vpack.c.b16 %v1063, %v1059
  %v1124 = vpack.c.b16 %v1064, %v1060
  %v1125 = vpack.c.b16 %v1069, %v1065
  %v1126 = vpack.c.b16 %v1070, %v1066
  %v1127 = vpack.c.b16 %v1071, %v1067
  %v1128 = vpack.c.b16 %v1072, %v1068
  %v1129 = vpack.c.b16 %v1077, %v1073
  %v1130 = vpack.c.b16 %v1078, %v1074
  %v1131 = vpack.c.b16 %v1079, %v1075
  %v1132 = vpack.c.b16 %v1080, %v1076
  %v1133 = vpack.c.b16 %v1085, %v1081
  %v1134 = vpack.c.b16 %v1086, %v1082
  %v1135 = vpack.c.b16 %v1087, %v1083
  %v1136 = vpack.c.b16 %v1088, %v1084
  %v1137 = vpack.c.b16 %v1093, %v1089
  %v1138 = vpack.c.b16 %v1094, %v1090
  %v1139 = vpack.c.b16 %v1095, %v1091
  %v1140 = vpack.c.b16 %v1096, %v1092
  %v1141 = vpack.c.b16 %v1101, %v1097
  %v1142 = vpack.c.b16 %v1102, %v1098
  %v1143 = vpack.c.b16 %v1103, %v1099
  %v1144 = vpack.c.b16 %v1104, %v1100
  %v1145 = vpack.c.b16 %v1109, %v1105
  %v1146 = vpack.c.b16 %v1110, %v1106
  %v1147 = vpack.c.b16 %v1111, %v1107
  %v1148 = vpack.c.b16 %v1112, %v1108
  %v1149 = vpack.c.b16 %v1117, %v1113
  %v1150 = vpack.c.b16 %v1118, %v1114
  %v1151 = vpack.c.b16 %v1119, %v1115
  %v1152 = vpack.c.b16 %v1120, %v1116
  %1185 = vmatprep.subr.bf16.mxu0 %v1150
  %1186 = vmatpush1.bf16.msra.mxu0 %v1149
  %1187 = vmatprep.subr.bf16.mxu0 %v1146
  %1188 = vmatpush1.bf16.msra.mxu0 %v1145
  %1189 = vmatprep.subr.bf16.mxu0 %v1142
  %1190 = vmatpush1.bf16.msra.mxu0 %v1141
  %1191 = vmatprep.subr.bf16.mxu0 %v1138
  %1192 = vmatpush1.bf16.msra.mxu0 %v1137
  %1193 = vmatprep.subr.bf16.mxu0 %v1134
  %1194 = vmatpush1.bf16.msra.mxu0 %v1133
  %1195 = vmatprep.subr.bf16.mxu0 %v1130
  %1196 = vmatpush1.bf16.msra.mxu0 %v1129
  %1197 = vmatprep.subr.bf16.mxu0 %v1126
  %1198 = vmatpush1.bf16.msra.mxu0 %v1125
  %1199 = vmatprep.subr.bf16.mxu0 %v1122
  %1200 = vmatpush1.bf16.msra.mxu0 %v1121
  %1201 = vmatprep.subr.bf16.mxu0 0
  %1202 = vmatpush2.bf16.msra.mxu0 0
  %1203 = vmatprep.subr.bf16.mxu0 0
  %1204 = vmatpush2.bf16.msra.mxu0 0
  %1205 = vmatprep.subr.bf16.mxu0 0
  %1206 = vmatpush2.bf16.msra.mxu0 0
  %1207 = vmatprep.subr.bf16.mxu0 0
  %1208 = vmatpush2.bf16.msra.mxu0 0
  %1209 = vmatprep.subr.bf16.mxu0 0
  %1210 = vmatpush2.bf16.msra.mxu0 0
  %1211 = vmatprep.subr.bf16.mxu0 0
  %1212 = vmatpush2.bf16.msra.mxu0 0
  %1213 = vmatprep.subr.bf16.mxu0 0
  %1214 = vmatpush2.bf16.msra.mxu0 0
  %1215 = vmatprep.subr.bf16.mxu0 0
  %1216 = vmatpush2.bf16.msra.mxu0 0
  %1217 = vmatprep.mubr.bf16.mxu0 0
  %1218 = vmatmul.mubr.bf16.gmra.mxu0 %v972
  %v1219 = vpop.f32.mrf.mxu0
  %v1220 = vadd.f32 0.0, %v1219
  %v1221 = vpop.f32.mrf.mxu0
  %v1222 = vadd.f32 0.0, %v1221
  %v1223 = vpop.f32.mrf.mxu0
  %v1224 = vadd.f32 0.0, %v1223
  %v1225 = vpop.f32.mrf.mxu0
  %v1226 = vadd.f32 0.0, %v1225
  %1227 = vdwg.mxu0
  %1228 = vmatprep.subr.bf16.mxu0 %v1152
  %1229 = vmatpush1.bf16.msra.mxu0 %v1151
  %1230 = vmatprep.subr.bf16.mxu0 %v1148
  %1231 = vmatpush1.bf16.msra.mxu0 %v1147
  %1232 = vmatprep.subr.bf16.mxu0 %v1144
  %1233 = vmatpush1.bf16.msra.mxu0 %v1143
  %1234 = vmatprep.subr.bf16.mxu0 %v1140
  %1235 = vmatpush1.bf16.msra.mxu0 %v1139
  %1236 = vmatprep.subr.bf16.mxu0 %v1136
  %1237 = vmatpush1.bf16.msra.mxu0 %v1135
  %1238 = vmatprep.subr.bf16.mxu0 %v1132
  %1239 = vmatpush1.bf16.msra.mxu0 %v1131
  %1240 = vmatprep.subr.bf16.mxu0 %v1128
  %1241 = vmatpush1.bf16.msra.mxu0 %v1127
  %1242 = vmatprep.subr.bf16.mxu0 %v1124
  %1243 = vmatpush1.bf16.msra.mxu0 %v1123
  %1244 = vmatprep.subr.bf16.mxu0 0
  %1245 = vmatpush2.bf16.msra.mxu0 0
  %1246 = vmatprep.subr.bf16.mxu0 0
  %1247 = vmatpush2.bf16.msra.mxu0 0
  %1248 = vmatprep.subr.bf16.mxu0 0
  %1249 = vmatpush2.bf16.msra.mxu0 0
  %1250 = vmatprep.subr.bf16.mxu0 0
  %1251 = vmatpush2.bf16.msra.mxu0 0
  %1252 = vmatprep.subr.bf16.mxu0 0
  %1253 = vmatpush2.bf16.msra.mxu0 0
  %1254 = vmatprep.subr.bf16.mxu0 0
  %1255 = vmatpush2.bf16.msra.mxu0 0
  %1256 = vmatprep.subr.bf16.mxu0 0
  %1257 = vmatpush2.bf16.msra.mxu0 0
  %1258 = vmatprep.subr.bf16.mxu0 0
  %1259 = vmatpush2.bf16.msra.mxu0 0
  %1260 = vmatprep.mubr.bf16.mxu0 0
  %1261 = vmatmul.mubr.bf16.gmra.mxu0 %v972
  %v1262 = vpop.f32.mrf.mxu0
  %v1263 = vadd.f32 0.0, %v1262
  %v1264 = vpop.f32.mrf.mxu0
  %v1265 = vadd.f32 0.0, %v1264
  %v1266 = vpop.f32.mrf.mxu0
  %v1267 = vadd.f32 0.0, %v1266
  %v1268 = vpop.f32.mrf.mxu0
  %v1269 = vadd.f32 0.0, %v1268
  %1270 = vdwg.mxu0
  %v1271 = vadd.f32 %v985, %v1220
  %v1272 = vadd.f32 %v986, %v1222
  %v1273 = vadd.f32 %v987, %v1263
  %v1274 = vadd.f32 %v988, %v1265
  %v1275 = vadd.f32 %v989, %v1224
  %v1276 = vadd.f32 %v990, %v1226
  %v1277 = vadd.f32 %v991, %v1267
  %v1278 = vadd.f32 %v992, %v1269
  %v1279 = vxor.u32 %v1271, 2147483648
  %v1280 = vxor.u32 %v1275, 2147483648
  %v1281 = vmul.f32 %v1279, 1.442695
  %v1282 = vpow.pop %v1281
  %v1283 = vmul.f32 %v1280, 1.442695
  %v1284 = vpow.pop %v1283
  %v1285 = vadd.f32 %v1282, 1.0
  %v1286 = vadd.f32 %v1284, 1.0
  %v1287 = vrcp.pop %v1285
  %v1288 = vmul.f32 1.0, %v1287
  %v1289 = vrcp.pop %v1286
  %v1290 = vmul.f32 1.0, %v1289
  %v1291 = vxor.u32 %v1272, 2147483648
  %v1292 = vxor.u32 %v1276, 2147483648
  %v1293 = vmul.f32 %v1291, 1.442695
  %v1294 = vpow.pop %v1293
  %v1295 = vmul.f32 %v1292, 1.442695
  %v1296 = vpow.pop %v1295
  %v1297 = vadd.f32 %v1294, 1.0
  %v1298 = vadd.f32 %v1296, 1.0
  %v1299 = vrcp.pop %v1297
  %v1300 = vmul.f32 1.0, %v1299
  %v1301 = vrcp.pop %v1298
  %v1302 = vmul.f32 1.0, %v1301
  %v1303 = vtanh.pop %v1273
  %v1304 = vtanh.pop %v1277
  %v1305 = vxor.u32 %v1274, 2147483648
  %v1306 = vxor.u32 %v1278, 2147483648
  %v1307 = vmul.f32 %v1305, 1.442695
  %v1308 = vpow.pop %v1307
  %v1309 = vmul.f32 %v1306, 1.442695
  %v1310 = vpow.pop %v1309
  %v1311 = vadd.f32 %v1308, 1.0
  %v1312 = vadd.f32 %v1310, 1.0
  %v1313 = vrcp.pop %v1311
  %v1314 = vmul.f32 1.0, %v1313
  %v1315 = vrcp.pop %v1312
  %v1316 = vmul.f32 1.0, %v1315
  %v1317 = vmul.f32 %v1300, %v966
  %v1318 = vmul.f32 %v1302, %v967
  %v1319 = vmul.f32 %v1288, %v1303
  %v1320 = vmul.f32 %v1290, %v1304
  %v1321 = vadd.f32 %v1317, %v1319
  %v1322 = vadd.f32 %v1318, %v1320
  %v1323 = vtanh.pop %v1321
  %v1324 = vtanh.pop %v1322
  %v1325 = vmul.f32 %v1314, %v1323
  %v1326 = vmul.f32 %v1316, %v1324
  %v1327 = vpack.c.bf16 %v1326, %v1325
  %v1329 = vunpack.c.l.b16 %v1327
  %v1330 = vunpack.c.h.b16 %v1327
  %v1331 = vpack.c.b16 %v1329, %v1329
  %v1332 = vpack.c.b16 %v1330, %v1330
  %s1335 = scalar_lea.vmem [#allocation2], 8
  %1336 = vst [vmem:[%s1335] sm:$0xf] %v1331
  %1337 = vst [vmem:[%s1335 + $0x4] sm:$0xf] %v1332
  %s1338 = smul.u32 4, 4
  %s1339 = smul.addr %s1338, 8
  %s1340 = scalar_lea.vmem [#allocation3], %s1339
  %v1341 = vld [vmem:[%s1340] sm:$0xff]
  %v1342 = vld [vmem:[%s1340 + $0x8] sm:$0xff]
  %v1343 = vld [vmem:[%s1340 + $0x10] sm:$0xff]
  %v1344 = vld [vmem:[%s1340 + $0x18] sm:$0xff]
  %v1345 = vld [vmem:[%s1340 + $0x20] sm:$0xff]
  %v1346 = vld [vmem:[%s1340 + $0x28] sm:$0xff]
  %v1347 = vld [vmem:[%s1340 + $0x30] sm:$0xff]
  %v1348 = vld [vmem:[%s1340 + $0x38] sm:$0xff]
  %v1349 = vld [vmem:[%s4] sm:$0xff]
  %v1350 = vld [vmem:[%s4 + $0x8] sm:$0xff]
  %v1351 = vld [vmem:[%s4 + $0x10] sm:$0xff]
  %v1352 = vld [vmem:[%s4 + $0x18] sm:$0xff]
  %v1353 = vld [vmem:[%s4 + $0x20] sm:$0xff]
  %v1354 = vld [vmem:[%s4 + $0x28] sm:$0xff]
  %v1355 = vld [vmem:[%s4 + $0x30] sm:$0xff]
  %v1356 = vld [vmem:[%s4 + $0x38] sm:$0xff]
  %v1357 = vld [vmem:[%s4 + $0x40] sm:$0xff]
  %v1358 = vld [vmem:[%s4 + $0x48] sm:$0xff]
  %v1359 = vld [vmem:[%s4 + $0x50] sm:$0xff]
  %v1360 = vld [vmem:[%s4 + $0x58] sm:$0xff]
  %v1361 = vld [vmem:[%s4 + $0x60] sm:$0xff]
  %v1362 = vld [vmem:[%s4 + $0x68] sm:$0xff]
  %v1363 = vld [vmem:[%s4 + $0x70] sm:$0xff]
  %v1364 = vld [vmem:[%s4 + $0x78] sm:$0xff]
  %v1365 = vld [vmem:[%s4 + $0x80] sm:$0xff]
  %v1366 = vld [vmem:[%s4 + $0x88] sm:$0xff]
  %v1367 = vld [vmem:[%s4 + $0x90] sm:$0xff]
  %v1368 = vld [vmem:[%s4 + $0x98] sm:$0xff]
  %v1369 = vld [vmem:[%s4 + $0xa0] sm:$0xff]
  %v1370 = vld [vmem:[%s4 + $0xa8] sm:$0xff]
  %v1371 = vld [vmem:[%s4 + $0xb0] sm:$0xff]
  %v1372 = vld [vmem:[%s4 + $0xb8] sm:$0xff]
  %v1373 = vld [vmem:[%s4 + $0xc0] sm:$0xff]
  %v1374 = vld [vmem:[%s4 + $0xc8] sm:$0xff]
  %v1375 = vld [vmem:[%s4 + $0xd0] sm:$0xff]
  %v1376 = vld [vmem:[%s4 + $0xd8] sm:$0xff]
  %v1377 = vld [vmem:[%s4 + $0xe0] sm:$0xff]
  %v1378 = vld [vmem:[%s4 + $0xe8] sm:$0xff]
  %v1379 = vld [vmem:[%s4 + $0xf0] sm:$0xff]
  %v1380 = vld [vmem:[%s4 + $0xf8] sm:$0xff]
  %v1413 = vunpack.c.l.b16 %v1349
  %v1414 = vunpack.c.h.b16 %v1349
  %v1415 = vunpack.c.l.b16 %v1350
  %v1416 = vunpack.c.h.b16 %v1350
  %v1417 = vunpack.c.l.b16 %v1351
  %v1418 = vunpack.c.h.b16 %v1351
  %v1419 = vunpack.c.l.b16 %v1352
  %v1420 = vunpack.c.h.b16 %v1352
  %v1421 = vunpack.c.l.b16 %v1353
  %v1422 = vunpack.c.h.b16 %v1353
  %v1423 = vunpack.c.l.b16 %v1354
  %v1424 = vunpack.c.h.b16 %v1354
  %v1425 = vunpack.c.l.b16 %v1355
  %v1426 = vunpack.c.h.b16 %v1355
  %v1427 = vunpack.c.l.b16 %v1356
  %v1428 = vunpack.c.h.b16 %v1356
  %v1429 = vunpack.c.l.b16 %v1357
  %v1430 = vunpack.c.h.b16 %v1357
  %v1431 = vunpack.c.l.b16 %v1358
  %v1432 = vunpack.c.h.b16 %v1358
  %v1433 = vunpack.c.l.b16 %v1359
  %v1434 = vunpack.c.h.b16 %v1359
  %v1435 = vunpack.c.l.b16 %v1360
  %v1436 = vunpack.c.h.b16 %v1360
  %v1437 = vunpack.c.l.b16 %v1361
  %v1438 = vunpack.c.h.b16 %v1361
  %v1439 = vunpack.c.l.b16 %v1362
  %v1440 = vunpack.c.h.b16 %v1362
  %v1441 = vunpack.c.l.b16 %v1363
  %v1442 = vunpack.c.h.b16 %v1363
  %v1443 = vunpack.c.l.b16 %v1364
  %v1444 = vunpack.c.h.b16 %v1364
  %v1445 = vunpack.c.l.b16 %v1365
  %v1446 = vunpack.c.h.b16 %v1365
  %v1447 = vunpack.c.l.b16 %v1366
  %v1448 = vunpack.c.h.b16 %v1366
  %v1449 = vunpack.c.l.b16 %v1367
  %v1450 = vunpack.c.h.b16 %v1367
  %v1451 = vunpack.c.l.b16 %v1368
  %v1452 = vunpack.c.h.b16 %v1368
  %v1453 = vunpack.c.l.b16 %v1369
  %v1454 = vunpack.c.h.b16 %v1369
  %v1455 = vunpack.c.l.b16 %v1370
  %v1456 = vunpack.c.h.b16 %v1370
  %v1457 = vunpack.c.l.b16 %v1371
  %v1458 = vunpack.c.h.b16 %v1371
  %v1459 = vunpack.c.l.b16 %v1372
  %v1460 = vunpack.c.h.b16 %v1372
  %v1461 = vunpack.c.l.b16 %v1373
  %v1462 = vunpack.c.h.b16 %v1373
  %v1463 = vunpack.c.l.b16 %v1374
  %v1464 = vunpack.c.h.b16 %v1374
  %v1465 = vunpack.c.l.b16 %v1375
  %v1466 = vunpack.c.h.b16 %v1375
  %v1467 = vunpack.c.l.b16 %v1376
  %v1468 = vunpack.c.h.b16 %v1376
  %v1469 = vunpack.c.l.b16 %v1377
  %v1470 = vunpack.c.h.b16 %v1377
  %v1471 = vunpack.c.l.b16 %v1378
  %v1472 = vunpack.c.h.b16 %v1378
  %v1473 = vunpack.c.l.b16 %v1379
  %v1474 = vunpack.c.h.b16 %v1379
  %v1475 = vunpack.c.l.b16 %v1380
  %v1476 = vunpack.c.h.b16 %v1380
  %v1477 = vpack.c.b16 %v1417, %v1413
  %v1478 = vpack.c.b16 %v1418, %v1414
  %v1479 = vpack.c.b16 %v1419, %v1415
  %v1480 = vpack.c.b16 %v1420, %v1416
  %v1481 = vpack.c.b16 %v1425, %v1421
  %v1482 = vpack.c.b16 %v1426, %v1422
  %v1483 = vpack.c.b16 %v1427, %v1423
  %v1484 = vpack.c.b16 %v1428, %v1424
  %v1485 = vpack.c.b16 %v1433, %v1429
  %v1486 = vpack.c.b16 %v1434, %v1430
  %v1487 = vpack.c.b16 %v1435, %v1431
  %v1488 = vpack.c.b16 %v1436, %v1432
  %v1489 = vpack.c.b16 %v1441, %v1437
  %v1490 = vpack.c.b16 %v1442, %v1438
  %v1491 = vpack.c.b16 %v1443, %v1439
  %v1492 = vpack.c.b16 %v1444, %v1440
  %v1493 = vpack.c.b16 %v1449, %v1445
  %v1494 = vpack.c.b16 %v1450, %v1446
  %v1495 = vpack.c.b16 %v1451, %v1447
  %v1496 = vpack.c.b16 %v1452, %v1448
  %v1497 = vpack.c.b16 %v1457, %v1453
  %v1498 = vpack.c.b16 %v1458, %v1454
  %v1499 = vpack.c.b16 %v1459, %v1455
  %v1500 = vpack.c.b16 %v1460, %v1456
  %v1501 = vpack.c.b16 %v1465, %v1461
  %v1502 = vpack.c.b16 %v1466, %v1462
  %v1503 = vpack.c.b16 %v1467, %v1463
  %v1504 = vpack.c.b16 %v1468, %v1464
  %v1505 = vpack.c.b16 %v1473, %v1469
  %v1506 = vpack.c.b16 %v1474, %v1470
  %v1507 = vpack.c.b16 %v1475, %v1471
  %v1508 = vpack.c.b16 %v1476, %v1472
  %1541 = vmatprep.subr.bf16.mxu0 %v1506
  %1542 = vmatpush1.bf16.msra.mxu0 %v1505
  %1543 = vmatprep.subr.bf16.mxu0 %v1502
  %1544 = vmatpush1.bf16.msra.mxu0 %v1501
  %1545 = vmatprep.subr.bf16.mxu0 %v1498
  %1546 = vmatpush1.bf16.msra.mxu0 %v1497
  %1547 = vmatprep.subr.bf16.mxu0 %v1494
  %1548 = vmatpush1.bf16.msra.mxu0 %v1493
  %1549 = vmatprep.subr.bf16.mxu0 %v1490
  %1550 = vmatpush1.bf16.msra.mxu0 %v1489
  %1551 = vmatprep.subr.bf16.mxu0 %v1486
  %1552 = vmatpush1.bf16.msra.mxu0 %v1485
  %1553 = vmatprep.subr.bf16.mxu0 %v1482
  %1554 = vmatpush1.bf16.msra.mxu0 %v1481
  %1555 = vmatprep.subr.bf16.mxu0 %v1478
  %1556 = vmatpush1.bf16.msra.mxu0 %v1477
  %1557 = vmatprep.subr.bf16.mxu0 0
  %1558 = vmatpush2.bf16.msra.mxu0 0
  %1559 = vmatprep.subr.bf16.mxu0 0
  %1560 = vmatpush2.bf16.msra.mxu0 0
  %1561 = vmatprep.subr.bf16.mxu0 0
  %1562 = vmatpush2.bf16.msra.mxu0 0
  %1563 = vmatprep.subr.bf16.mxu0 0
  %1564 = vmatpush2.bf16.msra.mxu0 0
  %1565 = vmatprep.subr.bf16.mxu0 0
  %1566 = vmatpush2.bf16.msra.mxu0 0
  %1567 = vmatprep.subr.bf16.mxu0 0
  %1568 = vmatpush2.bf16.msra.mxu0 0
  %1569 = vmatprep.subr.bf16.mxu0 0
  %1570 = vmatpush2.bf16.msra.mxu0 0
  %1571 = vmatprep.subr.bf16.mxu0 0
  %1572 = vmatpush2.bf16.msra.mxu0 0
  %1573 = vmatprep.mubr.bf16.mxu0 0
  %1574 = vmatmul.mubr.bf16.gmra.mxu0 %v1327
  %v1575 = vpop.f32.mrf.mxu0
  %v1576 = vadd.f32 0.0, %v1575
  %v1577 = vpop.f32.mrf.mxu0
  %v1578 = vadd.f32 0.0, %v1577
  %v1579 = vpop.f32.mrf.mxu0
  %v1580 = vadd.f32 0.0, %v1579
  %v1581 = vpop.f32.mrf.mxu0
  %v1582 = vadd.f32 0.0, %v1581
  %1583 = vdwg.mxu0
  %1584 = vmatprep.subr.bf16.mxu0 %v1508
  %1585 = vmatpush1.bf16.msra.mxu0 %v1507
  %1586 = vmatprep.subr.bf16.mxu0 %v1504
  %1587 = vmatpush1.bf16.msra.mxu0 %v1503
  %1588 = vmatprep.subr.bf16.mxu0 %v1500
  %1589 = vmatpush1.bf16.msra.mxu0 %v1499
  %1590 = vmatprep.subr.bf16.mxu0 %v1496
  %1591 = vmatpush1.bf16.msra.mxu0 %v1495
  %1592 = vmatprep.subr.bf16.mxu0 %v1492
  %1593 = vmatpush1.bf16.msra.mxu0 %v1491
  %1594 = vmatprep.subr.bf16.mxu0 %v1488
  %1595 = vmatpush1.bf16.msra.mxu0 %v1487
  %1596 = vmatprep.subr.bf16.mxu0 %v1484
  %1597 = vmatpush1.bf16.msra.mxu0 %v1483
  %1598 = vmatprep.subr.bf16.mxu0 %v1480
  %1599 = vmatpush1.bf16.msra.mxu0 %v1479
  %1600 = vmatprep.subr.bf16.mxu0 0
  %1601 = vmatpush2.bf16.msra.mxu0 0
  %1602 = vmatprep.subr.bf16.mxu0 0
  %1603 = vmatpush2.bf16.msra.mxu0 0
  %1604 = vmatprep.subr.bf16.mxu0 0
  %1605 = vmatpush2.bf16.msra.mxu0 0
  %1606 = vmatprep.subr.bf16.mxu0 0
  %1607 = vmatpush2.bf16.msra.mxu0 0
  %1608 = vmatprep.subr.bf16.mxu0 0
  %1609 = vmatpush2.bf16.msra.mxu0 0
  %1610 = vmatprep.subr.bf16.mxu0 0
  %1611 = vmatpush2.bf16.msra.mxu0 0
  %1612 = vmatprep.subr.bf16.mxu0 0
  %1613 = vmatpush2.bf16.msra.mxu0 0
  %1614 = vmatprep.subr.bf16.mxu0 0
  %1615 = vmatpush2.bf16.msra.mxu0 0
  %1616 = vmatprep.mubr.bf16.mxu0 0
  %1617 = vmatmul.mubr.bf16.gmra.mxu0 %v1327
  %v1618 = vpop.f32.mrf.mxu0
  %v1619 = vadd.f32 0.0, %v1618
  %v1620 = vpop.f32.mrf.mxu0
  %v1621 = vadd.f32 0.0, %v1620
  %v1622 = vpop.f32.mrf.mxu0
  %v1623 = vadd.f32 0.0, %v1622
  %v1624 = vpop.f32.mrf.mxu0
  %v1625 = vadd.f32 0.0, %v1624
  %1626 = vdwg.mxu0
  %v1627 = vadd.f32 %v1341, %v1576
  %v1628 = vadd.f32 %v1342, %v1578
  %v1629 = vadd.f32 %v1343, %v1619
  %v1630 = vadd.f32 %v1344, %v1621
  %v1631 = vadd.f32 %v1345, %v1580
  %v1632 = vadd.f32 %v1346, %v1582
  %v1633 = vadd.f32 %v1347, %v1623
  %v1634 = vadd.f32 %v1348, %v1625
  %v1635 = vxor.u32 %v1627, 2147483648
  %v1636 = vxor.u32 %v1631, 2147483648
  %v1637 = vmul.f32 %v1635, 1.442695
  %v1638 = vpow.pop %v1637
  %v1639 = vmul.f32 %v1636, 1.442695
  %v1640 = vpow.pop %v1639
  %v1641 = vadd.f32 %v1638, 1.0
  %v1642 = vadd.f32 %v1640, 1.0
  %v1643 = vrcp.pop %v1641
  %v1644 = vmul.f32 1.0, %v1643
  %v1645 = vrcp.pop %v1642
  %v1646 = vmul.f32 1.0, %v1645
  %v1647 = vxor.u32 %v1628, 2147483648
  %v1648 = vxor.u32 %v1632, 2147483648
  %v1649 = vmul.f32 %v1647, 1.442695
  %v1650 = vpow.pop %v1649
  %v1651 = vmul.f32 %v1648, 1.442695
  %v1652 = vpow.pop %v1651
  %v1653 = vadd.f32 %v1650, 1.0
  %v1654 = vadd.f32 %v1652, 1.0
  %v1655 = vrcp.pop %v1653
  %v1656 = vmul.f32 1.0, %v1655
  %v1657 = vrcp.pop %v1654
  %v1658 = vmul.f32 1.0, %v1657
  %v1659 = vtanh.pop %v1629
  %v1660 = vtanh.pop %v1633
  %v1661 = vxor.u32 %v1630, 2147483648
  %v1662 = vxor.u32 %v1634, 2147483648
  %v1663 = vmul.f32 %v1661, 1.442695
  %v1664 = vpow.pop %v1663
  %v1665 = vmul.f32 %v1662, 1.442695
  %v1666 = vpow.pop %v1665
  %v1667 = vadd.f32 %v1664, 1.0
  %v1668 = vadd.f32 %v1666, 1.0
  %v1669 = vrcp.pop %v1667
  %v1670 = vmul.f32 1.0, %v1669
  %v1671 = vrcp.pop %v1668
  %v1672 = vmul.f32 1.0, %v1671
  %v1673 = vmul.f32 %v1656, %v1321
  %v1674 = vmul.f32 %v1658, %v1322
  %v1675 = vmul.f32 %v1644, %v1659
  %v1676 = vmul.f32 %v1646, %v1660
  %v1677 = vadd.f32 %v1673, %v1675
  %v1678 = vadd.f32 %v1674, %v1676
  %v1679 = vtanh.pop %v1677
  %v1680 = vtanh.pop %v1678
  %v1681 = vmul.f32 %v1670, %v1679
  %v1682 = vmul.f32 %v1672, %v1680
  %v1683 = vpack.c.bf16 %v1682, %v1681
  %v1685 = vunpack.c.l.b16 %v1683
  %v1686 = vunpack.c.h.b16 %v1683
  %v1687 = vpack.c.b16 %v1685, %v1685
  %v1688 = vpack.c.b16 %v1686, %v1686
  %s1691 = scalar_lea.vmem [#allocation2], 16
  %1692 = vst [vmem:[%s1691] sm:$0xf] %v1687
  %1693 = vst [vmem:[%s1691 + $0x4] sm:$0xf] %v1688
  %s1694 = smul.u32 6, 4
  %s1695 = smul.addr %s1694, 8
  %s1696 = scalar_lea.vmem [#allocation3], %s1695
  %v1697 = vld [vmem:[%s1696] sm:$0xff]
  %v1698 = vld [vmem:[%s1696 + $0x8] sm:$0xff]
  %v1699 = vld [vmem:[%s1696 + $0x10] sm:$0xff]
  %v1700 = vld [vmem:[%s1696 + $0x18] sm:$0xff]
  %v1701 = vld [vmem:[%s1696 + $0x20] sm:$0xff]
  %v1702 = vld [vmem:[%s1696 + $0x28] sm:$0xff]
  %v1703 = vld [vmem:[%s1696 + $0x30] sm:$0xff]
  %v1704 = vld [vmem:[%s1696 + $0x38] sm:$0xff]
  %v1705 = vld [vmem:[%s4] sm:$0xff]
  %v1706 = vld [vmem:[%s4 + $0x8] sm:$0xff]
  %v1707 = vld [vmem:[%s4 + $0x10] sm:$0xff]
  %v1708 = vld [vmem:[%s4 + $0x18] sm:$0xff]
  %v1709 = vld [vmem:[%s4 + $0x20] sm:$0xff]
  %v1710 = vld [vmem:[%s4 + $0x28] sm:$0xff]
  %v1711 = vld [vmem:[%s4 + $0x30] sm:$0xff]
  %v1712 = vld [vmem:[%s4 + $0x38] sm:$0xff]
  %v1713 = vld [vmem:[%s4 + $0x40] sm:$0xff]
  %v1714 = vld [vmem:[%s4 + $0x48] sm:$0xff]
  %v1715 = vld [vmem:[%s4 + $0x50] sm:$0xff]
  %v1716 = vld [vmem:[%s4 + $0x58] sm:$0xff]
  %v1717 = vld [vmem:[%s4 + $0x60] sm:$0xff]
  %v1718 = vld [vmem:[%s4 + $0x68] sm:$0xff]
  %v1719 = vld [vmem:[%s4 + $0x70] sm:$0xff]
  %v1720 = vld [vmem:[%s4 + $0x78] sm:$0xff]
  %v1721 = vld [vmem:[%s4 + $0x80] sm:$0xff]
  %v1722 = vld [vmem:[%s4 + $0x88] sm:$0xff]
  %v1723 = vld [vmem:[%s4 + $0x90] sm:$0xff]
  %v1724 = vld [vmem:[%s4 + $0x98] sm:$0xff]
  %v1725 = vld [vmem:[%s4 + $0xa0] sm:$0xff]
  %v1726 = vld [vmem:[%s4 + $0xa8] sm:$0xff]
  %v1727 = vld [vmem:[%s4 + $0xb0] sm:$0xff]
  %v1728 = vld [vmem:[%s4 + $0xb8] sm:$0xff]
  %v1729 = vld [vmem:[%s4 + $0xc0] sm:$0xff]
  %v1730 = vld [vmem:[%s4 + $0xc8] sm:$0xff]
  %v1731 = vld [vmem:[%s4 + $0xd0] sm:$0xff]
  %v1732 = vld [vmem:[%s4 + $0xd8] sm:$0xff]
  %v1733 = vld [vmem:[%s4 + $0xe0] sm:$0xff]
  %v1734 = vld [vmem:[%s4 + $0xe8] sm:$0xff]
  %v1735 = vld [vmem:[%s4 + $0xf0] sm:$0xff]
  %v1736 = vld [vmem:[%s4 + $0xf8] sm:$0xff]
  %v1769 = vunpack.c.l.b16 %v1705
  %v1770 = vunpack.c.h.b16 %v1705
  %v1771 = vunpack.c.l.b16 %v1706
  %v1772 = vunpack.c.h.b16 %v1706
  %v1773 = vunpack.c.l.b16 %v1707
  %v1774 = vunpack.c.h.b16 %v1707
  %v1775 = vunpack.c.l.b16 %v1708
  %v1776 = vunpack.c.h.b16 %v1708
  %v1777 = vunpack.c.l.b16 %v1709
  %v1778 = vunpack.c.h.b16 %v1709
  %v1779 = vunpack.c.l.b16 %v1710
  %v1780 = vunpack.c.h.b16 %v1710
  %v1781 = vunpack.c.l.b16 %v1711
  %v1782 = vunpack.c.h.b16 %v1711
  %v1783 = vunpack.c.l.b16 %v1712
  %v1784 = vunpack.c.h.b16 %v1712
  %v1785 = vunpack.c.l.b16 %v1713
  %v1786 = vunpack.c.h.b16 %v1713
  %v1787 = vunpack.c.l.b16 %v1714
  %v1788 = vunpack.c.h.b16 %v1714
  %v1789 = vunpack.c.l.b16 %v1715
  %v1790 = vunpack.c.h.b16 %v1715
  %v1791 = vunpack.c.l.b16 %v1716
  %v1792 = vunpack.c.h.b16 %v1716
  %v1793 = vunpack.c.l.b16 %v1717
  %v1794 = vunpack.c.h.b16 %v1717
  %v1795 = vunpack.c.l.b16 %v1718
  %v1796 = vunpack.c.h.b16 %v1718
  %v1797 = vunpack.c.l.b16 %v1719
  %v1798 = vunpack.c.h.b16 %v1719
  %v1799 = vunpack.c.l.b16 %v1720
  %v1800 = vunpack.c.h.b16 %v1720
  %v1801 = vunpack.c.l.b16 %v1721
  %v1802 = vunpack.c.h.b16 %v1721
  %v1803 = vunpack.c.l.b16 %v1722
  %v1804 = vunpack.c.h.b16 %v1722
  %v1805 = vunpack.c.l.b16 %v1723
  %v1806 = vunpack.c.h.b16 %v1723
  %v1807 = vunpack.c.l.b16 %v1724
  %v1808 = vunpack.c.h.b16 %v1724
  %v1809 = vunpack.c.l.b16 %v1725
  %v1810 = vunpack.c.h.b16 %v1725
  %v1811 = vunpack.c.l.b16 %v1726
  %v1812 = vunpack.c.h.b16 %v1726
  %v1813 = vunpack.c.l.b16 %v1727
  %v1814 = vunpack.c.h.b16 %v1727
  %v1815 = vunpack.c.l.b16 %v1728
  %v1816 = vunpack.c.h.b16 %v1728
  %v1817 = vunpack.c.l.b16 %v1729
  %v1818 = vunpack.c.h.b16 %v1729
  %v1819 = vunpack.c.l.b16 %v1730
  %v1820 = vunpack.c.h.b16 %v1730
  %v1821 = vunpack.c.l.b16 %v1731
  %v1822 = vunpack.c.h.b16 %v1731
  %v1823 = vunpack.c.l.b16 %v1732
  %v1824 = vunpack.c.h.b16 %v1732
  %v1825 = vunpack.c.l.b16 %v1733
  %v1826 = vunpack.c.h.b16 %v1733
  %v1827 = vunpack.c.l.b16 %v1734
  %v1828 = vunpack.c.h.b16 %v1734
  %v1829 = vunpack.c.l.b16 %v1735
  %v1830 = vunpack.c.h.b16 %v1735
  %v1831 = vunpack.c.l.b16 %v1736
  %v1832 = vunpack.c.h.b16 %v1736
  %v1833 = vpack.c.b16 %v1773, %v1769
  %v1834 = vpack.c.b16 %v1774, %v1770
  %v1835 = vpack.c.b16 %v1775, %v1771
  %v1836 = vpack.c.b16 %v1776, %v1772
  %v1837 = vpack.c.b16 %v1781, %v1777
  %v1838 = vpack.c.b16 %v1782, %v1778
  %v1839 = vpack.c.b16 %v1783, %v1779
  %v1840 = vpack.c.b16 %v1784, %v1780
  %v1841 = vpack.c.b16 %v1789, %v1785
  %v1842 = vpack.c.b16 %v1790, %v1786
  %v1843 = vpack.c.b16 %v1791, %v1787
  %v1844 = vpack.c.b16 %v1792, %v1788
  %v1845 = vpack.c.b16 %v1797, %v1793
  %v1846 = vpack.c.b16 %v1798, %v1794
  %v1847 = vpack.c.b16 %v1799, %v1795
  %v1848 = vpack.c.b16 %v1800, %v1796
  %v1849 = vpack.c.b16 %v1805, %v1801
  %v1850 = vpack.c.b16 %v1806, %v1802
  %v1851 = vpack.c.b16 %v1807, %v1803
  %v1852 = vpack.c.b16 %v1808, %v1804
  %v1853 = vpack.c.b16 %v1813, %v1809
  %v1854 = vpack.c.b16 %v1814, %v1810
  %v1855 = vpack.c.b16 %v1815, %v1811
  %v1856 = vpack.c.b16 %v1816, %v1812
  %v1857 = vpack.c.b16 %v1821, %v1817
  %v1858 = vpack.c.b16 %v1822, %v1818
  %v1859 = vpack.c.b16 %v1823, %v1819
  %v1860 = vpack.c.b16 %v1824, %v1820
  %v1861 = vpack.c.b16 %v1829, %v1825
  %v1862 = vpack.c.b16 %v1830, %v1826
  %v1863 = vpack.c.b16 %v1831, %v1827
  %v1864 = vpack.c.b16 %v1832, %v1828
  %1897 = vmatprep.subr.bf16.mxu0 %v1862
  %1898 = vmatpush1.bf16.msra.mxu0 %v1861
  %1899 = vmatprep.subr.bf16.mxu0 %v1858
  %1900 = vmatpush1.bf16.msra.mxu0 %v1857
  %1901 = vmatprep.subr.bf16.mxu0 %v1854
  %1902 = vmatpush1.bf16.msra.mxu0 %v1853
  %1903 = vmatprep.subr.bf16.mxu0 %v1850
  %1904 = vmatpush1.bf16.msra.mxu0 %v1849
  %1905 = vmatprep.subr.bf16.mxu0 %v1846
  %1906 = vmatpush1.bf16.msra.mxu0 %v1845
  %1907 = vmatprep.subr.bf16.mxu0 %v1842
  %1908 = vmatpush1.bf16.msra.mxu0 %v1841
  %1909 = vmatprep.subr.bf16.mxu0 %v1838
  %1910 = vmatpush1.bf16.msra.mxu0 %v1837
  %1911 = vmatprep.subr.bf16.mxu0 %v1834
  %1912 = vmatpush1.bf16.msra.mxu0 %v1833
  %1913 = vmatprep.subr.bf16.mxu0 0
  %1914 = vmatpush2.bf16.msra.mxu0 0
  %1915 = vmatprep.subr.bf16.mxu0 0
  %1916 = vmatpush2.bf16.msra.mxu0 0
  %1917 = vmatprep.subr.bf16.mxu0 0
  %1918 = vmatpush2.bf16.msra.mxu0 0
  %1919 = vmatprep.subr.bf16.mxu0 0
  %1920 = vmatpush2.bf16.msra.mxu0 0
  %1921 = vmatprep.subr.bf16.mxu0 0
  %1922 = vmatpush2.bf16.msra.mxu0 0
  %1923 = vmatprep.subr.bf16.mxu0 0
  %1924 = vmatpush2.bf16.msra.mxu0 0
  %1925 = vmatprep.subr.bf16.mxu0 0
  %1926 = vmatpush2.bf16.msra.mxu0 0
  %1927 = vmatprep.subr.bf16.mxu0 0
  %1928 = vmatpush2.bf16.msra.mxu0 0
  %1929 = vmatprep.mubr.bf16.mxu0 0
  %1930 = vmatmul.mubr.bf16.gmra.mxu0 %v1683
  %v1931 = vpop.f32.mrf.mxu0
  %v1932 = vadd.f32 0.0, %v1931
  %v1933 = vpop.f32.mrf.mxu0
  %v1934 = vadd.f32 0.0, %v1933
  %v1935 = vpop.f32.mrf.mxu0
  %v1936 = vadd.f32 0.0, %v1935
  %v1937 = vpop.f32.mrf.mxu0
  %v1938 = vadd.f32 0.0, %v1937
  %1939 = vdwg.mxu0
  %1940 = vmatprep.subr.bf16.mxu0 %v1864
  %1941 = vmatpush1.bf16.msra.mxu0 %v1863
  %1942 = vmatprep.subr.bf16.mxu0 %v1860
  %1943 = vmatpush1.bf16.msra.mxu0 %v1859
  %1944 = vmatprep.subr.bf16.mxu0 %v1856
  %1945 = vmatpush1.bf16.msra.mxu0 %v1855
  %1946 = vmatprep.subr.bf16.mxu0 %v1852
  %1947 = vmatpush1.bf16.msra.mxu0 %v1851
  %1948 = vmatprep.subr.bf16.mxu0 %v1848
  %1949 = vmatpush1.bf16.msra.mxu0 %v1847
  %1950 = vmatprep.subr.bf16.mxu0 %v1844
  %1951 = vmatpush1.bf16.msra.mxu0 %v1843
  %1952 = vmatprep.subr.bf16.mxu0 %v1840
  %1953 = vmatpush1.bf16.msra.mxu0 %v1839
  %1954 = vmatprep.subr.bf16.mxu0 %v1836
  %1955 = vmatpush1.bf16.msra.mxu0 %v1835
  %1956 = vmatprep.subr.bf16.mxu0 0
  %1957 = vmatpush2.bf16.msra.mxu0 0
  %1958 = vmatprep.subr.bf16.mxu0 0
  %1959 = vmatpush2.bf16.msra.mxu0 0
  %1960 = vmatprep.subr.bf16.mxu0 0
  %1961 = vmatpush2.bf16.msra.mxu0 0
  %1962 = vmatprep.subr.bf16.mxu0 0
  %1963 = vmatpush2.bf16.msra.mxu0 0
  %1964 = vmatprep.subr.bf16.mxu0 0
  %1965 = vmatpush2.bf16.msra.mxu0 0
  %1966 = vmatprep.subr.bf16.mxu0 0
  %1967 = vmatpush2.bf16.msra.mxu0 0
  %1968 = vmatprep.subr.bf16.mxu0 0
  %1969 = vmatpush2.bf16.msra.mxu0 0
  %1970 = vmatprep.subr.bf16.mxu0 0
  %1971 = vmatpush2.bf16.msra.mxu0 0
  %1972 = vmatprep.mubr.bf16.mxu0 0
  %1973 = vmatmul.mubr.bf16.gmra.mxu0 %v1683
  %v1974 = vpop.f32.mrf.mxu0
  %v1975 = vadd.f32 0.0, %v1974
  %v1976 = vpop.f32.mrf.mxu0
  %v1977 = vadd.f32 0.0, %v1976
  %v1978 = vpop.f32.mrf.mxu0
  %v1979 = vadd.f32 0.0, %v1978
  %v1980 = vpop.f32.mrf.mxu0
  %v1981 = vadd.f32 0.0, %v1980
  %1982 = vdwg.mxu0
  %v1983 = vadd.f32 %v1697, %v1932
  %v1984 = vadd.f32 %v1698, %v1934
  %v1985 = vadd.f32 %v1699, %v1975
  %v1986 = vadd.f32 %v1700, %v1977
  %v1987 = vadd.f32 %v1701, %v1936
  %v1988 = vadd.f32 %v1702, %v1938
  %v1989 = vadd.f32 %v1703, %v1979
  %v1990 = vadd.f32 %v1704, %v1981
  %v1991 = vxor.u32 %v1983, 2147483648
  %v1992 = vxor.u32 %v1987, 2147483648
  %v1993 = vmul.f32 %v1991, 1.442695
  %v1994 = vpow.pop %v1993
  %v1995 = vmul.f32 %v1992, 1.442695
  %v1996 = vpow.pop %v1995
  %v1997 = vadd.f32 %v1994, 1.0
  %v1998 = vadd.f32 %v1996, 1.0
  %v1999 = vrcp.pop %v1997
  %v2000 = vmul.f32 1.0, %v1999
  %v2001 = vrcp.pop %v1998
  %v2002 = vmul.f32 1.0, %v2001
  %v2003 = vxor.u32 %v1984, 2147483648
  %v2004 = vxor.u32 %v1988, 2147483648
  %v2005 = vmul.f32 %v2003, 1.442695
  %v2006 = vpow.pop %v2005
  %v2007 = vmul.f32 %v2004, 1.442695
  %v2008 = vpow.pop %v2007
  %v2009 = vadd.f32 %v2006, 1.0
  %v2010 = vadd.f32 %v2008, 1.0
  %v2011 = vrcp.pop %v2009
  %v2012 = vmul.f32 1.0, %v2011
  %v2013 = vrcp.pop %v2010
  %v2014 = vmul.f32 1.0, %v2013
  %v2015 = vtanh.pop %v1985
  %v2016 = vtanh.pop %v1989
  %v2017 = vxor.u32 %v1986, 2147483648
  %v2018 = vxor.u32 %v1990, 2147483648
  %v2019 = vmul.f32 %v2017, 1.442695
  %v2020 = vpow.pop %v2019
  %v2021 = vmul.f32 %v2018, 1.442695
  %v2022 = vpow.pop %v2021
  %v2023 = vadd.f32 %v2020, 1.0
  %v2024 = vadd.f32 %v2022, 1.0
  %v2025 = vrcp.pop %v2023
  %v2026 = vmul.f32 1.0, %v2025
  %v2027 = vrcp.pop %v2024
  %v2028 = vmul.f32 1.0, %v2027
  %v2029 = vmul.f32 %v2012, %v1677
  %v2030 = vmul.f32 %v2014, %v1678
  %v2031 = vmul.f32 %v2000, %v2015
  %v2032 = vmul.f32 %v2002, %v2016
  %v2033 = vadd.f32 %v2029, %v2031
  %v2034 = vadd.f32 %v2030, %v2032
  %v2035 = vtanh.pop %v2033
  %v2036 = vtanh.pop %v2034
  %v2037 = vmul.f32 %v2026, %v2035
  %v2038 = vmul.f32 %v2028, %v2036
  %v2039 = vpack.c.bf16 %v2038, %v2037
  %v2041 = vunpack.c.l.b16 %v2039
  %v2042 = vunpack.c.h.b16 %v2039
  %v2043 = vpack.c.b16 %v2041, %v2041
  %v2044 = vpack.c.b16 %v2042, %v2042
  %s2047 = scalar_lea.vmem [#allocation2], 24
  %2048 = vst [vmem:[%s2047] sm:$0xf] %v2043
  %2049 = vst [vmem:[%s2047 + $0x4] sm:$0xf] %v2044
  %s2050 = smul.u32 8, 4
  %s2051 = smul.addr %s2050, 8
  %s2052 = scalar_lea.vmem [#allocation3], %s2051
  %v2053 = vld [vmem:[%s2052] sm:$0xff]
  %v2054 = vld [vmem:[%s2052 + $0x8] sm:$0xff]
  %v2055 = vld [vmem:[%s2052 + $0x10] sm:$0xff]
  %v2056 = vld [vmem:[%s2052 + $0x18] sm:$0xff]
  %v2057 = vld [vmem:[%s2052 + $0x20] sm:$0xff]
  %v2058 = vld [vmem:[%s2052 + $0x28] sm:$0xff]
  %v2059 = vld [vmem:[%s2052 + $0x30] sm:$0xff]
  %v2060 = vld [vmem:[%s2052 + $0x38] sm:$0xff]
  %v2061 = vld [vmem:[%s4] sm:$0xff]
  %v2062 = vld [vmem:[%s4 + $0x8] sm:$0xff]
  %v2063 = vld [vmem:[%s4 + $0x10] sm:$0xff]
  %v2064 = vld [vmem:[%s4 + $0x18] sm:$0xff]
  %v2065 = vld [vmem:[%s4 + $0x20] sm:$0xff]
  %v2066 = vld [vmem:[%s4 + $0x28] sm:$0xff]
  %v2067 = vld [vmem:[%s4 + $0x30] sm:$0xff]
  %v2068 = vld [vmem:[%s4 + $0x38] sm:$0xff]
  %v2069 = vld [vmem:[%s4 + $0x40] sm:$0xff]
  %v2070 = vld [vmem:[%s4 + $0x48] sm:$0xff]
  %v2071 = vld [vmem:[%s4 + $0x50] sm:$0xff]
  %v2072 = vld [vmem:[%s4 + $0x58] sm:$0xff]
  %v2073 = vld [vmem:[%s4 + $0x60] sm:$0xff]
  %v2074 = vld [vmem:[%s4 + $0x68] sm:$0xff]
  %v2075 = vld [vmem:[%s4 + $0x70] sm:$0xff]
  %v2076 = vld [vmem:[%s4 + $0x78] sm:$0xff]
  %v2077 = vld [vmem:[%s4 + $0x80] sm:$0xff]
  %v2078 = vld [vmem:[%s4 + $0x88] sm:$0xff]
  %v2079 = vld [vmem:[%s4 + $0x90] sm:$0xff]
  %v2080 = vld [vmem:[%s4 + $0x98] sm:$0xff]
  %v2081 = vld [vmem:[%s4 + $0xa0] sm:$0xff]
  %v2082 = vld [vmem:[%s4 + $0xa8] sm:$0xff]
  %v2083 = vld [vmem:[%s4 + $0xb0] sm:$0xff]
  %v2084 = vld [vmem:[%s4 + $0xb8] sm:$0xff]
  %v2085 = vld [vmem:[%s4 + $0xc0] sm:$0xff]
  %v2086 = vld [vmem:[%s4 + $0xc8] sm:$0xff]
  %v2087 = vld [vmem:[%s4 + $0xd0] sm:$0xff]
  %v2088 = vld [vmem:[%s4 + $0xd8] sm:$0xff]
  %v2089 = vld [vmem:[%s4 + $0xe0] sm:$0xff]
  %v2090 = vld [vmem:[%s4 + $0xe8] sm:$0xff]
  %v2091 = vld [vmem:[%s4 + $0xf0] sm:$0xff]
  %v2092 = vld [vmem:[%s4 + $0xf8] sm:$0xff]
  %v2125 = vunpack.c.l.b16 %v2061
  %v2126 = vunpack.c.h.b16 %v2061
  %v2127 = vunpack.c.l.b16 %v2062
  %v2128 = vunpack.c.h.b16 %v2062
  %v2129 = vunpack.c.l.b16 %v2063
  %v2130 = vunpack.c.h.b16 %v2063
  %v2131 = vunpack.c.l.b16 %v2064
  %v2132 = vunpack.c.h.b16 %v2064
  %v2133 = vunpack.c.l.b16 %v2065
  %v2134 = vunpack.c.h.b16 %v2065
  %v2135 = vunpack.c.l.b16 %v2066
  %v2136 = vunpack.c.h.b16 %v2066
  %v2137 = vunpack.c.l.b16 %v2067
  %v2138 = vunpack.c.h.b16 %v2067
  %v2139 = vunpack.c.l.b16 %v2068
  %v2140 = vunpack.c.h.b16 %v2068
  %v2141 = vunpack.c.l.b16 %v2069
  %v2142 = vunpack.c.h.b16 %v2069
  %v2143 = vunpack.c.l.b16 %v2070
  %v2144 = vunpack.c.h.b16 %v2070
  %v2145 = vunpack.c.l.b16 %v2071
  %v2146 = vunpack.c.h.b16 %v2071
  %v2147 = vunpack.c.l.b16 %v2072
  %v2148 = vunpack.c.h.b16 %v2072
  %v2149 = vunpack.c.l.b16 %v2073
  %v2150 = vunpack.c.h.b16 %v2073
  %v2151 = vunpack.c.l.b16 %v2074
  %v2152 = vunpack.c.h.b16 %v2074
  %v2153 = vunpack.c.l.b16 %v2075
  %v2154 = vunpack.c.h.b16 %v2075
  %v2155 = vunpack.c.l.b16 %v2076
  %v2156 = vunpack.c.h.b16 %v2076
  %v2157 = vunpack.c.l.b16 %v2077
  %v2158 = vunpack.c.h.b16 %v2077
  %v2159 = vunpack.c.l.b16 %v2078
  %v2160 = vunpack.c.h.b16 %v2078
  %v2161 = vunpack.c.l.b16 %v2079
  %v2162 = vunpack.c.h.b16 %v2079
  %v2163 = vunpack.c.l.b16 %v2080
  %v2164 = vunpack.c.h.b16 %v2080
  %v2165 = vunpack.c.l.b16 %v2081
  %v2166 = vunpack.c.h.b16 %v2081
  %v2167 = vunpack.c.l.b16 %v2082
  %v2168 = vunpack.c.h.b16 %v2082
  %v2169 = vunpack.c.l.b16 %v2083
  %v2170 = vunpack.c.h.b16 %v2083
  %v2171 = vunpack.c.l.b16 %v2084
  %v2172 = vunpack.c.h.b16 %v2084
  %v2173 = vunpack.c.l.b16 %v2085
  %v2174 = vunpack.c.h.b16 %v2085
  %v2175 = vunpack.c.l.b16 %v2086
  %v2176 = vunpack.c.h.b16 %v2086
  %v2177 = vunpack.c.l.b16 %v2087
  %v2178 = vunpack.c.h.b16 %v2087
  %v2179 = vunpack.c.l.b16 %v2088
  %v2180 = vunpack.c.h.b16 %v2088
  %v2181 = vunpack.c.l.b16 %v2089
  %v2182 = vunpack.c.h.b16 %v2089
  %v2183 = vunpack.c.l.b16 %v2090
  %v2184 = vunpack.c.h.b16 %v2090
  %v2185 = vunpack.c.l.b16 %v2091
  %v2186 = vunpack.c.h.b16 %v2091
  %v2187 = vunpack.c.l.b16 %v2092
  %v2188 = vunpack.c.h.b16 %v2092
  %v2189 = vpack.c.b16 %v2129, %v2125
  %v2190 = vpack.c.b16 %v2130, %v2126
  %v2191 = vpack.c.b16 %v2131, %v2127
  %v2192 = vpack.c.b16 %v2132, %v2128
  %v2193 = vpack.c.b16 %v2137, %v2133
  %v2194 = vpack.c.b16 %v2138, %v2134
  %v2195 = vpack.c.b16 %v2139, %v2135
  %v2196 = vpack.c.b16 %v2140, %v2136
  %v2197 = vpack.c.b16 %v2145, %v2141
  %v2198 = vpack.c.b16 %v2146, %v2142
  %v2199 = vpack.c.b16 %v2147, %v2143
  %v2200 = vpack.c.b16 %v2148, %v2144
  %v2201 = vpack.c.b16 %v2153, %v2149
  %v2202 = vpack.c.b16 %v2154, %v2150
  %v2203 = vpack.c.b16 %v2155, %v2151
  %v2204 = vpack.c.b16 %v2156, %v2152
  %v2205 = vpack.c.b16 %v2161, %v2157
  %v2206 = vpack.c.b16 %v2162, %v2158
  %v2207 = vpack.c.b16 %v2163, %v2159
  %v2208 = vpack.c.b16 %v2164, %v2160
  %v2209 = vpack.c.b16 %v2169, %v2165
  %v2210 = vpack.c.b16 %v2170, %v2166
  %v2211 = vpack.c.b16 %v2171, %v2167
  %v2212 = vpack.c.b16 %v2172, %v2168
  %v2213 = vpack.c.b16 %v2177, %v2173
  %v2214 = vpack.c.b16 %v2178, %v2174
  %v2215 = vpack.c.b16 %v2179, %v2175
  %v2216 = vpack.c.b16 %v2180, %v2176
  %v2217 = vpack.c.b16 %v2185, %v2181
  %v2218 = vpack.c.b16 %v2186, %v2182
  %v2219 = vpack.c.b16 %v2187, %v2183
  %v2220 = vpack.c.b16 %v2188, %v2184
  %2253 = vmatprep.subr.bf16.mxu0 %v2218
  %2254 = vmatpush1.bf16.msra.mxu0 %v2217
  %2255 = vmatprep.subr.bf16.mxu0 %v2214
  %2256 = vmatpush1.bf16.msra.mxu0 %v2213
  %2257 = vmatprep.subr.bf16.mxu0 %v2210
  %2258 = vmatpush1.bf16.msra.mxu0 %v2209
  %2259 = vmatprep.subr.bf16.mxu0 %v2206
  %2260 = vmatpush1.bf16.msra.mxu0 %v2205
  %2261 = vmatprep.subr.bf16.mxu0 %v2202
  %2262 = vmatpush1.bf16.msra.mxu0 %v2201
  %2263 = vmatprep.subr.bf16.mxu0 %v2198
  %2264 = vmatpush1.bf16.msra.mxu0 %v2197
  %2265 = vmatprep.subr.bf16.mxu0 %v2194
  %2266 = vmatpush1.bf16.msra.mxu0 %v2193
  %2267 = vmatprep.subr.bf16.mxu0 %v2190
  %2268 = vmatpush1.bf16.msra.mxu0 %v2189
  %2269 = vmatprep.subr.bf16.mxu0 0
  %2270 = vmatpush2.bf16.msra.mxu0 0
  %2271 = vmatprep.subr.bf16.mxu0 0
  %2272 = vmatpush2.bf16.msra.mxu0 0
  %2273 = vmatprep.subr.bf16.mxu0 0
  %2274 = vmatpush2.bf16.msra.mxu0 0
  %2275 = vmatprep.subr.bf16.mxu0 0
  %2276 = vmatpush2.bf16.msra.mxu0 0
  %2277 = vmatprep.subr.bf16.mxu0 0
  %2278 = vmatpush2.bf16.msra.mxu0 0
  %2279 = vmatprep.subr.bf16.mxu0 0
  %2280 = vmatpush2.bf16.msra.mxu0 0
  %2281 = vmatprep.subr.bf16.mxu0 0
  %2282 = vmatpush2.bf16.msra.mxu0 0
  %2283 = vmatprep.subr.bf16.mxu0 0
  %2284 = vmatpush2.bf16.msra.mxu0 0
  %2285 = vmatprep.mubr.bf16.mxu0 0
  %2286 = vmatmul.mubr.bf16.gmra.mxu0 %v2039
  %v2287 = vpop.f32.mrf.mxu0
  %v2288 = vadd.f32 0.0, %v2287
  %v2289 = vpop.f32.mrf.mxu0
  %v2290 = vadd.f32 0.0, %v2289
  %v2291 = vpop.f32.mrf.mxu0
  %v2292 = vadd.f32 0.0, %v2291
  %v2293 = vpop.f32.mrf.mxu0
  %v2294 = vadd.f32 0.0, %v2293
  %2295 = vdwg.mxu0
  %2296 = vmatprep.subr.bf16.mxu0 %v2220
  %2297 = vmatpush1.bf16.msra.mxu0 %v2219
  %2298 = vmatprep.subr.bf16.mxu0 %v2216
  %2299 = vmatpush1.bf16.msra.mxu0 %v2215
  %2300 = vmatprep.subr.bf16.mxu0 %v2212
  %2301 = vmatpush1.bf16.msra.mxu0 %v2211
  %2302 = vmatprep.subr.bf16.mxu0 %v2208
  %2303 = vmatpush1.bf16.msra.mxu0 %v2207
  %2304 = vmatprep.subr.bf16.mxu0 %v2204
  %2305 = vmatpush1.bf16.msra.mxu0 %v2203
  %2306 = vmatprep.subr.bf16.mxu0 %v2200
  %2307 = vmatpush1.bf16.msra.mxu0 %v2199
  %2308 = vmatprep.subr.bf16.mxu0 %v2196
  %2309 = vmatpush1.bf16.msra.mxu0 %v2195
  %2310 = vmatprep.subr.bf16.mxu0 %v2192
  %2311 = vmatpush1.bf16.msra.mxu0 %v2191
  %2312 = vmatprep.subr.bf16.mxu0 0
  %2313 = vmatpush2.bf16.msra.mxu0 0
  %2314 = vmatprep.subr.bf16.mxu0 0
  %2315 = vmatpush2.bf16.msra.mxu0 0
  %2316 = vmatprep.subr.bf16.mxu0 0
  %2317 = vmatpush2.bf16.msra.mxu0 0
  %2318 = vmatprep.subr.bf16.mxu0 0
  %2319 = vmatpush2.bf16.msra.mxu0 0
  %2320 = vmatprep.subr.bf16.mxu0 0
  %2321 = vmatpush2.bf16.msra.mxu0 0
  %2322 = vmatprep.subr.bf16.mxu0 0
  %2323 = vmatpush2.bf16.msra.mxu0 0
  %2324 = vmatprep.subr.bf16.mxu0 0
  %2325 = vmatpush2.bf16.msra.mxu0 0
  %2326 = vmatprep.subr.bf16.mxu0 0
  %2327 = vmatpush2.bf16.msra.mxu0 0
  %2328 = vmatprep.mubr.bf16.mxu0 0
  %2329 = vmatmul.mubr.bf16.gmra.mxu0 %v2039
  %v2330 = vpop.f32.mrf.mxu0
  %v2331 = vadd.f32 0.0, %v2330
  %v2332 = vpop.f32.mrf.mxu0
  %v2333 = vadd.f32 0.0, %v2332
  %v2334 = vpop.f32.mrf.mxu0
  %v2335 = vadd.f32 0.0, %v2334
  %v2336 = vpop.f32.mrf.mxu0
  %v2337 = vadd.f32 0.0, %v2336
  %2338 = vdwg.mxu0
  %v2339 = vadd.f32 %v2053, %v2288
  %v2340 = vadd.f32 %v2054, %v2290
  %v2341 = vadd.f32 %v2055, %v2331
  %v2342 = vadd.f32 %v2056, %v2333
  %v2343 = vadd.f32 %v2057, %v2292
  %v2344 = vadd.f32 %v2058, %v2294
  %v2345 = vadd.f32 %v2059, %v2335
  %v2346 = vadd.f32 %v2060, %v2337
  %v2347 = vxor.u32 %v2339, 2147483648
  %v2348 = vxor.u32 %v2343, 2147483648
  %v2349 = vmul.f32 %v2347, 1.442695
  %v2350 = vpow.pop %v2349
  %v2351 = vmul.f32 %v2348, 1.442695
  %v2352 = vpow.pop %v2351
  %v2353 = vadd.f32 %v2350, 1.0
  %v2354 = vadd.f32 %v2352, 1.0
  %v2355 = vrcp.pop %v2353
  %v2356 = vmul.f32 1.0, %v2355
  %v2357 = vrcp.pop %v2354
  %v2358 = vmul.f32 1.0, %v2357
  %v2359 = vxor.u32 %v2340, 2147483648
  %v2360 = vxor.u32 %v2344, 2147483648
  %v2361 = vmul.f32 %v2359, 1.442695
  %v2362 = vpow.pop %v2361
  %v2363 = vmul.f32 %v2360, 1.442695
  %v2364 = vpow.pop %v2363
  %v2365 = vadd.f32 %v2362, 1.0
  %v2366 = vadd.f32 %v2364, 1.0
  %v2367 = vrcp.pop %v2365
  %v2368 = vmul.f32 1.0, %v2367
  %v2369 = vrcp.pop %v2366
  %v2370 = vmul.f32 1.0, %v2369
  %v2371 = vtanh.pop %v2341
  %v2372 = vtanh.pop %v2345
  %v2373 = vxor.u32 %v2342, 2147483648
  %v2374 = vxor.u32 %v2346, 2147483648
  %v2375 = vmul.f32 %v2373, 1.442695
  %v2376 = vpow.pop %v2375
  %v2377 = vmul.f32 %v2374, 1.442695
  %v2378 = vpow.pop %v2377
  %v2379 = vadd.f32 %v2376, 1.0
  %v2380 = vadd.f32 %v2378, 1.0
  %v2381 = vrcp.pop %v2379
  %v2382 = vmul.f32 1.0, %v2381
  %v2383 = vrcp.pop %v2380
  %v2384 = vmul.f32 1.0, %v2383
  %v2385 = vmul.f32 %v2368, %v2033
  %v2386 = vmul.f32 %v2370, %v2034
  %v2387 = vmul.f32 %v2356, %v2371
  %v2388 = vmul.f32 %v2358, %v2372
  %v2389 = vadd.f32 %v2385, %v2387
  %v2390 = vadd.f32 %v2386, %v2388
  %v2391 = vtanh.pop %v2389
  %v2392 = vtanh.pop %v2390
  %v2393 = vmul.f32 %v2382, %v2391
  %v2394 = vmul.f32 %v2384, %v2392
  %v2395 = vpack.c.bf16 %v2394, %v2393
  %v2397 = vunpack.c.l.b16 %v2395
  %v2398 = vunpack.c.h.b16 %v2395
  %v2399 = vpack.c.b16 %v2397, %v2397
  %v2400 = vpack.c.b16 %v2398, %v2398
  %s2403 = scalar_lea.vmem [#allocation2], 32
  %2404 = vst [vmem:[%s2403] sm:$0xf] %v2399
  %2405 = vst [vmem:[%s2403 + $0x4] sm:$0xf] %v2400
  %s2406 = smul.u32 10, 4
  %s2407 = smul.addr %s2406, 8
  %s2408 = scalar_lea.vmem [#allocation3], %s2407
  %v2409 = vld [vmem:[%s2408] sm:$0xff]
  %v2410 = vld [vmem:[%s2408 + $0x8] sm:$0xff]
  %v2411 = vld [vmem:[%s2408 + $0x10] sm:$0xff]
  %v2412 = vld [vmem:[%s2408 + $0x18] sm:$0xff]
  %v2413 = vld [vmem:[%s2408 + $0x20] sm:$0xff]
  %v2414 = vld [vmem:[%s2408 + $0x28] sm:$0xff]
  %v2415 = vld [vmem:[%s2408 + $0x30] sm:$0xff]
  %v2416 = vld [vmem:[%s2408 + $0x38] sm:$0xff]
  %v2417 = vld [vmem:[%s4] sm:$0xff]
  %v2418 = vld [vmem:[%s4 + $0x8] sm:$0xff]
  %v2419 = vld [vmem:[%s4 + $0x10] sm:$0xff]
  %v2420 = vld [vmem:[%s4 + $0x18] sm:$0xff]
  %v2421 = vld [vmem:[%s4 + $0x20] sm:$0xff]
  %v2422 = vld [vmem:[%s4 + $0x28] sm:$0xff]
  %v2423 = vld [vmem:[%s4 + $0x30] sm:$0xff]
  %v2424 = vld [vmem:[%s4 + $0x38] sm:$0xff]
  %v2425 = vld [vmem:[%s4 + $0x40] sm:$0xff]
  %v2426 = vld [vmem:[%s4 + $0x48] sm:$0xff]
  %v2427 = vld [vmem:[%s4 + $0x50] sm:$0xff]
  %v2428 = vld [vmem:[%s4 + $0x58] sm:$0xff]
  %v2429 = vld [vmem:[%s4 + $0x60] sm:$0xff]
  %v2430 = vld [vmem:[%s4 + $0x68] sm:$0xff]
  %v2431 = vld [vmem:[%s4 + $0x70] sm:$0xff]
  %v2432 = vld [vmem:[%s4 + $0x78] sm:$0xff]
  %v2433 = vld [vmem:[%s4 + $0x80] sm:$0xff]
  %v2434 = vld [vmem:[%s4 + $0x88] sm:$0xff]
  %v2435 = vld [vmem:[%s4 + $0x90] sm:$0xff]
  %v2436 = vld [vmem:[%s4 + $0x98] sm:$0xff]
  %v2437 = vld [vmem:[%s4 + $0xa0] sm:$0xff]
  %v2438 = vld [vmem:[%s4 + $0xa8] sm:$0xff]
  %v2439 = vld [vmem:[%s4 + $0xb0] sm:$0xff]
  %v2440 = vld [vmem:[%s4 + $0xb8] sm:$0xff]
  %v2441 = vld [vmem:[%s4 + $0xc0] sm:$0xff]
  %v2442 = vld [vmem:[%s4 + $0xc8] sm:$0xff]
  %v2443 = vld [vmem:[%s4 + $0xd0] sm:$0xff]
  %v2444 = vld [vmem:[%s4 + $0xd8] sm:$0xff]
  %v2445 = vld [vmem:[%s4 + $0xe0] sm:$0xff]
  %v2446 = vld [vmem:[%s4 + $0xe8] sm:$0xff]
  %v2447 = vld [vmem:[%s4 + $0xf0] sm:$0xff]
  %v2448 = vld [vmem:[%s4 + $0xf8] sm:$0xff]
  %v2481 = vunpack.c.l.b16 %v2417
  %v2482 = vunpack.c.h.b16 %v2417
  %v2483 = vunpack.c.l.b16 %v2418
  %v2484 = vunpack.c.h.b16 %v2418
  %v2485 = vunpack.c.l.b16 %v2419
  %v2486 = vunpack.c.h.b16 %v2419
  %v2487 = vunpack.c.l.b16 %v2420
  %v2488 = vunpack.c.h.b16 %v2420
  %v2489 = vunpack.c.l.b16 %v2421
  %v2490 = vunpack.c.h.b16 %v2421
  %v2491 = vunpack.c.l.b16 %v2422
  %v2492 = vunpack.c.h.b16 %v2422
  %v2493 = vunpack.c.l.b16 %v2423
  %v2494 = vunpack.c.h.b16 %v2423
  %v2495 = vunpack.c.l.b16 %v2424
  %v2496 = vunpack.c.h.b16 %v2424
  %v2497 = vunpack.c.l.b16 %v2425
  %v2498 = vunpack.c.h.b16 %v2425
  %v2499 = vunpack.c.l.b16 %v2426
  %v2500 = vunpack.c.h.b16 %v2426
  %v2501 = vunpack.c.l.b16 %v2427
  %v2502 = vunpack.c.h.b16 %v2427
  %v2503 = vunpack.c.l.b16 %v2428
  %v2504 = vunpack.c.h.b16 %v2428
  %v2505 = vunpack.c.l.b16 %v2429
  %v2506 = vunpack.c.h.b16 %v2429
  %v2507 = vunpack.c.l.b16 %v2430
  %v2508 = vunpack.c.h.b16 %v2430
  %v2509 = vunpack.c.l.b16 %v2431
  %v2510 = vunpack.c.h.b16 %v2431
  %v2511 = vunpack.c.l.b16 %v2432
  %v2512 = vunpack.c.h.b16 %v2432
  %v2513 = vunpack.c.l.b16 %v2433
  %v2514 = vunpack.c.h.b16 %v2433
  %v2515 = vunpack.c.l.b16 %v2434
  %v2516 = vunpack.c.h.b16 %v2434
  %v2517 = vunpack.c.l.b16 %v2435
  %v2518 = vunpack.c.h.b16 %v2435
  %v2519 = vunpack.c.l.b16 %v2436
  %v2520 = vunpack.c.h.b16 %v2436
  %v2521 = vunpack.c.l.b16 %v2437
  %v2522 = vunpack.c.h.b16 %v2437
  %v2523 = vunpack.c.l.b16 %v2438
  %v2524 = vunpack.c.h.b16 %v2438
  %v2525 = vunpack.c.l.b16 %v2439
  %v2526 = vunpack.c.h.b16 %v2439
  %v2527 = vunpack.c.l.b16 %v2440
  %v2528 = vunpack.c.h.b16 %v2440
  %v2529 = vunpack.c.l.b16 %v2441
  %v2530 = vunpack.c.h.b16 %v2441
  %v2531 = vunpack.c.l.b16 %v2442
  %v2532 = vunpack.c.h.b16 %v2442
  %v2533 = vunpack.c.l.b16 %v2443
  %v2534 = vunpack.c.h.b16 %v2443
  %v2535 = vunpack.c.l.b16 %v2444
  %v2536 = vunpack.c.h.b16 %v2444
  %v2537 = vunpack.c.l.b16 %v2445
  %v2538 = vunpack.c.h.b16 %v2445
  %v2539 = vunpack.c.l.b16 %v2446
  %v2540 = vunpack.c.h.b16 %v2446
  %v2541 = vunpack.c.l.b16 %v2447
  %v2542 = vunpack.c.h.b16 %v2447
  %v2543 = vunpack.c.l.b16 %v2448
  %v2544 = vunpack.c.h.b16 %v2448
  %v2545 = vpack.c.b16 %v2485, %v2481
  %v2546 = vpack.c.b16 %v2486, %v2482
  %v2547 = vpack.c.b16 %v2487, %v2483
  %v2548 = vpack.c.b16 %v2488, %v2484
  %v2549 = vpack.c.b16 %v2493, %v2489
  %v2550 = vpack.c.b16 %v2494, %v2490
  %v2551 = vpack.c.b16 %v2495, %v2491
  %v2552 = vpack.c.b16 %v2496, %v2492
  %v2553 = vpack.c.b16 %v2501, %v2497
  %v2554 = vpack.c.b16 %v2502, %v2498
  %v2555 = vpack.c.b16 %v2503, %v2499
  %v2556 = vpack.c.b16 %v2504, %v2500
  %v2557 = vpack.c.b16 %v2509, %v2505
  %v2558 = vpack.c.b16 %v2510, %v2506
  %v2559 = vpack.c.b16 %v2511, %v2507
  %v2560 = vpack.c.b16 %v2512, %v2508
  %v2561 = vpack.c.b16 %v2517, %v2513
  %v2562 = vpack.c.b16 %v2518, %v2514
  %v2563 = vpack.c.b16 %v2519, %v2515
  %v2564 = vpack.c.b16 %v2520, %v2516
  %v2565 = vpack.c.b16 %v2525, %v2521
  %v2566 = vpack.c.b16 %v2526, %v2522
  %v2567 = vpack.c.b16 %v2527, %v2523
  %v2568 = vpack.c.b16 %v2528, %v2524
  %v2569 = vpack.c.b16 %v2533, %v2529
  %v2570 = vpack.c.b16 %v2534, %v2530
  %v2571 = vpack.c.b16 %v2535, %v2531
  %v2572 = vpack.c.b16 %v2536, %v2532
  %v2573 = vpack.c.b16 %v2541, %v2537
  %v2574 = vpack.c.b16 %v2542, %v2538
  %v2575 = vpack.c.b16 %v2543, %v2539
  %v2576 = vpack.c.b16 %v2544, %v2540
  %2609 = vmatprep.subr.bf16.mxu0 %v2574
  %2610 = vmatpush1.bf16.msra.mxu0 %v2573
  %2611 = vmatprep.subr.bf16.mxu0 %v2570
  %2612 = vmatpush1.bf16.msra.mxu0 %v2569
  %2613 = vmatprep.subr.bf16.mxu0 %v2566
  %2614 = vmatpush1.bf16.msra.mxu0 %v2565
  %2615 = vmatprep.subr.bf16.mxu0 %v2562
  %2616 = vmatpush1.bf16.msra.mxu0 %v2561
  %2617 = vmatprep.subr.bf16.mxu0 %v2558
  %2618 = vmatpush1.bf16.msra.mxu0 %v2557
  %2619 = vmatprep.subr.bf16.mxu0 %v2554
  %2620 = vmatpush1.bf16.msra.mxu0 %v2553
  %2621 = vmatprep.subr.bf16.mxu0 %v2550
  %2622 = vmatpush1.bf16.msra.mxu0 %v2549
  %2623 = vmatprep.subr.bf16.mxu0 %v2546
  %2624 = vmatpush1.bf16.msra.mxu0 %v2545
  %2625 = vmatprep.subr.bf16.mxu0 0
  %2626 = vmatpush2.bf16.msra.mxu0 0
  %2627 = vmatprep.subr.bf16.mxu0 0
  %2628 = vmatpush2.bf16.msra.mxu0 0
  %2629 = vmatprep.subr.bf16.mxu0 0
  %2630 = vmatpush2.bf16.msra.mxu0 0
  %2631 = vmatprep.subr.bf16.mxu0 0
  %2632 = vmatpush2.bf16.msra.mxu0 0
  %2633 = vmatprep.subr.bf16.mxu0 0
  %2634 = vmatpush2.bf16.msra.mxu0 0
  %2635 = vmatprep.subr.bf16.mxu0 0
  %2636 = vmatpush2.bf16.msra.mxu0 0
  %2637 = vmatprep.subr.bf16.mxu0 0
  %2638 = vmatpush2.bf16.msra.mxu0 0
  %2639 = vmatprep.subr.bf16.mxu0 0
  %2640 = vmatpush2.bf16.msra.mxu0 0
  %2641 = vmatprep.mubr.bf16.mxu0 0
  %2642 = vmatmul.mubr.bf16.gmra.mxu0 %v2395
  %v2643 = vpop.f32.mrf.mxu0
  %v2644 = vadd.f32 0.0, %v2643
  %v2645 = vpop.f32.mrf.mxu0
  %v2646 = vadd.f32 0.0, %v2645
  %v2647 = vpop.f32.mrf.mxu0
  %v2648 = vadd.f32 0.0, %v2647
  %v2649 = vpop.f32.mrf.mxu0
  %v2650 = vadd.f32 0.0, %v2649
  %2651 = vdwg.mxu0
  %2652 = vmatprep.subr.bf16.mxu0 %v2576
  %2653 = vmatpush1.bf16.msra.mxu0 %v2575
  %2654 = vmatprep.subr.bf16.mxu0 %v2572
  %2655 = vmatpush1.bf16.msra.mxu0 %v2571
  %2656 = vmatprep.subr.bf16.mxu0 %v2568
  %2657 = vmatpush1.bf16.msra.mxu0 %v2567
  %2658 = vmatprep.subr.bf16.mxu0 %v2564
  %2659 = vmatpush1.bf16.msra.mxu0 %v2563
  %2660 = vmatprep.subr.bf16.mxu0 %v2560
  %2661 = vmatpush1.bf16.msra.mxu0 %v2559
  %2662 = vmatprep.subr.bf16.mxu0 %v2556
  %2663 = vmatpush1.bf16.msra.mxu0 %v2555
  %2664 = vmatprep.subr.bf16.mxu0 %v2552
  %2665 = vmatpush1.bf16.msra.mxu0 %v2551
  %2666 = vmatprep.subr.bf16.mxu0 %v2548
  %2667 = vmatpush1.bf16.msra.mxu0 %v2547
  %2668 = vmatprep.subr.bf16.mxu0 0
  %2669 = vmatpush2.bf16.msra.mxu0 0
  %2670 = vmatprep.subr.bf16.mxu0 0
  %2671 = vmatpush2.bf16.msra.mxu0 0
  %2672 = vmatprep.subr.bf16.mxu0 0
  %2673 = vmatpush2.bf16.msra.mxu0 0
  %2674 = vmatprep.subr.bf16.mxu0 0
  %2675 = vmatpush2.bf16.msra.mxu0 0
  %2676 = vmatprep.subr.bf16.mxu0 0
  %2677 = vmatpush2.bf16.msra.mxu0 0
  %2678 = vmatprep.subr.bf16.mxu0 0
  %2679 = vmatpush2.bf16.msra.mxu0 0
  %2680 = vmatprep.subr.bf16.mxu0 0
  %2681 = vmatpush2.bf16.msra.mxu0 0
  %2682 = vmatprep.subr.bf16.mxu0 0
  %2683 = vmatpush2.bf16.msra.mxu0 0
  %2684 = vmatprep.mubr.bf16.mxu0 0
  %2685 = vmatmul.mubr.bf16.gmra.mxu0 %v2395
  %v2686 = vpop.f32.mrf.mxu0
  %v2687 = vadd.f32 0.0, %v2686
  %v2688 = vpop.f32.mrf.mxu0
  %v2689 = vadd.f32 0.0, %v2688
  %v2690 = vpop.f32.mrf.mxu0
  %v2691 = vadd.f32 0.0, %v2690
  %v2692 = vpop.f32.mrf.mxu0
  %v2693 = vadd.f32 0.0, %v2692
  %2694 = vdwg.mxu0
  %v2695 = vadd.f32 %v2409, %v2644
  %v2696 = vadd.f32 %v2410, %v2646
  %v2697 = vadd.f32 %v2411, %v2687
  %v2698 = vadd.f32 %v2412, %v2689
  %v2699 = vadd.f32 %v2413, %v2648
  %v2700 = vadd.f32 %v2414, %v2650
  %v2701 = vadd.f32 %v2415, %v2691
  %v2702 = vadd.f32 %v2416, %v2693
  %v2703 = vxor.u32 %v2695, 2147483648
  %v2704 = vxor.u32 %v2699, 2147483648
  %v2705 = vmul.f32 %v2703, 1.442695
  %v2706 = vpow.pop %v2705
  %v2707 = vmul.f32 %v2704, 1.442695
  %v2708 = vpow.pop %v2707
  %v2709 = vadd.f32 %v2706, 1.0
  %v2710 = vadd.f32 %v2708, 1.0
  %v2711 = vrcp.pop %v2709
  %v2712 = vmul.f32 1.0, %v2711
  %v2713 = vrcp.pop %v2710
  %v2714 = vmul.f32 1.0, %v2713
  %v2715 = vxor.u32 %v2696, 2147483648
  %v2716 = vxor.u32 %v2700, 2147483648
  %v2717 = vmul.f32 %v2715, 1.442695
  %v2718 = vpow.pop %v2717
  %v2719 = vmul.f32 %v2716, 1.442695
  %v2720 = vpow.pop %v2719
  %v2721 = vadd.f32 %v2718, 1.0
  %v2722 = vadd.f32 %v2720, 1.0
  %v2723 = vrcp.pop %v2721
  %v2724 = vmul.f32 1.0, %v2723
  %v2725 = vrcp.pop %v2722
  %v2726 = vmul.f32 1.0, %v2725
  %v2727 = vtanh.pop %v2697
  %v2728 = vtanh.pop %v2701
  %v2729 = vxor.u32 %v2698, 2147483648
  %v2730 = vxor.u32 %v2702, 2147483648
  %v2731 = vmul.f32 %v2729, 1.442695
  %v2732 = vpow.pop %v2731
  %v2733 = vmul.f32 %v2730, 1.442695
  %v2734 = vpow.pop %v2733
  %v2735 = vadd.f32 %v2732, 1.0
  %v2736 = vadd.f32 %v2734, 1.0
  %v2737 = vrcp.pop %v2735
  %v2738 = vmul.f32 1.0, %v2737
  %v2739 = vrcp.pop %v2736
  %v2740 = vmul.f32 1.0, %v2739
  %v2741 = vmul.f32 %v2724, %v2389
  %v2742 = vmul.f32 %v2726, %v2390
  %v2743 = vmul.f32 %v2712, %v2727
  %v2744 = vmul.f32 %v2714, %v2728
  %v2745 = vadd.f32 %v2741, %v2743
  %v2746 = vadd.f32 %v2742, %v2744
  %v2747 = vtanh.pop %v2745
  %v2748 = vtanh.pop %v2746
  %v2749 = vmul.f32 %v2738, %v2747
  %v2750 = vmul.f32 %v2740, %v2748
  %v2751 = vpack.c.bf16 %v2750, %v2749
  %v2753 = vunpack.c.l.b16 %v2751
  %v2754 = vunpack.c.h.b16 %v2751
  %v2755 = vpack.c.b16 %v2753, %v2753
  %v2756 = vpack.c.b16 %v2754, %v2754
  %s2759 = scalar_lea.vmem [#allocation2], 40
  %2760 = vst [vmem:[%s2759] sm:$0xf] %v2755
  %2761 = vst [vmem:[%s2759 + $0x4] sm:$0xf] %v2756
  %s2762 = smul.u32 12, 4
  %s2763 = smul.addr %s2762, 8
  %s2764 = scalar_lea.vmem [#allocation3], %s2763
  %v2765 = vld [vmem:[%s2764] sm:$0xff]
  %v2766 = vld [vmem:[%s2764 + $0x8] sm:$0xff]
  %v2767 = vld [vmem:[%s2764 + $0x10] sm:$0xff]
  %v2768 = vld [vmem:[%s2764 + $0x18] sm:$0xff]
  %v2769 = vld [vmem:[%s2764 + $0x20] sm:$0xff]
  %v2770 = vld [vmem:[%s2764 + $0x28] sm:$0xff]
  %v2771 = vld [vmem:[%s2764 + $0x30] sm:$0xff]
  %v2772 = vld [vmem:[%s2764 + $0x38] sm:$0xff]
  %v2773 = vld [vmem:[%s4] sm:$0xff]
  %v2774 = vld [vmem:[%s4 + $0x8] sm:$0xff]
  %v2775 = vld [vmem:[%s4 + $0x10] sm:$0xff]
  %v2776 = vld [vmem:[%s4 + $0x18] sm:$0xff]
  %v2777 = vld [vmem:[%s4 + $0x20] sm:$0xff]
  %v2778 = vld [vmem:[%s4 + $0x28] sm:$0xff]
  %v2779 = vld [vmem:[%s4 + $0x30] sm:$0xff]
  %v2780 = vld [vmem:[%s4 + $0x38] sm:$0xff]
  %v2781 = vld [vmem:[%s4 + $0x40] sm:$0xff]
  %v2782 = vld [vmem:[%s4 + $0x48] sm:$0xff]
  %v2783 = vld [vmem:[%s4 + $0x50] sm:$0xff]
  %v2784 = vld [vmem:[%s4 + $0x58] sm:$0xff]
  %v2785 = vld [vmem:[%s4 + $0x60] sm:$0xff]
  %v2786 = vld [vmem:[%s4 + $0x68] sm:$0xff]
  %v2787 = vld [vmem:[%s4 + $0x70] sm:$0xff]
  %v2788 = vld [vmem:[%s4 + $0x78] sm:$0xff]
  %v2789 = vld [vmem:[%s4 + $0x80] sm:$0xff]
  %v2790 = vld [vmem:[%s4 + $0x88] sm:$0xff]
  %v2791 = vld [vmem:[%s4 + $0x90] sm:$0xff]
  %v2792 = vld [vmem:[%s4 + $0x98] sm:$0xff]
  %v2793 = vld [vmem:[%s4 + $0xa0] sm:$0xff]
  %v2794 = vld [vmem:[%s4 + $0xa8] sm:$0xff]
  %v2795 = vld [vmem:[%s4 + $0xb0] sm:$0xff]
  %v2796 = vld [vmem:[%s4 + $0xb8] sm:$0xff]
  %v2797 = vld [vmem:[%s4 + $0xc0] sm:$0xff]
  %v2798 = vld [vmem:[%s4 + $0xc8] sm:$0xff]
  %v2799 = vld [vmem:[%s4 + $0xd0] sm:$0xff]
  %v2800 = vld [vmem:[%s4 + $0xd8] sm:$0xff]
  %v2801 = vld [vmem:[%s4 + $0xe0] sm:$0xff]
  %v2802 = vld [vmem:[%s4 + $0xe8] sm:$0xff]
  %v2803 = vld [vmem:[%s4 + $0xf0] sm:$0xff]
  %v2804 = vld [vmem:[%s4 + $0xf8] sm:$0xff]
  %v2837 = vunpack.c.l.b16 %v2773
  %v2838 = vunpack.c.h.b16 %v2773
  %v2839 = vunpack.c.l.b16 %v2774
  %v2840 = vunpack.c.h.b16 %v2774
  %v2841 = vunpack.c.l.b16 %v2775
  %v2842 = vunpack.c.h.b16 %v2775
  %v2843 = vunpack.c.l.b16 %v2776
  %v2844 = vunpack.c.h.b16 %v2776
  %v2845 = vunpack.c.l.b16 %v2777
  %v2846 = vunpack.c.h.b16 %v2777
  %v2847 = vunpack.c.l.b16 %v2778
  %v2848 = vunpack.c.h.b16 %v2778
  %v2849 = vunpack.c.l.b16 %v2779
  %v2850 = vunpack.c.h.b16 %v2779
  %v2851 = vunpack.c.l.b16 %v2780
  %v2852 = vunpack.c.h.b16 %v2780
  %v2853 = vunpack.c.l.b16 %v2781
  %v2854 = vunpack.c.h.b16 %v2781
  %v2855 = vunpack.c.l.b16 %v2782
  %v2856 = vunpack.c.h.b16 %v2782
  %v2857 = vunpack.c.l.b16 %v2783
  %v2858 = vunpack.c.h.b16 %v2783
  %v2859 = vunpack.c.l.b16 %v2784
  %v2860 = vunpack.c.h.b16 %v2784
  %v2861 = vunpack.c.l.b16 %v2785
  %v2862 = vunpack.c.h.b16 %v2785
  %v2863 = vunpack.c.l.b16 %v2786
  %v2864 = vunpack.c.h.b16 %v2786
  %v2865 = vunpack.c.l.b16 %v2787
  %v2866 = vunpack.c.h.b16 %v2787
  %v2867 = vunpack.c.l.b16 %v2788
  %v2868 = vunpack.c.h.b16 %v2788
  %v2869 = vunpack.c.l.b16 %v2789
  %v2870 = vunpack.c.h.b16 %v2789
  %v2871 = vunpack.c.l.b16 %v2790
  %v2872 = vunpack.c.h.b16 %v2790
  %v2873 = vunpack.c.l.b16 %v2791
  %v2874 = vunpack.c.h.b16 %v2791
  %v2875 = vunpack.c.l.b16 %v2792
  %v2876 = vunpack.c.h.b16 %v2792
  %v2877 = vunpack.c.l.b16 %v2793
  %v2878 = vunpack.c.h.b16 %v2793
  %v2879 = vunpack.c.l.b16 %v2794
  %v2880 = vunpack.c.h.b16 %v2794
  %v2881 = vunpack.c.l.b16 %v2795
  %v2882 = vunpack.c.h.b16 %v2795
  %v2883 = vunpack.c.l.b16 %v2796
  %v2884 = vunpack.c.h.b16 %v2796
  %v2885 = vunpack.c.l.b16 %v2797
  %v2886 = vunpack.c.h.b16 %v2797
  %v2887 = vunpack.c.l.b16 %v2798
  %v2888 = vunpack.c.h.b16 %v2798
  %v2889 = vunpack.c.l.b16 %v2799
  %v2890 = vunpack.c.h.b16 %v2799
  %v2891 = vunpack.c.l.b16 %v2800
  %v2892 = vunpack.c.h.b16 %v2800
  %v2893 = vunpack.c.l.b16 %v2801
  %v2894 = vunpack.c.h.b16 %v2801
  %v2895 = vunpack.c.l.b16 %v2802
  %v2896 = vunpack.c.h.b16 %v2802
  %v2897 = vunpack.c.l.b16 %v2803
  %v2898 = vunpack.c.h.b16 %v2803
  %v2899 = vunpack.c.l.b16 %v2804
  %v2900 = vunpack.c.h.b16 %v2804
  %v2901 = vpack.c.b16 %v2841, %v2837
  %v2902 = vpack.c.b16 %v2842, %v2838
  %v2903 = vpack.c.b16 %v2843, %v2839
  %v2904 = vpack.c.b16 %v2844, %v2840
  %v2905 = vpack.c.b16 %v2849, %v2845
  %v2906 = vpack.c.b16 %v2850, %v2846
  %v2907 = vpack.c.b16 %v2851, %v2847
  %v2908 = vpack.c.b16 %v2852, %v2848
  %v2909 = vpack.c.b16 %v2857, %v2853
  %v2910 = vpack.c.b16 %v2858, %v2854
  %v2911 = vpack.c.b16 %v2859, %v2855
  %v2912 = vpack.c.b16 %v2860, %v2856
  %v2913 = vpack.c.b16 %v2865, %v2861
  %v2914 = vpack.c.b16 %v2866, %v2862
  %v2915 = vpack.c.b16 %v2867, %v2863
  %v2916 = vpack.c.b16 %v2868, %v2864
  %v2917 = vpack.c.b16 %v2873, %v2869
  %v2918 = vpack.c.b16 %v2874, %v2870
  %v2919 = vpack.c.b16 %v2875, %v2871
  %v2920 = vpack.c.b16 %v2876, %v2872
  %v2921 = vpack.c.b16 %v2881, %v2877
  %v2922 = vpack.c.b16 %v2882, %v2878
  %v2923 = vpack.c.b16 %v2883, %v2879
  %v2924 = vpack.c.b16 %v2884, %v2880
  %v2925 = vpack.c.b16 %v2889, %v2885
  %v2926 = vpack.c.b16 %v2890, %v2886
  %v2927 = vpack.c.b16 %v2891, %v2887
  %v2928 = vpack.c.b16 %v2892, %v2888
  %v2929 = vpack.c.b16 %v2897, %v2893
  %v2930 = vpack.c.b16 %v2898, %v2894
  %v2931 = vpack.c.b16 %v2899, %v2895
  %v2932 = vpack.c.b16 %v2900, %v2896
  %2965 = vmatprep.subr.bf16.mxu0 %v2930
  %2966 = vmatpush1.bf16.msra.mxu0 %v2929
  %2967 = vmatprep.subr.bf16.mxu0 %v2926
  %2968 = vmatpush1.bf16.msra.mxu0 %v2925
  %2969 = vmatprep.subr.bf16.mxu0 %v2922
  %2970 = vmatpush1.bf16.msra.mxu0 %v2921
  %2971 = vmatprep.subr.bf16.mxu0 %v2918
  %2972 = vmatpush1.bf16.msra.mxu0 %v2917
  %2973 = vmatprep.subr.bf16.mxu0 %v2914
  %2974 = vmatpush1.bf16.msra.mxu0 %v2913
  %2975 = vmatprep.subr.bf16.mxu0 %v2910
  %2976 = vmatpush1.bf16.msra.mxu0 %v2909
  %2977 = vmatprep.subr.bf16.mxu0 %v2906
  %2978 = vmatpush1.bf16.msra.mxu0 %v2905
  %2979 = vmatprep.subr.bf16.mxu0 %v2902
  %2980 = vmatpush1.bf16.msra.mxu0 %v2901
  %2981 = vmatprep.subr.bf16.mxu0 0
  %2982 = vmatpush2.bf16.msra.mxu0 0
  %2983 = vmatprep.subr.bf16.mxu0 0
  %2984 = vmatpush2.bf16.msra.mxu0 0
  %2985 = vmatprep.subr.bf16.mxu0 0
  %2986 = vmatpush2.bf16.msra.mxu0 0
  %2987 = vmatprep.subr.bf16.mxu0 0
  %2988 = vmatpush2.bf16.msra.mxu0 0
  %2989 = vmatprep.subr.bf16.mxu0 0
  %2990 = vmatpush2.bf16.msra.mxu0 0
  %2991 = vmatprep.subr.bf16.mxu0 0
  %2992 = vmatpush2.bf16.msra.mxu0 0
  %2993 = vmatprep.subr.bf16.mxu0 0
  %2994 = vmatpush2.bf16.msra.mxu0 0
  %2995 = vmatprep.subr.bf16.mxu0 0
  %2996 = vmatpush2.bf16.msra.mxu0 0
  %2997 = vmatprep.mubr.bf16.mxu0 0
  %2998 = vmatmul.mubr.bf16.gmra.mxu0 %v2751
  %v2999 = vpop.f32.mrf.mxu0
  %v3000 = vadd.f32 0.0, %v2999
  %v3001 = vpop.f32.mrf.mxu0
  %v3002 = vadd.f32 0.0, %v3001
  %v3003 = vpop.f32.mrf.mxu0
  %v3004 = vadd.f32 0.0, %v3003
  %v3005 = vpop.f32.mrf.mxu0
  %v3006 = vadd.f32 0.0, %v3005
  %3007 = vdwg.mxu0
  %3008 = vmatprep.subr.bf16.mxu0 %v2932
  %3009 = vmatpush1.bf16.msra.mxu0 %v2931
  %3010 = vmatprep.subr.bf16.mxu0 %v2928
  %3011 = vmatpush1.bf16.msra.mxu0 %v2927
  %3012 = vmatprep.subr.bf16.mxu0 %v2924
  %3013 = vmatpush1.bf16.msra.mxu0 %v2923
  %3014 = vmatprep.subr.bf16.mxu0 %v2920
  %3015 = vmatpush1.bf16.msra.mxu0 %v2919
  %3016 = vmatprep.subr.bf16.mxu0 %v2916
  %3017 = vmatpush1.bf16.msra.mxu0 %v2915
  %3018 = vmatprep.subr.bf16.mxu0 %v2912
  %3019 = vmatpush1.bf16.msra.mxu0 %v2911
  %3020 = vmatprep.subr.bf16.mxu0 %v2908
  %3021 = vmatpush1.bf16.msra.mxu0 %v2907
  %3022 = vmatprep.subr.bf16.mxu0 %v2904
  %3023 = vmatpush1.bf16.msra.mxu0 %v2903
  %3024 = vmatprep.subr.bf16.mxu0 0
  %3025 = vmatpush2.bf16.msra.mxu0 0
  %3026 = vmatprep.subr.bf16.mxu0 0
  %3027 = vmatpush2.bf16.msra.mxu0 0
  %3028 = vmatprep.subr.bf16.mxu0 0
  %3029 = vmatpush2.bf16.msra.mxu0 0
  %3030 = vmatprep.subr.bf16.mxu0 0
  %3031 = vmatpush2.bf16.msra.mxu0 0
  %3032 = vmatprep.subr.bf16.mxu0 0
  %3033 = vmatpush2.bf16.msra.mxu0 0
  %3034 = vmatprep.subr.bf16.mxu0 0
  %3035 = vmatpush2.bf16.msra.mxu0 0
  %3036 = vmatprep.subr.bf16.mxu0 0
  %3037 = vmatpush2.bf16.msra.mxu0 0
  %3038 = vmatprep.subr.bf16.mxu0 0
  %3039 = vmatpush2.bf16.msra.mxu0 0
  %3040 = vmatprep.mubr.bf16.mxu0 0
  %3041 = vmatmul.mubr.bf16.gmra.mxu0 %v2751
  %v3042 = vpop.f32.mrf.mxu0
  %v3043 = vadd.f32 0.0, %v3042
  %v3044 = vpop.f32.mrf.mxu0
  %v3045 = vadd.f32 0.0, %v3044
  %v3046 = vpop.f32.mrf.mxu0
  %v3047 = vadd.f32 0.0, %v3046
  %v3048 = vpop.f32.mrf.mxu0
  %v3049 = vadd.f32 0.0, %v3048
  %3050 = vdwg.mxu0
  %v3051 = vadd.f32 %v2765, %v3000
  %v3052 = vadd.f32 %v2766, %v3002
  %v3053 = vadd.f32 %v2767, %v3043
  %v3054 = vadd.f32 %v2768, %v3045
  %v3055 = vadd.f32 %v2769, %v3004
  %v3056 = vadd.f32 %v2770, %v3006
  %v3057 = vadd.f32 %v2771, %v3047
  %v3058 = vadd.f32 %v2772, %v3049
  %v3059 = vxor.u32 %v3051, 2147483648
  %v3060 = vxor.u32 %v3055, 2147483648
  %v3061 = vmul.f32 %v3059, 1.442695
  %v3062 = vpow.pop %v3061
  %v3063 = vmul.f32 %v3060, 1.442695
  %v3064 = vpow.pop %v3063
  %v3065 = vadd.f32 %v3062, 1.0
  %v3066 = vadd.f32 %v3064, 1.0
  %v3067 = vrcp.pop %v3065
  %v3068 = vmul.f32 1.0, %v3067
  %v3069 = vrcp.pop %v3066
  %v3070 = vmul.f32 1.0, %v3069
  %v3071 = vxor.u32 %v3052, 2147483648
  %v3072 = vxor.u32 %v3056, 2147483648
  %v3073 = vmul.f32 %v3071, 1.442695
  %v3074 = vpow.pop %v3073
  %v3075 = vmul.f32 %v3072, 1.442695
  %v3076 = vpow.pop %v3075
  %v3077 = vadd.f32 %v3074, 1.0
  %v3078 = vadd.f32 %v3076, 1.0
  %v3079 = vrcp.pop %v3077
  %v3080 = vmul.f32 1.0, %v3079
  %v3081 = vrcp.pop %v3078
  %v3082 = vmul.f32 1.0, %v3081
  %v3083 = vtanh.pop %v3053
  %v3084 = vtanh.pop %v3057
  %v3085 = vxor.u32 %v3054, 2147483648
  %v3086 = vxor.u32 %v3058, 2147483648
  %v3087 = vmul.f32 %v3085, 1.442695
  %v3088 = vpow.pop %v3087
  %v3089 = vmul.f32 %v3086, 1.442695
  %v3090 = vpow.pop %v3089
  %v3091 = vadd.f32 %v3088, 1.0
  %v3092 = vadd.f32 %v3090, 1.0
  %v3093 = vrcp.pop %v3091
  %v3094 = vmul.f32 1.0, %v3093
  %v3095 = vrcp.pop %v3092
  %v3096 = vmul.f32 1.0, %v3095
  %v3097 = vmul.f32 %v3080, %v2745
  %v3098 = vmul.f32 %v3082, %v2746
  %v3099 = vmul.f32 %v3068, %v3083
  %v3100 = vmul.f32 %v3070, %v3084
  %v3101 = vadd.f32 %v3097, %v3099
  %v3102 = vadd.f32 %v3098, %v3100
  %v3103 = vtanh.pop %v3101
  %v3104 = vtanh.pop %v3102
  %v3105 = vmul.f32 %v3094, %v3103
  %v3106 = vmul.f32 %v3096, %v3104
  %v3107 = vpack.c.bf16 %v3106, %v3105
  %v3109 = vunpack.c.l.b16 %v3107
  %v3110 = vunpack.c.h.b16 %v3107
  %v3111 = vpack.c.b16 %v3109, %v3109
  %v3112 = vpack.c.b16 %v3110, %v3110
  %s3115 = scalar_lea.vmem [#allocation2], 48
  %3116 = vst [vmem:[%s3115] sm:$0xf] %v3111
  %3117 = vst [vmem:[%s3115 + $0x4] sm:$0xf] %v3112
  %s3118 = smul.u32 14, 4
  %s3119 = smul.addr %s3118, 8
  %s3120 = scalar_lea.vmem [#allocation3], %s3119
  %v3121 = vld [vmem:[%s3120] sm:$0xff]
  %v3122 = vld [vmem:[%s3120 + $0x8] sm:$0xff]
  %v3123 = vld [vmem:[%s3120 + $0x10] sm:$0xff]
  %v3124 = vld [vmem:[%s3120 + $0x18] sm:$0xff]
  %v3125 = vld [vmem:[%s3120 + $0x20] sm:$0xff]
  %v3126 = vld [vmem:[%s3120 + $0x28] sm:$0xff]
  %v3127 = vld [vmem:[%s3120 + $0x30] sm:$0xff]
  %v3128 = vld [vmem:[%s3120 + $0x38] sm:$0xff]
  %v3129 = vld [vmem:[%s4] sm:$0xff]
  %v3130 = vld [vmem:[%s4 + $0x8] sm:$0xff]
  %v3131 = vld [vmem:[%s4 + $0x10] sm:$0xff]
  %v3132 = vld [vmem:[%s4 + $0x18] sm:$0xff]
  %v3133 = vld [vmem:[%s4 + $0x20] sm:$0xff]
  %v3134 = vld [vmem:[%s4 + $0x28] sm:$0xff]
  %v3135 = vld [vmem:[%s4 + $0x30] sm:$0xff]
  %v3136 = vld [vmem:[%s4 + $0x38] sm:$0xff]
  %v3137 = vld [vmem:[%s4 + $0x40] sm:$0xff]
  %v3138 = vld [vmem:[%s4 + $0x48] sm:$0xff]
  %v3139 = vld [vmem:[%s4 + $0x50] sm:$0xff]
  %v3140 = vld [vmem:[%s4 + $0x58] sm:$0xff]
  %v3141 = vld [vmem:[%s4 + $0x60] sm:$0xff]
  %v3142 = vld [vmem:[%s4 + $0x68] sm:$0xff]
  %v3143 = vld [vmem:[%s4 + $0x70] sm:$0xff]
  %v3144 = vld [vmem:[%s4 + $0x78] sm:$0xff]
  %v3145 = vld [vmem:[%s4 + $0x80] sm:$0xff]
  %v3146 = vld [vmem:[%s4 + $0x88] sm:$0xff]
  %v3147 = vld [vmem:[%s4 + $0x90] sm:$0xff]
  %v3148 = vld [vmem:[%s4 + $0x98] sm:$0xff]
  %v3149 = vld [vmem:[%s4 + $0xa0] sm:$0xff]
  %v3150 = vld [vmem:[%s4 + $0xa8] sm:$0xff]
  %v3151 = vld [vmem:[%s4 + $0xb0] sm:$0xff]
  %v3152 = vld [vmem:[%s4 + $0xb8] sm:$0xff]
  %v3153 = vld [vmem:[%s4 + $0xc0] sm:$0xff]
  %v3154 = vld [vmem:[%s4 + $0xc8] sm:$0xff]
  %v3155 = vld [vmem:[%s4 + $0xd0] sm:$0xff]
  %v3156 = vld [vmem:[%s4 + $0xd8] sm:$0xff]
  %v3157 = vld [vmem:[%s4 + $0xe0] sm:$0xff]
  %v3158 = vld [vmem:[%s4 + $0xe8] sm:$0xff]
  %v3159 = vld [vmem:[%s4 + $0xf0] sm:$0xff]
  %v3160 = vld [vmem:[%s4 + $0xf8] sm:$0xff]
  %v3193 = vunpack.c.l.b16 %v3129
  %v3194 = vunpack.c.h.b16 %v3129
  %v3195 = vunpack.c.l.b16 %v3130
  %v3196 = vunpack.c.h.b16 %v3130
  %v3197 = vunpack.c.l.b16 %v3131
  %v3198 = vunpack.c.h.b16 %v3131
  %v3199 = vunpack.c.l.b16 %v3132
  %v3200 = vunpack.c.h.b16 %v3132
  %v3201 = vunpack.c.l.b16 %v3133
  %v3202 = vunpack.c.h.b16 %v3133
  %v3203 = vunpack.c.l.b16 %v3134
  %v3204 = vunpack.c.h.b16 %v3134
  %v3205 = vunpack.c.l.b16 %v3135
  %v3206 = vunpack.c.h.b16 %v3135
  %v3207 = vunpack.c.l.b16 %v3136
  %v3208 = vunpack.c.h.b16 %v3136
  %v3209 = vunpack.c.l.b16 %v3137
  %v3210 = vunpack.c.h.b16 %v3137
  %v3211 = vunpack.c.l.b16 %v3138
  %v3212 = vunpack.c.h.b16 %v3138
  %v3213 = vunpack.c.l.b16 %v3139
  %v3214 = vunpack.c.h.b16 %v3139
  %v3215 = vunpack.c.l.b16 %v3140
  %v3216 = vunpack.c.h.b16 %v3140
  %v3217 = vunpack.c.l.b16 %v3141
  %v3218 = vunpack.c.h.b16 %v3141
  %v3219 = vunpack.c.l.b16 %v3142
  %v3220 = vunpack.c.h.b16 %v3142
  %v3221 = vunpack.c.l.b16 %v3143
  %v3222 = vunpack.c.h.b16 %v3143
  %v3223 = vunpack.c.l.b16 %v3144
  %v3224 = vunpack.c.h.b16 %v3144
  %v3225 = vunpack.c.l.b16 %v3145
  %v3226 = vunpack.c.h.b16 %v3145
  %v3227 = vunpack.c.l.b16 %v3146
  %v3228 = vunpack.c.h.b16 %v3146
  %v3229 = vunpack.c.l.b16 %v3147
  %v3230 = vunpack.c.h.b16 %v3147
  %v3231 = vunpack.c.l.b16 %v3148
  %v3232 = vunpack.c.h.b16 %v3148
  %v3233 = vunpack.c.l.b16 %v3149
  %v3234 = vunpack.c.h.b16 %v3149
  %v3235 = vunpack.c.l.b16 %v3150
  %v3236 = vunpack.c.h.b16 %v3150
  %v3237 = vunpack.c.l.b16 %v3151
  %v3238 = vunpack.c.h.b16 %v3151
  %v3239 = vunpack.c.l.b16 %v3152
  %v3240 = vunpack.c.h.b16 %v3152
  %v3241 = vunpack.c.l.b16 %v3153
  %v3242 = vunpack.c.h.b16 %v3153
  %v3243 = vunpack.c.l.b16 %v3154
  %v3244 = vunpack.c.h.b16 %v3154
  %v3245 = vunpack.c.l.b16 %v3155
  %v3246 = vunpack.c.h.b16 %v3155
  %v3247 = vunpack.c.l.b16 %v3156
  %v3248 = vunpack.c.h.b16 %v3156
  %v3249 = vunpack.c.l.b16 %v3157
  %v3250 = vunpack.c.h.b16 %v3157
  %v3251 = vunpack.c.l.b16 %v3158
  %v3252 = vunpack.c.h.b16 %v3158
  %v3253 = vunpack.c.l.b16 %v3159
  %v3254 = vunpack.c.h.b16 %v3159
  %v3255 = vunpack.c.l.b16 %v3160
  %v3256 = vunpack.c.h.b16 %v3160
  %v3257 = vpack.c.b16 %v3197, %v3193
  %v3258 = vpack.c.b16 %v3198, %v3194
  %v3259 = vpack.c.b16 %v3199, %v3195
  %v3260 = vpack.c.b16 %v3200, %v3196
  %v3261 = vpack.c.b16 %v3205, %v3201
  %v3262 = vpack.c.b16 %v3206, %v3202
  %v3263 = vpack.c.b16 %v3207, %v3203
  %v3264 = vpack.c.b16 %v3208, %v3204
  %v3265 = vpack.c.b16 %v3213, %v3209
  %v3266 = vpack.c.b16 %v3214, %v3210
  %v3267 = vpack.c.b16 %v3215, %v3211
  %v3268 = vpack.c.b16 %v3216, %v3212
  %v3269 = vpack.c.b16 %v3221, %v3217
  %v3270 = vpack.c.b16 %v3222, %v3218
  %v3271 = vpack.c.b16 %v3223, %v3219
  %v3272 = vpack.c.b16 %v3224, %v3220
  %v3273 = vpack.c.b16 %v3229, %v3225
  %v3274 = vpack.c.b16 %v3230, %v3226
  %v3275 = vpack.c.b16 %v3231, %v3227
  %v3276 = vpack.c.b16 %v3232, %v3228
  %v3277 = vpack.c.b16 %v3237, %v3233
  %v3278 = vpack.c.b16 %v3238, %v3234
  %v3279 = vpack.c.b16 %v3239, %v3235
  %v3280 = vpack.c.b16 %v3240, %v3236
  %v3281 = vpack.c.b16 %v3245, %v3241
  %v3282 = vpack.c.b16 %v3246, %v3242
  %v3283 = vpack.c.b16 %v3247, %v3243
  %v3284 = vpack.c.b16 %v3248, %v3244
  %v3285 = vpack.c.b16 %v3253, %v3249
  %v3286 = vpack.c.b16 %v3254, %v3250
  %v3287 = vpack.c.b16 %v3255, %v3251
  %v3288 = vpack.c.b16 %v3256, %v3252
  %3321 = vmatprep.subr.bf16.mxu0 %v3286
  %3322 = vmatpush1.bf16.msra.mxu0 %v3285
  %3323 = vmatprep.subr.bf16.mxu0 %v3282
  %3324 = vmatpush1.bf16.msra.mxu0 %v3281
  %3325 = vmatprep.subr.bf16.mxu0 %v3278
  %3326 = vmatpush1.bf16.msra.mxu0 %v3277
  %3327 = vmatprep.subr.bf16.mxu0 %v3274
  %3328 = vmatpush1.bf16.msra.mxu0 %v3273
  %3329 = vmatprep.subr.bf16.mxu0 %v3270
  %3330 = vmatpush1.bf16.msra.mxu0 %v3269
  %3331 = vmatprep.subr.bf16.mxu0 %v3266
  %3332 = vmatpush1.bf16.msra.mxu0 %v3265
  %3333 = vmatprep.subr.bf16.mxu0 %v3262
  %3334 = vmatpush1.bf16.msra.mxu0 %v3261
  %3335 = vmatprep.subr.bf16.mxu0 %v3258
  %3336 = vmatpush1.bf16.msra.mxu0 %v3257
  %3337 = vmatprep.subr.bf16.mxu0 0
  %3338 = vmatpush2.bf16.msra.mxu0 0
  %3339 = vmatprep.subr.bf16.mxu0 0
  %3340 = vmatpush2.bf16.msra.mxu0 0
  %3341 = vmatprep.subr.bf16.mxu0 0
  %3342 = vmatpush2.bf16.msra.mxu0 0
  %3343 = vmatprep.subr.bf16.mxu0 0
  %3344 = vmatpush2.bf16.msra.mxu0 0
  %3345 = vmatprep.subr.bf16.mxu0 0
  %3346 = vmatpush2.bf16.msra.mxu0 0
  %3347 = vmatprep.subr.bf16.mxu0 0
  %3348 = vmatpush2.bf16.msra.mxu0 0
  %3349 = vmatprep.subr.bf16.mxu0 0
  %3350 = vmatpush2.bf16.msra.mxu0 0
  %3351 = vmatprep.subr.bf16.mxu0 0
  %3352 = vmatpush2.bf16.msra.mxu0 0
  %3353 = vmatprep.mubr.bf16.mxu0 0
  %3354 = vmatmul.mubr.bf16.gmra.mxu0 %v3107
  %v3355 = vpop.f32.mrf.mxu0
  %v3356 = vadd.f32 0.0, %v3355
  %v3357 = vpop.f32.mrf.mxu0
  %v3358 = vadd.f32 0.0, %v3357
  %v3359 = vpop.f32.mrf.mxu0
  %v3360 = vadd.f32 0.0, %v3359
  %v3361 = vpop.f32.mrf.mxu0
  %v3362 = vadd.f32 0.0, %v3361
  %3363 = vdwg.mxu0
  %3364 = vmatprep.subr.bf16.mxu0 %v3288
  %3365 = vmatpush1.bf16.msra.mxu0 %v3287
  %3366 = vmatprep.subr.bf16.mxu0 %v3284
  %3367 = vmatpush1.bf16.msra.mxu0 %v3283
  %3368 = vmatprep.subr.bf16.mxu0 %v3280
  %3369 = vmatpush1.bf16.msra.mxu0 %v3279
  %3370 = vmatprep.subr.bf16.mxu0 %v3276
  %3371 = vmatpush1.bf16.msra.mxu0 %v3275
  %3372 = vmatprep.subr.bf16.mxu0 %v3272
  %3373 = vmatpush1.bf16.msra.mxu0 %v3271
  %3374 = vmatprep.subr.bf16.mxu0 %v3268
  %3375 = vmatpush1.bf16.msra.mxu0 %v3267
  %3376 = vmatprep.subr.bf16.mxu0 %v3264
  %3377 = vmatpush1.bf16.msra.mxu0 %v3263
  %3378 = vmatprep.subr.bf16.mxu0 %v3260
  %3379 = vmatpush1.bf16.msra.mxu0 %v3259
  %3380 = vmatprep.subr.bf16.mxu0 0
  %3381 = vmatpush2.bf16.msra.mxu0 0
  %3382 = vmatprep.subr.bf16.mxu0 0
  %3383 = vmatpush2.bf16.msra.mxu0 0
  %3384 = vmatprep.subr.bf16.mxu0 0
  %3385 = vmatpush2.bf16.msra.mxu0 0
  %3386 = vmatprep.subr.bf16.mxu0 0
  %3387 = vmatpush2.bf16.msra.mxu0 0
  %3388 = vmatprep.subr.bf16.mxu0 0
  %3389 = vmatpush2.bf16.msra.mxu0 0
  %3390 = vmatprep.subr.bf16.mxu0 0
  %3391 = vmatpush2.bf16.msra.mxu0 0
  %3392 = vmatprep.subr.bf16.mxu0 0
  %3393 = vmatpush2.bf16.msra.mxu0 0
  %3394 = vmatprep.subr.bf16.mxu0 0
  %3395 = vmatpush2.bf16.msra.mxu0 0
  %3396 = vmatprep.mubr.bf16.mxu0 0
  %3397 = vmatmul.mubr.bf16.gmra.mxu0 %v3107
  %v3398 = vpop.f32.mrf.mxu0
  %v3399 = vadd.f32 0.0, %v3398
  %v3400 = vpop.f32.mrf.mxu0
  %v3401 = vadd.f32 0.0, %v3400
  %v3402 = vpop.f32.mrf.mxu0
  %v3403 = vadd.f32 0.0, %v3402
  %v3404 = vpop.f32.mrf.mxu0
  %v3405 = vadd.f32 0.0, %v3404
  %3406 = vdwg.mxu0
  %v3407 = vadd.f32 %v3121, %v3356
  %v3408 = vadd.f32 %v3122, %v3358
  %v3409 = vadd.f32 %v3123, %v3399
  %v3410 = vadd.f32 %v3124, %v3401
  %v3411 = vadd.f32 %v3125, %v3360
  %v3412 = vadd.f32 %v3126, %v3362
  %v3413 = vadd.f32 %v3127, %v3403
  %v3414 = vadd.f32 %v3128, %v3405
  %v3415 = vxor.u32 %v3407, 2147483648
  %v3416 = vxor.u32 %v3411, 2147483648
  %v3417 = vmul.f32 %v3415, 1.442695
  %v3418 = vpow.pop %v3417
  %v3419 = vmul.f32 %v3416, 1.442695
  %v3420 = vpow.pop %v3419
  %v3421 = vadd.f32 %v3418, 1.0
  %v3422 = vadd.f32 %v3420, 1.0
  %v3423 = vrcp.pop %v3421
  %v3424 = vmul.f32 1.0, %v3423
  %v3425 = vrcp.pop %v3422
  %v3426 = vmul.f32 1.0, %v3425
  %v3427 = vxor.u32 %v3408, 2147483648
  %v3428 = vxor.u32 %v3412, 2147483648
  %v3429 = vmul.f32 %v3427, 1.442695
  %v3430 = vpow.pop %v3429
  %v3431 = vmul.f32 %v3428, 1.442695
  %v3432 = vpow.pop %v3431
  %v3433 = vadd.f32 %v3430, 1.0
  %v3434 = vadd.f32 %v3432, 1.0
  %v3435 = vrcp.pop %v3433
  %v3436 = vmul.f32 1.0, %v3435
  %v3437 = vrcp.pop %v3434
  %v3438 = vmul.f32 1.0, %v3437
  %v3439 = vtanh.pop %v3409
  %v3440 = vtanh.pop %v3413
  %v3441 = vxor.u32 %v3410, 2147483648
  %v3442 = vxor.u32 %v3414, 2147483648
  %v3443 = vmul.f32 %v3441, 1.442695
  %v3444 = vpow.pop %v3443
  %v3445 = vmul.f32 %v3442, 1.442695
  %v3446 = vpow.pop %v3445
  %v3447 = vadd.f32 %v3444, 1.0
  %v3448 = vadd.f32 %v3446, 1.0
  %v3449 = vrcp.pop %v3447
  %v3450 = vmul.f32 1.0, %v3449
  %v3451 = vrcp.pop %v3448
  %v3452 = vmul.f32 1.0, %v3451
  %v3453 = vmul.f32 %v3436, %v3101
  %v3454 = vmul.f32 %v3438, %v3102
  %v3455 = vmul.f32 %v3424, %v3439
  %v3456 = vmul.f32 %v3426, %v3440
  %v3457 = vadd.f32 %v3453, %v3455
  %v3458 = vadd.f32 %v3454, %v3456
  %v3459 = vtanh.pop %v3457
  %v3460 = vtanh.pop %v3458
  %v3461 = vmul.f32 %v3450, %v3459
  %v3462 = vmul.f32 %v3452, %v3460
  %v3463 = vpack.c.bf16 %v3462, %v3461
  %v3465 = vunpack.c.l.b16 %v3463
  %v3466 = vunpack.c.h.b16 %v3463
  %v3467 = vpack.c.b16 %v3465, %v3465
  %v3468 = vpack.c.b16 %v3466, %v3466
  %s3471 = scalar_lea.vmem [#allocation2], 56
  %3472 = vst [vmem:[%s3471] sm:$0xf] %v3467
  %3473 = vst [vmem:[%s3471 + $0x4] sm:$0xf] %v3468
  %v3474 = vld [vmem:[#allocation2] sm:$0xf]
  %v3475 = vld [vmem:[#allocation2 + $0x4] sm:$0xf]
  %v3476 = vld [vmem:[#allocation2 + $0x8] sm:$0xf]
  %v3477 = vld [vmem:[#allocation2 + $0xc] sm:$0xf]
  %v3478 = vld [vmem:[#allocation2 + $0x10] sm:$0xf]
  %v3479 = vld [vmem:[#allocation2 + $0x14] sm:$0xf]
  %v3480 = vld [vmem:[#allocation2 + $0x18] sm:$0xf]
  %v3481 = vld [vmem:[#allocation2 + $0x1c] sm:$0xf]
  %v3482 = vld [vmem:[#allocation2 + $0x20] sm:$0xf]
  %v3483 = vld [vmem:[#allocation2 + $0x24] sm:$0xf]
  %v3484 = vld [vmem:[#allocation2 + $0x28] sm:$0xf]
  %v3485 = vld [vmem:[#allocation2 + $0x2c] sm:$0xf]
  %v3486 = vld [vmem:[#allocation2 + $0x30] sm:$0xf]
  %v3487 = vld [vmem:[#allocation2 + $0x34] sm:$0xf]
  %v3488 = vld [vmem:[#allocation2 + $0x38] sm:$0xf]
  %v3489 = vld [vmem:[#allocation2 + $0x3c] sm:$0xf]
  %v3490 = vld [vmem:[%s6] sm:$0xff]
  %v3491 = vld [vmem:[%s6 + $0x8] sm:$0xff]
  %v3492 = vld [vmem:[%s6 + $0x10] sm:$0xff]
  %v3493 = vld [vmem:[%s6 + $0x18] sm:$0xff]
  %v3494 = vld [vmem:[%s6 + $0x20] sm:$0xff]
  %v3495 = vld [vmem:[%s6 + $0x28] sm:$0xff]
  %v3496 = vld [vmem:[%s6 + $0x30] sm:$0xff]
  %v3497 = vld [vmem:[%s6 + $0x38] sm:$0xff]
  %v3498 = vld [vmem:[%s6 + $0x40] sm:$0xff]
  %v3499 = vld [vmem:[%s6 + $0x48] sm:$0xff]
  %v3500 = vld [vmem:[%s6 + $0x50] sm:$0xff]
  %v3501 = vld [vmem:[%s6 + $0x58] sm:$0xff]
  %v3502 = vld [vmem:[%s6 + $0x60] sm:$0xff]
  %v3503 = vld [vmem:[%s6 + $0x68] sm:$0xff]
  %v3504 = vld [vmem:[%s6 + $0x70] sm:$0xff]
  %v3505 = vld [vmem:[%s6 + $0x78] sm:$0xff]
  %v3506 = vld [vmem:[%s6 + $0x80] sm:$0xff]
  %v3507 = vld [vmem:[%s6 + $0x88] sm:$0xff]
  %v3508 = vld [vmem:[%s6 + $0x90] sm:$0xff]
  %v3509 = vld [vmem:[%s6 + $0x98] sm:$0xff]
  %v3510 = vld [vmem:[%s6 + $0xa0] sm:$0xff]
  %v3511 = vld [vmem:[%s6 + $0xa8] sm:$0xff]
  %v3512 = vld [vmem:[%s6 + $0xb0] sm:$0xff]
  %v3513 = vld [vmem:[%s6 + $0xb8] sm:$0xff]
  %v3514 = vld [vmem:[%s6 + $0xc0] sm:$0xff]
  %v3515 = vld [vmem:[%s6 + $0xc8] sm:$0xff]
  %v3516 = vld [vmem:[%s6 + $0xd0] sm:$0xff]
  %v3517 = vld [vmem:[%s6 + $0xd8] sm:$0xff]
  %v3518 = vld [vmem:[%s6 + $0xe0] sm:$0xff]
  %v3519 = vld [vmem:[%s6 + $0xe8] sm:$0xff]
  %v3520 = vld [vmem:[%s6 + $0xf0] sm:$0xff]
  %v3521 = vld [vmem:[%s6 + $0xf8] sm:$0xff]
  %v3522 = vld [vmem:[%s8] sm:$0xf]
  %v3524 = vlaneseq
  %v3525 = vshrl.u32 %v3524, 7
  %v3526 = vsub.s32 0, %v3525
  %v3527 = vrot.slane %v3522, %v3526
  %v3528 = vlaneseq
  %v3529 = vshrl.u32 %v3528, 7
  %v3530 = vsub.s32 1, %v3529
  %v3531 = vrot.slane %v3522, %v3530
  %v3532 = vlaneseq
  %v3533 = vshrl.u32 %v3532, 7
  %v3534 = vsub.s32 2, %v3533
  %v3535 = vrot.slane %v3522, %v3534
  %v3536 = vlaneseq
  %v3537 = vshrl.u32 %v3536, 7
  %v3538 = vsub.s32 3, %v3537
  %v3539 = vrot.slane %v3522, %v3538
  %v3560 = vunpack.c.l.b16 %v3474
  %v3561 = vunpack.c.l.b16 %v3475
  %v3562 = vunpack.c.l.b16 %v3476
  %v3563 = vunpack.c.l.b16 %v3477
  %v3564 = vunpack.c.l.b16 %v3478
  %v3565 = vunpack.c.l.b16 %v3479
  %v3566 = vunpack.c.l.b16 %v3480
  %v3567 = vunpack.c.l.b16 %v3481
  %v3568 = vunpack.c.l.b16 %v3482
  %v3569 = vunpack.c.l.b16 %v3483
  %v3570 = vunpack.c.l.b16 %v3484
  %v3571 = vunpack.c.l.b16 %v3485
  %v3572 = vunpack.c.l.b16 %v3486
  %v3573 = vunpack.c.l.b16 %v3487
  %v3574 = vunpack.c.l.b16 %v3488
  %v3575 = vunpack.c.l.b16 %v3489
  %v3576 = vpack.c.b16 %v3561, %v3560
  %v3577 = vpack.c.b16 %v3563, %v3562
  %v3578 = vpack.c.b16 %v3565, %v3564
  %v3579 = vpack.c.b16 %v3567, %v3566
  %v3580 = vpack.c.b16 %v3569, %v3568
  %v3581 = vpack.c.b16 %v3571, %v3570
  %v3582 = vpack.c.b16 %v3573, %v3572
  %v3583 = vpack.c.b16 %v3575, %v3574
  %v3624 = vunpack.c.l.b16 %v3490
  %v3625 = vunpack.c.h.b16 %v3490
  %v3626 = vunpack.c.l.b16 %v3491
  %v3627 = vunpack.c.h.b16 %v3491
  %v3628 = vunpack.c.l.b16 %v3492
  %v3629 = vunpack.c.h.b16 %v3492
  %v3630 = vunpack.c.l.b16 %v3493
  %v3631 = vunpack.c.h.b16 %v3493
  %v3632 = vunpack.c.l.b16 %v3494
  %v3633 = vunpack.c.h.b16 %v3494
  %v3634 = vunpack.c.l.b16 %v3495
  %v3635 = vunpack.c.h.b16 %v3495
  %v3636 = vunpack.c.l.b16 %v3496
  %v3637 = vunpack.c.h.b16 %v3496
  %v3638 = vunpack.c.l.b16 %v3497
  %v3639 = vunpack.c.h.b16 %v3497
  %v3640 = vunpack.c.l.b16 %v3498
  %v3641 = vunpack.c.h.b16 %v3498
  %v3642 = vunpack.c.l.b16 %v3499
  %v3643 = vunpack.c.h.b16 %v3499
  %v3644 = vunpack.c.l.b16 %v3500
  %v3645 = vunpack.c.h.b16 %v3500
  %v3646 = vunpack.c.l.b16 %v3501
  %v3647 = vunpack.c.h.b16 %v3501
  %v3648 = vunpack.c.l.b16 %v3502
  %v3649 = vunpack.c.h.b16 %v3502
  %v3650 = vunpack.c.l.b16 %v3503
  %v3651 = vunpack.c.h.b16 %v3503
  %v3652 = vunpack.c.l.b16 %v3504
  %v3653 = vunpack.c.h.b16 %v3504
  %v3654 = vunpack.c.l.b16 %v3505
  %v3655 = vunpack.c.h.b16 %v3505
  %v3656 = vunpack.c.l.b16 %v3506
  %v3657 = vunpack.c.h.b16 %v3506
  %v3658 = vunpack.c.l.b16 %v3507
  %v3659 = vunpack.c.h.b16 %v3507
  %v3660 = vunpack.c.l.b16 %v3508
  %v3661 = vunpack.c.h.b16 %v3508
  %v3662 = vunpack.c.l.b16 %v3509
  %v3663 = vunpack.c.h.b16 %v3509
  %v3664 = vunpack.c.l.b16 %v3510
  %v3665 = vunpack.c.h.b16 %v3510
  %v3666 = vunpack.c.l.b16 %v3511
  %v3667 = vunpack.c.h.b16 %v3511
  %v3668 = vunpack.c.l.b16 %v3512
  %v3669 = vunpack.c.h.b16 %v3512
  %v3670 = vunpack.c.l.b16 %v3513
  %v3671 = vunpack.c.h.b16 %v3513
  %v3672 = vunpack.c.l.b16 %v3514
  %v3673 = vunpack.c.h.b16 %v3514
  %v3674 = vunpack.c.l.b16 %v3515
  %v3675 = vunpack.c.h.b16 %v3515
  %v3676 = vunpack.c.l.b16 %v3516
  %v3677 = vunpack.c.h.b16 %v3516
  %v3678 = vunpack.c.l.b16 %v3517
  %v3679 = vunpack.c.h.b16 %v3517
  %v3680 = vunpack.c.l.b16 %v3518
  %v3681 = vunpack.c.h.b16 %v3518
  %v3682 = vunpack.c.l.b16 %v3519
  %v3683 = vunpack.c.h.b16 %v3519
  %v3684 = vunpack.c.l.b16 %v3520
  %v3685 = vunpack.c.h.b16 %v3520
  %v3686 = vunpack.c.l.b16 %v3521
  %v3687 = vunpack.c.h.b16 %v3521
  %v3688 = vpack.c.b16 %v3628, %v3624
  %v3689 = vpack.c.b16 %v3629, %v3625
  %v3690 = vpack.c.b16 %v3630, %v3626
  %v3691 = vpack.c.b16 %v3631, %v3627
  %v3692 = vpack.c.b16 %v3636, %v3632
  %v3693 = vpack.c.b16 %v3637, %v3633
  %v3694 = vpack.c.b16 %v3638, %v3634
  %v3695 = vpack.c.b16 %v3639, %v3635
  %v3696 = vpack.c.b16 %v3644, %v3640
  %v3697 = vpack.c.b16 %v3645, %v3641
  %v3698 = vpack.c.b16 %v3646, %v3642
  %v3699 = vpack.c.b16 %v3647, %v3643
  %v3700 = vpack.c.b16 %v3652, %v3648
  %v3701 = vpack.c.b16 %v3653, %v3649
  %v3702 = vpack.c.b16 %v3654, %v3650
  %v3703 = vpack.c.b16 %v3655, %v3651
  %v3704 = vpack.c.b16 %v3660, %v3656
  %v3705 = vpack.c.b16 %v3661, %v3657
  %v3706 = vpack.c.b16 %v3662, %v3658
  %v3707 = vpack.c.b16 %v3663, %v3659
  %v3708 = vpack.c.b16 %v3668, %v3664
  %v3709 = vpack.c.b16 %v3669, %v3665
  %v3710 = vpack.c.b16 %v3670, %v3666
  %v3711 = vpack.c.b16 %v3671, %v3667
  %v3712 = vpack.c.b16 %v3676, %v3672
  %v3713 = vpack.c.b16 %v3677, %v3673
  %v3714 = vpack.c.b16 %v3678, %v3674
  %v3715 = vpack.c.b16 %v3679, %v3675
  %v3716 = vpack.c.b16 %v3684, %v3680
  %v3717 = vpack.c.b16 %v3685, %v3681
  %v3718 = vpack.c.b16 %v3686, %v3682
  %v3719 = vpack.c.b16 %v3687, %v3683
  %3752 = vmatprep.subr.bf16.mxu0 %v3717
  %3753 = vmatpush1.bf16.msra.mxu0 %v3716
  %3754 = vmatprep.subr.bf16.mxu0 %v3713
  %3755 = vmatpush1.bf16.msra.mxu0 %v3712
  %3756 = vmatprep.subr.bf16.mxu0 %v3709
  %3757 = vmatpush1.bf16.msra.mxu0 %v3708
  %3758 = vmatprep.subr.bf16.mxu0 %v3705
  %3759 = vmatpush1.bf16.msra.mxu0 %v3704
  %3760 = vmatprep.subr.bf16.mxu0 %v3701
  %3761 = vmatpush1.bf16.msra.mxu0 %v3700
  %3762 = vmatprep.subr.bf16.mxu0 %v3697
  %3763 = vmatpush1.bf16.msra.mxu0 %v3696
  %3764 = vmatprep.subr.bf16.mxu0 %v3693
  %3765 = vmatpush1.bf16.msra.mxu0 %v3692
  %3766 = vmatprep.subr.bf16.mxu0 %v3689
  %3767 = vmatpush1.bf16.msra.mxu0 %v3688
  %3768 = vmatprep.subr.bf16.mxu0 0
  %3769 = vmatpush2.bf16.msra.mxu0 0
  %3770 = vmatprep.subr.bf16.mxu0 0
  %3771 = vmatpush2.bf16.msra.mxu0 0
  %3772 = vmatprep.subr.bf16.mxu0 0
  %3773 = vmatpush2.bf16.msra.mxu0 0
  %3774 = vmatprep.subr.bf16.mxu0 0
  %3775 = vmatpush2.bf16.msra.mxu0 0
  %3776 = vmatprep.subr.bf16.mxu0 0
  %3777 = vmatpush2.bf16.msra.mxu0 0
  %3778 = vmatprep.subr.bf16.mxu0 0
  %3779 = vmatpush2.bf16.msra.mxu0 0
  %3780 = vmatprep.subr.bf16.mxu0 0
  %3781 = vmatpush2.bf16.msra.mxu0 0
  %3782 = vmatprep.subr.bf16.mxu0 0
  %3783 = vmatpush2.bf16.msra.mxu0 0
  %3784 = vmatprep.mubr.bf16.mxu0 0
  %3785 = vmatmul.mubr.bf16.gmra.mxu0 %v3576
  %v3786 = vpop.f32.mrf.mxu0
  %v3787 = vadd.f32 %v3527, %v3786
  %v3788 = vpop.f32.mrf.mxu0
  %v3789 = vadd.f32 %v3531, %v3788
  %v3790 = vpop.f32.mrf.mxu0
  %v3791 = vadd.f32 %v3527, %v3790
  %v3792 = vpop.f32.mrf.mxu0
  %v3793 = vadd.f32 %v3531, %v3792
  %3794 = vmatprep.mubr.bf16.mxu0 0
  %3795 = vmatmul.mubr.bf16.gmra.mxu0 %v3577
  %v3796 = vpop.f32.mrf.mxu0
  %v3797 = vadd.f32 %v3527, %v3796
  %v3798 = vpop.f32.mrf.mxu0
  %v3799 = vadd.f32 %v3531, %v3798
  %v3800 = vpop.f32.mrf.mxu0
  %v3801 = vadd.f32 %v3527, %v3800
  %v3802 = vpop.f32.mrf.mxu0
  %v3803 = vadd.f32 %v3531, %v3802
  %3804 = vmatprep.mubr.bf16.mxu0 0
  %3805 = vmatmul.mubr.bf16.gmra.mxu0 %v3578
  %v3806 = vpop.f32.mrf.mxu0
  %v3807 = vadd.f32 %v3527, %v3806
  %v3808 = vpop.f32.mrf.mxu0
  %v3809 = vadd.f32 %v3531, %v3808
  %v3810 = vpop.f32.mrf.mxu0
  %v3811 = vadd.f32 %v3527, %v3810
  %v3812 = vpop.f32.mrf.mxu0
  %v3813 = vadd.f32 %v3531, %v3812
  %3814 = vmatprep.mubr.bf16.mxu0 0
  %3815 = vmatmul.mubr.bf16.gmra.mxu0 %v3579
  %v3816 = vpop.f32.mrf.mxu0
  %v3817 = vadd.f32 %v3527, %v3816
  %v3818 = vpop.f32.mrf.mxu0
  %v3819 = vadd.f32 %v3531, %v3818
  %v3820 = vpop.f32.mrf.mxu0
  %v3821 = vadd.f32 %v3527, %v3820
  %v3822 = vpop.f32.mrf.mxu0
  %v3823 = vadd.f32 %v3531, %v3822
  %3824 = vmatprep.mubr.bf16.mxu0 0
  %3825 = vmatmul.mubr.bf16.gmra.mxu0 %v3580
  %v3826 = vpop.f32.mrf.mxu0
  %v3827 = vadd.f32 %v3527, %v3826
  %v3828 = vpop.f32.mrf.mxu0
  %v3829 = vadd.f32 %v3531, %v3828
  %v3830 = vpop.f32.mrf.mxu0
  %v3831 = vadd.f32 %v3527, %v3830
  %v3832 = vpop.f32.mrf.mxu0
  %v3833 = vadd.f32 %v3531, %v3832
  %3834 = vmatprep.mubr.bf16.mxu0 0
  %3835 = vmatmul.mubr.bf16.gmra.mxu0 %v3581
  %v3836 = vpop.f32.mrf.mxu0
  %v3837 = vadd.f32 %v3527, %v3836
  %v3838 = vpop.f32.mrf.mxu0
  %v3839 = vadd.f32 %v3531, %v3838
  %v3840 = vpop.f32.mrf.mxu0
  %v3841 = vadd.f32 %v3527, %v3840
  %v3842 = vpop.f32.mrf.mxu0
  %v3843 = vadd.f32 %v3531, %v3842
  %3844 = vmatprep.mubr.bf16.mxu0 0
  %3845 = vmatmul.mubr.bf16.gmra.mxu0 %v3582
  %v3846 = vpop.f32.mrf.mxu0
  %v3847 = vadd.f32 %v3527, %v3846
  %v3848 = vpop.f32.mrf.mxu0
  %v3849 = vadd.f32 %v3531, %v3848
  %v3850 = vpop.f32.mrf.mxu0
  %v3851 = vadd.f32 %v3527, %v3850
  %v3852 = vpop.f32.mrf.mxu0
  %v3853 = vadd.f32 %v3531, %v3852
  %3854 = vmatprep.mubr.bf16.mxu0 0
  %3855 = vmatmul.mubr.bf16.gmra.mxu0 %v3583
  %v3856 = vpop.f32.mrf.mxu0
  %v3857 = vadd.f32 %v3527, %v3856
  %v3858 = vpop.f32.mrf.mxu0
  %v3859 = vadd.f32 %v3531, %v3858
  %v3860 = vpop.f32.mrf.mxu0
  %v3861 = vadd.f32 %v3527, %v3860
  %v3862 = vpop.f32.mrf.mxu0
  %v3863 = vadd.f32 %v3531, %v3862
  %3864 = vdwg.mxu0
  %3865 = vmatprep.subr.bf16.mxu0 %v3719
  %3866 = vmatpush1.bf16.msra.mxu0 %v3718
  %3867 = vmatprep.subr.bf16.mxu0 %v3715
  %3868 = vmatpush1.bf16.msra.mxu0 %v3714
  %3869 = vmatprep.subr.bf16.mxu0 %v3711
  %3870 = vmatpush1.bf16.msra.mxu0 %v3710
  %3871 = vmatprep.subr.bf16.mxu0 %v3707
  %3872 = vmatpush1.bf16.msra.mxu0 %v3706
  %3873 = vmatprep.subr.bf16.mxu0 %v3703
  %3874 = vmatpush1.bf16.msra.mxu0 %v3702
  %3875 = vmatprep.subr.bf16.mxu0 %v3699
  %3876 = vmatpush1.bf16.msra.mxu0 %v3698
  %3877 = vmatprep.subr.bf16.mxu0 %v3695
  %3878 = vmatpush1.bf16.msra.mxu0 %v3694
  %3879 = vmatprep.subr.bf16.mxu0 %v3691
  %3880 = vmatpush1.bf16.msra.mxu0 %v3690
  %3881 = vmatprep.subr.bf16.mxu0 0
  %3882 = vmatpush2.bf16.msra.mxu0 0
  %3883 = vmatprep.subr.bf16.mxu0 0
  %3884 = vmatpush2.bf16.msra.mxu0 0
  %3885 = vmatprep.subr.bf16.mxu0 0
  %3886 = vmatpush2.bf16.msra.mxu0 0
  %3887 = vmatprep.subr.bf16.mxu0 0
  %3888 = vmatpush2.bf16.msra.mxu0 0
  %3889 = vmatprep.subr.bf16.mxu0 0
  %3890 = vmatpush2.bf16.msra.mxu0 0
  %3891 = vmatprep.subr.bf16.mxu0 0
  %3892 = vmatpush2.bf16.msra.mxu0 0
  %3893 = vmatprep.subr.bf16.mxu0 0
  %3894 = vmatpush2.bf16.msra.mxu0 0
  %3895 = vmatprep.subr.bf16.mxu0 0
  %3896 = vmatpush2.bf16.msra.mxu0 0
  %3897 = vmatprep.mubr.bf16.mxu0 0
  %3898 = vmatmul.mubr.bf16.gmra.mxu0 %v3576
  %v3899 = vpop.f32.mrf.mxu0
  %v3900 = vadd.f32 %v3535, %v3899
  %v3901 = vpop.f32.mrf.mxu0
  %v3902 = vadd.f32 %v3539, %v3901
  %v3903 = vpop.f32.mrf.mxu0
  %v3904 = vadd.f32 %v3535, %v3903
  %v3905 = vpop.f32.mrf.mxu0
  %v3906 = vadd.f32 %v3539, %v3905
  %3907 = vmatprep.mubr.bf16.mxu0 0
  %3908 = vmatmul.mubr.bf16.gmra.mxu0 %v3577
  %v3909 = vpop.f32.mrf.mxu0
  %v3910 = vadd.f32 %v3535, %v3909
  %v3911 = vpop.f32.mrf.mxu0
  %v3912 = vadd.f32 %v3539, %v3911
  %v3913 = vpop.f32.mrf.mxu0
  %v3914 = vadd.f32 %v3535, %v3913
  %v3915 = vpop.f32.mrf.mxu0
  %v3916 = vadd.f32 %v3539, %v3915
  %3917 = vmatprep.mubr.bf16.mxu0 0
  %3918 = vmatmul.mubr.bf16.gmra.mxu0 %v3578
  %v3919 = vpop.f32.mrf.mxu0
  %v3920 = vadd.f32 %v3535, %v3919
  %v3921 = vpop.f32.mrf.mxu0
  %v3922 = vadd.f32 %v3539, %v3921
  %v3923 = vpop.f32.mrf.mxu0
  %v3924 = vadd.f32 %v3535, %v3923
  %v3925 = vpop.f32.mrf.mxu0
  %v3926 = vadd.f32 %v3539, %v3925
  %3927 = vmatprep.mubr.bf16.mxu0 0
  %3928 = vmatmul.mubr.bf16.gmra.mxu0 %v3579
  %v3929 = vpop.f32.mrf.mxu0
  %v3930 = vadd.f32 %v3535, %v3929
  %v3931 = vpop.f32.mrf.mxu0
  %v3932 = vadd.f32 %v3539, %v3931
  %v3933 = vpop.f32.mrf.mxu0
  %v3934 = vadd.f32 %v3535, %v3933
  %v3935 = vpop.f32.mrf.mxu0
  %v3936 = vadd.f32 %v3539, %v3935
  %3937 = vmatprep.mubr.bf16.mxu0 0
  %3938 = vmatmul.mubr.bf16.gmra.mxu0 %v3580
  %v3939 = vpop.f32.mrf.mxu0
  %v3940 = vadd.f32 %v3535, %v3939
  %v3941 = vpop.f32.mrf.mxu0
  %v3942 = vadd.f32 %v3539, %v3941
  %v3943 = vpop.f32.mrf.mxu0
  %v3944 = vadd.f32 %v3535, %v3943
  %v3945 = vpop.f32.mrf.mxu0
  %v3946 = vadd.f32 %v3539, %v3945
  %3947 = vmatprep.mubr.bf16.mxu0 0
  %3948 = vmatmul.mubr.bf16.gmra.mxu0 %v3581
  %v3949 = vpop.f32.mrf.mxu0
  %v3950 = vadd.f32 %v3535, %v3949
  %v3951 = vpop.f32.mrf.mxu0
  %v3952 = vadd.f32 %v3539, %v3951
  %v3953 = vpop.f32.mrf.mxu0
  %v3954 = vadd.f32 %v3535, %v3953
  %v3955 = vpop.f32.mrf.mxu0
  %v3956 = vadd.f32 %v3539, %v3955
  %3957 = vmatprep.mubr.bf16.mxu0 0
  %3958 = vmatmul.mubr.bf16.gmra.mxu0 %v3582
  %v3959 = vpop.f32.mrf.mxu0
  %v3960 = vadd.f32 %v3535, %v3959
  %v3961 = vpop.f32.mrf.mxu0
  %v3962 = vadd.f32 %v3539, %v3961
  %v3963 = vpop.f32.mrf.mxu0
  %v3964 = vadd.f32 %v3535, %v3963
  %v3965 = vpop.f32.mrf.mxu0
  %v3966 = vadd.f32 %v3539, %v3965
  %3967 = vmatprep.mubr.bf16.mxu0 0
  %3968 = vmatmul.mubr.bf16.gmra.mxu0 %v3583
  %v3969 = vpop.f32.mrf.mxu0
  %v3970 = vadd.f32 %v3535, %v3969
  %v3971 = vpop.f32.mrf.mxu0
  %v3972 = vadd.f32 %v3539, %v3971
  %v3973 = vpop.f32.mrf.mxu0
  %v3974 = vadd.f32 %v3535, %v3973
  %v3975 = vpop.f32.mrf.mxu0
  %v3976 = vadd.f32 %v3539, %v3975
  %3977 = vdwg.mxu0
  %3978 = vst [vmem:[#allocation3] sm:$0xff] %v3787
  %3979 = vst [vmem:[#allocation3 + $0x8] sm:$0xff] %v3789
  %3980 = vst [vmem:[#allocation3 + $0x10] sm:$0xff] %v3900
  %3981 = vst [vmem:[#allocation3 + $0x18] sm:$0xff] %v3902
  %3982 = vst [vmem:[#allocation3 + $0x20] sm:$0xff] %v3791
  %3983 = vst [vmem:[#allocation3 + $0x28] sm:$0xff] %v3793
  %3984 = vst [vmem:[#allocation3 + $0x30] sm:$0xff] %v3904
  %3985 = vst [vmem:[#allocation3 + $0x38] sm:$0xff] %v3906
  %3986 = vst [vmem:[#allocation3 + $0x40] sm:$0xff] %v3797
  %3987 = vst [vmem:[#allocation3 + $0x48] sm:$0xff] %v3799
  %3988 = vst [vmem:[#allocation3 + $0x50] sm:$0xff] %v3910
  %3989 = vst [vmem:[#allocation3 + $0x58] sm:$0xff] %v3912
  %3990 = vst [vmem:[#allocation3 + $0x60] sm:$0xff] %v3801
  %3991 = vst [vmem:[#allocation3 + $0x68] sm:$0xff] %v3803
  %3992 = vst [vmem:[#allocation3 + $0x70] sm:$0xff] %v3914
  %3993 = vst [vmem:[#allocation3 + $0x78] sm:$0xff] %v3916
  %3994 = vst [vmem:[#allocation3 + $0x80] sm:$0xff] %v3807
  %3995 = vst [vmem:[#allocation3 + $0x88] sm:$0xff] %v3809
  %3996 = vst [vmem:[#allocation3 + $0x90] sm:$0xff] %v3920
  %3997 = vst [vmem:[#allocation3 + $0x98] sm:$0xff] %v3922
  %3998 = vst [vmem:[#allocation3 + $0xa0] sm:$0xff] %v3811
  %3999 = vst [vmem:[#allocation3 + $0xa8] sm:$0xff] %v3813
  %4000 = vst [vmem:[#allocation3 + $0xb0] sm:$0xff] %v3924
  %4001 = vst [vmem:[#allocation3 + $0xb8] sm:$0xff] %v3926
  %4002 = vst [vmem:[#allocation3 + $0xc0] sm:$0xff] %v3817
  %4003 = vst [vmem:[#allocation3 + $0xc8] sm:$0xff] %v3819
  %4004 = vst [vmem:[#allocation3 + $0xd0] sm:$0xff] %v3930
  %4005 = vst [vmem:[#allocation3 + $0xd8] sm:$0xff] %v3932
  %4006 = vst [vmem:[#allocation3 + $0xe0] sm:$0xff] %v3821
  %4007 = vst [vmem:[#allocation3 + $0xe8] sm:$0xff] %v3823
  %4008 = vst [vmem:[#allocation3 + $0xf0] sm:$0xff] %v3934
  %4009 = vst [vmem:[#allocation3 + $0xf8] sm:$0xff] %v3936
  %4010 = vst [vmem:[#allocation3 + $0x100] sm:$0xff] %v3827
  %4011 = vst [vmem:[#allocation3 + $0x108] sm:$0xff] %v3829
  %4012 = vst [vmem:[#allocation3 + $0x110] sm:$0xff] %v3940
  %4013 = vst [vmem:[#allocation3 + $0x118] sm:$0xff] %v3942
  %4014 = vst [vmem:[#allocation3 + $0x120] sm:$0xff] %v3831
  %4015 = vst [vmem:[#allocation3 + $0x128] sm:$0xff] %v3833
  %4016 = vst [vmem:[#allocation3 + $0x130] sm:$0xff] %v3944
  %4017 = vst [vmem:[#allocation3 + $0x138] sm:$0xff] %v3946
  %4018 = vst [vmem:[#allocation3 + $0x140] sm:$0xff] %v3837
  %4019 = vst [vmem:[#allocation3 + $0x148] sm:$0xff] %v3839
  %4020 = vst [vmem:[#allocation3 + $0x150] sm:$0xff] %v3950
  %4021 = vst [vmem:[#allocation3 + $0x158] sm:$0xff] %v3952
  %4022 = vst [vmem:[#allocation3 + $0x160] sm:$0xff] %v3841
  %4023 = vst [vmem:[#allocation3 + $0x168] sm:$0xff] %v3843
  %4024 = vst [vmem:[#allocation3 + $0x170] sm:$0xff] %v3954
  %4025 = vst [vmem:[#allocation3 + $0x178] sm:$0xff] %v3956
  %4026 = vst [vmem:[#allocation3 + $0x180] sm:$0xff] %v3847
  %4027 = vst [vmem:[#allocation3 + $0x188] sm:$0xff] %v3849
  %4028 = vst [vmem:[#allocation3 + $0x190] sm:$0xff] %v3960
  %4029 = vst [vmem:[#allocation3 + $0x198] sm:$0xff] %v3962
  %4030 = vst [vmem:[#allocation3 + $0x1a0] sm:$0xff] %v3851
  %4031 = vst [vmem:[#allocation3 + $0x1a8] sm:$0xff] %v3853
  %4032 = vst [vmem:[#allocation3 + $0x1b0] sm:$0xff] %v3964
  %4033 = vst [vmem:[#allocation3 + $0x1b8] sm:$0xff] %v3966
  %4034 = vst [vmem:[#allocation3 + $0x1c0] sm:$0xff] %v3857
  %4035 = vst [vmem:[#allocation3 + $0x1c8] sm:$0xff] %v3859
  %4036 = vst [vmem:[#allocation3 + $0x1d0] sm:$0xff] %v3970
  %4037 = vst [vmem:[#allocation3 + $0x1d8] sm:$0xff] %v3972
  %4038 = vst [vmem:[#allocation3 + $0x1e0] sm:$0xff] %v3861
  %4039 = vst [vmem:[#allocation3 + $0x1e8] sm:$0xff] %v3863
  %4040 = vst [vmem:[#allocation3 + $0x1f0] sm:$0xff] %v3974
  %4041 = vst [vmem:[#allocation3 + $0x1f8] sm:$0xff] %v3976
  %s4042 = scalar_lea.vmem %s1, 16
  %v4043 = vld [vmem:[%s4042] sm:$0xff]
  %v4044 = vld [vmem:[%s4042 + $0x8] sm:$0xff]
  %s4045 = scalar_lea.vmem %s2, 16
  %v4046 = vld [vmem:[%s4045] sm:$0xff]
  %v4047 = vld [vmem:[%s4045 + $0x8] sm:$0xff]
  %v4048 = vld [vmem:[%s628] sm:$0xff]
  %v4049 = vld [vmem:[%s628 + $0x8] sm:$0xff]
  %v4050 = vld [vmem:[%s628 + $0x10] sm:$0xff]
  %v4051 = vld [vmem:[%s628 + $0x18] sm:$0xff]
  %v4052 = vld [vmem:[%s628 + $0x20] sm:$0xff]
  %v4053 = vld [vmem:[%s628 + $0x28] sm:$0xff]
  %v4054 = vld [vmem:[%s628 + $0x30] sm:$0xff]
  %v4055 = vld [vmem:[%s628 + $0x38] sm:$0xff]
  %v4056 = vpack.c.bf16 %v4044, %v4043
  %v4057 = vld [vmem:[%s7] sm:$0xff]
  %v4058 = vld [vmem:[%s7 + $0x8] sm:$0xff]
  %v4059 = vld [vmem:[%s7 + $0x10] sm:$0xff]
  %v4060 = vld [vmem:[%s7 + $0x18] sm:$0xff]
  %v4061 = vld [vmem:[%s7 + $0x20] sm:$0xff]
  %v4062 = vld [vmem:[%s7 + $0x28] sm:$0xff]
  %v4063 = vld [vmem:[%s7 + $0x30] sm:$0xff]
  %v4064 = vld [vmem:[%s7 + $0x38] sm:$0xff]
  %v4065 = vld [vmem:[%s7 + $0x40] sm:$0xff]
  %v4066 = vld [vmem:[%s7 + $0x48] sm:$0xff]
  %v4067 = vld [vmem:[%s7 + $0x50] sm:$0xff]
  %v4068 = vld [vmem:[%s7 + $0x58] sm:$0xff]
  %v4069 = vld [vmem:[%s7 + $0x60] sm:$0xff]
  %v4070 = vld [vmem:[%s7 + $0x68] sm:$0xff]
  %v4071 = vld [vmem:[%s7 + $0x70] sm:$0xff]
  %v4072 = vld [vmem:[%s7 + $0x78] sm:$0xff]
  %v4073 = vld [vmem:[%s7 + $0x80] sm:$0xff]
  %v4074 = vld [vmem:[%s7 + $0x88] sm:$0xff]
  %v4075 = vld [vmem:[%s7 + $0x90] sm:$0xff]
  %v4076 = vld [vmem:[%s7 + $0x98] sm:$0xff]
  %v4077 = vld [vmem:[%s7 + $0xa0] sm:$0xff]
  %v4078 = vld [vmem:[%s7 + $0xa8] sm:$0xff]
  %v4079 = vld [vmem:[%s7 + $0xb0] sm:$0xff]
  %v4080 = vld [vmem:[%s7 + $0xb8] sm:$0xff]
  %v4081 = vld [vmem:[%s7 + $0xc0] sm:$0xff]
  %v4082 = vld [vmem:[%s7 + $0xc8] sm:$0xff]
  %v4083 = vld [vmem:[%s7 + $0xd0] sm:$0xff]
  %v4084 = vld [vmem:[%s7 + $0xd8] sm:$0xff]
  %v4085 = vld [vmem:[%s7 + $0xe0] sm:$0xff]
  %v4086 = vld [vmem:[%s7 + $0xe8] sm:$0xff]
  %v4087 = vld [vmem:[%s7 + $0xf0] sm:$0xff]
  %v4088 = vld [vmem:[%s7 + $0xf8] sm:$0xff]
  %v4121 = vunpack.c.l.b16 %v4057
  %v4122 = vunpack.c.h.b16 %v4057
  %v4123 = vunpack.c.l.b16 %v4058
  %v4124 = vunpack.c.h.b16 %v4058
  %v4125 = vunpack.c.l.b16 %v4059
  %v4126 = vunpack.c.h.b16 %v4059
  %v4127 = vunpack.c.l.b16 %v4060
  %v4128 = vunpack.c.h.b16 %v4060
  %v4129 = vunpack.c.l.b16 %v4061
  %v4130 = vunpack.c.h.b16 %v4061
  %v4131 = vunpack.c.l.b16 %v4062
  %v4132 = vunpack.c.h.b16 %v4062
  %v4133 = vunpack.c.l.b16 %v4063
  %v4134 = vunpack.c.h.b16 %v4063
  %v4135 = vunpack.c.l.b16 %v4064
  %v4136 = vunpack.c.h.b16 %v4064
  %v4137 = vunpack.c.l.b16 %v4065
  %v4138 = vunpack.c.h.b16 %v4065
  %v4139 = vunpack.c.l.b16 %v4066
  %v4140 = vunpack.c.h.b16 %v4066
  %v4141 = vunpack.c.l.b16 %v4067
  %v4142 = vunpack.c.h.b16 %v4067
  %v4143 = vunpack.c.l.b16 %v4068
  %v4144 = vunpack.c.h.b16 %v4068
  %v4145 = vunpack.c.l.b16 %v4069
  %v4146 = vunpack.c.h.b16 %v4069
  %v4147 = vunpack.c.l.b16 %v4070
  %v4148 = vunpack.c.h.b16 %v4070
  %v4149 = vunpack.c.l.b16 %v4071
  %v4150 = vunpack.c.h.b16 %v4071
  %v4151 = vunpack.c.l.b16 %v4072
  %v4152 = vunpack.c.h.b16 %v4072
  %v4153 = vunpack.c.l.b16 %v4073
  %v4154 = vunpack.c.h.b16 %v4073
  %v4155 = vunpack.c.l.b16 %v4074
  %v4156 = vunpack.c.h.b16 %v4074
  %v4157 = vunpack.c.l.b16 %v4075
  %v4158 = vunpack.c.h.b16 %v4075
  %v4159 = vunpack.c.l.b16 %v4076
  %v4160 = vunpack.c.h.b16 %v4076
  %v4161 = vunpack.c.l.b16 %v4077
  %v4162 = vunpack.c.h.b16 %v4077
  %v4163 = vunpack.c.l.b16 %v4078
  %v4164 = vunpack.c.h.b16 %v4078
  %v4165 = vunpack.c.l.b16 %v4079
  %v4166 = vunpack.c.h.b16 %v4079
  %v4167 = vunpack.c.l.b16 %v4080
  %v4168 = vunpack.c.h.b16 %v4080
  %v4169 = vunpack.c.l.b16 %v4081
  %v4170 = vunpack.c.h.b16 %v4081
  %v4171 = vunpack.c.l.b16 %v4082
  %v4172 = vunpack.c.h.b16 %v4082
  %v4173 = vunpack.c.l.b16 %v4083
  %v4174 = vunpack.c.h.b16 %v4083
  %v4175 = vunpack.c.l.b16 %v4084
  %v4176 = vunpack.c.h.b16 %v4084
  %v4177 = vunpack.c.l.b16 %v4085
  %v4178 = vunpack.c.h.b16 %v4085
  %v4179 = vunpack.c.l.b16 %v4086
  %v4180 = vunpack.c.h.b16 %v4086
  %v4181 = vunpack.c.l.b16 %v4087
  %v4182 = vunpack.c.h.b16 %v4087
  %v4183 = vunpack.c.l.b16 %v4088
  %v4184 = vunpack.c.h.b16 %v4088
  %v4185 = vpack.c.b16 %v4125, %v4121
  %v4186 = vpack.c.b16 %v4126, %v4122
  %v4187 = vpack.c.b16 %v4127, %v4123
  %v4188 = vpack.c.b16 %v4128, %v4124
  %v4189 = vpack.c.b16 %v4133, %v4129
  %v4190 = vpack.c.b16 %v4134, %v4130
  %v4191 = vpack.c.b16 %v4135, %v4131
  %v4192 = vpack.c.b16 %v4136, %v4132
  %v4193 = vpack.c.b16 %v4141, %v4137
  %v4194 = vpack.c.b16 %v4142, %v4138
  %v4195 = vpack.c.b16 %v4143, %v4139
  %v4196 = vpack.c.b16 %v4144, %v4140
  %v4197 = vpack.c.b16 %v4149, %v4145
  %v4198 = vpack.c.b16 %v4150, %v4146
  %v4199 = vpack.c.b16 %v4151, %v4147
  %v4200 = vpack.c.b16 %v4152, %v4148
  %v4201 = vpack.c.b16 %v4157, %v4153
  %v4202 = vpack.c.b16 %v4158, %v4154
  %v4203 = vpack.c.b16 %v4159, %v4155
  %v4204 = vpack.c.b16 %v4160, %v4156
  %v4205 = vpack.c.b16 %v4165, %v4161
  %v4206 = vpack.c.b16 %v4166, %v4162
  %v4207 = vpack.c.b16 %v4167, %v4163
  %v4208 = vpack.c.b16 %v4168, %v4164
  %v4209 = vpack.c.b16 %v4173, %v4169
  %v4210 = vpack.c.b16 %v4174, %v4170
  %v4211 = vpack.c.b16 %v4175, %v4171
  %v4212 = vpack.c.b16 %v4176, %v4172
  %v4213 = vpack.c.b16 %v4181, %v4177
  %v4214 = vpack.c.b16 %v4182, %v4178
  %v4215 = vpack.c.b16 %v4183, %v4179
  %v4216 = vpack.c.b16 %v4184, %v4180
  %4249 = vmatprep.subr.bf16.mxu0 %v4214
  %4250 = vmatpush1.bf16.msra.mxu0 %v4213
  %4251 = vmatprep.subr.bf16.mxu0 %v4210
  %4252 = vmatpush1.bf16.msra.mxu0 %v4209
  %4253 = vmatprep.subr.bf16.mxu0 %v4206
  %4254 = vmatpush1.bf16.msra.mxu0 %v4205
  %4255 = vmatprep.subr.bf16.mxu0 %v4202
  %4256 = vmatpush1.bf16.msra.mxu0 %v4201
  %4257 = vmatprep.subr.bf16.mxu0 %v4198
  %4258 = vmatpush1.bf16.msra.mxu0 %v4197
  %4259 = vmatprep.subr.bf16.mxu0 %v4194
  %4260 = vmatpush1.bf16.msra.mxu0 %v4193
  %4261 = vmatprep.subr.bf16.mxu0 %v4190
  %4262 = vmatpush1.bf16.msra.mxu0 %v4189
  %4263 = vmatprep.subr.bf16.mxu0 %v4186
  %4264 = vmatpush1.bf16.msra.mxu0 %v4185
  %4265 = vmatprep.subr.bf16.mxu0 0
  %4266 = vmatpush2.bf16.msra.mxu0 0
  %4267 = vmatprep.subr.bf16.mxu0 0
  %4268 = vmatpush2.bf16.msra.mxu0 0
  %4269 = vmatprep.subr.bf16.mxu0 0
  %4270 = vmatpush2.bf16.msra.mxu0 0
  %4271 = vmatprep.subr.bf16.mxu0 0
  %4272 = vmatpush2.bf16.msra.mxu0 0
  %4273 = vmatprep.subr.bf16.mxu0 0
  %4274 = vmatpush2.bf16.msra.mxu0 0
  %4275 = vmatprep.subr.bf16.mxu0 0
  %4276 = vmatpush2.bf16.msra.mxu0 0
  %4277 = vmatprep.subr.bf16.mxu0 0
  %4278 = vmatpush2.bf16.msra.mxu0 0
  %4279 = vmatprep.subr.bf16.mxu0 0
  %4280 = vmatpush2.bf16.msra.mxu0 0
  %4281 = vmatprep.mubr.bf16.mxu0 0
  %4282 = vmatmul.mubr.bf16.gmra.mxu0 %v4056
  %v4283 = vpop.f32.mrf.mxu0
  %v4284 = vadd.f32 0.0, %v4283
  %v4285 = vpop.f32.mrf.mxu0
  %v4286 = vadd.f32 0.0, %v4285
  %v4287 = vpop.f32.mrf.mxu0
  %v4288 = vadd.f32 0.0, %v4287
  %v4289 = vpop.f32.mrf.mxu0
  %v4290 = vadd.f32 0.0, %v4289
  %4291 = vdwg.mxu0
  %4292 = vmatprep.subr.bf16.mxu0 %v4216
  %4293 = vmatpush1.bf16.msra.mxu0 %v4215
  %4294 = vmatprep.subr.bf16.mxu0 %v4212
  %4295 = vmatpush1.bf16.msra.mxu0 %v4211
  %4296 = vmatprep.subr.bf16.mxu0 %v4208
  %4297 = vmatpush1.bf16.msra.mxu0 %v4207
  %4298 = vmatprep.subr.bf16.mxu0 %v4204
  %4299 = vmatpush1.bf16.msra.mxu0 %v4203
  %4300 = vmatprep.subr.bf16.mxu0 %v4200
  %4301 = vmatpush1.bf16.msra.mxu0 %v4199
  %4302 = vmatprep.subr.bf16.mxu0 %v4196
  %4303 = vmatpush1.bf16.msra.mxu0 %v4195
  %4304 = vmatprep.subr.bf16.mxu0 %v4192
  %4305 = vmatpush1.bf16.msra.mxu0 %v4191
  %4306 = vmatprep.subr.bf16.mxu0 %v4188
  %4307 = vmatpush1.bf16.msra.mxu0 %v4187
  %4308 = vmatprep.subr.bf16.mxu0 0
  %4309 = vmatpush2.bf16.msra.mxu0 0
  %4310 = vmatprep.subr.bf16.mxu0 0
  %4311 = vmatpush2.bf16.msra.mxu0 0
  %4312 = vmatprep.subr.bf16.mxu0 0
  %4313 = vmatpush2.bf16.msra.mxu0 0
  %4314 = vmatprep.subr.bf16.mxu0 0
  %4315 = vmatpush2.bf16.msra.mxu0 0
  %4316 = vmatprep.subr.bf16.mxu0 0
  %4317 = vmatpush2.bf16.msra.mxu0 0
  %4318 = vmatprep.subr.bf16.mxu0 0
  %4319 = vmatpush2.bf16.msra.mxu0 0
  %4320 = vmatprep.subr.bf16.mxu0 0
  %4321 = vmatpush2.bf16.msra.mxu0 0
  %4322 = vmatprep.subr.bf16.mxu0 0
  %4323 = vmatpush2.bf16.msra.mxu0 0
  %4324 = vmatprep.mubr.bf16.mxu0 0
  %4325 = vmatmul.mubr.bf16.gmra.mxu0 %v4056
  %v4326 = vpop.f32.mrf.mxu0
  %v4327 = vadd.f32 0.0, %v4326
  %v4328 = vpop.f32.mrf.mxu0
  %v4329 = vadd.f32 0.0, %v4328
  %v4330 = vpop.f32.mrf.mxu0
  %v4331 = vadd.f32 0.0, %v4330
  %v4332 = vpop.f32.mrf.mxu0
  %v4333 = vadd.f32 0.0, %v4332
  %4334 = vdwg.mxu0
  %v4335 = vadd.f32 %v4048, %v4284
  %v4336 = vadd.f32 %v4049, %v4286
  %v4337 = vadd.f32 %v4050, %v4327
  %v4338 = vadd.f32 %v4051, %v4329
  %v4339 = vadd.f32 %v4052, %v4288
  %v4340 = vadd.f32 %v4053, %v4290
  %v4341 = vadd.f32 %v4054, %v4331
  %v4342 = vadd.f32 %v4055, %v4333
  %v4343 = vxor.u32 %v4335, 2147483648
  %v4344 = vxor.u32 %v4339, 2147483648
  %v4345 = vmul.f32 %v4343, 1.442695
  %v4346 = vpow.pop %v4345
  %v4347 = vmul.f32 %v4344, 1.442695
  %v4348 = vpow.pop %v4347
  %v4349 = vadd.f32 %v4346, 1.0
  %v4350 = vadd.f32 %v4348, 1.0
  %v4351 = vrcp.pop %v4349
  %v4352 = vmul.f32 1.0, %v4351
  %v4353 = vrcp.pop %v4350
  %v4354 = vmul.f32 1.0, %v4353
  %v4355 = vxor.u32 %v4336, 2147483648
  %v4356 = vxor.u32 %v4340, 2147483648
  %v4357 = vmul.f32 %v4355, 1.442695
  %v4358 = vpow.pop %v4357
  %v4359 = vmul.f32 %v4356, 1.442695
  %v4360 = vpow.pop %v4359
  %v4361 = vadd.f32 %v4358, 1.0
  %v4362 = vadd.f32 %v4360, 1.0
  %v4363 = vrcp.pop %v4361
  %v4364 = vmul.f32 1.0, %v4363
  %v4365 = vrcp.pop %v4362
  %v4366 = vmul.f32 1.0, %v4365
  %v4367 = vtanh.pop %v4337
  %v4368 = vtanh.pop %v4341
  %v4369 = vxor.u32 %v4338, 2147483648
  %v4370 = vxor.u32 %v4342, 2147483648
  %v4371 = vmul.f32 %v4369, 1.442695
  %v4372 = vpow.pop %v4371
  %v4373 = vmul.f32 %v4370, 1.442695
  %v4374 = vpow.pop %v4373
  %v4375 = vadd.f32 %v4372, 1.0
  %v4376 = vadd.f32 %v4374, 1.0
  %v4377 = vrcp.pop %v4375
  %v4378 = vmul.f32 1.0, %v4377
  %v4379 = vrcp.pop %v4376
  %v4380 = vmul.f32 1.0, %v4379
  %v4381 = vmul.f32 %v4364, %v4046
  %v4382 = vmul.f32 %v4366, %v4047
  %v4383 = vmul.f32 %v4352, %v4367
  %v4384 = vmul.f32 %v4354, %v4368
  %v4385 = vadd.f32 %v4381, %v4383
  %v4386 = vadd.f32 %v4382, %v4384
  %v4387 = vtanh.pop %v4385
  %v4388 = vtanh.pop %v4386
  %v4389 = vmul.f32 %v4378, %v4387
  %v4390 = vmul.f32 %v4380, %v4388
  %v4391 = vld [vmem:[%s984] sm:$0xff]
  %v4392 = vld [vmem:[%s984 + $0x8] sm:$0xff]
  %v4393 = vld [vmem:[%s984 + $0x10] sm:$0xff]
  %v4394 = vld [vmem:[%s984 + $0x18] sm:$0xff]
  %v4395 = vld [vmem:[%s984 + $0x20] sm:$0xff]
  %v4396 = vld [vmem:[%s984 + $0x28] sm:$0xff]
  %v4397 = vld [vmem:[%s984 + $0x30] sm:$0xff]
  %v4398 = vld [vmem:[%s984 + $0x38] sm:$0xff]
  %v4399 = vpack.c.bf16 %v4390, %v4389
  %4400 = vmatprep.subr.bf16.mxu0 %v4214
  %4401 = vmatpush1.bf16.msra.mxu0 %v4213
  %4402 = vmatprep.subr.bf16.mxu0 %v4210
  %4403 = vmatpush1.bf16.msra.mxu0 %v4209
  %4404 = vmatprep.subr.bf16.mxu0 %v4206
  %4405 = vmatpush1.bf16.msra.mxu0 %v4205
  %4406 = vmatprep.subr.bf16.mxu0 %v4202
  %4407 = vmatpush1.bf16.msra.mxu0 %v4201
  %4408 = vmatprep.subr.bf16.mxu0 %v4198
  %4409 = vmatpush1.bf16.msra.mxu0 %v4197
  %4410 = vmatprep.subr.bf16.mxu0 %v4194
  %4411 = vmatpush1.bf16.msra.mxu0 %v4193
  %4412 = vmatprep.subr.bf16.mxu0 %v4190
  %4413 = vmatpush1.bf16.msra.mxu0 %v4189
  %4414 = vmatprep.subr.bf16.mxu0 %v4186
  %4415 = vmatpush1.bf16.msra.mxu0 %v4185
  %4416 = vmatprep.subr.bf16.mxu0 0
  %4417 = vmatpush2.bf16.msra.mxu0 0
  %4418 = vmatprep.subr.bf16.mxu0 0
  %4419 = vmatpush2.bf16.msra.mxu0 0
  %4420 = vmatprep.subr.bf16.mxu0 0
  %4421 = vmatpush2.bf16.msra.mxu0 0
  %4422 = vmatprep.subr.bf16.mxu0 0
  %4423 = vmatpush2.bf16.msra.mxu0 0
  %4424 = vmatprep.subr.bf16.mxu0 0
  %4425 = vmatpush2.bf16.msra.mxu0 0
  %4426 = vmatprep.subr.bf16.mxu0 0
  %4427 = vmatpush2.bf16.msra.mxu0 0
  %4428 = vmatprep.subr.bf16.mxu0 0
  %4429 = vmatpush2.bf16.msra.mxu0 0
  %4430 = vmatprep.subr.bf16.mxu0 0
  %4431 = vmatpush2.bf16.msra.mxu0 0
  %4432 = vmatprep.mubr.bf16.mxu0 0
  %4433 = vmatmul.mubr.bf16.gmra.mxu0 %v4399
  %v4434 = vpop.f32.mrf.mxu0
  %v4435 = vadd.f32 0.0, %v4434
  %v4436 = vpop.f32.mrf.mxu0
  %v4437 = vadd.f32 0.0, %v4436
  %v4438 = vpop.f32.mrf.mxu0
  %v4439 = vadd.f32 0.0, %v4438
  %v4440 = vpop.f32.mrf.mxu0
  %v4441 = vadd.f32 0.0, %v4440
  %4442 = vdwg.mxu0
  %4443 = vmatprep.subr.bf16.mxu0 %v4216
  %4444 = vmatpush1.bf16.msra.mxu0 %v4215
  %4445 = vmatprep.subr.bf16.mxu0 %v4212
  %4446 = vmatpush1.bf16.msra.mxu0 %v4211
  %4447 = vmatprep.subr.bf16.mxu0 %v4208
  %4448 = vmatpush1.bf16.msra.mxu0 %v4207
  %4449 = vmatprep.subr.bf16.mxu0 %v4204
  %4450 = vmatpush1.bf16.msra.mxu0 %v4203
  %4451 = vmatprep.subr.bf16.mxu0 %v4200
  %4452 = vmatpush1.bf16.msra.mxu0 %v4199
  %4453 = vmatprep.subr.bf16.mxu0 %v4196
  %4454 = vmatpush1.bf16.msra.mxu0 %v4195
  %4455 = vmatprep.subr.bf16.mxu0 %v4192
  %4456 = vmatpush1.bf16.msra.mxu0 %v4191
  %4457 = vmatprep.subr.bf16.mxu0 %v4188
  %4458 = vmatpush1.bf16.msra.mxu0 %v4187
  %4459 = vmatprep.subr.bf16.mxu0 0
  %4460 = vmatpush2.bf16.msra.mxu0 0
  %4461 = vmatprep.subr.bf16.mxu0 0
  %4462 = vmatpush2.bf16.msra.mxu0 0
  %4463 = vmatprep.subr.bf16.mxu0 0
  %4464 = vmatpush2.bf16.msra.mxu0 0
  %4465 = vmatprep.subr.bf16.mxu0 0
  %4466 = vmatpush2.bf16.msra.mxu0 0
  %4467 = vmatprep.subr.bf16.mxu0 0
  %4468 = vmatpush2.bf16.msra.mxu0 0
  %4469 = vmatprep.subr.bf16.mxu0 0
  %4470 = vmatpush2.bf16.msra.mxu0 0
  %4471 = vmatprep.subr.bf16.mxu0 0
  %4472 = vmatpush2.bf16.msra.mxu0 0
  %4473 = vmatprep.subr.bf16.mxu0 0
  %4474 = vmatpush2.bf16.msra.mxu0 0
  %4475 = vmatprep.mubr.bf16.mxu0 0
  %4476 = vmatmul.mubr.bf16.gmra.mxu0 %v4399
  %v4477 = vpop.f32.mrf.mxu0
  %v4478 = vadd.f32 0.0, %v4477
  %v4479 = vpop.f32.mrf.mxu0
  %v4480 = vadd.f32 0.0, %v4479
  %v4481 = vpop.f32.mrf.mxu0
  %v4482 = vadd.f32 0.0, %v4481
  %v4483 = vpop.f32.mrf.mxu0
  %v4484 = vadd.f32 0.0, %v4483
  %4485 = vdwg.mxu0
  %v4486 = vadd.f32 %v4391, %v4435
  %v4487 = vadd.f32 %v4392, %v4437
  %v4488 = vadd.f32 %v4393, %v4478
  %v4489 = vadd.f32 %v4394, %v4480
  %v4490 = vadd.f32 %v4395, %v4439
  %v4491 = vadd.f32 %v4396, %v4441
  %v4492 = vadd.f32 %v4397, %v4482
  %v4493 = vadd.f32 %v4398, %v4484
  %v4494 = vxor.u32 %v4486, 2147483648
  %v4495 = vxor.u32 %v4490, 2147483648
  %v4496 = vmul.f32 %v4494, 1.442695
  %v4497 = vpow.pop %v4496
  %v4498 = vmul.f32 %v4495, 1.442695
  %v4499 = vpow.pop %v4498
  %v4500 = vadd.f32 %v4497, 1.0
  %v4501 = vadd.f32 %v4499, 1.0
  %v4502 = vrcp.pop %v4500
  %v4503 = vmul.f32 1.0, %v4502
  %v4504 = vrcp.pop %v4501
  %v4505 = vmul.f32 1.0, %v4504
  %v4506 = vxor.u32 %v4487, 2147483648
  %v4507 = vxor.u32 %v4491, 2147483648
  %v4508 = vmul.f32 %v4506, 1.442695
  %v4509 = vpow.pop %v4508
  %v4510 = vmul.f32 %v4507, 1.442695
  %v4511 = vpow.pop %v4510
  %v4512 = vadd.f32 %v4509, 1.0
  %v4513 = vadd.f32 %v4511, 1.0
  %v4514 = vrcp.pop %v4512
  %v4515 = vmul.f32 1.0, %v4514
  %v4516 = vrcp.pop %v4513
  %v4517 = vmul.f32 1.0, %v4516
  %v4518 = vtanh.pop %v4488
  %v4519 = vtanh.pop %v4492
  %v4520 = vxor.u32 %v4489, 2147483648
  %v4521 = vxor.u32 %v4493, 2147483648
  %v4522 = vmul.f32 %v4520, 1.442695
  %v4523 = vpow.pop %v4522
  %v4524 = vmul.f32 %v4521, 1.442695
  %v4525 = vpow.pop %v4524
  %v4526 = vadd.f32 %v4523, 1.0
  %v4527 = vadd.f32 %v4525, 1.0
  %v4528 = vrcp.pop %v4526
  %v4529 = vmul.f32 1.0, %v4528
  %v4530 = vrcp.pop %v4527
  %v4531 = vmul.f32 1.0, %v4530
  %v4532 = vmul.f32 %v4515, %v4385
  %v4533 = vmul.f32 %v4517, %v4386
  %v4534 = vmul.f32 %v4503, %v4518
  %v4535 = vmul.f32 %v4505, %v4519
  %v4536 = vadd.f32 %v4532, %v4534
  %v4537 = vadd.f32 %v4533, %v4535
  %v4538 = vtanh.pop %v4536
  %v4539 = vtanh.pop %v4537
  %v4540 = vmul.f32 %v4529, %v4538
  %v4541 = vmul.f32 %v4531, %v4539
  %v4542 = vld [vmem:[%s1340] sm:$0xff]
  %v4543 = vld [vmem:[%s1340 + $0x8] sm:$0xff]
  %v4544 = vld [vmem:[%s1340 + $0x10] sm:$0xff]
  %v4545 = vld [vmem:[%s1340 + $0x18] sm:$0xff]
  %v4546 = vld [vmem:[%s1340 + $0x20] sm:$0xff]
  %v4547 = vld [vmem:[%s1340 + $0x28] sm:$0xff]
  %v4548 = vld [vmem:[%s1340 + $0x30] sm:$0xff]
  %v4549 = vld [vmem:[%s1340 + $0x38] sm:$0xff]
  %v4550 = vpack.c.bf16 %v4541, %v4540
  %4551 = vmatprep.subr.bf16.mxu0 %v4214
  %4552 = vmatpush1.bf16.msra.mxu0 %v4213
  %4553 = vmatprep.subr.bf16.mxu0 %v4210
  %4554 = vmatpush1.bf16.msra.mxu0 %v4209
  %4555 = vmatprep.subr.bf16.mxu0 %v4206
  %4556 = vmatpush1.bf16.msra.mxu0 %v4205
  %4557 = vmatprep.subr.bf16.mxu0 %v4202
  %4558 = vmatpush1.bf16.msra.mxu0 %v4201
  %4559 = vmatprep.subr.bf16.mxu0 %v4198
  %4560 = vmatpush1.bf16.msra.mxu0 %v4197
  %4561 = vmatprep.subr.bf16.mxu0 %v4194
  %4562 = vmatpush1.bf16.msra.mxu0 %v4193
  %4563 = vmatprep.subr.bf16.mxu0 %v4190
  %4564 = vmatpush1.bf16.msra.mxu0 %v4189
  %4565 = vmatprep.subr.bf16.mxu0 %v4186
  %4566 = vmatpush1.bf16.msra.mxu0 %v4185
  %4567 = vmatprep.subr.bf16.mxu0 0
  %4568 = vmatpush2.bf16.msra.mxu0 0
  %4569 = vmatprep.subr.bf16.mxu0 0
  %4570 = vmatpush2.bf16.msra.mxu0 0
  %4571 = vmatprep.subr.bf16.mxu0 0
  %4572 = vmatpush2.bf16.msra.mxu0 0
  %4573 = vmatprep.subr.bf16.mxu0 0
  %4574 = vmatpush2.bf16.msra.mxu0 0
  %4575 = vmatprep.subr.bf16.mxu0 0
  %4576 = vmatpush2.bf16.msra.mxu0 0
  %4577 = vmatprep.subr.bf16.mxu0 0
  %4578 = vmatpush2.bf16.msra.mxu0 0
  %4579 = vmatprep.subr.bf16.mxu0 0
  %4580 = vmatpush2.bf16.msra.mxu0 0
  %4581 = vmatprep.subr.bf16.mxu0 0
  %4582 = vmatpush2.bf16.msra.mxu0 0
  %4583 = vmatprep.mubr.bf16.mxu0 0
  %4584 = vmatmul.mubr.bf16.gmra.mxu0 %v4550
  %v4585 = vpop.f32.mrf.mxu0
  %v4586 = vadd.f32 0.0, %v4585
  %v4587 = vpop.f32.mrf.mxu0
  %v4588 = vadd.f32 0.0, %v4587
  %v4589 = vpop.f32.mrf.mxu0
  %v4590 = vadd.f32 0.0, %v4589
  %v4591 = vpop.f32.mrf.mxu0
  %v4592 = vadd.f32 0.0, %v4591
  %4593 = vdwg.mxu0
  %4594 = vmatprep.subr.bf16.mxu0 %v4216
  %4595 = vmatpush1.bf16.msra.mxu0 %v4215
  %4596 = vmatprep.subr.bf16.mxu0 %v4212
  %4597 = vmatpush1.bf16.msra.mxu0 %v4211
  %4598 = vmatprep.subr.bf16.mxu0 %v4208
  %4599 = vmatpush1.bf16.msra.mxu0 %v4207
  %4600 = vmatprep.subr.bf16.mxu0 %v4204
  %4601 = vmatpush1.bf16.msra.mxu0 %v4203
  %4602 = vmatprep.subr.bf16.mxu0 %v4200
  %4603 = vmatpush1.bf16.msra.mxu0 %v4199
  %4604 = vmatprep.subr.bf16.mxu0 %v4196
  %4605 = vmatpush1.bf16.msra.mxu0 %v4195
  %4606 = vmatprep.subr.bf16.mxu0 %v4192
  %4607 = vmatpush1.bf16.msra.mxu0 %v4191
  %4608 = vmatprep.subr.bf16.mxu0 %v4188
  %4609 = vmatpush1.bf16.msra.mxu0 %v4187
  %4610 = vmatprep.subr.bf16.mxu0 0
  %4611 = vmatpush2.bf16.msra.mxu0 0
  %4612 = vmatprep.subr.bf16.mxu0 0
  %4613 = vmatpush2.bf16.msra.mxu0 0
  %4614 = vmatprep.subr.bf16.mxu0 0
  %4615 = vmatpush2.bf16.msra.mxu0 0
  %4616 = vmatprep.subr.bf16.mxu0 0
  %4617 = vmatpush2.bf16.msra.mxu0 0
  %4618 = vmatprep.subr.bf16.mxu0 0
  %4619 = vmatpush2.bf16.msra.mxu0 0
  %4620 = vmatprep.subr.bf16.mxu0 0
  %4621 = vmatpush2.bf16.msra.mxu0 0
  %4622 = vmatprep.subr.bf16.mxu0 0
  %4623 = vmatpush2.bf16.msra.mxu0 0
  %4624 = vmatprep.subr.bf16.mxu0 0
  %4625 = vmatpush2.bf16.msra.mxu0 0
  %4626 = vmatprep.mubr.bf16.mxu0 0
  %4627 = vmatmul.mubr.bf16.gmra.mxu0 %v4550
  %v4628 = vpop.f32.mrf.mxu0
  %v4629 = vadd.f32 0.0, %v4628
  %v4630 = vpop.f32.mrf.mxu0
  %v4631 = vadd.f32 0.0, %v4630
  %v4632 = vpop.f32.mrf.mxu0
  %v4633 = vadd.f32 0.0, %v4632
  %v4634 = vpop.f32.mrf.mxu0
  %v4635 = vadd.f32 0.0, %v4634
  %4636 = vdwg.mxu0
  %v4637 = vadd.f32 %v4542, %v4586
  %v4638 = vadd.f32 %v4543, %v4588
  %v4639 = vadd.f32 %v4544, %v4629
  %v4640 = vadd.f32 %v4545, %v4631
  %v4641 = vadd.f32 %v4546, %v4590
  %v4642 = vadd.f32 %v4547, %v4592
  %v4643 = vadd.f32 %v4548, %v4633
  %v4644 = vadd.f32 %v4549, %v4635
  %v4645 = vxor.u32 %v4637, 2147483648
  %v4646 = vxor.u32 %v4641, 2147483648
  %v4647 = vmul.f32 %v4645, 1.442695
  %v4648 = vpow.pop %v4647
  %v4649 = vmul.f32 %v4646, 1.442695
  %v4650 = vpow.pop %v4649
  %v4651 = vadd.f32 %v4648, 1.0
  %v4652 = vadd.f32 %v4650, 1.0
  %v4653 = vrcp.pop %v4651
  %v4654 = vmul.f32 1.0, %v4653
  %v4655 = vrcp.pop %v4652
  %v4656 = vmul.f32 1.0, %v4655
  %v4657 = vxor.u32 %v4638, 2147483648
  %v4658 = vxor.u32 %v4642, 2147483648
  %v4659 = vmul.f32 %v4657, 1.442695
  %v4660 = vpow.pop %v4659
  %v4661 = vmul.f32 %v4658, 1.442695
  %v4662 = vpow.pop %v4661
  %v4663 = vadd.f32 %v4660, 1.0
  %v4664 = vadd.f32 %v4662, 1.0
  %v4665 = vrcp.pop %v4663
  %v4666 = vmul.f32 1.0, %v4665
  %v4667 = vrcp.pop %v4664
  %v4668 = vmul.f32 1.0, %v4667
  %v4669 = vtanh.pop %v4639
  %v4670 = vtanh.pop %v4643
  %v4671 = vxor.u32 %v4640, 2147483648
  %v4672 = vxor.u32 %v4644, 2147483648
  %v4673 = vmul.f32 %v4671, 1.442695
  %v4674 = vpow.pop %v4673
  %v4675 = vmul.f32 %v4672, 1.442695
  %v4676 = vpow.pop %v4675
  %v4677 = vadd.f32 %v4674, 1.0
  %v4678 = vadd.f32 %v4676, 1.0
  %v4679 = vrcp.pop %v4677
  %v4680 = vmul.f32 1.0, %v4679
  %v4681 = vrcp.pop %v4678
  %v4682 = vmul.f32 1.0, %v4681
  %v4683 = vmul.f32 %v4666, %v4536
  %v4684 = vmul.f32 %v4668, %v4537
  %v4685 = vmul.f32 %v4654, %v4669
  %v4686 = vmul.f32 %v4656, %v4670
  %v4687 = vadd.f32 %v4683, %v4685
  %v4688 = vadd.f32 %v4684, %v4686
  %v4689 = vtanh.pop %v4687
  %v4690 = vtanh.pop %v4688
  %v4691 = vmul.f32 %v4680, %v4689
  %v4692 = vmul.f32 %v4682, %v4690
  %v4693 = vld [vmem:[%s1696] sm:$0xff]
  %v4694 = vld [vmem:[%s1696 + $0x8] sm:$0xff]
  %v4695 = vld [vmem:[%s1696 + $0x10] sm:$0xff]
  %v4696 = vld [vmem:[%s1696 + $0x18] sm:$0xff]
  %v4697 = vld [vmem:[%s1696 + $0x20] sm:$0xff]
  %v4698 = vld [vmem:[%s1696 + $0x28] sm:$0xff]
  %v4699 = vld [vmem:[%s1696 + $0x30] sm:$0xff]
  %v4700 = vld [vmem:[%s1696 + $0x38] sm:$0xff]
  %v4701 = vpack.c.bf16 %v4692, %v4691
  %4702 = vmatprep.subr.bf16.mxu0 %v4214
  %4703 = vmatpush1.bf16.msra.mxu0 %v4213
  %4704 = vmatprep.subr.bf16.mxu0 %v4210
  %4705 = vmatpush1.bf16.msra.mxu0 %v4209
  %4706 = vmatprep.subr.bf16.mxu0 %v4206
  %4707 = vmatpush1.bf16.msra.mxu0 %v4205
  %4708 = vmatprep.subr.bf16.mxu0 %v4202
  %4709 = vmatpush1.bf16.msra.mxu0 %v4201
  %4710 = vmatprep.subr.bf16.mxu0 %v4198
  %4711 = vmatpush1.bf16.msra.mxu0 %v4197
  %4712 = vmatprep.subr.bf16.mxu0 %v4194
  %4713 = vmatpush1.bf16.msra.mxu0 %v4193
  %4714 = vmatprep.subr.bf16.mxu0 %v4190
  %4715 = vmatpush1.bf16.msra.mxu0 %v4189
  %4716 = vmatprep.subr.bf16.mxu0 %v4186
  %4717 = vmatpush1.bf16.msra.mxu0 %v4185
  %4718 = vmatprep.subr.bf16.mxu0 0
  %4719 = vmatpush2.bf16.msra.mxu0 0
  %4720 = vmatprep.subr.bf16.mxu0 0
  %4721 = vmatpush2.bf16.msra.mxu0 0
  %4722 = vmatprep.subr.bf16.mxu0 0
  %4723 = vmatpush2.bf16.msra.mxu0 0
  %4724 = vmatprep.subr.bf16.mxu0 0
  %4725 = vmatpush2.bf16.msra.mxu0 0
  %4726 = vmatprep.subr.bf16.mxu0 0
  %4727 = vmatpush2.bf16.msra.mxu0 0
  %4728 = vmatprep.subr.bf16.mxu0 0
  %4729 = vmatpush2.bf16.msra.mxu0 0
  %4730 = vmatprep.subr.bf16.mxu0 0
  %4731 = vmatpush2.bf16.msra.mxu0 0
  %4732 = vmatprep.subr.bf16.mxu0 0
  %4733 = vmatpush2.bf16.msra.mxu0 0
  %4734 = vmatprep.mubr.bf16.mxu0 0
  %4735 = vmatmul.mubr.bf16.gmra.mxu0 %v4701
  %v4736 = vpop.f32.mrf.mxu0
  %v4737 = vadd.f32 0.0, %v4736
  %v4738 = vpop.f32.mrf.mxu0
  %v4739 = vadd.f32 0.0, %v4738
  %v4740 = vpop.f32.mrf.mxu0
  %v4741 = vadd.f32 0.0, %v4740
  %v4742 = vpop.f32.mrf.mxu0
  %v4743 = vadd.f32 0.0, %v4742
  %4744 = vdwg.mxu0
  %4745 = vmatprep.subr.bf16.mxu0 %v4216
  %4746 = vmatpush1.bf16.msra.mxu0 %v4215
  %4747 = vmatprep.subr.bf16.mxu0 %v4212
  %4748 = vmatpush1.bf16.msra.mxu0 %v4211
  %4749 = vmatprep.subr.bf16.mxu0 %v4208
  %4750 = vmatpush1.bf16.msra.mxu0 %v4207
  %4751 = vmatprep.subr.bf16.mxu0 %v4204
  %4752 = vmatpush1.bf16.msra.mxu0 %v4203
  %4753 = vmatprep.subr.bf16.mxu0 %v4200
  %4754 = vmatpush1.bf16.msra.mxu0 %v4199
  %4755 = vmatprep.subr.bf16.mxu0 %v4196
  %4756 = vmatpush1.bf16.msra.mxu0 %v4195
  %4757 = vmatprep.subr.bf16.mxu0 %v4192
  %4758 = vmatpush1.bf16.msra.mxu0 %v4191
  %4759 = vmatprep.subr.bf16.mxu0 %v4188
  %4760 = vmatpush1.bf16.msra.mxu0 %v4187
  %4761 = vmatprep.subr.bf16.mxu0 0
  %4762 = vmatpush2.bf16.msra.mxu0 0
  %4763 = vmatprep.subr.bf16.mxu0 0
  %4764 = vmatpush2.bf16.msra.mxu0 0
  %4765 = vmatprep.subr.bf16.mxu0 0
  %4766 = vmatpush2.bf16.msra.mxu0 0
  %4767 = vmatprep.subr.bf16.mxu0 0
  %4768 = vmatpush2.bf16.msra.mxu0 0
  %4769 = vmatprep.subr.bf16.mxu0 0
  %4770 = vmatpush2.bf16.msra.mxu0 0
  %4771 = vmatprep.subr.bf16.mxu0 0
  %4772 = vmatpush2.bf16.msra.mxu0 0
  %4773 = vmatprep.subr.bf16.mxu0 0
  %4774 = vmatpush2.bf16.msra.mxu0 0
  %4775 = vmatprep.subr.bf16.mxu0 0
  %4776 = vmatpush2.bf16.msra.mxu0 0
  %4777 = vmatprep.mubr.bf16.mxu0 0
  %4778 = vmatmul.mubr.bf16.gmra.mxu0 %v4701
  %v4779 = vpop.f32.mrf.mxu0
  %v4780 = vadd.f32 0.0, %v4779
  %v4781 = vpop.f32.mrf.mxu0
  %v4782 = vadd.f32 0.0, %v4781
  %v4783 = vpop.f32.mrf.mxu0
  %v4784 = vadd.f32 0.0, %v4783
  %v4785 = vpop.f32.mrf.mxu0
  %v4786 = vadd.f32 0.0, %v4785
  %4787 = vdwg.mxu0
  %v4788 = vadd.f32 %v4693, %v4737
  %v4789 = vadd.f32 %v4694, %v4739
  %v4790 = vadd.f32 %v4695, %v4780
  %v4791 = vadd.f32 %v4696, %v4782
  %v4792 = vadd.f32 %v4697, %v4741
  %v4793 = vadd.f32 %v4698, %v4743
  %v4794 = vadd.f32 %v4699, %v4784
  %v4795 = vadd.f32 %v4700, %v4786
  %v4796 = vxor.u32 %v4788, 2147483648
  %v4797 = vxor.u32 %v4792, 2147483648
  %v4798 = vmul.f32 %v4796, 1.442695
  %v4799 = vpow.pop %v4798
  %v4800 = vmul.f32 %v4797, 1.442695
  %v4801 = vpow.pop %v4800
  %v4802 = vadd.f32 %v4799, 1.0
  %v4803 = vadd.f32 %v4801, 1.0
  %v4804 = vrcp.pop %v4802
  %v4805 = vmul.f32 1.0, %v4804
  %v4806 = vrcp.pop %v4803
  %v4807 = vmul.f32 1.0, %v4806
  %v4808 = vxor.u32 %v4789, 2147483648
  %v4809 = vxor.u32 %v4793, 2147483648
  %v4810 = vmul.f32 %v4808, 1.442695
  %v4811 = vpow.pop %v4810
  %v4812 = vmul.f32 %v4809, 1.442695
  %v4813 = vpow.pop %v4812
  %v4814 = vadd.f32 %v4811, 1.0
  %v4815 = vadd.f32 %v4813, 1.0
  %v4816 = vrcp.pop %v4814
  %v4817 = vmul.f32 1.0, %v4816
  %v4818 = vrcp.pop %v4815
  %v4819 = vmul.f32 1.0, %v4818
  %v4820 = vtanh.pop %v4790
  %v4821 = vtanh.pop %v4794
  %v4822 = vxor.u32 %v4791, 2147483648
  %v4823 = vxor.u32 %v4795, 2147483648
  %v4824 = vmul.f32 %v4822, 1.442695
  %v4825 = vpow.pop %v4824
  %v4826 = vmul.f32 %v4823, 1.442695
  %v4827 = vpow.pop %v4826
  %v4828 = vadd.f32 %v4825, 1.0
  %v4829 = vadd.f32 %v4827, 1.0
  %v4830 = vrcp.pop %v4828
  %v4831 = vmul.f32 1.0, %v4830
  %v4832 = vrcp.pop %v4829
  %v4833 = vmul.f32 1.0, %v4832
  %v4834 = vmul.f32 %v4817, %v4687
  %v4835 = vmul.f32 %v4819, %v4688
  %v4836 = vmul.f32 %v4805, %v4820
  %v4837 = vmul.f32 %v4807, %v4821
  %v4838 = vadd.f32 %v4834, %v4836
  %v4839 = vadd.f32 %v4835, %v4837
  %v4840 = vtanh.pop %v4838
  %v4841 = vtanh.pop %v4839
  %v4842 = vmul.f32 %v4831, %v4840
  %v4843 = vmul.f32 %v4833, %v4841
  %v4844 = vld [vmem:[%s2052] sm:$0xff]
  %v4845 = vld [vmem:[%s2052 + $0x8] sm:$0xff]
  %v4846 = vld [vmem:[%s2052 + $0x10] sm:$0xff]
  %v4847 = vld [vmem:[%s2052 + $0x18] sm:$0xff]
  %v4848 = vld [vmem:[%s2052 + $0x20] sm:$0xff]
  %v4849 = vld [vmem:[%s2052 + $0x28] sm:$0xff]
  %v4850 = vld [vmem:[%s2052 + $0x30] sm:$0xff]
  %v4851 = vld [vmem:[%s2052 + $0x38] sm:$0xff]
  %v4852 = vpack.c.bf16 %v4843, %v4842
  %4853 = vmatprep.subr.bf16.mxu0 %v4214
  %4854 = vmatpush1.bf16.msra.mxu0 %v4213
  %4855 = vmatprep.subr.bf16.mxu0 %v4210
  %4856 = vmatpush1.bf16.msra.mxu0 %v4209
  %4857 = vmatprep.subr.bf16.mxu0 %v4206
  %4858 = vmatpush1.bf16.msra.mxu0 %v4205
  %4859 = vmatprep.subr.bf16.mxu0 %v4202
  %4860 = vmatpush1.bf16.msra.mxu0 %v4201
  %4861 = vmatprep.subr.bf16.mxu0 %v4198
  %4862 = vmatpush1.bf16.msra.mxu0 %v4197
  %4863 = vmatprep.subr.bf16.mxu0 %v4194
  %4864 = vmatpush1.bf16.msra.mxu0 %v4193
  %4865 = vmatprep.subr.bf16.mxu0 %v4190
  %4866 = vmatpush1.bf16.msra.mxu0 %v4189
  %4867 = vmatprep.subr.bf16.mxu0 %v4186
  %4868 = vmatpush1.bf16.msra.mxu0 %v4185
  %4869 = vmatprep.subr.bf16.mxu0 0
  %4870 = vmatpush2.bf16.msra.mxu0 0
  %4871 = vmatprep.subr.bf16.mxu0 0
  %4872 = vmatpush2.bf16.msra.mxu0 0
  %4873 = vmatprep.subr.bf16.mxu0 0
  %4874 = vmatpush2.bf16.msra.mxu0 0
  %4875 = vmatprep.subr.bf16.mxu0 0
  %4876 = vmatpush2.bf16.msra.mxu0 0
  %4877 = vmatprep.subr.bf16.mxu0 0
  %4878 = vmatpush2.bf16.msra.mxu0 0
  %4879 = vmatprep.subr.bf16.mxu0 0
  %4880 = vmatpush2.bf16.msra.mxu0 0
  %4881 = vmatprep.subr.bf16.mxu0 0
  %4882 = vmatpush2.bf16.msra.mxu0 0
  %4883 = vmatprep.subr.bf16.mxu0 0
  %4884 = vmatpush2.bf16.msra.mxu0 0
  %4885 = vmatprep.mubr.bf16.mxu0 0
  %4886 = vmatmul.mubr.bf16.gmra.mxu0 %v4852
  %v4887 = vpop.f32.mrf.mxu0
  %v4888 = vadd.f32 0.0, %v4887
  %v4889 = vpop.f32.mrf.mxu0
  %v4890 = vadd.f32 0.0, %v4889
  %v4891 = vpop.f32.mrf.mxu0
  %v4892 = vadd.f32 0.0, %v4891
  %v4893 = vpop.f32.mrf.mxu0
  %v4894 = vadd.f32 0.0, %v4893
  %4895 = vdwg.mxu0
  %4896 = vmatprep.subr.bf16.mxu0 %v4216
  %4897 = vmatpush1.bf16.msra.mxu0 %v4215
  %4898 = vmatprep.subr.bf16.mxu0 %v4212
  %4899 = vmatpush1.bf16.msra.mxu0 %v4211
  %4900 = vmatprep.subr.bf16.mxu0 %v4208
  %4901 = vmatpush1.bf16.msra.mxu0 %v4207
  %4902 = vmatprep.subr.bf16.mxu0 %v4204
  %4903 = vmatpush1.bf16.msra.mxu0 %v4203
  %4904 = vmatprep.subr.bf16.mxu0 %v4200
  %4905 = vmatpush1.bf16.msra.mxu0 %v4199
  %4906 = vmatprep.subr.bf16.mxu0 %v4196
  %4907 = vmatpush1.bf16.msra.mxu0 %v4195
  %4908 = vmatprep.subr.bf16.mxu0 %v4192
  %4909 = vmatpush1.bf16.msra.mxu0 %v4191
  %4910 = vmatprep.subr.bf16.mxu0 %v4188
  %4911 = vmatpush1.bf16.msra.mxu0 %v4187
  %4912 = vmatprep.subr.bf16.mxu0 0
  %4913 = vmatpush2.bf16.msra.mxu0 0
  %4914 = vmatprep.subr.bf16.mxu0 0
  %4915 = vmatpush2.bf16.msra.mxu0 0
  %4916 = vmatprep.subr.bf16.mxu0 0
  %4917 = vmatpush2.bf16.msra.mxu0 0
  %4918 = vmatprep.subr.bf16.mxu0 0
  %4919 = vmatpush2.bf16.msra.mxu0 0
  %4920 = vmatprep.subr.bf16.mxu0 0
  %4921 = vmatpush2.bf16.msra.mxu0 0
  %4922 = vmatprep.subr.bf16.mxu0 0
  %4923 = vmatpush2.bf16.msra.mxu0 0
  %4924 = vmatprep.subr.bf16.mxu0 0
  %4925 = vmatpush2.bf16.msra.mxu0 0
  %4926 = vmatprep.subr.bf16.mxu0 0
  %4927 = vmatpush2.bf16.msra.mxu0 0
  %4928 = vmatprep.mubr.bf16.mxu0 0
  %4929 = vmatmul.mubr.bf16.gmra.mxu0 %v4852
  %v4930 = vpop.f32.mrf.mxu0
  %v4931 = vadd.f32 0.0, %v4930
  %v4932 = vpop.f32.mrf.mxu0
  %v4933 = vadd.f32 0.0, %v4932
  %v4934 = vpop.f32.mrf.mxu0
  %v4935 = vadd.f32 0.0, %v4934
  %v4936 = vpop.f32.mrf.mxu0
  %v4937 = vadd.f32 0.0, %v4936
  %4938 = vdwg.mxu0
  %v4939 = vadd.f32 %v4844, %v4888
  %v4940 = vadd.f32 %v4845, %v4890
  %v4941 = vadd.f32 %v4846, %v4931
  %v4942 = vadd.f32 %v4847, %v4933
  %v4943 = vadd.f32 %v4848, %v4892
  %v4944 = vadd.f32 %v4849, %v4894
  %v4945 = vadd.f32 %v4850, %v4935
  %v4946 = vadd.f32 %v4851, %v4937
  %v4947 = vxor.u32 %v4939, 2147483648
  %v4948 = vxor.u32 %v4943, 2147483648
  %v4949 = vmul.f32 %v4947, 1.442695
  %v4950 = vpow.pop %v4949
  %v4951 = vmul.f32 %v4948, 1.442695
  %v4952 = vpow.pop %v4951
  %v4953 = vadd.f32 %v4950, 1.0
  %v4954 = vadd.f32 %v4952, 1.0
  %v4955 = vrcp.pop %v4953
  %v4956 = vmul.f32 1.0, %v4955
  %v4957 = vrcp.pop %v4954
  %v4958 = vmul.f32 1.0, %v4957
  %v4959 = vxor.u32 %v4940, 2147483648
  %v4960 = vxor.u32 %v4944, 2147483648
  %v4961 = vmul.f32 %v4959, 1.442695
  %v4962 = vpow.pop %v4961
  %v4963 = vmul.f32 %v4960, 1.442695
  %v4964 = vpow.pop %v4963
  %v4965 = vadd.f32 %v4962, 1.0
  %v4966 = vadd.f32 %v4964, 1.0
  %v4967 = vrcp.pop %v4965
  %v4968 = vmul.f32 1.0, %v4967
  %v4969 = vrcp.pop %v4966
  %v4970 = vmul.f32 1.0, %v4969
  %v4971 = vtanh.pop %v4941
  %v4972 = vtanh.pop %v4945
  %v4973 = vxor.u32 %v4942, 2147483648
  %v4974 = vxor.u32 %v4946, 2147483648
  %v4975 = vmul.f32 %v4973, 1.442695
  %v4976 = vpow.pop %v4975
  %v4977 = vmul.f32 %v4974, 1.442695
  %v4978 = vpow.pop %v4977
  %v4979 = vadd.f32 %v4976, 1.0
  %v4980 = vadd.f32 %v4978, 1.0
  %v4981 = vrcp.pop %v4979
  %v4982 = vmul.f32 1.0, %v4981
  %v4983 = vrcp.pop %v4980
  %v4984 = vmul.f32 1.0, %v4983
  %v4985 = vmul.f32 %v4968, %v4838
  %v4986 = vmul.f32 %v4970, %v4839
  %v4987 = vmul.f32 %v4956, %v4971
  %v4988 = vmul.f32 %v4958, %v4972
  %v4989 = vadd.f32 %v4985, %v4987
  %v4990 = vadd.f32 %v4986, %v4988
  %v4991 = vtanh.pop %v4989
  %v4992 = vtanh.pop %v4990
  %v4993 = vmul.f32 %v4982, %v4991
  %v4994 = vmul.f32 %v4984, %v4992
  %v4995 = vld [vmem:[%s2408] sm:$0xff]
  %v4996 = vld [vmem:[%s2408 + $0x8] sm:$0xff]
  %v4997 = vld [vmem:[%s2408 + $0x10] sm:$0xff]
  %v4998 = vld [vmem:[%s2408 + $0x18] sm:$0xff]
  %v4999 = vld [vmem:[%s2408 + $0x20] sm:$0xff]
  %v5000 = vld [vmem:[%s2408 + $0x28] sm:$0xff]
  %v5001 = vld [vmem:[%s2408 + $0x30] sm:$0xff]
  %v5002 = vld [vmem:[%s2408 + $0x38] sm:$0xff]
  %v5003 = vpack.c.bf16 %v4994, %v4993
  %5004 = vmatprep.subr.bf16.mxu0 %v4214
  %5005 = vmatpush1.bf16.msra.mxu0 %v4213
  %5006 = vmatprep.subr.bf16.mxu0 %v4210
  %5007 = vmatpush1.bf16.msra.mxu0 %v4209
  %5008 = vmatprep.subr.bf16.mxu0 %v4206
  %5009 = vmatpush1.bf16.msra.mxu0 %v4205
  %5010 = vmatprep.subr.bf16.mxu0 %v4202
  %5011 = vmatpush1.bf16.msra.mxu0 %v4201
  %5012 = vmatprep.subr.bf16.mxu0 %v4198
  %5013 = vmatpush1.bf16.msra.mxu0 %v4197
  %5014 = vmatprep.subr.bf16.mxu0 %v4194
  %5015 = vmatpush1.bf16.msra.mxu0 %v4193
  %5016 = vmatprep.subr.bf16.mxu0 %v4190
  %5017 = vmatpush1.bf16.msra.mxu0 %v4189
  %5018 = vmatprep.subr.bf16.mxu0 %v4186
  %5019 = vmatpush1.bf16.msra.mxu0 %v4185
  %5020 = vmatprep.subr.bf16.mxu0 0
  %5021 = vmatpush2.bf16.msra.mxu0 0
  %5022 = vmatprep.subr.bf16.mxu0 0
  %5023 = vmatpush2.bf16.msra.mxu0 0
  %5024 = vmatprep.subr.bf16.mxu0 0
  %5025 = vmatpush2.bf16.msra.mxu0 0
  %5026 = vmatprep.subr.bf16.mxu0 0
  %5027 = vmatpush2.bf16.msra.mxu0 0
  %5028 = vmatprep.subr.bf16.mxu0 0
  %5029 = vmatpush2.bf16.msra.mxu0 0
  %5030 = vmatprep.subr.bf16.mxu0 0
  %5031 = vmatpush2.bf16.msra.mxu0 0
  %5032 = vmatprep.subr.bf16.mxu0 0
  %5033 = vmatpush2.bf16.msra.mxu0 0
  %5034 = vmatprep.subr.bf16.mxu0 0
  %5035 = vmatpush2.bf16.msra.mxu0 0
  %5036 = vmatprep.mubr.bf16.mxu0 0
  %5037 = vmatmul.mubr.bf16.gmra.mxu0 %v5003
  %v5038 = vpop.f32.mrf.mxu0
  %v5039 = vadd.f32 0.0, %v5038
  %v5040 = vpop.f32.mrf.mxu0
  %v5041 = vadd.f32 0.0, %v5040
  %v5042 = vpop.f32.mrf.mxu0
  %v5043 = vadd.f32 0.0, %v5042
  %v5044 = vpop.f32.mrf.mxu0
  %v5045 = vadd.f32 0.0, %v5044
  %5046 = vdwg.mxu0
  %5047 = vmatprep.subr.bf16.mxu0 %v4216
  %5048 = vmatpush1.bf16.msra.mxu0 %v4215
  %5049 = vmatprep.subr.bf16.mxu0 %v4212
  %5050 = vmatpush1.bf16.msra.mxu0 %v4211
  %5051 = vmatprep.subr.bf16.mxu0 %v4208
  %5052 = vmatpush1.bf16.msra.mxu0 %v4207
  %5053 = vmatprep.subr.bf16.mxu0 %v4204
  %5054 = vmatpush1.bf16.msra.mxu0 %v4203
  %5055 = vmatprep.subr.bf16.mxu0 %v4200
  %5056 = vmatpush1.bf16.msra.mxu0 %v4199
  %5057 = vmatprep.subr.bf16.mxu0 %v4196
  %5058 = vmatpush1.bf16.msra.mxu0 %v4195
  %5059 = vmatprep.subr.bf16.mxu0 %v4192
  %5060 = vmatpush1.bf16.msra.mxu0 %v4191
  %5061 = vmatprep.subr.bf16.mxu0 %v4188
  %5062 = vmatpush1.bf16.msra.mxu0 %v4187
  %5063 = vmatprep.subr.bf16.mxu0 0
  %5064 = vmatpush2.bf16.msra.mxu0 0
  %5065 = vmatprep.subr.bf16.mxu0 0
  %5066 = vmatpush2.bf16.msra.mxu0 0
  %5067 = vmatprep.subr.bf16.mxu0 0
  %5068 = vmatpush2.bf16.msra.mxu0 0
  %5069 = vmatprep.subr.bf16.mxu0 0
  %5070 = vmatpush2.bf16.msra.mxu0 0
  %5071 = vmatprep.subr.bf16.mxu0 0
  %5072 = vmatpush2.bf16.msra.mxu0 0
  %5073 = vmatprep.subr.bf16.mxu0 0
  %5074 = vmatpush2.bf16.msra.mxu0 0
  %5075 = vmatprep.subr.bf16.mxu0 0
  %5076 = vmatpush2.bf16.msra.mxu0 0
  %5077 = vmatprep.subr.bf16.mxu0 0
  %5078 = vmatpush2.bf16.msra.mxu0 0
  %5079 = vmatprep.mubr.bf16.mxu0 0
  %5080 = vmatmul.mubr.bf16.gmra.mxu0 %v5003
  %v5081 = vpop.f32.mrf.mxu0
  %v5082 = vadd.f32 0.0, %v5081
  %v5083 = vpop.f32.mrf.mxu0
  %v5084 = vadd.f32 0.0, %v5083
  %v5085 = vpop.f32.mrf.mxu0
  %v5086 = vadd.f32 0.0, %v5085
  %v5087 = vpop.f32.mrf.mxu0
  %v5088 = vadd.f32 0.0, %v5087
  %5089 = vdwg.mxu0
  %v5090 = vadd.f32 %v4995, %v5039
  %v5091 = vadd.f32 %v4996, %v5041
  %v5092 = vadd.f32 %v4997, %v5082
  %v5093 = vadd.f32 %v4998, %v5084
  %v5094 = vadd.f32 %v4999, %v5043
  %v5095 = vadd.f32 %v5000, %v5045
  %v5096 = vadd.f32 %v5001, %v5086
  %v5097 = vadd.f32 %v5002, %v5088
  %v5098 = vxor.u32 %v5090, 2147483648
  %v5099 = vxor.u32 %v5094, 2147483648
  %v5100 = vmul.f32 %v5098, 1.442695
  %v5101 = vpow.pop %v5100
  %v5102 = vmul.f32 %v5099, 1.442695
  %v5103 = vpow.pop %v5102
  %v5104 = vadd.f32 %v5101, 1.0
  %v5105 = vadd.f32 %v5103, 1.0
  %v5106 = vrcp.pop %v5104
  %v5107 = vmul.f32 1.0, %v5106
  %v5108 = vrcp.pop %v5105
  %v5109 = vmul.f32 1.0, %v5108
  %v5110 = vxor.u32 %v5091, 2147483648
  %v5111 = vxor.u32 %v5095, 2147483648
  %v5112 = vmul.f32 %v5110, 1.442695
  %v5113 = vpow.pop %v5112
  %v5114 = vmul.f32 %v5111, 1.442695
  %v5115 = vpow.pop %v5114
  %v5116 = vadd.f32 %v5113, 1.0
  %v5117 = vadd.f32 %v5115, 1.0
  %v5118 = vrcp.pop %v5116
  %v5119 = vmul.f32 1.0, %v5118
  %v5120 = vrcp.pop %v5117
  %v5121 = vmul.f32 1.0, %v5120
  %v5122 = vtanh.pop %v5092
  %v5123 = vtanh.pop %v5096
  %v5124 = vxor.u32 %v5093, 2147483648
  %v5125 = vxor.u32 %v5097, 2147483648
  %v5126 = vmul.f32 %v5124, 1.442695
  %v5127 = vpow.pop %v5126
  %v5128 = vmul.f32 %v5125, 1.442695
  %v5129 = vpow.pop %v5128
  %v5130 = vadd.f32 %v5127, 1.0
  %v5131 = vadd.f32 %v5129, 1.0
  %v5132 = vrcp.pop %v5130
  %v5133 = vmul.f32 1.0, %v5132
  %v5134 = vrcp.pop %v5131
  %v5135 = vmul.f32 1.0, %v5134
  %v5136 = vmul.f32 %v5119, %v4989
  %v5137 = vmul.f32 %v5121, %v4990
  %v5138 = vmul.f32 %v5107, %v5122
  %v5139 = vmul.f32 %v5109, %v5123
  %v5140 = vadd.f32 %v5136, %v5138
  %v5141 = vadd.f32 %v5137, %v5139
  %v5142 = vtanh.pop %v5140
  %v5143 = vtanh.pop %v5141
  %v5144 = vmul.f32 %v5133, %v5142
  %v5145 = vmul.f32 %v5135, %v5143
  %v5146 = vld [vmem:[%s2764] sm:$0xff]
  %v5147 = vld [vmem:[%s2764 + $0x8] sm:$0xff]
  %v5148 = vld [vmem:[%s2764 + $0x10] sm:$0xff]
  %v5149 = vld [vmem:[%s2764 + $0x18] sm:$0xff]
  %v5150 = vld [vmem:[%s2764 + $0x20] sm:$0xff]
  %v5151 = vld [vmem:[%s2764 + $0x28] sm:$0xff]
  %v5152 = vld [vmem:[%s2764 + $0x30] sm:$0xff]
  %v5153 = vld [vmem:[%s2764 + $0x38] sm:$0xff]
  %v5154 = vpack.c.bf16 %v5145, %v5144
  %5155 = vmatprep.subr.bf16.mxu0 %v4214
  %5156 = vmatpush1.bf16.msra.mxu0 %v4213
  %5157 = vmatprep.subr.bf16.mxu0 %v4210
  %5158 = vmatpush1.bf16.msra.mxu0 %v4209
  %5159 = vmatprep.subr.bf16.mxu0 %v4206
  %5160 = vmatpush1.bf16.msra.mxu0 %v4205
  %5161 = vmatprep.subr.bf16.mxu0 %v4202
  %5162 = vmatpush1.bf16.msra.mxu0 %v4201
  %5163 = vmatprep.subr.bf16.mxu0 %v4198
  %5164 = vmatpush1.bf16.msra.mxu0 %v4197
  %5165 = vmatprep.subr.bf16.mxu0 %v4194
  %5166 = vmatpush1.bf16.msra.mxu0 %v4193
  %5167 = vmatprep.subr.bf16.mxu0 %v4190
  %5168 = vmatpush1.bf16.msra.mxu0 %v4189
  %5169 = vmatprep.subr.bf16.mxu0 %v4186
  %5170 = vmatpush1.bf16.msra.mxu0 %v4185
  %5171 = vmatprep.subr.bf16.mxu0 0
  %5172 = vmatpush2.bf16.msra.mxu0 0
  %5173 = vmatprep.subr.bf16.mxu0 0
  %5174 = vmatpush2.bf16.msra.mxu0 0
  %5175 = vmatprep.subr.bf16.mxu0 0
  %5176 = vmatpush2.bf16.msra.mxu0 0
  %5177 = vmatprep.subr.bf16.mxu0 0
  %5178 = vmatpush2.bf16.msra.mxu0 0
  %5179 = vmatprep.subr.bf16.mxu0 0
  %5180 = vmatpush2.bf16.msra.mxu0 0
  %5181 = vmatprep.subr.bf16.mxu0 0
  %5182 = vmatpush2.bf16.msra.mxu0 0
  %5183 = vmatprep.subr.bf16.mxu0 0
  %5184 = vmatpush2.bf16.msra.mxu0 0
  %5185 = vmatprep.subr.bf16.mxu0 0
  %5186 = vmatpush2.bf16.msra.mxu0 0
  %5187 = vmatprep.mubr.bf16.mxu0 0
  %5188 = vmatmul.mubr.bf16.gmra.mxu0 %v5154
  %v5189 = vpop.f32.mrf.mxu0
  %v5190 = vadd.f32 0.0, %v5189
  %v5191 = vpop.f32.mrf.mxu0
  %v5192 = vadd.f32 0.0, %v5191
  %v5193 = vpop.f32.mrf.mxu0
  %v5194 = vadd.f32 0.0, %v5193
  %v5195 = vpop.f32.mrf.mxu0
  %v5196 = vadd.f32 0.0, %v5195
  %5197 = vdwg.mxu0
  %5198 = vmatprep.subr.bf16.mxu0 %v4216
  %5199 = vmatpush1.bf16.msra.mxu0 %v4215
  %5200 = vmatprep.subr.bf16.mxu0 %v4212
  %5201 = vmatpush1.bf16.msra.mxu0 %v4211
  %5202 = vmatprep.subr.bf16.mxu0 %v4208
  %5203 = vmatpush1.bf16.msra.mxu0 %v4207
  %5204 = vmatprep.subr.bf16.mxu0 %v4204
  %5205 = vmatpush1.bf16.msra.mxu0 %v4203
  %5206 = vmatprep.subr.bf16.mxu0 %v4200
  %5207 = vmatpush1.bf16.msra.mxu0 %v4199
  %5208 = vmatprep.subr.bf16.mxu0 %v4196
  %5209 = vmatpush1.bf16.msra.mxu0 %v4195
  %5210 = vmatprep.subr.bf16.mxu0 %v4192
  %5211 = vmatpush1.bf16.msra.mxu0 %v4191
  %5212 = vmatprep.subr.bf16.mxu0 %v4188
  %5213 = vmatpush1.bf16.msra.mxu0 %v4187
  %5214 = vmatprep.subr.bf16.mxu0 0
  %5215 = vmatpush2.bf16.msra.mxu0 0
  %5216 = vmatprep.subr.bf16.mxu0 0
  %5217 = vmatpush2.bf16.msra.mxu0 0
  %5218 = vmatprep.subr.bf16.mxu0 0
  %5219 = vmatpush2.bf16.msra.mxu0 0
  %5220 = vmatprep.subr.bf16.mxu0 0
  %5221 = vmatpush2.bf16.msra.mxu0 0
  %5222 = vmatprep.subr.bf16.mxu0 0
  %5223 = vmatpush2.bf16.msra.mxu0 0
  %5224 = vmatprep.subr.bf16.mxu0 0
  %5225 = vmatpush2.bf16.msra.mxu0 0
  %5226 = vmatprep.subr.bf16.mxu0 0
  %5227 = vmatpush2.bf16.msra.mxu0 0
  %5228 = vmatprep.subr.bf16.mxu0 0
  %5229 = vmatpush2.bf16.msra.mxu0 0
  %5230 = vmatprep.mubr.bf16.mxu0 0
  %5231 = vmatmul.mubr.bf16.gmra.mxu0 %v5154
  %v5232 = vpop.f32.mrf.mxu0
  %v5233 = vadd.f32 0.0, %v5232
  %v5234 = vpop.f32.mrf.mxu0
  %v5235 = vadd.f32 0.0, %v5234
  %v5236 = vpop.f32.mrf.mxu0
  %v5237 = vadd.f32 0.0, %v5236
  %v5238 = vpop.f32.mrf.mxu0
  %v5239 = vadd.f32 0.0, %v5238
  %5240 = vdwg.mxu0
  %v5241 = vadd.f32 %v5146, %v5190
  %v5242 = vadd.f32 %v5147, %v5192
  %v5243 = vadd.f32 %v5148, %v5233
  %v5244 = vadd.f32 %v5149, %v5235
  %v5245 = vadd.f32 %v5150, %v5194
  %v5246 = vadd.f32 %v5151, %v5196
  %v5247 = vadd.f32 %v5152, %v5237
  %v5248 = vadd.f32 %v5153, %v5239
  %v5249 = vxor.u32 %v5241, 2147483648
  %v5250 = vxor.u32 %v5245, 2147483648
  %v5251 = vmul.f32 %v5249, 1.442695
  %v5252 = vpow.pop %v5251
  %v5253 = vmul.f32 %v5250, 1.442695
  %v5254 = vpow.pop %v5253
  %v5255 = vadd.f32 %v5252, 1.0
  %v5256 = vadd.f32 %v5254, 1.0
  %v5257 = vrcp.pop %v5255
  %v5258 = vmul.f32 1.0, %v5257
  %v5259 = vrcp.pop %v5256
  %v5260 = vmul.f32 1.0, %v5259
  %v5261 = vxor.u32 %v5242, 2147483648
  %v5262 = vxor.u32 %v5246, 2147483648
  %v5263 = vmul.f32 %v5261, 1.442695
  %v5264 = vpow.pop %v5263
  %v5265 = vmul.f32 %v5262, 1.442695
  %v5266 = vpow.pop %v5265
  %v5267 = vadd.f32 %v5264, 1.0
  %v5268 = vadd.f32 %v5266, 1.0
  %v5269 = vrcp.pop %v5267
  %v5270 = vmul.f32 1.0, %v5269
  %v5271 = vrcp.pop %v5268
  %v5272 = vmul.f32 1.0, %v5271
  %v5273 = vtanh.pop %v5243
  %v5274 = vtanh.pop %v5247
  %v5275 = vxor.u32 %v5244, 2147483648
  %v5276 = vxor.u32 %v5248, 2147483648
  %v5277 = vmul.f32 %v5275, 1.442695
  %v5278 = vpow.pop %v5277
  %v5279 = vmul.f32 %v5276, 1.442695
  %v5280 = vpow.pop %v5279
  %v5281 = vadd.f32 %v5278, 1.0
  %v5282 = vadd.f32 %v5280, 1.0
  %v5283 = vrcp.pop %v5281
  %v5284 = vmul.f32 1.0, %v5283
  %v5285 = vrcp.pop %v5282
  %v5286 = vmul.f32 1.0, %v5285
  %v5287 = vmul.f32 %v5270, %v5140
  %v5288 = vmul.f32 %v5272, %v5141
  %v5289 = vmul.f32 %v5258, %v5273
  %v5290 = vmul.f32 %v5260, %v5274
  %v5291 = vadd.f32 %v5287, %v5289
  %v5292 = vadd.f32 %v5288, %v5290
  %v5293 = vtanh.pop %v5291
  %v5294 = vtanh.pop %v5292
  %v5295 = vmul.f32 %v5284, %v5293
  %v5296 = vmul.f32 %v5286, %v5294
  %v5297 = vld [vmem:[%s3120] sm:$0xff]
  %v5298 = vld [vmem:[%s3120 + $0x8] sm:$0xff]
  %v5299 = vld [vmem:[%s3120 + $0x10] sm:$0xff]
  %v5300 = vld [vmem:[%s3120 + $0x18] sm:$0xff]
  %v5301 = vld [vmem:[%s3120 + $0x20] sm:$0xff]
  %v5302 = vld [vmem:[%s3120 + $0x28] sm:$0xff]
  %v5303 = vld [vmem:[%s3120 + $0x30] sm:$0xff]
  %v5304 = vld [vmem:[%s3120 + $0x38] sm:$0xff]
  %v5305 = vpack.c.bf16 %v5296, %v5295
  %5306 = vmatprep.subr.bf16.mxu0 %v4214
  %5307 = vmatpush1.bf16.msra.mxu0 %v4213
  %5308 = vmatprep.subr.bf16.mxu0 %v4210
  %5309 = vmatpush1.bf16.msra.mxu0 %v4209
  %5310 = vmatprep.subr.bf16.mxu0 %v4206
  %5311 = vmatpush1.bf16.msra.mxu0 %v4205
  %5312 = vmatprep.subr.bf16.mxu0 %v4202
  %5313 = vmatpush1.bf16.msra.mxu0 %v4201
  %5314 = vmatprep.subr.bf16.mxu0 %v4198
  %5315 = vmatpush1.bf16.msra.mxu0 %v4197
  %5316 = vmatprep.subr.bf16.mxu0 %v4194
  %5317 = vmatpush1.bf16.msra.mxu0 %v4193
  %5318 = vmatprep.subr.bf16.mxu0 %v4190
  %5319 = vmatpush1.bf16.msra.mxu0 %v4189
  %5320 = vmatprep.subr.bf16.mxu0 %v4186
  %5321 = vmatpush1.bf16.msra.mxu0 %v4185
  %5322 = vmatprep.subr.bf16.mxu0 0
  %5323 = vmatpush2.bf16.msra.mxu0 0
  %5324 = vmatprep.subr.bf16.mxu0 0
  %5325 = vmatpush2.bf16.msra.mxu0 0
  %5326 = vmatprep.subr.bf16.mxu0 0
  %5327 = vmatpush2.bf16.msra.mxu0 0
  %5328 = vmatprep.subr.bf16.mxu0 0
  %5329 = vmatpush2.bf16.msra.mxu0 0
  %5330 = vmatprep.subr.bf16.mxu0 0
  %5331 = vmatpush2.bf16.msra.mxu0 0
  %5332 = vmatprep.subr.bf16.mxu0 0
  %5333 = vmatpush2.bf16.msra.mxu0 0
  %5334 = vmatprep.subr.bf16.mxu0 0
  %5335 = vmatpush2.bf16.msra.mxu0 0
  %5336 = vmatprep.subr.bf16.mxu0 0
  %5337 = vmatpush2.bf16.msra.mxu0 0
  %5338 = vmatprep.mubr.bf16.mxu0 0
  %5339 = vmatmul.mubr.bf16.gmra.mxu0 %v5305
  %v5340 = vpop.f32.mrf.mxu0
  %v5341 = vadd.f32 0.0, %v5340
  %v5342 = vpop.f32.mrf.mxu0
  %v5343 = vadd.f32 0.0, %v5342
  %v5344 = vpop.f32.mrf.mxu0
  %v5345 = vadd.f32 0.0, %v5344
  %v5346 = vpop.f32.mrf.mxu0
  %v5347 = vadd.f32 0.0, %v5346
  %5348 = vdwg.mxu0
  %5349 = vmatprep.subr.bf16.mxu0 %v4216
  %5350 = vmatpush1.bf16.msra.mxu0 %v4215
  %5351 = vmatprep.subr.bf16.mxu0 %v4212
  %5352 = vmatpush1.bf16.msra.mxu0 %v4211
  %5353 = vmatprep.subr.bf16.mxu0 %v4208
  %5354 = vmatpush1.bf16.msra.mxu0 %v4207
  %5355 = vmatprep.subr.bf16.mxu0 %v4204
  %5356 = vmatpush1.bf16.msra.mxu0 %v4203
  %5357 = vmatprep.subr.bf16.mxu0 %v4200
  %5358 = vmatpush1.bf16.msra.mxu0 %v4199
  %5359 = vmatprep.subr.bf16.mxu0 %v4196
  %5360 = vmatpush1.bf16.msra.mxu0 %v4195
  %5361 = vmatprep.subr.bf16.mxu0 %v4192
  %5362 = vmatpush1.bf16.msra.mxu0 %v4191
  %5363 = vmatprep.subr.bf16.mxu0 %v4188
  %5364 = vmatpush1.bf16.msra.mxu0 %v4187
  %5365 = vmatprep.subr.bf16.mxu0 0
  %5366 = vmatpush2.bf16.msra.mxu0 0
  %5367 = vmatprep.subr.bf16.mxu0 0
  %5368 = vmatpush2.bf16.msra.mxu0 0
  %5369 = vmatprep.subr.bf16.mxu0 0
  %5370 = vmatpush2.bf16.msra.mxu0 0
  %5371 = vmatprep.subr.bf16.mxu0 0
  %5372 = vmatpush2.bf16.msra.mxu0 0
  %5373 = vmatprep.subr.bf16.mxu0 0
  %5374 = vmatpush2.bf16.msra.mxu0 0
  %5375 = vmatprep.subr.bf16.mxu0 0
  %5376 = vmatpush2.bf16.msra.mxu0 0
  %5377 = vmatprep.subr.bf16.mxu0 0
  %5378 = vmatpush2.bf16.msra.mxu0 0
  %5379 = vmatprep.subr.bf16.mxu0 0
  %5380 = vmatpush2.bf16.msra.mxu0 0
  %5381 = vmatprep.mubr.bf16.mxu0 0
  %5382 = vmatmul.mubr.bf16.gmra.mxu0 %v5305
  %v5383 = vpop.f32.mrf.mxu0
  %v5384 = vadd.f32 0.0, %v5383
  %v5385 = vpop.f32.mrf.mxu0
  %v5386 = vadd.f32 0.0, %v5385
  %v5387 = vpop.f32.mrf.mxu0
  %v5388 = vadd.f32 0.0, %v5387
  %v5389 = vpop.f32.mrf.mxu0
  %v5390 = vadd.f32 0.0, %v5389
  %5391 = vdwg.mxu0
  %v5392 = vadd.f32 %v5297, %v5341
  %v5393 = vadd.f32 %v5298, %v5343
  %v5394 = vadd.f32 %v5299, %v5384
  %v5395 = vadd.f32 %v5300, %v5386
  %v5396 = vadd.f32 %v5301, %v5345
  %v5397 = vadd.f32 %v5302, %v5347
  %v5398 = vadd.f32 %v5303, %v5388
  %v5399 = vadd.f32 %v5304, %v5390
  %v5400 = vxor.u32 %v5392, 2147483648
  %v5401 = vxor.u32 %v5396, 2147483648
  %v5402 = vmul.f32 %v5400, 1.442695
  %v5403 = vpow.pop %v5402
  %v5404 = vmul.f32 %v5401, 1.442695
  %v5405 = vpow.pop %v5404
  %v5406 = vadd.f32 %v5403, 1.0
  %v5407 = vadd.f32 %v5405, 1.0
  %v5408 = vrcp.pop %v5406
  %v5409 = vmul.f32 1.0, %v5408
  %v5410 = vrcp.pop %v5407
  %v5411 = vmul.f32 1.0, %v5410
  %v5412 = vxor.u32 %v5393, 2147483648
  %v5413 = vxor.u32 %v5397, 2147483648
  %v5414 = vmul.f32 %v5412, 1.442695
  %v5415 = vpow.pop %v5414
  %v5416 = vmul.f32 %v5413, 1.442695
  %v5417 = vpow.pop %v5416
  %v5418 = vadd.f32 %v5415, 1.0
  %v5419 = vadd.f32 %v5417, 1.0
  %v5420 = vrcp.pop %v5418
  %v5421 = vmul.f32 1.0, %v5420
  %v5422 = vrcp.pop %v5419
  %v5423 = vmul.f32 1.0, %v5422
  %v5424 = vtanh.pop %v5394
  %v5425 = vtanh.pop %v5398
  %v5426 = vxor.u32 %v5395, 2147483648
  %v5427 = vxor.u32 %v5399, 2147483648
  %v5428 = vmul.f32 %v5426, 1.442695
  %v5429 = vpow.pop %v5428
  %v5430 = vmul.f32 %v5427, 1.442695
  %v5431 = vpow.pop %v5430
  %v5432 = vadd.f32 %v5429, 1.0
  %v5433 = vadd.f32 %v5431, 1.0
  %v5434 = vrcp.pop %v5432
  %v5435 = vmul.f32 1.0, %v5434
  %v5436 = vrcp.pop %v5433
  %v5437 = vmul.f32 1.0, %v5436
  %v5438 = vmul.f32 %v5421, %v5291
  %v5439 = vmul.f32 %v5423, %v5292
  %v5440 = vmul.f32 %v5409, %v5424
  %v5441 = vmul.f32 %v5411, %v5425
  %v5442 = vadd.f32 %v5438, %v5440
  %v5443 = vadd.f32 %v5439, %v5441
  %v5444 = vtanh.pop %v5442
  %v5445 = vtanh.pop %v5443
  %v5446 = vmul.f32 %v5435, %v5444
  %v5447 = vmul.f32 %v5437, %v5445
  %v5448 = vpack.c.bf16 %v5447, %v5446
  %v5449 = vld [vmem:[%s9] sm:$0xff]
  %v5450 = vld [vmem:[%s9 + $0x8] sm:$0xff]
  %v5451 = vld [vmem:[%s9 + $0x10] sm:$0xff]
  %v5452 = vld [vmem:[%s9 + $0x18] sm:$0xff]
  %v5453 = vld [vmem:[%s9 + $0x20] sm:$0xff]
  %v5454 = vld [vmem:[%s9 + $0x28] sm:$0xff]
  %v5455 = vld [vmem:[%s9 + $0x30] sm:$0xff]
  %v5456 = vld [vmem:[%s9 + $0x38] sm:$0xff]
  %v5457 = vld [vmem:[%s9 + $0x40] sm:$0xff]
  %v5458 = vld [vmem:[%s9 + $0x48] sm:$0xff]
  %v5459 = vld [vmem:[%s9 + $0x50] sm:$0xff]
  %v5460 = vld [vmem:[%s9 + $0x58] sm:$0xff]
  %v5461 = vld [vmem:[%s9 + $0x60] sm:$0xff]
  %v5462 = vld [vmem:[%s9 + $0x68] sm:$0xff]
  %v5463 = vld [vmem:[%s9 + $0x70] sm:$0xff]
  %v5464 = vld [vmem:[%s9 + $0x78] sm:$0xff]
  %v5465 = vld [vmem:[%s10] sm:$0x3]
  %v5467 = vlaneseq
  %v5468 = vshrl.u32 %v5467, 7
  %v5469 = vsub.s32 0, %v5468
  %v5470 = vrot.slane %v5465, %v5469
  %v5471 = vlaneseq
  %v5472 = vshrl.u32 %v5471, 7
  %v5473 = vsub.s32 1, %v5472
  %v5474 = vrot.slane %v5465, %v5473
  %v5493 = vunpack.c.l.b16 %v5449
  %v5494 = vunpack.c.h.b16 %v5449
  %v5495 = vunpack.c.l.b16 %v5450
  %v5496 = vunpack.c.h.b16 %v5450
  %v5497 = vunpack.c.l.b16 %v5451
  %v5498 = vunpack.c.h.b16 %v5451
  %v5499 = vunpack.c.l.b16 %v5452
  %v5500 = vunpack.c.h.b16 %v5452
  %v5501 = vunpack.c.l.b16 %v5453
  %v5502 = vunpack.c.h.b16 %v5453
  %v5503 = vunpack.c.l.b16 %v5454
  %v5504 = vunpack.c.h.b16 %v5454
  %v5505 = vunpack.c.l.b16 %v5455
  %v5506 = vunpack.c.h.b16 %v5455
  %v5507 = vunpack.c.l.b16 %v5456
  %v5508 = vunpack.c.h.b16 %v5456
  %v5509 = vunpack.c.l.b16 %v5457
  %v5510 = vunpack.c.h.b16 %v5457
  %v5511 = vunpack.c.l.b16 %v5458
  %v5512 = vunpack.c.h.b16 %v5458
  %v5513 = vunpack.c.l.b16 %v5459
  %v5514 = vunpack.c.h.b16 %v5459
  %v5515 = vunpack.c.l.b16 %v5460
  %v5516 = vunpack.c.h.b16 %v5460
  %v5517 = vunpack.c.l.b16 %v5461
  %v5518 = vunpack.c.h.b16 %v5461
  %v5519 = vunpack.c.l.b16 %v5462
  %v5520 = vunpack.c.h.b16 %v5462
  %v5521 = vunpack.c.l.b16 %v5463
  %v5522 = vunpack.c.h.b16 %v5463
  %v5523 = vunpack.c.l.b16 %v5464
  %v5524 = vunpack.c.h.b16 %v5464
  %v5525 = vpack.c.b16 %v5495, %v5493
  %v5526 = vpack.c.b16 %v5496, %v5494
  %v5527 = vpack.c.b16 %v5499, %v5497
  %v5528 = vpack.c.b16 %v5500, %v5498
  %v5529 = vpack.c.b16 %v5503, %v5501
  %v5530 = vpack.c.b16 %v5504, %v5502
  %v5531 = vpack.c.b16 %v5507, %v5505
  %v5532 = vpack.c.b16 %v5508, %v5506
  %v5533 = vpack.c.b16 %v5511, %v5509
  %v5534 = vpack.c.b16 %v5512, %v5510
  %v5535 = vpack.c.b16 %v5515, %v5513
  %v5536 = vpack.c.b16 %v5516, %v5514
  %v5537 = vpack.c.b16 %v5519, %v5517
  %v5538 = vpack.c.b16 %v5520, %v5518
  %v5539 = vpack.c.b16 %v5523, %v5521
  %v5540 = vpack.c.b16 %v5524, %v5522
  %5557 = vmatprep.subr.bf16.mxu0 %v5540
  %5558 = vmatpush1.bf16.msra.mxu0 %v5539
  %5559 = vmatprep.subr.bf16.mxu0 %v5538
  %5560 = vmatpush1.bf16.msra.mxu0 %v5537
  %5561 = vmatprep.subr.bf16.mxu0 %v5536
  %5562 = vmatpush1.bf16.msra.mxu0 %v5535
  %5563 = vmatprep.subr.bf16.mxu0 %v5534
  %5564 = vmatpush1.bf16.msra.mxu0 %v5533
  %5565 = vmatprep.subr.bf16.mxu0 %v5532
  %5566 = vmatpush1.bf16.msra.mxu0 %v5531
  %5567 = vmatprep.subr.bf16.mxu0 %v5530
  %5568 = vmatpush1.bf16.msra.mxu0 %v5529
  %5569 = vmatprep.subr.bf16.mxu0 %v5528
  %5570 = vmatpush1.bf16.msra.mxu0 %v5527
  %5571 = vmatprep.subr.bf16.mxu0 %v5526
  %5572 = vmatpush1.bf16.msra.mxu0 %v5525
  %5573 = vmatprep.subr.bf16.mxu0 0
  %5574 = vmatpush2.bf16.msra.mxu0 0
  %5575 = vmatprep.subr.bf16.mxu0 0
  %5576 = vmatpush2.bf16.msra.mxu0 0
  %5577 = vmatprep.subr.bf16.mxu0 0
  %5578 = vmatpush2.bf16.msra.mxu0 0
  %5579 = vmatprep.subr.bf16.mxu0 0
  %5580 = vmatpush2.bf16.msra.mxu0 0
  %5581 = vmatprep.subr.bf16.mxu0 0
  %5582 = vmatpush2.bf16.msra.mxu0 0
  %5583 = vmatprep.subr.bf16.mxu0 0
  %5584 = vmatpush2.bf16.msra.mxu0 0
  %5585 = vmatprep.subr.bf16.mxu0 0
  %5586 = vmatpush2.bf16.msra.mxu0 0
  %5587 = vmatprep.subr.bf16.mxu0 0
  %5588 = vmatpush2.bf16.msra.mxu0 0
  %5589 = vmatprep.mubr.bf16.mxu0 0
  %5590 = vmatmul.mubr.bf16.gmra.mxu0 %v5448
  %v5591 = vpop.f32.mrf.mxu0
  %v5592 = vadd.f32 %v5470, %v5591
  %v5593 = vpop.f32.mrf.mxu0
  %v5594 = vadd.f32 %v5474, %v5593
  %v5595 = vpop.f32.mrf.mxu0
  %v5596 = vadd.f32 %v5470, %v5595
  %v5597 = vpop.f32.mrf.mxu0
  %v5598 = vadd.f32 %v5474, %v5597
  %5599 = vdwg.mxu0
  %v5600 = vtanh.pop %v5592
  %v5601 = vtanh.pop %v5596
  %v5602 = vtanh.pop %v5594
  %v5603 = vtanh.pop %v5598
  %5604 = vst [vmem:[%s17] sm:$0xff] %v5602
  %5605 = vst [vmem:[%s17 + $0x8] sm:$0xff] %v5603
  %v5606 = vpack.c.bf16 %v5601, %v5600
  %v5607 = vld [vmem:[%s11] sm:$0xf]
  %v5608 = vld [vmem:[%s11 + $0x4] sm:$0xf]
  %v5609 = vld [vmem:[%s11 + $0x8] sm:$0xf]
  %v5610 = vld [vmem:[%s11 + $0xc] sm:$0xf]
  %v5611 = vld [vmem:[%s11 + $0x10] sm:$0xf]
  %v5612 = vld [vmem:[%s11 + $0x14] sm:$0xf]
  %v5613 = vld [vmem:[%s11 + $0x18] sm:$0xf]
  %v5614 = vld [vmem:[%s11 + $0x1c] sm:$0xf]
  %v5615 = vld [vmem:[%s11 + $0x20] sm:$0xf]
  %v5616 = vld [vmem:[%s11 + $0x24] sm:$0xf]
  %v5617 = vld [vmem:[%s11 + $0x28] sm:$0xf]
  %v5618 = vld [vmem:[%s11 + $0x2c] sm:$0xf]
  %v5619 = vld [vmem:[%s11 + $0x30] sm:$0xf]
  %v5620 = vld [vmem:[%s11 + $0x34] sm:$0xf]
  %v5621 = vld [vmem:[%s11 + $0x38] sm:$0xf]
  %v5622 = vld [vmem:[%s11 + $0x3c] sm:$0xf]
  %v5623 = vld [vmem:[%s12] sm:$0x1]
  %v5625 = vlaneseq
  %v5626 = vshrl.u32 %v5625, 7
  %v5627 = vsub.s32 0, %v5626
  %v5628 = vrot.slane %v5623, %v5627
  %v5646 = vunpack.c.l.b16 %v5607
  %v5647 = vunpack.c.l.b16 %v5608
  %v5648 = vunpack.c.l.b16 %v5609
  %v5649 = vunpack.c.l.b16 %v5610
  %v5650 = vunpack.c.l.b16 %v5611
  %v5651 = vunpack.c.l.b16 %v5612
  %v5652 = vunpack.c.l.b16 %v5613
  %v5653 = vunpack.c.l.b16 %v5614
  %v5654 = vunpack.c.l.b16 %v5615
  %v5655 = vunpack.c.l.b16 %v5616
  %v5656 = vunpack.c.l.b16 %v5617
  %v5657 = vunpack.c.l.b16 %v5618
  %v5658 = vunpack.c.l.b16 %v5619
  %v5659 = vunpack.c.l.b16 %v5620
  %v5660 = vunpack.c.l.b16 %v5621
  %v5661 = vunpack.c.l.b16 %v5622
  %v5662 = vpack.c.b16 %v5647, %v5646
  %v5663 = vpack.c.b16 %v5649, %v5648
  %v5664 = vpack.c.b16 %v5651, %v5650
  %v5665 = vpack.c.b16 %v5653, %v5652
  %v5666 = vpack.c.b16 %v5655, %v5654
  %v5667 = vpack.c.b16 %v5657, %v5656
  %v5668 = vpack.c.b16 %v5659, %v5658
  %v5669 = vpack.c.b16 %v5661, %v5660
  %5678 = vmatprep.subr.bf16.mxu0 0
  %5679 = vmatpush1.bf16.msra.mxu0 %v5669
  %5680 = vmatprep.subr.bf16.mxu0 0
  %5681 = vmatpush1.bf16.msra.mxu0 %v5668
  %5682 = vmatprep.subr.bf16.mxu0 0
  %5683 = vmatpush1.bf16.msra.mxu0 %v5667
  %5684 = vmatprep.subr.bf16.mxu0 0
  %5685 = vmatpush1.bf16.msra.mxu0 %v5666
  %5686 = vmatprep.subr.bf16.mxu0 0
  %5687 = vmatpush1.bf16.msra.mxu0 %v5665
  %5688 = vmatprep.subr.bf16.mxu0 0
  %5689 = vmatpush1.bf16.msra.mxu0 %v5664
  %5690 = vmatprep.subr.bf16.mxu0 0
  %5691 = vmatpush1.bf16.msra.mxu0 %v5663
  %5692 = vmatprep.subr.bf16.mxu0 0
  %5693 = vmatpush1.bf16.msra.mxu0 %v5662
  %5694 = vmatprep.subr.bf16.mxu0 0
  %5695 = vmatpush2.bf16.msra.mxu0 0
  %5696 = vmatprep.subr.bf16.mxu0 0
  %5697 = vmatpush2.bf16.msra.mxu0 0
  %5698 = vmatprep.subr.bf16.mxu0 0
  %5699 = vmatpush2.bf16.msra.mxu0 0
  %5700 = vmatprep.subr.bf16.mxu0 0
  %5701 = vmatpush2.bf16.msra.mxu0 0
  %5702 = vmatprep.subr.bf16.mxu0 0
  %5703 = vmatpush2.bf16.msra.mxu0 0
  %5704 = vmatprep.subr.bf16.mxu0 0
  %5705 = vmatpush2.bf16.msra.mxu0 0
  %5706 = vmatprep.subr.bf16.mxu0 0
  %5707 = vmatpush2.bf16.msra.mxu0 0
  %5708 = vmatprep.subr.bf16.mxu0 0
  %5709 = vmatpush2.bf16.msra.mxu0 0
  %5710 = vmatprep.mubr.bf16.mxu0 0
  %5711 = vmatmul.mubr.bf16.gmra.mxu0 %v5606
  %v5712 = vpop.f32.mrf.mxu0
  %v5713 = vadd.f32 %v5628, %v5712
  %v5714 = vpop.f32.mrf.mxu0
  %v5715 = vpop.f32.mrf.mxu0
  %v5716 = vadd.f32 %v5628, %v5715
  %v5717 = vpop.f32.mrf.mxu0
  %5718 = vdwg.mxu0
  %5719 = vst [vmem:[%s15] sm:$0xff] %v5713
  %5720 = vst [vmem:[%s15 + $0x8] sm:$0xff] %v5716
  %v5721 = vpack.c.bf16 %v5603, %v5602
  %v5722 = vld [vmem:[%s13] sm:$0xf]
  %v5723 = vld [vmem:[%s13 + $0x4] sm:$0xf]
  %v5724 = vld [vmem:[%s13 + $0x8] sm:$0xf]
  %v5725 = vld [vmem:[%s13 + $0xc] sm:$0xf]
  %v5726 = vld [vmem:[%s13 + $0x10] sm:$0xf]
  %v5727 = vld [vmem:[%s13 + $0x14] sm:$0xf]
  %v5728 = vld [vmem:[%s13 + $0x18] sm:$0xf]
  %v5729 = vld [vmem:[%s13 + $0x1c] sm:$0xf]
  %v5730 = vld [vmem:[%s13 + $0x20] sm:$0xf]
  %v5731 = vld [vmem:[%s13 + $0x24] sm:$0xf]
  %v5732 = vld [vmem:[%s13 + $0x28] sm:$0xf]
  %v5733 = vld [vmem:[%s13 + $0x2c] sm:$0xf]
  %v5734 = vld [vmem:[%s13 + $0x30] sm:$0xf]
  %v5735 = vld [vmem:[%s13 + $0x34] sm:$0xf]
  %v5736 = vld [vmem:[%s13 + $0x38] sm:$0xf]
  %v5737 = vld [vmem:[%s13 + $0x3c] sm:$0xf]
  %v5738 = vld [vmem:[%s14] sm:$0x1]
  %v5740 = vlaneseq
  %v5741 = vshrl.u32 %v5740, 7
  %v5742 = vsub.s32 0, %v5741
  %v5743 = vrot.slane %v5738, %v5742
  %v5761 = vunpack.c.l.b16 %v5722
  %v5762 = vunpack.c.l.b16 %v5723
  %v5763 = vunpack.c.l.b16 %v5724
  %v5764 = vunpack.c.l.b16 %v5725
  %v5765 = vunpack.c.l.b16 %v5726
  %v5766 = vunpack.c.l.b16 %v5727
  %v5767 = vunpack.c.l.b16 %v5728
  %v5768 = vunpack.c.l.b16 %v5729
  %v5769 = vunpack.c.l.b16 %v5730
  %v5770 = vunpack.c.l.b16 %v5731
  %v5771 = vunpack.c.l.b16 %v5732
  %v5772 = vunpack.c.l.b16 %v5733
  %v5773 = vunpack.c.l.b16 %v5734
  %v5774 = vunpack.c.l.b16 %v5735
  %v5775 = vunpack.c.l.b16 %v5736
  %v5776 = vunpack.c.l.b16 %v5737
  %v5777 = vpack.c.b16 %v5762, %v5761
  %v5778 = vpack.c.b16 %v5764, %v5763
  %v5779 = vpack.c.b16 %v5766, %v5765
  %v5780 = vpack.c.b16 %v5768, %v5767
  %v5781 = vpack.c.b16 %v5770, %v5769
  %v5782 = vpack.c.b16 %v5772, %v5771
  %v5783 = vpack.c.b16 %v5774, %v5773
  %v5784 = vpack.c.b16 %v5776, %v5775
  %5793 = vmatprep.subr.bf16.mxu0 0
  %5794 = vmatpush1.bf16.msra.mxu0 %v5784
  %5795 = vmatprep.subr.bf16.mxu0 0
  %5796 = vmatpush1.bf16.msra.mxu0 %v5783
  %5797 = vmatprep.subr.bf16.mxu0 0
  %5798 = vmatpush1.bf16.msra.mxu0 %v5782
  %5799 = vmatprep.subr.bf16.mxu0 0
  %5800 = vmatpush1.bf16.msra.mxu0 %v5781
  %5801 = vmatprep.subr.bf16.mxu0 0
  %5802 = vmatpush1.bf16.msra.mxu0 %v5780
  %5803 = vmatprep.subr.bf16.mxu0 0
  %5804 = vmatpush1.bf16.msra.mxu0 %v5779
  %5805 = vmatprep.subr.bf16.mxu0 0
  %5806 = vmatpush1.bf16.msra.mxu0 %v5778
  %5807 = vmatprep.subr.bf16.mxu0 0
  %5808 = vmatpush1.bf16.msra.mxu0 %v5777
  %5809 = vmatprep.subr.bf16.mxu0 0
  %5810 = vmatpush2.bf16.msra.mxu0 0
  %5811 = vmatprep.subr.bf16.mxu0 0
  %5812 = vmatpush2.bf16.msra.mxu0 0
  %5813 = vmatprep.subr.bf16.mxu0 0
  %5814 = vmatpush2.bf16.msra.mxu0 0
  %5815 = vmatprep.subr.bf16.mxu0 0
  %5816 = vmatpush2.bf16.msra.mxu0 0
  %5817 = vmatprep.subr.bf16.mxu0 0
  %5818 = vmatpush2.bf16.msra.mxu0 0
  %5819 = vmatprep.subr.bf16.mxu0 0
  %5820 = vmatpush2.bf16.msra.mxu0 0
  %5821 = vmatprep.subr.bf16.mxu0 0
  %5822 = vmatpush2.bf16.msra.mxu0 0
  %5823 = vmatprep.subr.bf16.mxu0 0
  %5824 = vmatpush2.bf16.msra.mxu0 0
  %5825 = vmatprep.mubr.bf16.mxu0 0
  %5826 = vmatmul.mubr.bf16.gmra.mxu0 %v5721
  %v5827 = vpop.f32.mrf.mxu0
  %v5828 = vadd.f32 %v5743, %v5827
  %v5829 = vpop.f32.mrf.mxu0
  %v5830 = vpop.f32.mrf.mxu0
  %v5831 = vadd.f32 %v5743, %v5830
  %v5832 = vpop.f32.mrf.mxu0
  %5833 = vdwg.mxu0
  %5834 = vst [vmem:[%s16] sm:$0xff] %v5828
  %5835 = vst [vmem:[%s16 + $0x8] sm:$0xff] %v5831
  // Predicated region
  $region62: #{lstm_multitask_forward.1} parent=0 // pred_check
    _
  $region63: #{lstm_multitask_forward.1} parent=0 // pred_check_branch
    %5837 = sbr.rel (0) target = $region65
  $region64: #{lstm_multitask_forward.1} parent=0 // pred_region
    _
  $region65: #{lstm_multitask_forward.1} parent=0 // pred_fallthru
    _
  // Predicated region
  $region66: #{lstm_multitask_forward.1} parent=0 // pred_check
    _
  $region67: #{lstm_multitask_forward.1} parent=0 // pred_check_branch
    %5839 = sbr.rel (0) target = $region69
  $region68: #{lstm_multitask_forward.1} parent=0 // pred_region
    _
  $region69: #{lstm_multitask_forward.1} parent=0 // pred_fallthru
    _
  // Predicated region
  $region70: #{lstm_multitask_forward.1} parent=0 // pred_check
    _
  $region71: #{lstm_multitask_forward.1} parent=0 // pred_check_branch
    %5841 = sbr.rel (0) target = $region73
  $region72: #{lstm_multitask_forward.1} parent=0 // pred_region
    _
  $region73: #{lstm_multitask_forward.1} parent=0 // pred_fallthru
    _
  // Predicated region
  $region74: #{lstm_multitask_forward.1} parent=0 // pred_check
    _
  $region75: #{lstm_multitask_forward.1} parent=0 // pred_check_branch
    %5843 = sbr.rel (0) target = $region77
  $region76: #{lstm_multitask_forward.1} parent=0 // pred_region
    _
  $region77: #{lstm_multitask_forward.1} parent=0 // pred_fallthru
    _
  // Predicated region
  $region78: #{lstm_multitask_forward.1} parent=0 // pred_check
    _
  $region79: #{lstm_multitask_forward.1} parent=0 // pred_check_branch
    %5845 = sbr.rel (0) target = $region81
  $region80: #{lstm_multitask_forward.1} parent=0 // pred_region
    _
  $region81: #{lstm_multitask_forward.1} parent=0 // pred_fallthru
    _
  // Predicated region
  $region82: #{lstm_multitask_forward.1} parent=0 // pred_check
    _
  $region83: #{lstm_multitask_forward.1} parent=0 // pred_check_branch
    %5847 = sbr.rel (0) target = $region85
  $region84: #{lstm_multitask_forward.1} parent=0 // pred_region
    _
  $region85: #{lstm_multitask_forward.1} parent=0 // pred_fallthru
    _

</llo_original>
